<compile_context>
chip_gen: v6e
topology: v6e:2x2x1
jax: 0.10.0
libtpu: 0.0.40
codegen_flags: <defaults>
</compile_context>

<pallas_src>
import math

import jax
import jax.numpy as jnp
import numpy as np
from jax.experimental import pallas as pl
from jax.experimental.pallas import tpu as pltpu

# ---- config (small shapes consistent with the module) ----
BATCH = 2
SEQ = 8            # decoder length == encoder length (required by the module's .view)
EMBED = 32
HEADS = 4
HEAD_DIM = EMBED // HEADS
NUM_LAYERS = 2
VOCAB = 64
MAX_LEN = 16
BT = BATCH * SEQ
NEG_INF = -1e30    # stand-in for float('-inf'); exp() underflows to 0 identically

# MXU input dtype.  f32 keeps closest parity with the reference (and is the right choice
# for v5e, whose VPU/EUP have no bf16).  On v6e/v7x flip to jnp.bfloat16 to make every
# projection a single MXU pass; accumulation stays f32 via preferred_element_type.
MM_DTYPE = jnp.float32


def _mm(a, b):
    return jnp.dot(a.astype(MM_DTYPE), b.astype(MM_DTYPE),
                   preferred_element_type=jnp.float32)


# ---- row layout of the packed small-vector slab: shape (7L+2, 4E) f32 ----
def _row_ln(l, i):                      # per-layer LayerNorm weights ln1/ln2/ln3 (lanes [:E])
    return 3 * l + i


ROW_LNF = 3 * NUM_LAYERS                # final LayerNorm weight


def _row_attn_b(l, which):              # attention fc bias: which 0=self, 1=cross
    return 3 * NUM_LAYERS + 1 + 2 * l + which


def _row_ffd_b2(l):                     # FFD second Linear bias
    return 5 * NUM_LAYERS + 1 + l


ROW_FCB = 6 * NUM_LAYERS + 1            # final Linear bias


def _row_ffd_b1(l):                     # FFD first Linear bias (full 4E lanes)
    return 6 * NUM_LAYERS + 2 + l


VEC_ROWS = 7 * NUM_LAYERS + 2
VEC_W = 4 * EMBED


def decoder_fwd_kernel(x0_ref, enc_ref, mask_ref, wqkv_ref, wkc_ref, wqvc_ref,
                       wfc_ref, w1_ref, w2_ref, vec_ref, o_ref):
    E, D, H, B, T, L = EMBED, HEAD_DIM, HEADS, BATCH, SEQ, NUM_LAYERS
    att_scale = jnp.float32(math.sqrt(D))      # module MULTIPLIES by sqrt(head_dim)

    x = x0_ref[...]                            # (BT, E): emb*sqrt(E)+PE, built in wrapper
    enc = enc_ref[...]                         # (BT, E)
    mask_trg = mask_ref[0][None]               # (1, T, T) additive (-1e30 where masked)
    mask_src = mask_ref[1][None]

    # Cross-attention Q/V depend only on enc_out: one lane-dense (BT,E)@(E,2E*L) matmul
    # covers every layer.
    cross_qv = _mm(enc, wqvc_ref[...]).reshape(B, T, 2 * E * L)

    def layer_norm(v, w):                      # v (BT,E), w (1,E); bias=None, eps=1e-5
        mu = jnp.mean(v, axis=-1, keepdims=True)
        c = v - mu
        var = jnp.mean(c * c, axis=-1, keepdims=True)
        return c * jax.lax.rsqrt(var + jnp.float32(1e-5)) * w

    def vec_e(row):                            # (1, E) row of the packed vector slab
        return vec_ref[row:row + 1, :E]

    def split_heads(mat3, base):
        # mat3 (B, T, W): pick head lanes [base+h*D, base+(h+1)*D) and stack heads on a
        # leading batch axis (n = h*B + b) so attention runs as a single-batch-dim einsum.
        return jnp.concatenate(
            [mat3[:, :, base + h * D: base + (h + 1) * D] for h in range(H)], axis=0)

    def merge_heads(o_n):                      # (H*B, T, D) -> (BT, E), lanes head-major
        return jnp.concatenate(
            [o_n[h * B:(h + 1) * B] for h in range(H)], axis=-1).reshape(BT, E)

    def mha(q_n, k_n, v_n, mask_add, wfc, bfc):
        # Whole-head attention: one scores einsum + one PV einsum (was 4 micro-pairs).
        s = jnp.einsum('nqd,nkd->nqk', q_n, k_n,
                       preferred_element_type=jnp.float32) * att_scale + mask_add
        m = jnp.max(s, axis=-1, keepdims=True)
        e = jnp.exp(s - m)
        p = e * pl.reciprocal(jnp.sum(e, axis=-1, keepdims=True), approx=True)
        # TODO(synk): attention dropout (self.dp) omitted — eval-mode identity.
        o = merge_heads(jnp.einsum('nqk,nkd->nqd', p, v_n,
                                   preferred_element_type=jnp.float32))
        return _mm(o, wfc) + bfc

    for l in range(L):
        # ---- self-attention: attn1(lx, lx, lx, trg_mask); pre-LN, residual ----
        lx = layer_norm(x, vec_e(_row_ln(l, 0)))
        qkv = _mm(lx, wqkv_ref[l]).reshape(B, T, 3 * E)        # packed [Q|K|V] projection
        x = mha(split_heads(qkv, 0), split_heads(qkv, E), split_heads(qkv, 2 * E),
                mask_trg, wfc_ref[2 * l], vec_e(_row_attn_b(l, 0))) + x

        # ---- cross-attention: attn2(k=lx, q=enc_out, v=enc_out, src_mask) ----
        lx = layer_norm(x, vec_e(_row_ln(l, 1)))
        kc = _mm(lx, wkc_ref[l]).reshape(B, T, E)
        x = mha(split_heads(cross_qv, 2 * E * l), split_heads(kc, 0),
                split_heads(cross_qv, 2 * E * l + E),
                mask_src, wfc_ref[2 * l + 1], vec_e(_row_attn_b(l, 1))) + x

        # ---- feed-forward ----
        lx = layer_norm(x, vec_e(_row_ln(l, 2)))
        h1 = jnp.maximum(
            _mm(lx, w1_ref[l]) + vec_ref[_row_ffd_b1(l):_row_ffd_b1(l) + 1, :],
            jnp.float32(0.0))
        x = _mm(h1, w2_ref[l]) + vec_e(_row_ffd_b2(l)) + x
        # TODO(synk): dp1/dp2/dp3 and FFD dropout omitted — eval-mode identity.

    # ---- final LayerNorm + Linear ----
    x = layer_norm(x, vec_e(ROW_LNF))
    y = _mm(x, wfc_ref[2 * L]) + vec_e(ROW_FCB)
    o_ref[...] = y.astype(o_ref.dtype)         # single contiguous (BT, E) store


def decoder_forward(tok, emb, pe_t, enc, trg_mask, src_mask,
                    lnw, attn_w, attn_b, ffd_w1, ffd_b1, ffd_w2, ffd_b2,
                    lnf, fcw, fcb):
    B, T = tok.shape
    E, L = EMBED, NUM_LAYERS

    # Embedding gather + positional encoding done by XLA (cuts 3 operands + the in-kernel
    # one-hot matmul).
    x0 = (emb[tok] * jnp.float32(math.sqrt(E)) + pe_t[None]).reshape(B * T, E)
    enc_flat = enc.reshape(B * T, E)

    # Additive masks precomputed once (no bool compare / select in the kernel).
    mask_add = jnp.stack([jnp.where(trg_mask == 0, NEG_INF, 0.0),
                          jnp.where(src_mask == 0, NEG_INF, 0.0)]).astype(jnp.float32)

    # ---- weight packing (column order [Q|K|V] for self-attn; [Q|V] per layer for cross) --
    w_qkv_self = jnp.stack([jnp.concatenate(
        [attn_w[8 * l + 1], attn_w[8 * l + 0], attn_w[8 * l + 2]], axis=1)
        for l in range(L)])                                              # (L, E, 3E)
    w_k_cross = jnp.stack([attn_w[8 * l + 4] for l in range(L)])         # (L, E, E)
    w_qv_cross = jnp.concatenate([jnp.concatenate(
        [attn_w[8 * l + 5], attn_w[8 * l + 6]], axis=1)
        for l in range(L)], axis=1)                                      # (E, 2E*L)
    w_fc = jnp.stack([attn_w[8 * l + (3 if j == 0 else 7)]
                      for l in range(L) for j in range(2)] + [fcw])      # (2L+1, E, E)

    # ---- packed small-vector slab: every E-wide vector padded to 4E lanes ----
    def pad_e(v):
        return jnp.pad(v, (0, VEC_W - E))

    rows = [None] * VEC_ROWS
    for l in range(L):
        for i in range(3):
            rows[_row_ln(l, i)] = pad_e(lnw[3 * l + i])
        rows[_row_attn_b(l, 0)] = pad_e(attn_b[2 * l])
        rows[_row_attn_b(l, 1)] = pad_e(attn_b[2 * l + 1])
        rows[_row_ffd_b2(l)] = pad_e(ffd_b2[l])
        rows[_row_ffd_b1(l)] = ffd_b1[l]
    rows[ROW_LNF] = pad_e(lnf)
    rows[ROW_FCB] = pad_e(fcb)
    vecs = jnp.stack(rows)                                               # (7L+2, 4E)

    n_inputs = 10
    y = pl.pallas_call(
        decoder_fwd_kernel,
        out_shape=jax.ShapeDtypeStruct((B * T, E), jnp.float32),
        # Grid collapsed: whole problem (~170 KiB) resident in VMEM, single invocation.
        # TODO(synk): at much larger B (>=8) on v7x, add a "parallel" batch grid axis so the
        # work shards across both TensorCores; at B=2 per-step overhead outweighs it.
        in_specs=[pl.BlockSpec(memory_space=pltpu.MemorySpace.VMEM)
                  for _ in range(n_inputs)],
        out_specs=pl.BlockSpec(memory_space=pltpu.MemorySpace.VMEM),
    )(x0, enc_flat, mask_add, w_qkv_self, w_k_cross, w_qv_cross, w_fc,
      ffd_w1, ffd_w2, vecs)
    return y.reshape(B, T, E)


# ---------------- pure-JAX reference (mirror of the PyTorch forward, eval mode) -------------
def reference(tok, emb, pe_t, enc, trg_mask, src_mask,
              lnw, attn_w, attn_b, ffd_w1, ffd_b1, ffd_w2, ffd_b2, lnf, fcw, fcb):
    B, T = tok.shape
    E = emb.shape[1]
    x = emb[tok] * math.sqrt(E) + pe_t[None]

    def layer_norm(v, w):
        mu = v.mean(-1, keepdims=True)
        var = ((v - mu) ** 2).mean(-1, keepdims=True)
        return (v - mu) / jnp.sqrt(var + 1e-5) * w

    def attention(k_in, q_in, v_in, wk, wq, wv, wfc, bfc, mask):
        k = (k_in @ wk).reshape(B, T, HEADS, HEAD_DIM).transpose(0, 2, 1, 3)
        q = (q_in @ wq).reshape(B, T, HEADS, HEAD_DIM).transpose(0, 2, 1, 3)
        v = (v_in @ wv).reshape(B, T, HEADS, HEAD_DIM).transpose(0, 2, 1, 3)
        s = jnp.einsum('bhqd,bhkd->bhqk', q, k) * math.sqrt(HEAD_DIM)
        s = jnp.where(mask[None, None] == 0, NEG_INF, s)   # masked_fill(mask==0, -inf)
        p = jax.nn.softmax(s, axis=-1)
        o = jnp.einsum('bhqk,bhkd->bhqd', p, v)
        o = o.transpose(0, 2, 1, 3).reshape(B, T, E)
        return o @ wfc + bfc

    for l in range(NUM_LAYERS):
        base = 8 * l
        lx = layer_norm(x, lnw[3 * l])
        x = attention(lx, lx, lx, attn_w[base + 0], attn_w[base + 1], attn_w[base + 2],
                      attn_w[base + 3], attn_b[2 * l], trg_mask) + x
        lx = layer_norm(x, lnw[3 * l + 1])
        x = attention(lx, enc, enc, attn_w[base + 4], attn_w[base + 5], attn_w[base + 6],
                      attn_w[base + 7], attn_b[2 * l + 1], src_mask) + x
        lx = layer_norm(x, lnw[3 * l + 2])
        h = jnp.maximum(lx @ ffd_w1[l] + ffd_b1[l], 0.0)
        x = h @ ffd_w2[l] + ffd_b2[l] + x
    x = layer_norm(x, lnf)
    return x @ fcw + fcb


if __name__ == "__main__":
    key = jax.random.PRNGKey(0)
    ks = jax.random.split(key, 4)

    # ---- forward inputs ----
    tok = jax.random.randint(ks[0], (BATCH, SEQ), 0, VOCAB, dtype=jnp.int32)
    emb = jax.random.normal(ks[1], (VOCAB, EMBED), dtype=jnp.float32)   # nn.Embedding ~ N(0,1)
    enc = jax.random.normal(ks[2], (BATCH, SEQ, EMBED), dtype=jnp.float32)
    trg_mask = jnp.asarray(np.tril(np.ones((SEQ, SEQ), dtype=np.float32)))  # causal (1=attend)
    src_mask = jnp.ones((SEQ, SEQ), dtype=jnp.float32)

    # positional-encoding buffer — exact mirror of the PyTorch double loop
    pe = np.zeros((MAX_LEN, EMBED), dtype=np.float32)
    for pos in range(MAX_LEN):
        for i in range(0, EMBED, 2):
            pe[pos, i] = math.sin(pos / 10000 ** (2 * i / EMBED))
            pe[pos, i + 1] = math.cos(pos / 10000 ** (2 * (i + 1) / EMBED))
    pe_t = jnp.asarray(pe[:SEQ])                                     # (T, E)

    # ---- parameters (all Linear weights stored as (in, out) so y = x @ W) ----
    p = iter(jax.random.split(ks[3], 64))

    def rnd(shape, scale=0.1):
        return scale * jax.random.normal(next(p), shape, dtype=jnp.float32)

    # per-layer LayerNorm weights (ln1, ln2, ln3) — randomized around 1 to exercise the path
    lnw = jnp.stack([1.0 + rnd((EMBED,)) for _ in range(NUM_LAYERS * 3)])          # (3L, E)
    # per-layer attention weights: [attn1: Wk,Wq,Wv,Wfc, attn2: Wk,Wq,Wv,Wfc]
    attn_w = jnp.stack([rnd((EMBED, EMBED)) for _ in range(NUM_LAYERS * 8)])       # (8L, E, E)
    attn_b = jnp.stack([rnd((EMBED,)) for _ in range(NUM_LAYERS * 2)])             # (2L, E)
    # per-layer FFD
    ffd_w1 = jnp.stack([rnd((EMBED, 4 * EMBED)) for _ in range(NUM_LAYERS)])       # (L, E, 4E)
    ffd_b1 = jnp.stack([rnd((4 * EMBED,)) for _ in range(NUM_LAYERS)])             # (L, 4E)
    ffd_w2 = jnp.stack([rnd((4 * EMBED, EMBED), 0.05) for _ in range(NUM_LAYERS)])  # (L, 4E, E)
    ffd_b2 = jnp.stack([rnd((EMBED,)) for _ in range(NUM_LAYERS)])                 # (L, E)
    # final LayerNorm + Linear
    lnf = 1.0 + rnd((EMBED,))
    fcw = rnd((EMBED, EMBED))
    fcb = rnd((EMBED,))

    out = decoder_forward(tok, emb, pe_t, enc, trg_mask, src_mask,
                          lnw, attn_w, attn_b, ffd_w1, ffd_b1, ffd_w2, ffd_b2,
                          lnf, fcw, fcb)
    out = jax.block_until_ready(out)

    ref = reference(tok, emb, pe_t, enc, trg_mask, src_mask,
                    lnw, attn_w, attn_b, ffd_w1, ffd_b1, ffd_w2, ffd_b2, lnf, fcw, fcb)
    # tolerance covers the EUP approximate reciprocal used for the softmax denominator
    np.testing.assert_allclose(np.asarray(out), np.asarray(ref), atol=2e-3, rtol=2e-3)

    print("KERNEL_OK")
</pallas_src>

<mosaic_0001>
module attributes {stable_mosaic.version = 11 : i64} {
  func.func @decoder_fwd_kernel(%arg0: memref<16x32xf32, #tpu.memory_space<vmem>>, %arg1: memref<16x32xf32, #tpu.memory_space<vmem>>, %arg2: memref<2x8x8xf32, #tpu.memory_space<vmem>>, %arg3: memref<2x32x96xf32, #tpu.memory_space<vmem>>, %arg4: memref<2x32x32xf32, #tpu.memory_space<vmem>>, %arg5: memref<32x128xf32, #tpu.memory_space<vmem>>, %arg6: memref<5x32x32xf32, #tpu.memory_space<vmem>>, %arg7: memref<2x32x128xf32, #tpu.memory_space<vmem>>, %arg8: memref<2x128x32xf32, #tpu.memory_space<vmem>>, %arg9: memref<16x128xf32, #tpu.memory_space<vmem>>, %arg10: memref<16x32xf32, #tpu.memory_space<vmem>>) attributes {dimension_semantics = [], scalar_prefetch = 0 : i64, scratch_operands = 0 : i64, tpu.core_type = #tpu.core_type<tc>} {
    %c0 = arith.constant 0 : index
    %c0_0 = arith.constant 0 : index
    %0 = vector.load %arg0[%c0, %c0_0] : memref<16x32xf32, #tpu.memory_space<vmem>>, vector<16x32xf32>
    %c0_1 = arith.constant 0 : index
    %c0_2 = arith.constant 0 : index
    %1 = vector.load %arg1[%c0_1, %c0_2] : memref<16x32xf32, #tpu.memory_space<vmem>>, vector<16x32xf32>
    %c0_3 = arith.constant 0 : index
    %c0_4 = arith.constant 0 : index
    %c0_5 = arith.constant 0 : index
    %2 = vector.load %arg2[%c0_3, %c0_4, %c0_5] : memref<2x8x8xf32, #tpu.memory_space<vmem>>, vector<1x8x8xf32>
    %3 = vector.shape_cast %2 : vector<1x8x8xf32> to vector<8x8xf32>
    %4 = vector.shape_cast %3 : vector<8x8xf32> to vector<1x8x8xf32>
    %c1 = arith.constant 1 : index
    %c0_6 = arith.constant 0 : index
    %c0_7 = arith.constant 0 : index
    %5 = vector.load %arg2[%c1, %c0_6, %c0_7] : memref<2x8x8xf32, #tpu.memory_space<vmem>>, vector<1x8x8xf32>
    %6 = vector.shape_cast %5 : vector<1x8x8xf32> to vector<8x8xf32>
    %7 = vector.shape_cast %6 : vector<8x8xf32> to vector<1x8x8xf32>
    %c0_8 = arith.constant 0 : index
    %c0_9 = arith.constant 0 : index
    %8 = vector.load %arg5[%c0_8, %c0_9] : memref<32x128xf32, #tpu.memory_space<vmem>>, vector<32x128xf32>
    %cst = arith.constant dense<0.000000e+00> : vector<16x128xf32>
    %9 = tpu.matmul %1, %8, %cst {dimension_numbers = #tpu.dot_dimension_numbers<[1], [0], [0], [1], [0, 0, 1, 1], [], []>} : vector<16x32xf32>, vector<32x128xf32>, vector<16x128xf32> -> vector<16x128xf32>
    %10 = vector.shape_cast %9 : vector<16x128xf32> to vector<2x8x128xf32>
    %c0_10 = arith.constant 0 : index
    %c0_11 = arith.constant 0 : index
    %11 = vector.load %arg9[%c0_10, %c0_11] : memref<16x128xf32, #tpu.memory_space<vmem>>, vector<1x32xf32>
    %cst_12 = arith.constant dense<0.000000e+00> : vector<16xf32>
    %12 = vector.multi_reduction <add>, %0, %cst_12 [1] : vector<16x32xf32> to vector<16xf32>
    %13 = vector.shape_cast %12 : vector<16xf32> to vector<16x1xf32>
    %cst_13 = arith.constant 3.200000e+01 : f32
    %14 = vector.broadcast %cst_13 : f32 to vector<16x1xf32>
    %15 = arith.divf %13, %14 : vector<16x1xf32>
    %16 = vector.broadcast %15 : vector<16x1xf32> to vector<16x32xf32>
    %17 = arith.subf %0, %16 : vector<16x32xf32>
    %18 = arith.mulf %17, %17 : vector<16x32xf32>
    %cst_14 = arith.constant dense<0.000000e+00> : vector<16xf32>
    %19 = vector.multi_reduction <add>, %18, %cst_14 [1] : vector<16x32xf32> to vector<16xf32>
    %20 = vector.shape_cast %19 : vector<16xf32> to vector<16x1xf32>
    %cst_15 = arith.constant 3.200000e+01 : f32
    %21 = vector.broadcast %cst_15 : f32 to vector<16x1xf32>
    %22 = arith.divf %20, %21 : vector<16x1xf32>
    %cst_16 = arith.constant 9.99999974E-6 : f32
    %23 = vector.broadcast %cst_16 : f32 to vector<16x1xf32>
    %24 = arith.addf %22, %23 : vector<16x1xf32>
    %25 = math.rsqrt %24 : vector<16x1xf32>
    %26 = vector.broadcast %25 : vector<16x1xf32> to vector<16x32xf32>
    %27 = arith.mulf %17, %26 : vector<16x32xf32>
    %28 = vector.broadcast %11 : vector<1x32xf32> to vector<16x32xf32>
    %29 = arith.mulf %27, %28 : vector<16x32xf32>
    %c0_17 = arith.constant 0 : index
    %c0_18 = arith.constant 0 : index
    %c0_19 = arith.constant 0 : index
    %30 = vector.load %arg3[%c0_17, %c0_18, %c0_19] : memref<2x32x96xf32, #tpu.memory_space<vmem>>, vector<1x32x96xf32>
    %31 = vector.shape_cast %30 : vector<1x32x96xf32> to vector<32x96xf32>
    %cst_20 = arith.constant dense<0.000000e+00> : vector<16x96xf32>
    %32 = tpu.matmul %29, %31, %cst_20 {dimension_numbers = #tpu.dot_dimension_numbers<[1], [0], [0], [1], [0, 0, 1, 1], [], []>} : vector<16x32xf32>, vector<32x96xf32>, vector<16x96xf32> -> vector<16x96xf32>
    %33 = vector.shape_cast %32 : vector<16x96xf32> to vector<2x8x96xf32>
    %34 = vector.extract_strided_slice %33 {offsets = [0, 0, 0], sizes = [2, 8, 8], strides = [1, 1, 1]} : vector<2x8x96xf32> to vector<2x8x8xf32>
    %35 = vector.extract_strided_slice %33 {offsets = [0, 0, 8], sizes = [2, 8, 8], strides = [1, 1, 1]} : vector<2x8x96xf32> to vector<2x8x8xf32>
    %36 = vector.extract_strided_slice %33 {offsets = [0, 0, 16], sizes = [2, 8, 8], strides = [1, 1, 1]} : vector<2x8x96xf32> to vector<2x8x8xf32>
    %37 = vector.extract_strided_slice %33 {offsets = [0, 0, 24], sizes = [2, 8, 8], strides = [1, 1, 1]} : vector<2x8x96xf32> to vector<2x8x8xf32>
    %38 = tpu.concatenate %34, %35, %36, %37 in 0 : vector<2x8x8xf32>, vector<2x8x8xf32>, vector<2x8x8xf32>, vector<2x8x8xf32> -> vector<8x8x8xf32>
    %39 = vector.extract_strided_slice %33 {offsets = [0, 0, 32], sizes = [2, 8, 8], strides = [1, 1, 1]} : vector<2x8x96xf32> to vector<2x8x8xf32>
    %40 = vector.extract_strided_slice %33 {offsets = [0, 0, 40], sizes = [2, 8, 8], strides = [1, 1, 1]} : vector<2x8x96xf32> to vector<2x8x8xf32>
    %41 = vector.extract_strided_slice %33 {offsets = [0, 0, 48], sizes = [2, 8, 8], strides = [1, 1, 1]} : vector<2x8x96xf32> to vector<2x8x8xf32>
    %42 = vector.extract_strided_slice %33 {offsets = [0, 0, 56], sizes = [2, 8, 8], strides = [1, 1, 1]} : vector<2x8x96xf32> to vector<2x8x8xf32>
    %43 = tpu.concatenate %39, %40, %41, %42 in 0 : vector<2x8x8xf32>, vector<2x8x8xf32>, vector<2x8x8xf32>, vector<2x8x8xf32> -> vector<8x8x8xf32>
    %44 = vector.extract_strided_slice %33 {offsets = [0, 0, 64], sizes = [2, 8, 8], strides = [1, 1, 1]} : vector<2x8x96xf32> to vector<2x8x8xf32>
    %45 = vector.extract_strided_slice %33 {offsets = [0, 0, 72], sizes = [2, 8, 8], strides = [1, 1, 1]} : vector<2x8x96xf32> to vector<2x8x8xf32>
    %46 = vector.extract_strided_slice %33 {offsets = [0, 0, 80], sizes = [2, 8, 8], strides = [1, 1, 1]} : vector<2x8x96xf32> to vector<2x8x8xf32>
    %47 = vector.extract_strided_slice %33 {offsets = [0, 0, 88], sizes = [2, 8, 8], strides = [1, 1, 1]} : vector<2x8x96xf32> to vector<2x8x8xf32>
    %48 = tpu.concatenate %44, %45, %46, %47 in 0 : vector<2x8x8xf32>, vector<2x8x8xf32>, vector<2x8x8xf32>, vector<2x8x8xf32> -> vector<8x8x8xf32>
    %c0_21 = arith.constant 0 : index
    %c0_22 = arith.constant 0 : index
    %c0_23 = arith.constant 0 : index
    %49 = vector.load %arg6[%c0_21, %c0_22, %c0_23] : memref<5x32x32xf32, #tpu.memory_space<vmem>>, vector<1x32x32xf32>
    %50 = vector.shape_cast %49 : vector<1x32x32xf32> to vector<32x32xf32>
    %c7 = arith.constant 7 : index
    %c0_24 = arith.constant 0 : index
    %51 = vector.load %arg9[%c7, %c0_24] : memref<16x128xf32, #tpu.memory_space<vmem>>, vector<1x32xf32>
    "tpu.trace_start"() <{level = 10 : i32, message = "nqd,nkd->nqk"}> : () -> ()
    %cst_25 = arith.constant dense<0.000000e+00> : vector<8x8x8xf32>
    %52 = tpu.matmul %38, %43, %cst_25 {dimension_numbers = #tpu.dot_dimension_numbers<[2], [2], [1], [1], [0, 0, 0, 1, 1, 1], [0], [0]>} : vector<8x8x8xf32>, vector<8x8x8xf32>, vector<8x8x8xf32> -> vector<8x8x8xf32>
    "tpu.trace_stop"() : () -> ()
    %cst_26 = arith.constant 2.82842708 : f32
    %53 = vector.broadcast %cst_26 : f32 to vector<8x8x8xf32>
    %54 = arith.mulf %52, %53 : vector<8x8x8xf32>
    %55 = vector.broadcast %4 : vector<1x8x8xf32> to vector<8x8x8xf32>
    %56 = arith.addf %54, %55 : vector<8x8x8xf32>
    %cst_27 = arith.constant dense<0xFF800000> : vector<8x8xf32>
    %57 = vector.multi_reduction <maximumf>, %56, %cst_27 [2] : vector<8x8x8xf32> to vector<8x8xf32>
    %58 = vector.shape_cast %57 : vector<8x8xf32> to vector<8x8x1xf32>
    %59 = vector.broadcast %58 : vector<8x8x1xf32> to vector<8x8x8xf32>
    %60 = arith.subf %56, %59 : vector<8x8x8xf32>
    %61 = math.exp %60 : vector<8x8x8xf32>
    %cst_28 = arith.constant dense<0.000000e+00> : vector<8x8xf32>
    %62 = vector.multi_reduction <add>, %61, %cst_28 [2] : vector<8x8x8xf32> to vector<8x8xf32>
    %63 = vector.shape_cast %62 : vector<8x8xf32> to vector<8x8x1xf32>
    %64 = tpu.reciprocal %63 {approx = true} : vector<8x8x1xf32> -> vector<8x8x1xf32>
    %65 = vector.broadcast %64 : vector<8x8x1xf32> to vector<8x8x8xf32>
    %66 = arith.mulf %61, %65 : vector<8x8x8xf32>
    "tpu.trace_start"() <{level = 10 : i32, message = "nqk,nkd->nqd"}> : () -> ()
    %cst_29 = arith.constant dense<0.000000e+00> : vector<8x8x8xf32>
    %67 = tpu.matmul %66, %48, %cst_29 {dimension_numbers = #tpu.dot_dimension_numbers<[2], [1], [1], [2], [0, 0, 0, 1, 1, 2], [0], [0]>} : vector<8x8x8xf32>, vector<8x8x8xf32>, vector<8x8x8xf32> -> vector<8x8x8xf32>
    "tpu.trace_stop"() : () -> ()
    %68 = vector.extract_strided_slice %67 {offsets = [0, 0, 0], sizes = [2, 8, 8], strides = [1, 1, 1]} : vector<8x8x8xf32> to vector<2x8x8xf32>
    %69 = vector.extract_strided_slice %67 {offsets = [2, 0, 0], sizes = [2, 8, 8], strides = [1, 1, 1]} : vector<8x8x8xf32> to vector<2x8x8xf32>
    %70 = vector.extract_strided_slice %67 {offsets = [4, 0, 0], sizes = [2, 8, 8], strides = [1, 1, 1]} : vector<8x8x8xf32> to vector<2x8x8xf32>
    %71 = vector.extract_strided_slice %67 {offsets = [6, 0, 0], sizes = [2, 8, 8], strides = [1, 1, 1]} : vector<8x8x8xf32> to vector<2x8x8xf32>
    %72 = tpu.concatenate %68, %69, %70, %71 in 2 : vector<2x8x8xf32>, vector<2x8x8xf32>, vector<2x8x8xf32>, vector<2x8x8xf32> -> vector<2x8x32xf32>
    %73 = vector.shape_cast %72 : vector<2x8x32xf32> to vector<16x32xf32>
    %cst_30 = arith.constant dense<0.000000e+00> : vector<16x32xf32>
    %74 = tpu.matmul %73, %50, %cst_30 {dimension_numbers = #tpu.dot_dimension_numbers<[1], [0], [0], [1], [0, 0, 1, 1], [], []>} : vector<16x32xf32>, vector<32x32xf32>, vector<16x32xf32> -> vector<16x32xf32>
    %75 = vector.broadcast %51 : vector<1x32xf32> to vector<16x32xf32>
    %76 = arith.addf %74, %75 : vector<16x32xf32>
    %77 = arith.addf %76, %0 : vector<16x32xf32>
    %c1_31 = arith.constant 1 : index
    %c0_32 = arith.constant 0 : index
    %78 = vector.load %arg9[%c1_31, %c0_32] : memref<16x128xf32, #tpu.memory_space<vmem>>, vector<1x32xf32>
    %cst_33 = arith.constant dense<0.000000e+00> : vector<16xf32>
    %79 = vector.multi_reduction <add>, %77, %cst_33 [1] : vector<16x32xf32> to vector<16xf32>
    %80 = vector.shape_cast %79 : vector<16xf32> to vector<16x1xf32>
    %cst_34 = arith.constant 3.200000e+01 : f32
    %81 = vector.broadcast %cst_34 : f32 to vector<16x1xf32>
    %82 = arith.divf %80, %81 : vector<16x1xf32>
    %83 = vector.broadcast %82 : vector<16x1xf32> to vector<16x32xf32>
    %84 = arith.subf %77, %83 : vector<16x32xf32>
    %85 = arith.mulf %84, %84 : vector<16x32xf32>
    %cst_35 = arith.constant dense<0.000000e+00> : vector<16xf32>
    %86 = vector.multi_reduction <add>, %85, %cst_35 [1] : vector<16x32xf32> to vector<16xf32>
    %87 = vector.shape_cast %86 : vector<16xf32> to vector<16x1xf32>
    %cst_36 = arith.constant 3.200000e+01 : f32
    %88 = vector.broadcast %cst_36 : f32 to vector<16x1xf32>
    %89 = arith.divf %87, %88 : vector<16x1xf32>
    %cst_37 = arith.constant 9.99999974E-6 : f32
    %90 = vector.broadcast %cst_37 : f32 to vector<16x1xf32>
    %91 = arith.addf %89, %90 : vector<16x1xf32>
    %92 = math.rsqrt %91 : vector<16x1xf32>
    %93 = vector.broadcast %92 : vector<16x1xf32> to vector<16x32xf32>
    %94 = arith.mulf %84, %93 : vector<16x32xf32>
    %95 = vector.broadcast %78 : vector<1x32xf32> to vector<16x32xf32>
    %96 = arith.mulf %94, %95 : vector<16x32xf32>
    %c0_38 = arith.constant 0 : index
    %c0_39 = arith.constant 0 : index
    %c0_40 = arith.constant 0 : index
    %97 = vector.load %arg4[%c0_38, %c0_39, %c0_40] : memref<2x32x32xf32, #tpu.memory_space<vmem>>, vector<1x32x32xf32>
    %98 = vector.shape_cast %97 : vector<1x32x32xf32> to vector<32x32xf32>
    %cst_41 = arith.constant dense<0.000000e+00> : vector<16x32xf32>
    %99 = tpu.matmul %96, %98, %cst_41 {dimension_numbers = #tpu.dot_dimension_numbers<[1], [0], [0], [1], [0, 0, 1, 1], [], []>} : vector<16x32xf32>, vector<32x32xf32>, vector<16x32xf32> -> vector<16x32xf32>
    %100 = vector.shape_cast %99 : vector<16x32xf32> to vector<2x8x32xf32>
    %101 = vector.extract_strided_slice %10 {offsets = [0, 0, 0], sizes = [2, 8, 8], strides = [1, 1, 1]} : vector<2x8x128xf32> to vector<2x8x8xf32>
    %102 = vector.extract_strided_slice %10 {offsets = [0, 0, 8], sizes = [2, 8, 8], strides = [1, 1, 1]} : vector<2x8x128xf32> to vector<2x8x8xf32>
    %103 = vector.extract_strided_slice %10 {offsets = [0, 0, 16], sizes = [2, 8, 8], strides = [1, 1, 1]} : vector<2x8x128xf32> to vector<2x8x8xf32>
    %104 = vector.extract_strided_slice %10 {offsets = [0, 0, 24], sizes = [2, 8, 8], strides = [1, 1, 1]} : vector<2x8x128xf32> to vector<2x8x8xf32>
    %105 = tpu.concatenate %101, %102, %103, %104 in 0 : vector<2x8x8xf32>, vector<2x8x8xf32>, vector<2x8x8xf32>, vector<2x8x8xf32> -> vector<8x8x8xf32>
    %106 = vector.extract_strided_slice %100 {offsets = [0, 0, 0], sizes = [2, 8, 8], strides = [1, 1, 1]} : vector<2x8x32xf32> to vector<2x8x8xf32>
    %107 = vector.extract_strided_slice %100 {offsets = [0, 0, 8], sizes = [2, 8, 8], strides = [1, 1, 1]} : vector<2x8x32xf32> to vector<2x8x8xf32>
    %108 = vector.extract_strided_slice %100 {offsets = [0, 0, 16], sizes = [2, 8, 8], strides = [1, 1, 1]} : vector<2x8x32xf32> to vector<2x8x8xf32>
    %109 = vector.extract_strided_slice %100 {offsets = [0, 0, 24], sizes = [2, 8, 8], strides = [1, 1, 1]} : vector<2x8x32xf32> to vector<2x8x8xf32>
    %110 = tpu.concatenate %106, %107, %108, %109 in 0 : vector<2x8x8xf32>, vector<2x8x8xf32>, vector<2x8x8xf32>, vector<2x8x8xf32> -> vector<8x8x8xf32>
    %111 = vector.extract_strided_slice %10 {offsets = [0, 0, 32], sizes = [2, 8, 8], strides = [1, 1, 1]} : vector<2x8x128xf32> to vector<2x8x8xf32>
    %112 = vector.extract_strided_slice %10 {offsets = [0, 0, 40], sizes = [2, 8, 8], strides = [1, 1, 1]} : vector<2x8x128xf32> to vector<2x8x8xf32>
    %113 = vector.extract_strided_slice %10 {offsets = [0, 0, 48], sizes = [2, 8, 8], strides = [1, 1, 1]} : vector<2x8x128xf32> to vector<2x8x8xf32>
    %114 = vector.extract_strided_slice %10 {offsets = [0, 0, 56], sizes = [2, 8, 8], strides = [1, 1, 1]} : vector<2x8x128xf32> to vector<2x8x8xf32>
    %115 = tpu.concatenate %111, %112, %113, %114 in 0 : vector<2x8x8xf32>, vector<2x8x8xf32>, vector<2x8x8xf32>, vector<2x8x8xf32> -> vector<8x8x8xf32>
    %c1_42 = arith.constant 1 : index
    %c0_43 = arith.constant 0 : index
    %c0_44 = arith.constant 0 : index
    %116 = vector.load %arg6[%c1_42, %c0_43, %c0_44] : memref<5x32x32xf32, #tpu.memory_space<vmem>>, vector<1x32x32xf32>
    %117 = vector.shape_cast %116 : vector<1x32x32xf32> to vector<32x32xf32>
    %c8 = arith.constant 8 : index
    %c0_45 = arith.constant 0 : index
    %118 = vector.load %arg9[%c8, %c0_45] : memref<16x128xf32, #tpu.memory_space<vmem>>, vector<1x32xf32>
    "tpu.trace_start"() <{level = 10 : i32, message = "nqd,nkd->nqk"}> : () -> ()
    %cst_46 = arith.constant dense<0.000000e+00> : vector<8x8x8xf32>
    %119 = tpu.matmul %105, %110, %cst_46 {dimension_numbers = #tpu.dot_dimension_numbers<[2], [2], [1], [1], [0, 0, 0, 1, 1, 1], [0], [0]>} : vector<8x8x8xf32>, vector<8x8x8xf32>, vector<8x8x8xf32> -> vector<8x8x8xf32>
    "tpu.trace_stop"() : () -> ()
    %cst_47 = arith.constant 2.82842708 : f32
    %120 = vector.broadcast %cst_47 : f32 to vector<8x8x8xf32>
    %121 = arith.mulf %119, %120 : vector<8x8x8xf32>
    %122 = vector.broadcast %7 : vector<1x8x8xf32> to vector<8x8x8xf32>
    %123 = arith.addf %121, %122 : vector<8x8x8xf32>
    %cst_48 = arith.constant dense<0xFF800000> : vector<8x8xf32>
    %124 = vector.multi_reduction <maximumf>, %123, %cst_48 [2] : vector<8x8x8xf32> to vector<8x8xf32>
    %125 = vector.shape_cast %124 : vector<8x8xf32> to vector<8x8x1xf32>
    %126 = vector.broadcast %125 : vector<8x8x1xf32> to vector<8x8x8xf32>
    %127 = arith.subf %123, %126 : vector<8x8x8xf32>
    %128 = math.exp %127 : vector<8x8x8xf32>
    %cst_49 = arith.constant dense<0.000000e+00> : vector<8x8xf32>
    %129 = vector.multi_reduction <add>, %128, %cst_49 [2] : vector<8x8x8xf32> to vector<8x8xf32>
    %130 = vector.shape_cast %129 : vector<8x8xf32> to vector<8x8x1xf32>
    %131 = tpu.reciprocal %130 {approx = true} : vector<8x8x1xf32> -> vector<8x8x1xf32>
    %132 = vector.broadcast %131 : vector<8x8x1xf32> to vector<8x8x8xf32>
    %133 = arith.mulf %128, %132 : vector<8x8x8xf32>
    "tpu.trace_start"() <{level = 10 : i32, message = "nqk,nkd->nqd"}> : () -> ()
    %cst_50 = arith.constant dense<0.000000e+00> : vector<8x8x8xf32>
    %134 = tpu.matmul %133, %115, %cst_50 {dimension_numbers = #tpu.dot_dimension_numbers<[2], [1], [1], [2], [0, 0, 0, 1, 1, 2], [0], [0]>} : vector<8x8x8xf32>, vector<8x8x8xf32>, vector<8x8x8xf32> -> vector<8x8x8xf32>
    "tpu.trace_stop"() : () -> ()
    %135 = vector.extract_strided_slice %134 {offsets = [0, 0, 0], sizes = [2, 8, 8], strides = [1, 1, 1]} : vector<8x8x8xf32> to vector<2x8x8xf32>
    %136 = vector.extract_strided_slice %134 {offsets = [2, 0, 0], sizes = [2, 8, 8], strides = [1, 1, 1]} : vector<8x8x8xf32> to vector<2x8x8xf32>
    %137 = vector.extract_strided_slice %134 {offsets = [4, 0, 0], sizes = [2, 8, 8], strides = [1, 1, 1]} : vector<8x8x8xf32> to vector<2x8x8xf32>
    %138 = vector.extract_strided_slice %134 {offsets = [6, 0, 0], sizes = [2, 8, 8], strides = [1, 1, 1]} : vector<8x8x8xf32> to vector<2x8x8xf32>
    %139 = tpu.concatenate %135, %136, %137, %138 in 2 : vector<2x8x8xf32>, vector<2x8x8xf32>, vector<2x8x8xf32>, vector<2x8x8xf32> -> vector<2x8x32xf32>
    %140 = vector.shape_cast %139 : vector<2x8x32xf32> to vector<16x32xf32>
    %cst_51 = arith.constant dense<0.000000e+00> : vector<16x32xf32>
    %141 = tpu.matmul %140, %117, %cst_51 {dimension_numbers = #tpu.dot_dimension_numbers<[1], [0], [0], [1], [0, 0, 1, 1], [], []>} : vector<16x32xf32>, vector<32x32xf32>, vector<16x32xf32> -> vector<16x32xf32>
    %142 = vector.broadcast %118 : vector<1x32xf32> to vector<16x32xf32>
    %143 = arith.addf %141, %142 : vector<16x32xf32>
    %144 = arith.addf %143, %77 : vector<16x32xf32>
    %c2 = arith.constant 2 : index
    %c0_52 = arith.constant 0 : index
    %145 = vector.load %arg9[%c2, %c0_52] : memref<16x128xf32, #tpu.memory_space<vmem>>, vector<1x32xf32>
    %cst_53 = arith.constant dense<0.000000e+00> : vector<16xf32>
    %146 = vector.multi_reduction <add>, %144, %cst_53 [1] : vector<16x32xf32> to vector<16xf32>
    %147 = vector.shape_cast %146 : vector<16xf32> to vector<16x1xf32>
    %cst_54 = arith.constant 3.200000e+01 : f32
    %148 = vector.broadcast %cst_54 : f32 to vector<16x1xf32>
    %149 = arith.divf %147, %148 : vector<16x1xf32>
    %150 = vector.broadcast %149 : vector<16x1xf32> to vector<16x32xf32>
    %151 = arith.subf %144, %150 : vector<16x32xf32>
    %152 = arith.mulf %151, %151 : vector<16x32xf32>
    %cst_55 = arith.constant dense<0.000000e+00> : vector<16xf32>
    %153 = vector.multi_reduction <add>, %152, %cst_55 [1] : vector<16x32xf32> to vector<16xf32>
    %154 = vector.shape_cast %153 : vector<16xf32> to vector<16x1xf32>
    %cst_56 = arith.constant 3.200000e+01 : f32
    %155 = vector.broadcast %cst_56 : f32 to vector<16x1xf32>
    %156 = arith.divf %154, %155 : vector<16x1xf32>
    %cst_57 = arith.constant 9.99999974E-6 : f32
    %157 = vector.broadcast %cst_57 : f32 to vector<16x1xf32>
    %158 = arith.addf %156, %157 : vector<16x1xf32>
    %159 = math.rsqrt %158 : vector<16x1xf32>
    %160 = vector.broadcast %159 : vector<16x1xf32> to vector<16x32xf32>
    %161 = arith.mulf %151, %160 : vector<16x32xf32>
    %162 = vector.broadcast %145 : vector<1x32xf32> to vector<16x32xf32>
    %163 = arith.mulf %161, %162 : vector<16x32xf32>
    %c0_58 = arith.constant 0 : index
    %c0_59 = arith.constant 0 : index
    %c0_60 = arith.constant 0 : index
    %164 = vector.load %arg7[%c0_58, %c0_59, %c0_60] : memref<2x32x128xf32, #tpu.memory_space<vmem>>, vector<1x32x128xf32>
    %165 = vector.shape_cast %164 : vector<1x32x128xf32> to vector<32x128xf32>
    %cst_61 = arith.constant dense<0.000000e+00> : vector<16x128xf32>
    %166 = tpu.matmul %163, %165, %cst_61 {dimension_numbers = #tpu.dot_dimension_numbers<[1], [0], [0], [1], [0, 0, 1, 1], [], []>} : vector<16x32xf32>, vector<32x128xf32>, vector<16x128xf32> -> vector<16x128xf32>
    %c14 = arith.constant 14 : index
    %c0_62 = arith.constant 0 : index
    %167 = vector.load %arg9[%c14, %c0_62] : memref<16x128xf32, #tpu.memory_space<vmem>>, vector<1x128xf32>
    %168 = vector.broadcast %167 : vector<1x128xf32> to vector<16x128xf32>
    %169 = arith.addf %166, %168 : vector<16x128xf32>
    %cst_63 = arith.constant 0.000000e+00 : f32
    %170 = vector.broadcast %cst_63 : f32 to vector<16x128xf32>
    %171 = arith.maximumf %169, %170 : vector<16x128xf32>
    %c0_64 = arith.constant 0 : index
    %c0_65 = arith.constant 0 : index
    %c0_66 = arith.constant 0 : index
    %172 = vector.load %arg8[%c0_64, %c0_65, %c0_66] : memref<2x128x32xf32, #tpu.memory_space<vmem>>, vector<1x128x32xf32>
    %173 = vector.shape_cast %172 : vector<1x128x32xf32> to vector<128x32xf32>
    %cst_67 = arith.constant dense<0.000000e+00> : vector<16x32xf32>
    %174 = tpu.matmul %171, %173, %cst_67 {dimension_numbers = #tpu.dot_dimension_numbers<[1], [0], [0], [1], [0, 0, 1, 1], [], []>} : vector<16x128xf32>, vector<128x32xf32>, vector<16x32xf32> -> vector<16x32xf32>
    %c11 = arith.constant 11 : index
    %c0_68 = arith.constant 0 : index
    %175 = vector.load %arg9[%c11, %c0_68] : memref<16x128xf32, #tpu.memory_space<vmem>>, vector<1x32xf32>
    %176 = vector.broadcast %175 : vector<1x32xf32> to vector<16x32xf32>
    %177 = arith.addf %174, %176 : vector<16x32xf32>
    %178 = arith.addf %177, %144 : vector<16x32xf32>
    %c3 = arith.constant 3 : index
    %c0_69 = arith.constant 0 : index
    %179 = vector.load %arg9[%c3, %c0_69] : memref<16x128xf32, #tpu.memory_space<vmem>>, vector<1x32xf32>
    %cst_70 = arith.constant dense<0.000000e+00> : vector<16xf32>
    %180 = vector.multi_reduction <add>, %178, %cst_70 [1] : vector<16x32xf32> to vector<16xf32>
    %181 = vector.shape_cast %180 : vector<16xf32> to vector<16x1xf32>
    %cst_71 = arith.constant 3.200000e+01 : f32
    %182 = vector.broadcast %cst_71 : f32 to vector<16x1xf32>
    %183 = arith.divf %181, %182 : vector<16x1xf32>
    %184 = vector.broadcast %183 : vector<16x1xf32> to vector<16x32xf32>
    %185 = arith.subf %178, %184 : vector<16x32xf32>
    %186 = arith.mulf %185, %185 : vector<16x32xf32>
    %cst_72 = arith.constant dense<0.000000e+00> : vector<16xf32>
    %187 = vector.multi_reduction <add>, %186, %cst_72 [1] : vector<16x32xf32> to vector<16xf32>
    %188 = vector.shape_cast %187 : vector<16xf32> to vector<16x1xf32>
    %cst_73 = arith.constant 3.200000e+01 : f32
    %189 = vector.broadcast %cst_73 : f32 to vector<16x1xf32>
    %190 = arith.divf %188, %189 : vector<16x1xf32>
    %cst_74 = arith.constant 9.99999974E-6 : f32
    %191 = vector.broadcast %cst_74 : f32 to vector<16x1xf32>
    %192 = arith.addf %190, %191 : vector<16x1xf32>
    %193 = math.rsqrt %192 : vector<16x1xf32>
    %194 = vector.broadcast %193 : vector<16x1xf32> to vector<16x32xf32>
    %195 = arith.mulf %185, %194 : vector<16x32xf32>
    %196 = vector.broadcast %179 : vector<1x32xf32> to vector<16x32xf32>
    %197 = arith.mulf %195, %196 : vector<16x32xf32>
    %c1_75 = arith.constant 1 : index
    %c0_76 = arith.constant 0 : index
    %c0_77 = arith.constant 0 : index
    %198 = vector.load %arg3[%c1_75, %c0_76, %c0_77] : memref<2x32x96xf32, #tpu.memory_space<vmem>>, vector<1x32x96xf32>
    %199 = vector.shape_cast %198 : vector<1x32x96xf32> to vector<32x96xf32>
    %cst_78 = arith.constant dense<0.000000e+00> : vector<16x96xf32>
    %200 = tpu.matmul %197, %199, %cst_78 {dimension_numbers = #tpu.dot_dimension_numbers<[1], [0], [0], [1], [0, 0, 1, 1], [], []>} : vector<16x32xf32>, vector<32x96xf32>, vector<16x96xf32> -> vector<16x96xf32>
    %201 = vector.shape_cast %200 : vector<16x96xf32> to vector<2x8x96xf32>
    %202 = vector.extract_strided_slice %201 {offsets = [0, 0, 0], sizes = [2, 8, 8], strides = [1, 1, 1]} : vector<2x8x96xf32> to vector<2x8x8xf32>
    %203 = vector.extract_strided_slice %201 {offsets = [0, 0, 8], sizes = [2, 8, 8], strides = [1, 1, 1]} : vector<2x8x96xf32> to vector<2x8x8xf32>
    %204 = vector.extract_strided_slice %201 {offsets = [0, 0, 16], sizes = [2, 8, 8], strides = [1, 1, 1]} : vector<2x8x96xf32> to vector<2x8x8xf32>
    %205 = vector.extract_strided_slice %201 {offsets = [0, 0, 24], sizes = [2, 8, 8], strides = [1, 1, 1]} : vector<2x8x96xf32> to vector<2x8x8xf32>
    %206 = tpu.concatenate %202, %203, %204, %205 in 0 : vector<2x8x8xf32>, vector<2x8x8xf32>, vector<2x8x8xf32>, vector<2x8x8xf32> -> vector<8x8x8xf32>
    %207 = vector.extract_strided_slice %201 {offsets = [0, 0, 32], sizes = [2, 8, 8], strides = [1, 1, 1]} : vector<2x8x96xf32> to vector<2x8x8xf32>
    %208 = vector.extract_strided_slice %201 {offsets = [0, 0, 40], sizes = [2, 8, 8], strides = [1, 1, 1]} : vector<2x8x96xf32> to vector<2x8x8xf32>
    %209 = vector.extract_strided_slice %201 {offsets = [0, 0, 48], sizes = [2, 8, 8], strides = [1, 1, 1]} : vector<2x8x96xf32> to vector<2x8x8xf32>
    %210 = vector.extract_strided_slice %201 {offsets = [0, 0, 56], sizes = [2, 8, 8], strides = [1, 1, 1]} : vector<2x8x96xf32> to vector<2x8x8xf32>
    %211 = tpu.concatenate %207, %208, %209, %210 in 0 : vector<2x8x8xf32>, vector<2x8x8xf32>, vector<2x8x8xf32>, vector<2x8x8xf32> -> vector<8x8x8xf32>
    %212 = vector.extract_strided_slice %201 {offsets = [0, 0, 64], sizes = [2, 8, 8], strides = [1, 1, 1]} : vector<2x8x96xf32> to vector<2x8x8xf32>
    %213 = vector.extract_strided_slice %201 {offsets = [0, 0, 72], sizes = [2, 8, 8], strides = [1, 1, 1]} : vector<2x8x96xf32> to vector<2x8x8xf32>
    %214 = vector.extract_strided_slice %201 {offsets = [0, 0, 80], sizes = [2, 8, 8], strides = [1, 1, 1]} : vector<2x8x96xf32> to vector<2x8x8xf32>
    %215 = vector.extract_strided_slice %201 {offsets = [0, 0, 88], sizes = [2, 8, 8], strides = [1, 1, 1]} : vector<2x8x96xf32> to vector<2x8x8xf32>
    %216 = tpu.concatenate %212, %213, %214, %215 in 0 : vector<2x8x8xf32>, vector<2x8x8xf32>, vector<2x8x8xf32>, vector<2x8x8xf32> -> vector<8x8x8xf32>
    %c2_79 = arith.constant 2 : index
    %c0_80 = arith.constant 0 : index
    %c0_81 = arith.constant 0 : index
    %217 = vector.load %arg6[%c2_79, %c0_80, %c0_81] : memref<5x32x32xf32, #tpu.memory_space<vmem>>, vector<1x32x32xf32>
    %218 = vector.shape_cast %217 : vector<1x32x32xf32> to vector<32x32xf32>
    %c9 = arith.constant 9 : index
    %c0_82 = arith.constant 0 : index
    %219 = vector.load %arg9[%c9, %c0_82] : memref<16x128xf32, #tpu.memory_space<vmem>>, vector<1x32xf32>
    "tpu.trace_start"() <{level = 10 : i32, message = "nqd,nkd->nqk"}> : () -> ()
    %cst_83 = arith.constant dense<0.000000e+00> : vector<8x8x8xf32>
    %220 = tpu.matmul %206, %211, %cst_83 {dimension_numbers = #tpu.dot_dimension_numbers<[2], [2], [1], [1], [0, 0, 0, 1, 1, 1], [0], [0]>} : vector<8x8x8xf32>, vector<8x8x8xf32>, vector<8x8x8xf32> -> vector<8x8x8xf32>
    "tpu.trace_stop"() : () -> ()
    %cst_84 = arith.constant 2.82842708 : f32
    %221 = vector.broadcast %cst_84 : f32 to vector<8x8x8xf32>
    %222 = arith.mulf %220, %221 : vector<8x8x8xf32>
    %223 = vector.broadcast %4 : vector<1x8x8xf32> to vector<8x8x8xf32>
    %224 = arith.addf %222, %223 : vector<8x8x8xf32>
    %cst_85 = arith.constant dense<0xFF800000> : vector<8x8xf32>
    %225 = vector.multi_reduction <maximumf>, %224, %cst_85 [2] : vector<8x8x8xf32> to vector<8x8xf32>
    %226 = vector.shape_cast %225 : vector<8x8xf32> to vector<8x8x1xf32>
    %227 = vector.broadcast %226 : vector<8x8x1xf32> to vector<8x8x8xf32>
    %228 = arith.subf %224, %227 : vector<8x8x8xf32>
    %229 = math.exp %228 : vector<8x8x8xf32>
    %cst_86 = arith.constant dense<0.000000e+00> : vector<8x8xf32>
    %230 = vector.multi_reduction <add>, %229, %cst_86 [2] : vector<8x8x8xf32> to vector<8x8xf32>
    %231 = vector.shape_cast %230 : vector<8x8xf32> to vector<8x8x1xf32>
    %232 = tpu.reciprocal %231 {approx = true} : vector<8x8x1xf32> -> vector<8x8x1xf32>
    %233 = vector.broadcast %232 : vector<8x8x1xf32> to vector<8x8x8xf32>
    %234 = arith.mulf %229, %233 : vector<8x8x8xf32>
    "tpu.trace_start"() <{level = 10 : i32, message = "nqk,nkd->nqd"}> : () -> ()
    %cst_87 = arith.constant dense<0.000000e+00> : vector<8x8x8xf32>
    %235 = tpu.matmul %234, %216, %cst_87 {dimension_numbers = #tpu.dot_dimension_numbers<[2], [1], [1], [2], [0, 0, 0, 1, 1, 2], [0], [0]>} : vector<8x8x8xf32>, vector<8x8x8xf32>, vector<8x8x8xf32> -> vector<8x8x8xf32>
    "tpu.trace_stop"() : () -> ()
    %236 = vector.extract_strided_slice %235 {offsets = [0, 0, 0], sizes = [2, 8, 8], strides = [1, 1, 1]} : vector<8x8x8xf32> to vector<2x8x8xf32>
    %237 = vector.extract_strided_slice %235 {offsets = [2, 0, 0], sizes = [2, 8, 8], strides = [1, 1, 1]} : vector<8x8x8xf32> to vector<2x8x8xf32>
    %238 = vector.extract_strided_slice %235 {offsets = [4, 0, 0], sizes = [2, 8, 8], strides = [1, 1, 1]} : vector<8x8x8xf32> to vector<2x8x8xf32>
    %239 = vector.extract_strided_slice %235 {offsets = [6, 0, 0], sizes = [2, 8, 8], strides = [1, 1, 1]} : vector<8x8x8xf32> to vector<2x8x8xf32>
    %240 = tpu.concatenate %236, %237, %238, %239 in 2 : vector<2x8x8xf32>, vector<2x8x8xf32>, vector<2x8x8xf32>, vector<2x8x8xf32> -> vector<2x8x32xf32>
    %241 = vector.shape_cast %240 : vector<2x8x32xf32> to vector<16x32xf32>
    %cst_88 = arith.constant dense<0.000000e+00> : vector<16x32xf32>
    %242 = tpu.matmul %241, %218, %cst_88 {dimension_numbers = #tpu.dot_dimension_numbers<[1], [0], [0], [1], [0, 0, 1, 1], [], []>} : vector<16x32xf32>, vector<32x32xf32>, vector<16x32xf32> -> vector<16x32xf32>
    %243 = vector.broadcast %219 : vector<1x32xf32> to vector<16x32xf32>
    %244 = arith.addf %242, %243 : vector<16x32xf32>
    %245 = arith.addf %244, %178 : vector<16x32xf32>
    %c4 = arith.constant 4 : index
    %c0_89 = arith.constant 0 : index
    %246 = vector.load %arg9[%c4, %c0_89] : memref<16x128xf32, #tpu.memory_space<vmem>>, vector<1x32xf32>
    %cst_90 = arith.constant dense<0.000000e+00> : vector<16xf32>
    %247 = vector.multi_reduction <add>, %245, %cst_90 [1] : vector<16x32xf32> to vector<16xf32>
    %248 = vector.shape_cast %247 : vector<16xf32> to vector<16x1xf32>
    %cst_91 = arith.constant 3.200000e+01 : f32
    %249 = vector.broadcast %cst_91 : f32 to vector<16x1xf32>
    %250 = arith.divf %248, %249 : vector<16x1xf32>
    %251 = vector.broadcast %250 : vector<16x1xf32> to vector<16x32xf32>
    %252 = arith.subf %245, %251 : vector<16x32xf32>
    %253 = arith.mulf %252, %252 : vector<16x32xf32>
    %cst_92 = arith.constant dense<0.000000e+00> : vector<16xf32>
    %254 = vector.multi_reduction <add>, %253, %cst_92 [1] : vector<16x32xf32> to vector<16xf32>
    %255 = vector.shape_cast %254 : vector<16xf32> to vector<16x1xf32>
    %cst_93 = arith.constant 3.200000e+01 : f32
    %256 = vector.broadcast %cst_93 : f32 to vector<16x1xf32>
    %257 = arith.divf %255, %256 : vector<16x1xf32>
    %cst_94 = arith.constant 9.99999974E-6 : f32
    %258 = vector.broadcast %cst_94 : f32 to vector<16x1xf32>
    %259 = arith.addf %257, %258 : vector<16x1xf32>
    %260 = math.rsqrt %259 : vector<16x1xf32>
    %261 = vector.broadcast %260 : vector<16x1xf32> to vector<16x32xf32>
    %262 = arith.mulf %252, %261 : vector<16x32xf32>
    %263 = vector.broadcast %246 : vector<1x32xf32> to vector<16x32xf32>
    %264 = arith.mulf %262, %263 : vector<16x32xf32>
    %c1_95 = arith.constant 1 : index
    %c0_96 = arith.constant 0 : index
    %c0_97 = arith.constant 0 : index
    %265 = vector.load %arg4[%c1_95, %c0_96, %c0_97] : memref<2x32x32xf32, #tpu.memory_space<vmem>>, vector<1x32x32xf32>
    %266 = vector.shape_cast %265 : vector<1x32x32xf32> to vector<32x32xf32>
    %cst_98 = arith.constant dense<0.000000e+00> : vector<16x32xf32>
    %267 = tpu.matmul %264, %266, %cst_98 {dimension_numbers = #tpu.dot_dimension_numbers<[1], [0], [0], [1], [0, 0, 1, 1], [], []>} : vector<16x32xf32>, vector<32x32xf32>, vector<16x32xf32> -> vector<16x32xf32>
    %268 = vector.shape_cast %267 : vector<16x32xf32> to vector<2x8x32xf32>
    %269 = vector.extract_strided_slice %10 {offsets = [0, 0, 64], sizes = [2, 8, 8], strides = [1, 1, 1]} : vector<2x8x128xf32> to vector<2x8x8xf32>
    %270 = vector.extract_strided_slice %10 {offsets = [0, 0, 72], sizes = [2, 8, 8], strides = [1, 1, 1]} : vector<2x8x128xf32> to vector<2x8x8xf32>
    %271 = vector.extract_strided_slice %10 {offsets = [0, 0, 80], sizes = [2, 8, 8], strides = [1, 1, 1]} : vector<2x8x128xf32> to vector<2x8x8xf32>
    %272 = vector.extract_strided_slice %10 {offsets = [0, 0, 88], sizes = [2, 8, 8], strides = [1, 1, 1]} : vector<2x8x128xf32> to vector<2x8x8xf32>
    %273 = tpu.concatenate %269, %270, %271, %272 in 0 : vector<2x8x8xf32>, vector<2x8x8xf32>, vector<2x8x8xf32>, vector<2x8x8xf32> -> vector<8x8x8xf32>
    %274 = vector.extract_strided_slice %268 {offsets = [0, 0, 0], sizes = [2, 8, 8], strides = [1, 1, 1]} : vector<2x8x32xf32> to vector<2x8x8xf32>
    %275 = vector.extract_strided_slice %268 {offsets = [0, 0, 8], sizes = [2, 8, 8], strides = [1, 1, 1]} : vector<2x8x32xf32> to vector<2x8x8xf32>
    %276 = vector.extract_strided_slice %268 {offsets = [0, 0, 16], sizes = [2, 8, 8], strides = [1, 1, 1]} : vector<2x8x32xf32> to vector<2x8x8xf32>
    %277 = vector.extract_strided_slice %268 {offsets = [0, 0, 24], sizes = [2, 8, 8], strides = [1, 1, 1]} : vector<2x8x32xf32> to vector<2x8x8xf32>
    %278 = tpu.concatenate %274, %275, %276, %277 in 0 : vector<2x8x8xf32>, vector<2x8x8xf32>, vector<2x8x8xf32>, vector<2x8x8xf32> -> vector<8x8x8xf32>
    %279 = vector.extract_strided_slice %10 {offsets = [0, 0, 96], sizes = [2, 8, 8], strides = [1, 1, 1]} : vector<2x8x128xf32> to vector<2x8x8xf32>
    %280 = vector.extract_strided_slice %10 {offsets = [0, 0, 104], sizes = [2, 8, 8], strides = [1, 1, 1]} : vector<2x8x128xf32> to vector<2x8x8xf32>
    %281 = vector.extract_strided_slice %10 {offsets = [0, 0, 112], sizes = [2, 8, 8], strides = [1, 1, 1]} : vector<2x8x128xf32> to vector<2x8x8xf32>
    %282 = vector.extract_strided_slice %10 {offsets = [0, 0, 120], sizes = [2, 8, 8], strides = [1, 1, 1]} : vector<2x8x128xf32> to vector<2x8x8xf32>
    %283 = tpu.concatenate %279, %280, %281, %282 in 0 : vector<2x8x8xf32>, vector<2x8x8xf32>, vector<2x8x8xf32>, vector<2x8x8xf32> -> vector<8x8x8xf32>
    %c3_99 = arith.constant 3 : index
    %c0_100 = arith.constant 0 : index
    %c0_101 = arith.constant 0 : index
    %284 = vector.load %arg6[%c3_99, %c0_100, %c0_101] : memref<5x32x32xf32, #tpu.memory_space<vmem>>, vector<1x32x32xf32>
    %285 = vector.shape_cast %284 : vector<1x32x32xf32> to vector<32x32xf32>
    %c10 = arith.constant 10 : index
    %c0_102 = arith.constant 0 : index
    %286 = vector.load %arg9[%c10, %c0_102] : memref<16x128xf32, #tpu.memory_space<vmem>>, vector<1x32xf32>
    "tpu.trace_start"() <{level = 10 : i32, message = "nqd,nkd->nqk"}> : () -> ()
    %cst_103 = arith.constant dense<0.000000e+00> : vector<8x8x8xf32>
    %287 = tpu.matmul %273, %278, %cst_103 {dimension_numbers = #tpu.dot_dimension_numbers<[2], [2], [1], [1], [0, 0, 0, 1, 1, 1], [0], [0]>} : vector<8x8x8xf32>, vector<8x8x8xf32>, vector<8x8x8xf32> -> vector<8x8x8xf32>
    "tpu.trace_stop"() : () -> ()
    %cst_104 = arith.constant 2.82842708 : f32
    %288 = vector.broadcast %cst_104 : f32 to vector<8x8x8xf32>
    %289 = arith.mulf %287, %288 : vector<8x8x8xf32>
    %290 = vector.broadcast %7 : vector<1x8x8xf32> to vector<8x8x8xf32>
    %291 = arith.addf %289, %290 : vector<8x8x8xf32>
    %cst_105 = arith.constant dense<0xFF800000> : vector<8x8xf32>
    %292 = vector.multi_reduction <maximumf>, %291, %cst_105 [2] : vector<8x8x8xf32> to vector<8x8xf32>
    %293 = vector.shape_cast %292 : vector<8x8xf32> to vector<8x8x1xf32>
    %294 = vector.broadcast %293 : vector<8x8x1xf32> to vector<8x8x8xf32>
    %295 = arith.subf %291, %294 : vector<8x8x8xf32>
    %296 = math.exp %295 : vector<8x8x8xf32>
    %cst_106 = arith.constant dense<0.000000e+00> : vector<8x8xf32>
    %297 = vector.multi_reduction <add>, %296, %cst_106 [2] : vector<8x8x8xf32> to vector<8x8xf32>
    %298 = vector.shape_cast %297 : vector<8x8xf32> to vector<8x8x1xf32>
    %299 = tpu.reciprocal %298 {approx = true} : vector<8x8x1xf32> -> vector<8x8x1xf32>
    %300 = vector.broadcast %299 : vector<8x8x1xf32> to vector<8x8x8xf32>
    %301 = arith.mulf %296, %300 : vector<8x8x8xf32>
    "tpu.trace_start"() <{level = 10 : i32, message = "nqk,nkd->nqd"}> : () -> ()
    %cst_107 = arith.constant dense<0.000000e+00> : vector<8x8x8xf32>
    %302 = tpu.matmul %301, %283, %cst_107 {dimension_numbers = #tpu.dot_dimension_numbers<[2], [1], [1], [2], [0, 0, 0, 1, 1, 2], [0], [0]>} : vector<8x8x8xf32>, vector<8x8x8xf32>, vector<8x8x8xf32> -> vector<8x8x8xf32>
    "tpu.trace_stop"() : () -> ()
    %303 = vector.extract_strided_slice %302 {offsets = [0, 0, 0], sizes = [2, 8, 8], strides = [1, 1, 1]} : vector<8x8x8xf32> to vector<2x8x8xf32>
    %304 = vector.extract_strided_slice %302 {offsets = [2, 0, 0], sizes = [2, 8, 8], strides = [1, 1, 1]} : vector<8x8x8xf32> to vector<2x8x8xf32>
    %305 = vector.extract_strided_slice %302 {offsets = [4, 0, 0], sizes = [2, 8, 8], strides = [1, 1, 1]} : vector<8x8x8xf32> to vector<2x8x8xf32>
    %306 = vector.extract_strided_slice %302 {offsets = [6, 0, 0], sizes = [2, 8, 8], strides = [1, 1, 1]} : vector<8x8x8xf32> to vector<2x8x8xf32>
    %307 = tpu.concatenate %303, %304, %305, %306 in 2 : vector<2x8x8xf32>, vector<2x8x8xf32>, vector<2x8x8xf32>, vector<2x8x8xf32> -> vector<2x8x32xf32>
    %308 = vector.shape_cast %307 : vector<2x8x32xf32> to vector<16x32xf32>
    %cst_108 = arith.constant dense<0.000000e+00> : vector<16x32xf32>
    %309 = tpu.matmul %308, %285, %cst_108 {dimension_numbers = #tpu.dot_dimension_numbers<[1], [0], [0], [1], [0, 0, 1, 1], [], []>} : vector<16x32xf32>, vector<32x32xf32>, vector<16x32xf32> -> vector<16x32xf32>
    %310 = vector.broadcast %286 : vector<1x32xf32> to vector<16x32xf32>
    %311 = arith.addf %309, %310 : vector<16x32xf32>
    %312 = arith.addf %311, %245 : vector<16x32xf32>
    %c5 = arith.constant 5 : index
    %c0_109 = arith.constant 0 : index
    %313 = vector.load %arg9[%c5, %c0_109] : memref<16x128xf32, #tpu.memory_space<vmem>>, vector<1x32xf32>
    %cst_110 = arith.constant dense<0.000000e+00> : vector<16xf32>
    %314 = vector.multi_reduction <add>, %312, %cst_110 [1] : vector<16x32xf32> to vector<16xf32>
    %315 = vector.shape_cast %314 : vector<16xf32> to vector<16x1xf32>
    %cst_111 = arith.constant 3.200000e+01 : f32
    %316 = vector.broadcast %cst_111 : f32 to vector<16x1xf32>
    %317 = arith.divf %315, %316 : vector<16x1xf32>
    %318 = vector.broadcast %317 : vector<16x1xf32> to vector<16x32xf32>
    %319 = arith.subf %312, %318 : vector<16x32xf32>
    %320 = arith.mulf %319, %319 : vector<16x32xf32>
    %cst_112 = arith.constant dense<0.000000e+00> : vector<16xf32>
    %321 = vector.multi_reduction <add>, %320, %cst_112 [1] : vector<16x32xf32> to vector<16xf32>
    %322 = vector.shape_cast %321 : vector<16xf32> to vector<16x1xf32>
    %cst_113 = arith.constant 3.200000e+01 : f32
    %323 = vector.broadcast %cst_113 : f32 to vector<16x1xf32>
    %324 = arith.divf %322, %323 : vector<16x1xf32>
    %cst_114 = arith.constant 9.99999974E-6 : f32
    %325 = vector.broadcast %cst_114 : f32 to vector<16x1xf32>
    %326 = arith.addf %324, %325 : vector<16x1xf32>
    %327 = math.rsqrt %326 : vector<16x1xf32>
    %328 = vector.broadcast %327 : vector<16x1xf32> to vector<16x32xf32>
    %329 = arith.mulf %319, %328 : vector<16x32xf32>
    %330 = vector.broadcast %313 : vector<1x32xf32> to vector<16x32xf32>
    %331 = arith.mulf %329, %330 : vector<16x32xf32>
    %c1_115 = arith.constant 1 : index
    %c0_116 = arith.constant 0 : index
    %c0_117 = arith.constant 0 : index
    %332 = vector.load %arg7[%c1_115, %c0_116, %c0_117] : memref<2x32x128xf32, #tpu.memory_space<vmem>>, vector<1x32x128xf32>
    %333 = vector.shape_cast %332 : vector<1x32x128xf32> to vector<32x128xf32>
    %cst_118 = arith.constant dense<0.000000e+00> : vector<16x128xf32>
    %334 = tpu.matmul %331, %333, %cst_118 {dimension_numbers = #tpu.dot_dimension_numbers<[1], [0], [0], [1], [0, 0, 1, 1], [], []>} : vector<16x32xf32>, vector<32x128xf32>, vector<16x128xf32> -> vector<16x128xf32>
    %c15 = arith.constant 15 : index
    %c0_119 = arith.constant 0 : index
    %335 = vector.load %arg9[%c15, %c0_119] : memref<16x128xf32, #tpu.memory_space<vmem>>, vector<1x128xf32>
    %336 = vector.broadcast %335 : vector<1x128xf32> to vector<16x128xf32>
    %337 = arith.addf %334, %336 : vector<16x128xf32>
    %cst_120 = arith.constant 0.000000e+00 : f32
    %338 = vector.broadcast %cst_120 : f32 to vector<16x128xf32>
    %339 = arith.maximumf %337, %338 : vector<16x128xf32>
    %c1_121 = arith.constant 1 : index
    %c0_122 = arith.constant 0 : index
    %c0_123 = arith.constant 0 : index
    %340 = vector.load %arg8[%c1_121, %c0_122, %c0_123] : memref<2x128x32xf32, #tpu.memory_space<vmem>>, vector<1x128x32xf32>
    %341 = vector.shape_cast %340 : vector<1x128x32xf32> to vector<128x32xf32>
    %cst_124 = arith.constant dense<0.000000e+00> : vector<16x32xf32>
    %342 = tpu.matmul %339, %341, %cst_124 {dimension_numbers = #tpu.dot_dimension_numbers<[1], [0], [0], [1], [0, 0, 1, 1], [], []>} : vector<16x128xf32>, vector<128x32xf32>, vector<16x32xf32> -> vector<16x32xf32>
    %c12 = arith.constant 12 : index
    %c0_125 = arith.constant 0 : index
    %343 = vector.load %arg9[%c12, %c0_125] : memref<16x128xf32, #tpu.memory_space<vmem>>, vector<1x32xf32>
    %344 = vector.broadcast %343 : vector<1x32xf32> to vector<16x32xf32>
    %345 = arith.addf %342, %344 : vector<16x32xf32>
    %346 = arith.addf %345, %312 : vector<16x32xf32>
    %c6 = arith.constant 6 : index
    %c0_126 = arith.constant 0 : index
    %347 = vector.load %arg9[%c6, %c0_126] : memref<16x128xf32, #tpu.memory_space<vmem>>, vector<1x32xf32>
    %cst_127 = arith.constant dense<0.000000e+00> : vector<16xf32>
    %348 = vector.multi_reduction <add>, %346, %cst_127 [1] : vector<16x32xf32> to vector<16xf32>
    %349 = vector.shape_cast %348 : vector<16xf32> to vector<16x1xf32>
    %cst_128 = arith.constant 3.200000e+01 : f32
    %350 = vector.broadcast %cst_128 : f32 to vector<16x1xf32>
    %351 = arith.divf %349, %350 : vector<16x1xf32>
    %352 = vector.broadcast %351 : vector<16x1xf32> to vector<16x32xf32>
    %353 = arith.subf %346, %352 : vector<16x32xf32>
    %354 = arith.mulf %353, %353 : vector<16x32xf32>
    %cst_129 = arith.constant dense<0.000000e+00> : vector<16xf32>
    %355 = vector.multi_reduction <add>, %354, %cst_129 [1] : vector<16x32xf32> to vector<16xf32>
    %356 = vector.shape_cast %355 : vector<16xf32> to vector<16x1xf32>
    %cst_130 = arith.constant 3.200000e+01 : f32
    %357 = vector.broadcast %cst_130 : f32 to vector<16x1xf32>
    %358 = arith.divf %356, %357 : vector<16x1xf32>
    %cst_131 = arith.constant 9.99999974E-6 : f32
    %359 = vector.broadcast %cst_131 : f32 to vector<16x1xf32>
    %360 = arith.addf %358, %359 : vector<16x1xf32>
    %361 = math.rsqrt %360 : vector<16x1xf32>
    %362 = vector.broadcast %361 : vector<16x1xf32> to vector<16x32xf32>
    %363 = arith.mulf %353, %362 : vector<16x32xf32>
    %364 = vector.broadcast %347 : vector<1x32xf32> to vector<16x32xf32>
    %365 = arith.mulf %363, %364 : vector<16x32xf32>
    %c4_132 = arith.constant 4 : index
    %c0_133 = arith.constant 0 : index
    %c0_134 = arith.constant 0 : index
    %366 = vector.load %arg6[%c4_132, %c0_133, %c0_134] : memref<5x32x32xf32, #tpu.memory_space<vmem>>, vector<1x32x32xf32>
    %367 = vector.shape_cast %366 : vector<1x32x32xf32> to vector<32x32xf32>
    %cst_135 = arith.constant dense<0.000000e+00> : vector<16x32xf32>
    %368 = tpu.matmul %365, %367, %cst_135 {dimension_numbers = #tpu.dot_dimension_numbers<[1], [0], [0], [1], [0, 0, 1, 1], [], []>} : vector<16x32xf32>, vector<32x32xf32>, vector<16x32xf32> -> vector<16x32xf32>
    %c13 = arith.constant 13 : index
    %c0_136 = arith.constant 0 : index
    %369 = vector.load %arg9[%c13, %c0_136] : memref<16x128xf32, #tpu.memory_space<vmem>>, vector<1x32xf32>
    %370 = vector.broadcast %369 : vector<1x32xf32> to vector<16x32xf32>
    %371 = arith.addf %368, %370 : vector<16x32xf32>
    %c0_137 = arith.constant 0 : index
    %c0_138 = arith.constant 0 : index
    %372 = vector.load %arg10[%c0_137, %c0_138] : memref<16x32xf32, #tpu.memory_space<vmem>>, vector<16x32xf32>
    tpu.vector_store %arg10[%c0_137, %c0_138], %371 {strides = array<i32>} : memref<16x32xf32, #tpu.memory_space<vmem>>, vector<16x32xf32>,
    return
  }
}

</mosaic_0001>

<llo_original>
// kernel: tpu_custom_call.1
$region0: #{tpu_custom_call.1}
  #allocation0 [shape = 'u32[]', space=smem, size = 0x4, offset = 0x4, fixed_abs, tag = 'smem constant byte address 0x4 - core index']
  #allocation1 [shape = 'u32[144,128]{1,0:T(1,128)}', space=vmem, size = 0x12000, scoped, tag = 'internal scratch']
  %s0 = inlined_call_operand.hbm [shape: f32[16,32], index: 0, kind: input, shape index: {}]
  %s1 = inlined_call_operand.hbm [shape: f32[16,32], index: 1, kind: input, shape index: {}]
  %s2 = inlined_call_operand.hbm [shape: f32[2,8,8], index: 2, kind: input, shape index: {}]
  %s3 = inlined_call_operand.vmem [shape: f32[2,32,96], index: 3, kind: input, shape index: {}]
  %s4 = inlined_call_operand.vmem [shape: f32[2,32,32], index: 4, kind: input, shape index: {}]
  %s5 = inlined_call_operand.vmem [shape: f32[32,128], index: 5, kind: input, shape index: {}]
  %s6 = inlined_call_operand.vmem [shape: f32[5,32,32], index: 6, kind: input, shape index: {}]
  %s7 = inlined_call_operand.hbm [shape: f32[2,32,128], index: 7, kind: input, shape index: {}]
  %s8 = inlined_call_operand.vmem [shape: f32[2,128,32], index: 8, kind: input, shape index: {}]
  %s9 = inlined_call_operand.hbm [shape: f32[16,128], index: 9, kind: input, shape index: {}]
  %s10 = inlined_call_operand.hbm [shape: f32[16,32], index: 10, kind: output, shape index: {}]
  %s11 = sld [smem:[#allocation0]]
  $region70: #{tpu_custom_call.1} parent=0
    _
  %s13 = ssub.s32 1, %s11
  %s14 = scalar_select 0, %s13, %s11
  $region1: #{tpu_custom_call.1} parent=0
    #allocation2 [shape = 'u8[8192]{0}', space=vmem, size = 0x2000, scoped, tag = 'input window, operand 0, single buffered']
    #allocation3 [shape = 's32[1]{0}', space=sflag, size = 0x4, scoped, tag = 'scoped memory for tpu_custom_call.1']
    #allocation4 [shape = 's32[1]{0}', space=sflag, size = 0x4, scoped, tag = 'scoped memory for tpu_custom_call.1']
    #allocation5 [shape = 'u8[8192]{0}', space=vmem, size = 0x2000, scoped, tag = 'input window, operand 1, single buffered']
    #allocation6 [shape = 's32[1]{0}', space=sflag, size = 0x4, scoped, tag = 'scoped memory for tpu_custom_call.1']
    #allocation7 [shape = 'u8[8192]{0}', space=vmem, size = 0x2000, scoped, tag = 'input window, operand 2, single buffered']
    #allocation8 [shape = 'u8[32768]{0}', space=vmem, size = 0x8000, scoped, tag = 'input window, operand 7, single buffered']
    #allocation9 [shape = 's32[1]{0}', space=sflag, size = 0x4, scoped, tag = 'scoped memory for tpu_custom_call.1']
    #allocation10 [shape = 'u8[8192]{0}', space=vmem, size = 0x2000, scoped, tag = 'input window, operand 9, single buffered']
    #allocation11 [shape = 'u8[8192]{0}', space=vmem, size = 0x2000, scoped, tag = 'output window, operand 0, single buffered']
    %15 = vsyncpa [#allocation3], 0
    %16 = vsyncpa [#allocation6], 0
    %17 = vsyncpa [#allocation9], 0
    %18 = vsyncpa [#allocation4], 0
    // Predicated region
    $region2: #{tpu_custom_call.1} parent=1 // pred_check
      _
    $region3: #{tpu_custom_call.1} parent=1 // pred_check_branch
      %20 = sbr.rel (0) target = $region5
    $region4: #{tpu_custom_call.1} parent=1 // pred_region
      %s22 = ssub.s32 256, 256
      %23 = vsyncadd [#allocation3], %s22
      %s24 = sshll.u32 [#allocation2], 4
      %s25 = int_to_ptr.vmem [resolvable:$true] %s24
      %30 = dma.hbm_to_vmem [thread:$0]  %s0, 256, %s25, [#allocation3], 128, 128, 8
    $region5: #{tpu_custom_call.1} parent=1 // pred_fallthru
      _
    // Predicated region
    $region6: #{tpu_custom_call.1} parent=1 // pred_check
      _
    $region7: #{tpu_custom_call.1} parent=1 // pred_check_branch
      %32 = sbr.rel (0) target = $region9
    $region8: #{tpu_custom_call.1} parent=1 // pred_region
      %s34 = ssub.s32 256, 256
      %35 = vsyncadd [#allocation6], %s34
      %s36 = sshll.u32 [#allocation5], 4
      %s37 = int_to_ptr.vmem [resolvable:$true] %s36
      %42 = dma.hbm_to_vmem [thread:$0]  %s1, 256, %s37, [#allocation6], 128, 128, 8
    $region9: #{tpu_custom_call.1} parent=1 // pred_fallthru
      _
    // Predicated region
    $region10: #{tpu_custom_call.1} parent=1 // pred_check
      _
    $region11: #{tpu_custom_call.1} parent=1 // pred_check_branch
      %44 = sbr.rel (0) target = $region13
    $region12: #{tpu_custom_call.1} parent=1 // pred_region
      %s46 = ssub.s32 256, 256
      %47 = vsyncadd [#allocation6], %s46
      %s48 = sshll.u32 [#allocation7], 4
      %s49 = int_to_ptr.vmem [resolvable:$true] %s48
      %54 = dma.hbm_to_vmem [thread:$0]  %s2, 256, %s49, [#allocation6], 128, 128, 8
    $region13: #{tpu_custom_call.1} parent=1 // pred_fallthru
      _
    // Predicated region
    $region14: #{tpu_custom_call.1} parent=1 // pred_check
      _
    $region15: #{tpu_custom_call.1} parent=1 // pred_check_branch
      %56 = sbr.rel (0) target = $region17
    $region16: #{tpu_custom_call.1} parent=1 // pred_region
      _
    $region17: #{tpu_custom_call.1} parent=1 // pred_fallthru
      _
    // Predicated region
    $region18: #{tpu_custom_call.1} parent=1 // pred_check
      _
    $region19: #{tpu_custom_call.1} parent=1 // pred_check_branch
      %58 = sbr.rel (0) target = $region21
    $region20: #{tpu_custom_call.1} parent=1 // pred_region
      _
    $region21: #{tpu_custom_call.1} parent=1 // pred_fallthru
      _
    // Predicated region
    $region22: #{tpu_custom_call.1} parent=1 // pred_check
      _
    $region23: #{tpu_custom_call.1} parent=1 // pred_check_branch
      %60 = sbr.rel (0) target = $region25
    $region24: #{tpu_custom_call.1} parent=1 // pred_region
      _
    $region25: #{tpu_custom_call.1} parent=1 // pred_fallthru
      _
    // Predicated region
    $region26: #{tpu_custom_call.1} parent=1 // pred_check
      _
    $region27: #{tpu_custom_call.1} parent=1 // pred_check_branch
      %62 = sbr.rel (0) target = $region29
    $region28: #{tpu_custom_call.1} parent=1 // pred_region
      _
    $region29: #{tpu_custom_call.1} parent=1 // pred_fallthru
      _
    // Predicated region
    $region30: #{tpu_custom_call.1} parent=1 // pred_check
      _
    $region31: #{tpu_custom_call.1} parent=1 // pred_check_branch
      %64 = sbr.rel (0) target = $region33
    $region32: #{tpu_custom_call.1} parent=1 // pred_region
      %s66 = ssub.s32 1024, 1024
      %67 = vsyncadd [#allocation9], %s66
      %s68 = sshll.u32 [#allocation8], 4
      %s69 = int_to_ptr.vmem [resolvable:$true] %s68
      %74 = dma.hbm_to_vmem [thread:$0]  %s7, 1024, %s69, [#allocation9], 128, 128, 8
    $region33: #{tpu_custom_call.1} parent=1 // pred_fallthru
      _
    // Predicated region
    $region34: #{tpu_custom_call.1} parent=1 // pred_check
      _
    $region35: #{tpu_custom_call.1} parent=1 // pred_check_branch
      %76 = sbr.rel (0) target = $region37
    $region36: #{tpu_custom_call.1} parent=1 // pred_region
      _
    $region37: #{tpu_custom_call.1} parent=1 // pred_fallthru
      _
    // Predicated region
    $region38: #{tpu_custom_call.1} parent=1 // pred_check
      _
    $region39: #{tpu_custom_call.1} parent=1 // pred_check_branch
      %78 = sbr.rel (0) target = $region41
    $region40: #{tpu_custom_call.1} parent=1 // pred_region
      %s80 = ssub.s32 256, 256
      %81 = vsyncadd [#allocation9], %s80
      %s82 = sshll.u32 [#allocation10], 4
      %s83 = int_to_ptr.vmem [resolvable:$true] %s82
      %88 = dma.hbm_to_vmem [thread:$0]  %s9, 256, %s83, [#allocation9], 128, 128, 8
    $region41: #{tpu_custom_call.1} parent=1 // pred_fallthru
      _
    // Predicated region
    $region42: #{tpu_custom_call.1} parent=1 // pred_check
      _
    $region43: #{tpu_custom_call.1} parent=1 // pred_check_branch
      %90 = sbr.rel (0) target = $region45
    $region44: #{tpu_custom_call.1} parent=1 // pred_region
      %91 = dma.done [#allocation3], 256
    $region45: #{tpu_custom_call.1} parent=1 // pred_fallthru
      _
    // Predicated region
    $region46: #{tpu_custom_call.1} parent=1 // pred_check
      _
    $region47: #{tpu_custom_call.1} parent=1 // pred_check_branch
      %93 = sbr.rel (0) target = $region49
    $region48: #{tpu_custom_call.1} parent=1 // pred_region
      %94 = dma.done [#allocation6], 256
    $region49: #{tpu_custom_call.1} parent=1 // pred_fallthru
      _
    // Predicated region
    $region50: #{tpu_custom_call.1} parent=1 // pred_check
      _
    $region51: #{tpu_custom_call.1} parent=1 // pred_check_branch
      %96 = sbr.rel (0) target = $region53
    $region52: #{tpu_custom_call.1} parent=1 // pred_region
      %97 = dma.done [#allocation6], 256
    $region53: #{tpu_custom_call.1} parent=1 // pred_fallthru
      _
    // Predicated region
    $region54: #{tpu_custom_call.1} parent=1 // pred_check
      _
    $region55: #{tpu_custom_call.1} parent=1 // pred_check_branch
      %99 = sbr.rel (0) target = $region57
    $region56: #{tpu_custom_call.1} parent=1 // pred_region
      %100 = dma.done [#allocation9], 1024
    $region57: #{tpu_custom_call.1} parent=1 // pred_fallthru
      _
    // Predicated region
    $region58: #{tpu_custom_call.1} parent=1 // pred_check
      _
    $region59: #{tpu_custom_call.1} parent=1 // pred_check_branch
      %102 = sbr.rel (0) target = $region61
    $region60: #{tpu_custom_call.1} parent=1 // pred_region
      %103 = dma.done [#allocation9], 256
    $region61: #{tpu_custom_call.1} parent=1 // pred_fallthru
      _
    %v104 = vld [vmem:[#allocation2] sm:$0xff]
    %v105 = vld [vmem:[#allocation2 + $0x8] sm:$0xff]
    %v106 = vld [vmem:[#allocation5] sm:$0xff]
    %v107 = vld [vmem:[#allocation5 + $0x8] sm:$0xff]
    %v108 = vld [vmem:[#allocation7] sm:$0xff]
    %s109 = scalar_lea.vmem [#allocation7], 8
    %v110 = vld [vmem:[%s109] sm:$0xff]
    %v111 = vld [vmem:[%s5] sm:$0xff]
    %v112 = vld [vmem:[%s5 + $0x8] sm:$0xff]
    %v113 = vld [vmem:[%s5 + $0x10] sm:$0xff]
    %v114 = vld [vmem:[%s5 + $0x18] sm:$0xff]
    %vm115 = vcmask 261120
    %v117 = vsel %vm115, %v106, 0
    %v120 = vsel %vm115, %v107, 0
    %122 = vmatprep.subr.mxu0 0.0
    %123 = vmatpush1.msra.mxu0 0.0
    %124 = vmatprep.subr.mxu0 0.0
    %125 = vmatpush1.msra.mxu0 0.0
    %126 = vmatprep.subr.mxu0 0.0
    %127 = vmatpush1.msra.mxu0 0.0
    %128 = vmatprep.subr.mxu0 0.0
    %129 = vmatpush1.msra.mxu0 0.0
    %130 = vmatprep.subr.mxu0 0.0
    %131 = vmatpush1.msra.mxu0 0.0
    %132 = vmatprep.subr.mxu0 0.0
    %133 = vmatpush1.msra.mxu0 0.0
    %134 = vmatprep.subr.mxu0 0.0
    %135 = vmatpush1.msra.mxu0 0.0
    %136 = vmatprep.subr.mxu0 0.0
    %137 = vmatpush1.msra.mxu0 0.0
    %138 = vmatprep.subr.mxu0 0.0
    %139 = vmatpush1.msra.mxu0 0.0
    %140 = vmatprep.subr.mxu0 0.0
    %141 = vmatpush1.msra.mxu0 0.0
    %142 = vmatprep.subr.mxu0 0.0
    %143 = vmatpush1.msra.mxu0 0.0
    %144 = vmatprep.subr.mxu0 0.0
    %145 = vmatpush1.msra.mxu0 0.0
    %146 = vmatprep.subr.mxu0 0.0
    %147 = vmatpush1.msra.mxu0 %v114
    %148 = vmatprep.subr.mxu0 0.0
    %149 = vmatpush1.msra.mxu0 %v113
    %150 = vmatprep.subr.mxu0 0.0
    %151 = vmatpush1.msra.mxu0 %v112
    %152 = vmatprep.subr.mxu0 0.0
    %153 = vmatpush1.msra.mxu0 %v111
    %154 = vmatprep.subr.mxu0 0.0
    %155 = vmatpush2.msra.mxu0 0.0
    %156 = vmatprep.subr.mxu0 0.0
    %157 = vmatpush2.msra.mxu0 0.0
    %158 = vmatprep.subr.mxu0 0.0
    %159 = vmatpush2.msra.mxu0 0.0
    %160 = vmatprep.subr.mxu0 0.0
    %161 = vmatpush2.msra.mxu0 0.0
    %162 = vmatprep.subr.mxu0 0.0
    %163 = vmatpush2.msra.mxu0 0.0
    %164 = vmatprep.subr.mxu0 0.0
    %165 = vmatpush2.msra.mxu0 0.0
    %166 = vmatprep.subr.mxu0 0.0
    %167 = vmatpush2.msra.mxu0 0.0
    %168 = vmatprep.subr.mxu0 0.0
    %169 = vmatpush2.msra.mxu0 0.0
    %170 = vmatprep.subr.mxu0 0.0
    %171 = vmatpush2.msra.mxu0 0.0
    %172 = vmatprep.subr.mxu0 0.0
    %173 = vmatpush2.msra.mxu0 0.0
    %174 = vmatprep.subr.mxu0 0.0
    %175 = vmatpush2.msra.mxu0 0.0
    %176 = vmatprep.subr.mxu0 0.0
    %177 = vmatpush2.msra.mxu0 0.0
    %178 = vmatprep.subr.mxu0 0.0
    %179 = vmatpush2.msra.mxu0 0.0
    %180 = vmatprep.subr.mxu0 0.0
    %181 = vmatpush2.msra.mxu0 0.0
    %182 = vmatprep.subr.mxu0 0.0
    %183 = vmatpush2.msra.mxu0 0.0
    %184 = vmatprep.subr.mxu0 0.0
    %185 = vmatpush2.msra.mxu0 0.0
    %186 = vmatprep.mubr.f32.mxu0 0.0
    %187 = vmatmul.mubr.f32.gmra.mxu0 %v117
    %v188 = vpop.f32.mrf.mxu0
    %v189 = vadd.f32 0.0, %v188
    %v190 = vpop.f32.mrf.mxu0
    %191 = vmatprep.mubr.f32.mxu0 0.0
    %192 = vmatmul.mubr.f32.gmra.mxu0 %v120
    %v193 = vpop.f32.mrf.mxu0
    %v194 = vadd.f32 0.0, %v193
    %v195 = vpop.f32.mrf.mxu0
    %196 = vdwg.mxu0
    %v197 = vld [vmem:[#allocation10] sm:$0x1]
    %v198 = vsel %vm115, %v104, 0.0
    %199 = vadd.xlane.f32.xlu0 %v198
    %v200 = vpop.xlane.xlu0 %199
    %v201 = vsel %vm115, %v105, 0.0
    %202 = vadd.xlane.f32.xlu0 %v201
    %v203 = vpop.xlane.xlu0 %202
    %v204 = vrcp.pop 32.0
    %v205 = vmul.f32 %v200, %v204
    %v206 = vmul.f32 %v203, %v204
    %v207 = vsub.f32 %v104, %v205
    %v208 = vsub.f32 %v105, %v206
    %v209 = vmul.f32 %v207, %v207
    %v210 = vmul.f32 %v208, %v208
    %v211 = vsel %vm115, %v209, 0.0
    %212 = vadd.xlane.f32.xlu0 %v211
    %v213 = vpop.xlane.xlu0 %212
    %v214 = vsel %vm115, %v210, 0.0
    %215 = vadd.xlane.f32.xlu0 %v214
    %v216 = vpop.xlane.xlu0 %215
    %v217 = vmul.f32 %v213, %v204
    %v218 = vmul.f32 %v216, %v204
    %v219 = vadd.f32 %v217, 1e-05
    %v220 = vadd.f32 %v218, 1e-05
    %v221 = vrsqrt.pop %v219
    %v222 = vrsqrt.pop %v220
    %v223 = vmul.f32 %v207, %v221
    %v224 = vmul.f32 %v208, %v222
    %v225 = vlaneseq
    %v226 = vshrl.u32 %v225, 7
    %v227 = vsub.s32 0, %v226
    %v228 = vrot.slane %v197, %v227
    %v229 = vmul.f32 %v223, %v228
    %v230 = vmul.f32 %v224, %v228
    %v231 = vld [vmem:[%s3] sm:$0xff]
    %v232 = vld [vmem:[%s3 + $0x8] sm:$0xff]
    %v233 = vld [vmem:[%s3 + $0x10] sm:$0xff]
    %v234 = vld [vmem:[%s3 + $0x18] sm:$0xff]
    %v236 = vsel %vm115, %v229, 0
    %v239 = vsel %vm115, %v230, 0
    %241 = vmatprep.subr.mxu0 0.0
    %242 = vmatpush1.msra.mxu0 0.0
    %243 = vmatprep.subr.mxu0 0.0
    %244 = vmatpush1.msra.mxu0 0.0
    %245 = vmatprep.subr.mxu0 0.0
    %246 = vmatpush1.msra.mxu0 0.0
    %247 = vmatprep.subr.mxu0 0.0
    %248 = vmatpush1.msra.mxu0 0.0
    %249 = vmatprep.subr.mxu0 0.0
    %250 = vmatpush1.msra.mxu0 0.0
    %251 = vmatprep.subr.mxu0 0.0
    %252 = vmatpush1.msra.mxu0 0.0
    %253 = vmatprep.subr.mxu0 0.0
    %254 = vmatpush1.msra.mxu0 0.0
    %255 = vmatprep.subr.mxu0 0.0
    %256 = vmatpush1.msra.mxu0 0.0
    %257 = vmatprep.subr.mxu0 0.0
    %258 = vmatpush1.msra.mxu0 0.0
    %259 = vmatprep.subr.mxu0 0.0
    %260 = vmatpush1.msra.mxu0 0.0
    %261 = vmatprep.subr.mxu0 0.0
    %262 = vmatpush1.msra.mxu0 0.0
    %263 = vmatprep.subr.mxu0 0.0
    %264 = vmatpush1.msra.mxu0 0.0
    %265 = vmatprep.subr.mxu0 0.0
    %266 = vmatpush1.msra.mxu0 %v234
    %267 = vmatprep.subr.mxu0 0.0
    %268 = vmatpush1.msra.mxu0 %v233
    %269 = vmatprep.subr.mxu0 0.0
    %270 = vmatpush1.msra.mxu0 %v232
    %271 = vmatprep.subr.mxu0 0.0
    %272 = vmatpush1.msra.mxu0 %v231
    %273 = vmatprep.subr.mxu0 0.0
    %274 = vmatpush2.msra.mxu0 0.0
    %275 = vmatprep.subr.mxu0 0.0
    %276 = vmatpush2.msra.mxu0 0.0
    %277 = vmatprep.subr.mxu0 0.0
    %278 = vmatpush2.msra.mxu0 0.0
    %279 = vmatprep.subr.mxu0 0.0
    %280 = vmatpush2.msra.mxu0 0.0
    %281 = vmatprep.subr.mxu0 0.0
    %282 = vmatpush2.msra.mxu0 0.0
    %283 = vmatprep.subr.mxu0 0.0
    %284 = vmatpush2.msra.mxu0 0.0
    %285 = vmatprep.subr.mxu0 0.0
    %286 = vmatpush2.msra.mxu0 0.0
    %287 = vmatprep.subr.mxu0 0.0
    %288 = vmatpush2.msra.mxu0 0.0
    %289 = vmatprep.subr.mxu0 0.0
    %290 = vmatpush2.msra.mxu0 0.0
    %291 = vmatprep.subr.mxu0 0.0
    %292 = vmatpush2.msra.mxu0 0.0
    %293 = vmatprep.subr.mxu0 0.0
    %294 = vmatpush2.msra.mxu0 0.0
    %295 = vmatprep.subr.mxu0 0.0
    %296 = vmatpush2.msra.mxu0 0.0
    %297 = vmatprep.subr.mxu0 0.0
    %298 = vmatpush2.msra.mxu0 0.0
    %299 = vmatprep.subr.mxu0 0.0
    %300 = vmatpush2.msra.mxu0 0.0
    %301 = vmatprep.subr.mxu0 0.0
    %302 = vmatpush2.msra.mxu0 0.0
    %303 = vmatprep.subr.mxu0 0.0
    %304 = vmatpush2.msra.mxu0 0.0
    %305 = vmatprep.mubr.f32.mxu0 0.0
    %306 = vmatmul.mubr.f32.gmra.mxu0 %v236
    %v307 = vpop.f32.mrf.mxu0
    %v308 = vadd.f32 0.0, %v307
    %v309 = vpop.f32.mrf.mxu0
    %310 = vmatprep.mubr.f32.mxu0 0.0
    %311 = vmatmul.mubr.f32.gmra.mxu0 %v239
    %v312 = vpop.f32.mrf.mxu0
    %v313 = vadd.f32 0.0, %v312
    %v314 = vpop.f32.mrf.mxu0
    %315 = vdwg.mxu0
    %318 = vrot.lane.b32.xlu0 %v308, 120
    %v319 = vpop.permute.xlu0 %318
    %320 = vrot.lane.b32.xlu0 %v313, 120
    %v321 = vpop.permute.xlu0 %320
    %322 = vrot.lane.b32.xlu0 %v308, 112
    %v323 = vpop.permute.xlu0 %322
    %324 = vrot.lane.b32.xlu0 %v313, 112
    %v325 = vpop.permute.xlu0 %324
    %326 = vrot.lane.b32.xlu0 %v308, 104
    %v327 = vpop.permute.xlu0 %326
    %328 = vrot.lane.b32.xlu0 %v313, 104
    %v329 = vpop.permute.xlu0 %328
    %v330 = vld [vmem:[%s6] sm:$0xff]
    %v331 = vld [vmem:[%s6 + $0x8] sm:$0xff]
    %v332 = vld [vmem:[%s6 + $0x10] sm:$0xff]
    %v333 = vld [vmem:[%s6 + $0x18] sm:$0xff]
    %v334 = vld [vmem:[#allocation10 + $0x7] sm:$0x1]
    %335 = vrot.lane.b32.xlu0 %v308, 96
    %v336 = vpop.permute.xlu0 %335
    %vm337 = vcmask 64512
    %v338 = vsel %vm337, %v308, 0
    %v340 = vsel %vm337, %v336, 0
    %342 = vmatprep.subr.mxu0 0.0
    %343 = vmatpush1.xpose.msra.mxu0 0.0
    %344 = vmatprep.subr.mxu0 0.0
    %345 = vmatpush1.xpose.msra.mxu0 0.0
    %346 = vmatprep.subr.mxu0 0.0
    %347 = vmatpush1.xpose.msra.mxu0 0.0
    %348 = vmatprep.subr.mxu0 0.0
    %349 = vmatpush1.xpose.msra.mxu0 0.0
    %350 = vmatprep.subr.mxu0 0.0
    %351 = vmatpush1.xpose.msra.mxu0 0.0
    %352 = vmatprep.subr.mxu0 0.0
    %353 = vmatpush1.xpose.msra.mxu0 0.0
    %354 = vmatprep.subr.mxu0 0.0
    %355 = vmatpush1.xpose.msra.mxu0 0.0
    %356 = vmatprep.subr.mxu0 0.0
    %357 = vmatpush1.xpose.msra.mxu0 0.0
    %358 = vmatprep.subr.mxu0 0.0
    %359 = vmatpush1.xpose.msra.mxu0 0.0
    %360 = vmatprep.subr.mxu0 0.0
    %361 = vmatpush1.xpose.msra.mxu0 0.0
    %362 = vmatprep.subr.mxu0 0.0
    %363 = vmatpush1.xpose.msra.mxu0 0.0
    %364 = vmatprep.subr.mxu0 0.0
    %365 = vmatpush1.xpose.msra.mxu0 0.0
    %366 = vmatprep.subr.mxu0 0.0
    %367 = vmatpush1.xpose.msra.mxu0 0.0
    %368 = vmatprep.subr.mxu0 0.0
    %369 = vmatpush1.xpose.msra.mxu0 0.0
    %370 = vmatprep.subr.mxu0 0.0
    %371 = vmatpush1.xpose.msra.mxu0 0.0
    %372 = vmatprep.subr.mxu0 0.0
    %373 = vmatpush1.xpose.msra.mxu0 %v340
    %374 = vmatprep.subr.mxu0 0.0
    %375 = vmatpush2.xpose.msra.mxu0 0.0
    %376 = vmatprep.subr.mxu0 0.0
    %377 = vmatpush2.xpose.msra.mxu0 0.0
    %378 = vmatprep.subr.mxu0 0.0
    %379 = vmatpush2.xpose.msra.mxu0 0.0
    %380 = vmatprep.subr.mxu0 0.0
    %381 = vmatpush2.xpose.msra.mxu0 0.0
    %382 = vmatprep.subr.mxu0 0.0
    %383 = vmatpush2.xpose.msra.mxu0 0.0
    %384 = vmatprep.subr.mxu0 0.0
    %385 = vmatpush2.xpose.msra.mxu0 0.0
    %386 = vmatprep.subr.mxu0 0.0
    %387 = vmatpush2.xpose.msra.mxu0 0.0
    %388 = vmatprep.subr.mxu0 0.0
    %389 = vmatpush2.xpose.msra.mxu0 0.0
    %390 = vmatprep.subr.mxu0 0.0
    %391 = vmatpush2.xpose.msra.mxu0 0.0
    %392 = vmatprep.subr.mxu0 0.0
    %393 = vmatpush2.xpose.msra.mxu0 0.0
    %394 = vmatprep.subr.mxu0 0.0
    %395 = vmatpush2.xpose.msra.mxu0 0.0
    %396 = vmatprep.subr.mxu0 0.0
    %397 = vmatpush2.xpose.msra.mxu0 0.0
    %398 = vmatprep.subr.mxu0 0.0
    %399 = vmatpush2.xpose.msra.mxu0 0.0
    %400 = vmatprep.subr.mxu0 0.0
    %401 = vmatpush2.xpose.msra.mxu0 0.0
    %402 = vmatprep.subr.mxu0 0.0
    %403 = vmatpush2.xpose.msra.mxu0 0.0
    %404 = vmatprep.subr.mxu0 0.0
    %405 = vmatpush2.xpose.msra.mxu0 0.0
    %406 = vmatprep.mubr.f32.mxu0 0.0
    %407 = vmatmul.mubr.f32.gmra.mxu0 %v338
    %v408 = vpop.f32.mrf.mxu0
    %v409 = vadd.f32 0.0, %v408
    %v410 = vpop.f32.mrf.mxu0
    %411 = vdwg.mxu0
    %412 = vrot.lane.b32.xlu0 %v313, 96
    %v413 = vpop.permute.xlu0 %412
    %v414 = vsel %vm337, %v313, 0
    %v416 = vsel %vm337, %v413, 0
    %418 = vmatprep.subr.mxu0 0.0
    %419 = vmatpush1.xpose.msra.mxu0 0.0
    %420 = vmatprep.subr.mxu0 0.0
    %421 = vmatpush1.xpose.msra.mxu0 0.0
    %422 = vmatprep.subr.mxu0 0.0
    %423 = vmatpush1.xpose.msra.mxu0 0.0
    %424 = vmatprep.subr.mxu0 0.0
    %425 = vmatpush1.xpose.msra.mxu0 0.0
    %426 = vmatprep.subr.mxu0 0.0
    %427 = vmatpush1.xpose.msra.mxu0 0.0
    %428 = vmatprep.subr.mxu0 0.0
    %429 = vmatpush1.xpose.msra.mxu0 0.0
    %430 = vmatprep.subr.mxu0 0.0
    %431 = vmatpush1.xpose.msra.mxu0 0.0
    %432 = vmatprep.subr.mxu0 0.0
    %433 = vmatpush1.xpose.msra.mxu0 0.0
    %434 = vmatprep.subr.mxu0 0.0
    %435 = vmatpush1.xpose.msra.mxu0 0.0
    %436 = vmatprep.subr.mxu0 0.0
    %437 = vmatpush1.xpose.msra.mxu0 0.0
    %438 = vmatprep.subr.mxu0 0.0
    %439 = vmatpush1.xpose.msra.mxu0 0.0
    %440 = vmatprep.subr.mxu0 0.0
    %441 = vmatpush1.xpose.msra.mxu0 0.0
    %442 = vmatprep.subr.mxu0 0.0
    %443 = vmatpush1.xpose.msra.mxu0 0.0
    %444 = vmatprep.subr.mxu0 0.0
    %445 = vmatpush1.xpose.msra.mxu0 0.0
    %446 = vmatprep.subr.mxu0 0.0
    %447 = vmatpush1.xpose.msra.mxu0 0.0
    %448 = vmatprep.subr.mxu0 0.0
    %449 = vmatpush1.xpose.msra.mxu0 %v416
    %450 = vmatprep.subr.mxu0 0.0
    %451 = vmatpush2.xpose.msra.mxu0 0.0
    %452 = vmatprep.subr.mxu0 0.0
    %453 = vmatpush2.xpose.msra.mxu0 0.0
    %454 = vmatprep.subr.mxu0 0.0
    %455 = vmatpush2.xpose.msra.mxu0 0.0
    %456 = vmatprep.subr.mxu0 0.0
    %457 = vmatpush2.xpose.msra.mxu0 0.0
    %458 = vmatprep.subr.mxu0 0.0
    %459 = vmatpush2.xpose.msra.mxu0 0.0
    %460 = vmatprep.subr.mxu0 0.0
    %461 = vmatpush2.xpose.msra.mxu0 0.0
    %462 = vmatprep.subr.mxu0 0.0
    %463 = vmatpush2.xpose.msra.mxu0 0.0
    %464 = vmatprep.subr.mxu0 0.0
    %465 = vmatpush2.xpose.msra.mxu0 0.0
    %466 = vmatprep.subr.mxu0 0.0
    %467 = vmatpush2.xpose.msra.mxu0 0.0
    %468 = vmatprep.subr.mxu0 0.0
    %469 = vmatpush2.xpose.msra.mxu0 0.0
    %470 = vmatprep.subr.mxu0 0.0
    %471 = vmatpush2.xpose.msra.mxu0 0.0
    %472 = vmatprep.subr.mxu0 0.0
    %473 = vmatpush2.xpose.msra.mxu0 0.0
    %474 = vmatprep.subr.mxu0 0.0
    %475 = vmatpush2.xpose.msra.mxu0 0.0
    %476 = vmatprep.subr.mxu0 0.0
    %477 = vmatpush2.xpose.msra.mxu0 0.0
    %478 = vmatprep.subr.mxu0 0.0
    %479 = vmatpush2.xpose.msra.mxu0 0.0
    %480 = vmatprep.subr.mxu0 0.0
    %481 = vmatpush2.xpose.msra.mxu0 0.0
    %482 = vmatprep.mubr.f32.mxu0 0.0
    %483 = vmatmul.mubr.f32.gmra.mxu0 %v414
    %v484 = vpop.f32.mrf.mxu0
    %v485 = vadd.f32 0.0, %v484
    %v486 = vpop.f32.mrf.mxu0
    %487 = vdwg.mxu0
    %488 = vrot.lane.b32.xlu0 %v319, 96
    %v489 = vpop.permute.xlu0 %488
    %v490 = vsel %vm337, %v319, 0
    %v492 = vsel %vm337, %v489, 0
    %494 = vmatprep.subr.mxu0 0.0
    %495 = vmatpush1.xpose.msra.mxu0 0.0
    %496 = vmatprep.subr.mxu0 0.0
    %497 = vmatpush1.xpose.msra.mxu0 0.0
    %498 = vmatprep.subr.mxu0 0.0
    %499 = vmatpush1.xpose.msra.mxu0 0.0
    %500 = vmatprep.subr.mxu0 0.0
    %501 = vmatpush1.xpose.msra.mxu0 0.0
    %502 = vmatprep.subr.mxu0 0.0
    %503 = vmatpush1.xpose.msra.mxu0 0.0
    %504 = vmatprep.subr.mxu0 0.0
    %505 = vmatpush1.xpose.msra.mxu0 0.0
    %506 = vmatprep.subr.mxu0 0.0
    %507 = vmatpush1.xpose.msra.mxu0 0.0
    %508 = vmatprep.subr.mxu0 0.0
    %509 = vmatpush1.xpose.msra.mxu0 0.0
    %510 = vmatprep.subr.mxu0 0.0
    %511 = vmatpush1.xpose.msra.mxu0 0.0
    %512 = vmatprep.subr.mxu0 0.0
    %513 = vmatpush1.xpose.msra.mxu0 0.0
    %514 = vmatprep.subr.mxu0 0.0
    %515 = vmatpush1.xpose.msra.mxu0 0.0
    %516 = vmatprep.subr.mxu0 0.0
    %517 = vmatpush1.xpose.msra.mxu0 0.0
    %518 = vmatprep.subr.mxu0 0.0
    %519 = vmatpush1.xpose.msra.mxu0 0.0
    %520 = vmatprep.subr.mxu0 0.0
    %521 = vmatpush1.xpose.msra.mxu0 0.0
    %522 = vmatprep.subr.mxu0 0.0
    %523 = vmatpush1.xpose.msra.mxu0 0.0
    %524 = vmatprep.subr.mxu0 0.0
    %525 = vmatpush1.xpose.msra.mxu0 %v492
    %526 = vmatprep.subr.mxu0 0.0
    %527 = vmatpush2.xpose.msra.mxu0 0.0
    %528 = vmatprep.subr.mxu0 0.0
    %529 = vmatpush2.xpose.msra.mxu0 0.0
    %530 = vmatprep.subr.mxu0 0.0
    %531 = vmatpush2.xpose.msra.mxu0 0.0
    %532 = vmatprep.subr.mxu0 0.0
    %533 = vmatpush2.xpose.msra.mxu0 0.0
    %534 = vmatprep.subr.mxu0 0.0
    %535 = vmatpush2.xpose.msra.mxu0 0.0
    %536 = vmatprep.subr.mxu0 0.0
    %537 = vmatpush2.xpose.msra.mxu0 0.0
    %538 = vmatprep.subr.mxu0 0.0
    %539 = vmatpush2.xpose.msra.mxu0 0.0
    %540 = vmatprep.subr.mxu0 0.0
    %541 = vmatpush2.xpose.msra.mxu0 0.0
    %542 = vmatprep.subr.mxu0 0.0
    %543 = vmatpush2.xpose.msra.mxu0 0.0
    %544 = vmatprep.subr.mxu0 0.0
    %545 = vmatpush2.xpose.msra.mxu0 0.0
    %546 = vmatprep.subr.mxu0 0.0
    %547 = vmatpush2.xpose.msra.mxu0 0.0
    %548 = vmatprep.subr.mxu0 0.0
    %549 = vmatpush2.xpose.msra.mxu0 0.0
    %550 = vmatprep.subr.mxu0 0.0
    %551 = vmatpush2.xpose.msra.mxu0 0.0
    %552 = vmatprep.subr.mxu0 0.0
    %553 = vmatpush2.xpose.msra.mxu0 0.0
    %554 = vmatprep.subr.mxu0 0.0
    %555 = vmatpush2.xpose.msra.mxu0 0.0
    %556 = vmatprep.subr.mxu0 0.0
    %557 = vmatpush2.xpose.msra.mxu0 0.0
    %558 = vmatprep.mubr.f32.mxu0 0.0
    %559 = vmatmul.mubr.f32.gmra.mxu0 %v490
    %v560 = vpop.f32.mrf.mxu0
    %v561 = vadd.f32 0.0, %v560
    %v562 = vpop.f32.mrf.mxu0
    %563 = vdwg.mxu0
    %564 = vrot.lane.b32.xlu0 %v321, 96
    %v565 = vpop.permute.xlu0 %564
    %v566 = vsel %vm337, %v321, 0
    %v568 = vsel %vm337, %v565, 0
    %570 = vmatprep.subr.mxu0 0.0
    %571 = vmatpush1.xpose.msra.mxu0 0.0
    %572 = vmatprep.subr.mxu0 0.0
    %573 = vmatpush1.xpose.msra.mxu0 0.0
    %574 = vmatprep.subr.mxu0 0.0
    %575 = vmatpush1.xpose.msra.mxu0 0.0
    %576 = vmatprep.subr.mxu0 0.0
    %577 = vmatpush1.xpose.msra.mxu0 0.0
    %578 = vmatprep.subr.mxu0 0.0
    %579 = vmatpush1.xpose.msra.mxu0 0.0
    %580 = vmatprep.subr.mxu0 0.0
    %581 = vmatpush1.xpose.msra.mxu0 0.0
    %582 = vmatprep.subr.mxu0 0.0
    %583 = vmatpush1.xpose.msra.mxu0 0.0
    %584 = vmatprep.subr.mxu0 0.0
    %585 = vmatpush1.xpose.msra.mxu0 0.0
    %586 = vmatprep.subr.mxu0 0.0
    %587 = vmatpush1.xpose.msra.mxu0 0.0
    %588 = vmatprep.subr.mxu0 0.0
    %589 = vmatpush1.xpose.msra.mxu0 0.0
    %590 = vmatprep.subr.mxu0 0.0
    %591 = vmatpush1.xpose.msra.mxu0 0.0
    %592 = vmatprep.subr.mxu0 0.0
    %593 = vmatpush1.xpose.msra.mxu0 0.0
    %594 = vmatprep.subr.mxu0 0.0
    %595 = vmatpush1.xpose.msra.mxu0 0.0
    %596 = vmatprep.subr.mxu0 0.0
    %597 = vmatpush1.xpose.msra.mxu0 0.0
    %598 = vmatprep.subr.mxu0 0.0
    %599 = vmatpush1.xpose.msra.mxu0 0.0
    %600 = vmatprep.subr.mxu0 0.0
    %601 = vmatpush1.xpose.msra.mxu0 %v568
    %602 = vmatprep.subr.mxu0 0.0
    %603 = vmatpush2.xpose.msra.mxu0 0.0
    %604 = vmatprep.subr.mxu0 0.0
    %605 = vmatpush2.xpose.msra.mxu0 0.0
    %606 = vmatprep.subr.mxu0 0.0
    %607 = vmatpush2.xpose.msra.mxu0 0.0
    %608 = vmatprep.subr.mxu0 0.0
    %609 = vmatpush2.xpose.msra.mxu0 0.0
    %610 = vmatprep.subr.mxu0 0.0
    %611 = vmatpush2.xpose.msra.mxu0 0.0
    %612 = vmatprep.subr.mxu0 0.0
    %613 = vmatpush2.xpose.msra.mxu0 0.0
    %614 = vmatprep.subr.mxu0 0.0
    %615 = vmatpush2.xpose.msra.mxu0 0.0
    %616 = vmatprep.subr.mxu0 0.0
    %617 = vmatpush2.xpose.msra.mxu0 0.0
    %618 = vmatprep.subr.mxu0 0.0
    %619 = vmatpush2.xpose.msra.mxu0 0.0
    %620 = vmatprep.subr.mxu0 0.0
    %621 = vmatpush2.xpose.msra.mxu0 0.0
    %622 = vmatprep.subr.mxu0 0.0
    %623 = vmatpush2.xpose.msra.mxu0 0.0
    %624 = vmatprep.subr.mxu0 0.0
    %625 = vmatpush2.xpose.msra.mxu0 0.0
    %626 = vmatprep.subr.mxu0 0.0
    %627 = vmatpush2.xpose.msra.mxu0 0.0
    %628 = vmatprep.subr.mxu0 0.0
    %629 = vmatpush2.xpose.msra.mxu0 0.0
    %630 = vmatprep.subr.mxu0 0.0
    %631 = vmatpush2.xpose.msra.mxu0 0.0
    %632 = vmatprep.subr.mxu0 0.0
    %633 = vmatpush2.xpose.msra.mxu0 0.0
    %634 = vmatprep.mubr.f32.mxu0 0.0
    %635 = vmatmul.mubr.f32.gmra.mxu0 %v566
    %v636 = vpop.f32.mrf.mxu0
    %v637 = vadd.f32 0.0, %v636
    %v638 = vpop.f32.mrf.mxu0
    %639 = vdwg.mxu0
    %640 = vrot.lane.b32.xlu0 %v323, 96
    %v641 = vpop.permute.xlu0 %640
    %v642 = vsel %vm337, %v323, 0
    %v644 = vsel %vm337, %v641, 0
    %646 = vmatprep.subr.mxu0 0.0
    %647 = vmatpush1.xpose.msra.mxu0 0.0
    %648 = vmatprep.subr.mxu0 0.0
    %649 = vmatpush1.xpose.msra.mxu0 0.0
    %650 = vmatprep.subr.mxu0 0.0
    %651 = vmatpush1.xpose.msra.mxu0 0.0
    %652 = vmatprep.subr.mxu0 0.0
    %653 = vmatpush1.xpose.msra.mxu0 0.0
    %654 = vmatprep.subr.mxu0 0.0
    %655 = vmatpush1.xpose.msra.mxu0 0.0
    %656 = vmatprep.subr.mxu0 0.0
    %657 = vmatpush1.xpose.msra.mxu0 0.0
    %658 = vmatprep.subr.mxu0 0.0
    %659 = vmatpush1.xpose.msra.mxu0 0.0
    %660 = vmatprep.subr.mxu0 0.0
    %661 = vmatpush1.xpose.msra.mxu0 0.0
    %662 = vmatprep.subr.mxu0 0.0
    %663 = vmatpush1.xpose.msra.mxu0 0.0
    %664 = vmatprep.subr.mxu0 0.0
    %665 = vmatpush1.xpose.msra.mxu0 0.0
    %666 = vmatprep.subr.mxu0 0.0
    %667 = vmatpush1.xpose.msra.mxu0 0.0
    %668 = vmatprep.subr.mxu0 0.0
    %669 = vmatpush1.xpose.msra.mxu0 0.0
    %670 = vmatprep.subr.mxu0 0.0
    %671 = vmatpush1.xpose.msra.mxu0 0.0
    %672 = vmatprep.subr.mxu0 0.0
    %673 = vmatpush1.xpose.msra.mxu0 0.0
    %674 = vmatprep.subr.mxu0 0.0
    %675 = vmatpush1.xpose.msra.mxu0 0.0
    %676 = vmatprep.subr.mxu0 0.0
    %677 = vmatpush1.xpose.msra.mxu0 %v644
    %678 = vmatprep.subr.mxu0 0.0
    %679 = vmatpush2.xpose.msra.mxu0 0.0
    %680 = vmatprep.subr.mxu0 0.0
    %681 = vmatpush2.xpose.msra.mxu0 0.0
    %682 = vmatprep.subr.mxu0 0.0
    %683 = vmatpush2.xpose.msra.mxu0 0.0
    %684 = vmatprep.subr.mxu0 0.0
    %685 = vmatpush2.xpose.msra.mxu0 0.0
    %686 = vmatprep.subr.mxu0 0.0
    %687 = vmatpush2.xpose.msra.mxu0 0.0
    %688 = vmatprep.subr.mxu0 0.0
    %689 = vmatpush2.xpose.msra.mxu0 0.0
    %690 = vmatprep.subr.mxu0 0.0
    %691 = vmatpush2.xpose.msra.mxu0 0.0
    %692 = vmatprep.subr.mxu0 0.0
    %693 = vmatpush2.xpose.msra.mxu0 0.0
    %694 = vmatprep.subr.mxu0 0.0
    %695 = vmatpush2.xpose.msra.mxu0 0.0
    %696 = vmatprep.subr.mxu0 0.0
    %697 = vmatpush2.xpose.msra.mxu0 0.0
    %698 = vmatprep.subr.mxu0 0.0
    %699 = vmatpush2.xpose.msra.mxu0 0.0
    %700 = vmatprep.subr.mxu0 0.0
    %701 = vmatpush2.xpose.msra.mxu0 0.0
    %702 = vmatprep.subr.mxu0 0.0
    %703 = vmatpush2.xpose.msra.mxu0 0.0
    %704 = vmatprep.subr.mxu0 0.0
    %705 = vmatpush2.xpose.msra.mxu0 0.0
    %706 = vmatprep.subr.mxu0 0.0
    %707 = vmatpush2.xpose.msra.mxu0 0.0
    %708 = vmatprep.subr.mxu0 0.0
    %709 = vmatpush2.xpose.msra.mxu0 0.0
    %710 = vmatprep.mubr.f32.mxu0 0.0
    %711 = vmatmul.mubr.f32.gmra.mxu0 %v642
    %v712 = vpop.f32.mrf.mxu0
    %v713 = vadd.f32 0.0, %v712
    %v714 = vpop.f32.mrf.mxu0
    %715 = vdwg.mxu0
    %716 = vrot.lane.b32.xlu0 %v325, 96
    %v717 = vpop.permute.xlu0 %716
    %v718 = vsel %vm337, %v325, 0
    %v720 = vsel %vm337, %v717, 0
    %722 = vmatprep.subr.mxu0 0.0
    %723 = vmatpush1.xpose.msra.mxu0 0.0
    %724 = vmatprep.subr.mxu0 0.0
    %725 = vmatpush1.xpose.msra.mxu0 0.0
    %726 = vmatprep.subr.mxu0 0.0
    %727 = vmatpush1.xpose.msra.mxu0 0.0
    %728 = vmatprep.subr.mxu0 0.0
    %729 = vmatpush1.xpose.msra.mxu0 0.0
    %730 = vmatprep.subr.mxu0 0.0
    %731 = vmatpush1.xpose.msra.mxu0 0.0
    %732 = vmatprep.subr.mxu0 0.0
    %733 = vmatpush1.xpose.msra.mxu0 0.0
    %734 = vmatprep.subr.mxu0 0.0
    %735 = vmatpush1.xpose.msra.mxu0 0.0
    %736 = vmatprep.subr.mxu0 0.0
    %737 = vmatpush1.xpose.msra.mxu0 0.0
    %738 = vmatprep.subr.mxu0 0.0
    %739 = vmatpush1.xpose.msra.mxu0 0.0
    %740 = vmatprep.subr.mxu0 0.0
    %741 = vmatpush1.xpose.msra.mxu0 0.0
    %742 = vmatprep.subr.mxu0 0.0
    %743 = vmatpush1.xpose.msra.mxu0 0.0
    %744 = vmatprep.subr.mxu0 0.0
    %745 = vmatpush1.xpose.msra.mxu0 0.0
    %746 = vmatprep.subr.mxu0 0.0
    %747 = vmatpush1.xpose.msra.mxu0 0.0
    %748 = vmatprep.subr.mxu0 0.0
    %749 = vmatpush1.xpose.msra.mxu0 0.0
    %750 = vmatprep.subr.mxu0 0.0
    %751 = vmatpush1.xpose.msra.mxu0 0.0
    %752 = vmatprep.subr.mxu0 0.0
    %753 = vmatpush1.xpose.msra.mxu0 %v720
    %754 = vmatprep.subr.mxu0 0.0
    %755 = vmatpush2.xpose.msra.mxu0 0.0
    %756 = vmatprep.subr.mxu0 0.0
    %757 = vmatpush2.xpose.msra.mxu0 0.0
    %758 = vmatprep.subr.mxu0 0.0
    %759 = vmatpush2.xpose.msra.mxu0 0.0
    %760 = vmatprep.subr.mxu0 0.0
    %761 = vmatpush2.xpose.msra.mxu0 0.0
    %762 = vmatprep.subr.mxu0 0.0
    %763 = vmatpush2.xpose.msra.mxu0 0.0
    %764 = vmatprep.subr.mxu0 0.0
    %765 = vmatpush2.xpose.msra.mxu0 0.0
    %766 = vmatprep.subr.mxu0 0.0
    %767 = vmatpush2.xpose.msra.mxu0 0.0
    %768 = vmatprep.subr.mxu0 0.0
    %769 = vmatpush2.xpose.msra.mxu0 0.0
    %770 = vmatprep.subr.mxu0 0.0
    %771 = vmatpush2.xpose.msra.mxu0 0.0
    %772 = vmatprep.subr.mxu0 0.0
    %773 = vmatpush2.xpose.msra.mxu0 0.0
    %774 = vmatprep.subr.mxu0 0.0
    %775 = vmatpush2.xpose.msra.mxu0 0.0
    %776 = vmatprep.subr.mxu0 0.0
    %777 = vmatpush2.xpose.msra.mxu0 0.0
    %778 = vmatprep.subr.mxu0 0.0
    %779 = vmatpush2.xpose.msra.mxu0 0.0
    %780 = vmatprep.subr.mxu0 0.0
    %781 = vmatpush2.xpose.msra.mxu0 0.0
    %782 = vmatprep.subr.mxu0 0.0
    %783 = vmatpush2.xpose.msra.mxu0 0.0
    %784 = vmatprep.subr.mxu0 0.0
    %785 = vmatpush2.xpose.msra.mxu0 0.0
    %786 = vmatprep.mubr.f32.mxu0 0.0
    %787 = vmatmul.mubr.f32.gmra.mxu0 %v718
    %v788 = vpop.f32.mrf.mxu0
    %v789 = vadd.f32 0.0, %v788
    %v790 = vpop.f32.mrf.mxu0
    %791 = vdwg.mxu0
    %792 = vrot.lane.b32.xlu0 %v327, 96
    %v793 = vpop.permute.xlu0 %792
    %v794 = vsel %vm337, %v327, 0
    %v796 = vsel %vm337, %v793, 0
    %798 = vmatprep.subr.mxu0 0.0
    %799 = vmatpush1.xpose.msra.mxu0 0.0
    %800 = vmatprep.subr.mxu0 0.0
    %801 = vmatpush1.xpose.msra.mxu0 0.0
    %802 = vmatprep.subr.mxu0 0.0
    %803 = vmatpush1.xpose.msra.mxu0 0.0
    %804 = vmatprep.subr.mxu0 0.0
    %805 = vmatpush1.xpose.msra.mxu0 0.0
    %806 = vmatprep.subr.mxu0 0.0
    %807 = vmatpush1.xpose.msra.mxu0 0.0
    %808 = vmatprep.subr.mxu0 0.0
    %809 = vmatpush1.xpose.msra.mxu0 0.0
    %810 = vmatprep.subr.mxu0 0.0
    %811 = vmatpush1.xpose.msra.mxu0 0.0
    %812 = vmatprep.subr.mxu0 0.0
    %813 = vmatpush1.xpose.msra.mxu0 0.0
    %814 = vmatprep.subr.mxu0 0.0
    %815 = vmatpush1.xpose.msra.mxu0 0.0
    %816 = vmatprep.subr.mxu0 0.0
    %817 = vmatpush1.xpose.msra.mxu0 0.0
    %818 = vmatprep.subr.mxu0 0.0
    %819 = vmatpush1.xpose.msra.mxu0 0.0
    %820 = vmatprep.subr.mxu0 0.0
    %821 = vmatpush1.xpose.msra.mxu0 0.0
    %822 = vmatprep.subr.mxu0 0.0
    %823 = vmatpush1.xpose.msra.mxu0 0.0
    %824 = vmatprep.subr.mxu0 0.0
    %825 = vmatpush1.xpose.msra.mxu0 0.0
    %826 = vmatprep.subr.mxu0 0.0
    %827 = vmatpush1.xpose.msra.mxu0 0.0
    %828 = vmatprep.subr.mxu0 0.0
    %829 = vmatpush1.xpose.msra.mxu0 %v796
    %830 = vmatprep.subr.mxu0 0.0
    %831 = vmatpush2.xpose.msra.mxu0 0.0
    %832 = vmatprep.subr.mxu0 0.0
    %833 = vmatpush2.xpose.msra.mxu0 0.0
    %834 = vmatprep.subr.mxu0 0.0
    %835 = vmatpush2.xpose.msra.mxu0 0.0
    %836 = vmatprep.subr.mxu0 0.0
    %837 = vmatpush2.xpose.msra.mxu0 0.0
    %838 = vmatprep.subr.mxu0 0.0
    %839 = vmatpush2.xpose.msra.mxu0 0.0
    %840 = vmatprep.subr.mxu0 0.0
    %841 = vmatpush2.xpose.msra.mxu0 0.0
    %842 = vmatprep.subr.mxu0 0.0
    %843 = vmatpush2.xpose.msra.mxu0 0.0
    %844 = vmatprep.subr.mxu0 0.0
    %845 = vmatpush2.xpose.msra.mxu0 0.0
    %846 = vmatprep.subr.mxu0 0.0
    %847 = vmatpush2.xpose.msra.mxu0 0.0
    %848 = vmatprep.subr.mxu0 0.0
    %849 = vmatpush2.xpose.msra.mxu0 0.0
    %850 = vmatprep.subr.mxu0 0.0
    %851 = vmatpush2.xpose.msra.mxu0 0.0
    %852 = vmatprep.subr.mxu0 0.0
    %853 = vmatpush2.xpose.msra.mxu0 0.0
    %854 = vmatprep.subr.mxu0 0.0
    %855 = vmatpush2.xpose.msra.mxu0 0.0
    %856 = vmatprep.subr.mxu0 0.0
    %857 = vmatpush2.xpose.msra.mxu0 0.0
    %858 = vmatprep.subr.mxu0 0.0
    %859 = vmatpush2.xpose.msra.mxu0 0.0
    %860 = vmatprep.subr.mxu0 0.0
    %861 = vmatpush2.xpose.msra.mxu0 0.0
    %862 = vmatprep.mubr.f32.mxu0 0.0
    %863 = vmatmul.mubr.f32.gmra.mxu0 %v794
    %v864 = vpop.f32.mrf.mxu0
    %v865 = vadd.f32 0.0, %v864
    %v866 = vpop.f32.mrf.mxu0
    %867 = vdwg.mxu0
    %868 = vrot.lane.b32.xlu0 %v329, 96
    %v869 = vpop.permute.xlu0 %868
    %v870 = vsel %vm337, %v329, 0
    %v872 = vsel %vm337, %v869, 0
    %874 = vmatprep.subr.mxu0 0.0
    %875 = vmatpush1.xpose.msra.mxu0 0.0
    %876 = vmatprep.subr.mxu0 0.0
    %877 = vmatpush1.xpose.msra.mxu0 0.0
    %878 = vmatprep.subr.mxu0 0.0
    %879 = vmatpush1.xpose.msra.mxu0 0.0
    %880 = vmatprep.subr.mxu0 0.0
    %881 = vmatpush1.xpose.msra.mxu0 0.0
    %882 = vmatprep.subr.mxu0 0.0
    %883 = vmatpush1.xpose.msra.mxu0 0.0
    %884 = vmatprep.subr.mxu0 0.0
    %885 = vmatpush1.xpose.msra.mxu0 0.0
    %886 = vmatprep.subr.mxu0 0.0
    %887 = vmatpush1.xpose.msra.mxu0 0.0
    %888 = vmatprep.subr.mxu0 0.0
    %889 = vmatpush1.xpose.msra.mxu0 0.0
    %890 = vmatprep.subr.mxu0 0.0
    %891 = vmatpush1.xpose.msra.mxu0 0.0
    %892 = vmatprep.subr.mxu0 0.0
    %893 = vmatpush1.xpose.msra.mxu0 0.0
    %894 = vmatprep.subr.mxu0 0.0
    %895 = vmatpush1.xpose.msra.mxu0 0.0
    %896 = vmatprep.subr.mxu0 0.0
    %897 = vmatpush1.xpose.msra.mxu0 0.0
    %898 = vmatprep.subr.mxu0 0.0
    %899 = vmatpush1.xpose.msra.mxu0 0.0
    %900 = vmatprep.subr.mxu0 0.0
    %901 = vmatpush1.xpose.msra.mxu0 0.0
    %902 = vmatprep.subr.mxu0 0.0
    %903 = vmatpush1.xpose.msra.mxu0 0.0
    %904 = vmatprep.subr.mxu0 0.0
    %905 = vmatpush1.xpose.msra.mxu0 %v872
    %906 = vmatprep.subr.mxu0 0.0
    %907 = vmatpush2.xpose.msra.mxu0 0.0
    %908 = vmatprep.subr.mxu0 0.0
    %909 = vmatpush2.xpose.msra.mxu0 0.0
    %910 = vmatprep.subr.mxu0 0.0
    %911 = vmatpush2.xpose.msra.mxu0 0.0
    %912 = vmatprep.subr.mxu0 0.0
    %913 = vmatpush2.xpose.msra.mxu0 0.0
    %914 = vmatprep.subr.mxu0 0.0
    %915 = vmatpush2.xpose.msra.mxu0 0.0
    %916 = vmatprep.subr.mxu0 0.0
    %917 = vmatpush2.xpose.msra.mxu0 0.0
    %918 = vmatprep.subr.mxu0 0.0
    %919 = vmatpush2.xpose.msra.mxu0 0.0
    %920 = vmatprep.subr.mxu0 0.0
    %921 = vmatpush2.xpose.msra.mxu0 0.0
    %922 = vmatprep.subr.mxu0 0.0
    %923 = vmatpush2.xpose.msra.mxu0 0.0
    %924 = vmatprep.subr.mxu0 0.0
    %925 = vmatpush2.xpose.msra.mxu0 0.0
    %926 = vmatprep.subr.mxu0 0.0
    %927 = vmatpush2.xpose.msra.mxu0 0.0
    %928 = vmatprep.subr.mxu0 0.0
    %929 = vmatpush2.xpose.msra.mxu0 0.0
    %930 = vmatprep.subr.mxu0 0.0
    %931 = vmatpush2.xpose.msra.mxu0 0.0
    %932 = vmatprep.subr.mxu0 0.0
    %933 = vmatpush2.xpose.msra.mxu0 0.0
    %934 = vmatprep.subr.mxu0 0.0
    %935 = vmatpush2.xpose.msra.mxu0 0.0
    %936 = vmatprep.subr.mxu0 0.0
    %937 = vmatpush2.xpose.msra.mxu0 0.0
    %938 = vmatprep.mubr.f32.mxu0 0.0
    %939 = vmatmul.mubr.f32.gmra.mxu0 %v870
    %v940 = vpop.f32.mrf.mxu0
    %v941 = vadd.f32 0.0, %v940
    %v942 = vpop.f32.mrf.mxu0
    %943 = vdwg.mxu0
    %v944 = vmul.f32 %v409, 2.828427
    %v945 = vmul.f32 %v485, 2.828427
    %v946 = vmul.f32 %v561, 2.828427
    %v947 = vmul.f32 %v637, 2.828427
    %v948 = vmul.f32 %v713, 2.828427
    %v949 = vmul.f32 %v789, 2.828427
    %v950 = vmul.f32 %v865, 2.828427
    %v951 = vmul.f32 %v941, 2.828427
    %v952 = vadd.f32 %v944, %v108
    %v953 = vadd.f32 %v945, %v108
    %v954 = vadd.f32 %v946, %v108
    %v955 = vadd.f32 %v947, %v108
    %v956 = vadd.f32 %v948, %v108
    %v957 = vadd.f32 %v949, %v108
    %v958 = vadd.f32 %v950, %v108
    %v959 = vadd.f32 %v951, %v108
    %v960 = vsel %vm337, %v952, -inf
    %961 = vmax.xlane.f32.xlu0 %v960
    %v962 = vpop.xlane.xlu0 %961
    %v963 = vsel %vm337, %v953, -inf
    %964 = vmax.xlane.f32.xlu0 %v963
    %v965 = vpop.xlane.xlu0 %964
    %v966 = vsel %vm337, %v954, -inf
    %967 = vmax.xlane.f32.xlu0 %v966
    %v968 = vpop.xlane.xlu0 %967
    %v969 = vsel %vm337, %v955, -inf
    %970 = vmax.xlane.f32.xlu0 %v969
    %v971 = vpop.xlane.xlu0 %970
    %v972 = vsel %vm337, %v956, -inf
    %973 = vmax.xlane.f32.xlu0 %v972
    %v974 = vpop.xlane.xlu0 %973
    %v975 = vsel %vm337, %v957, -inf
    %976 = vmax.xlane.f32.xlu0 %v975
    %v977 = vpop.xlane.xlu0 %976
    %v978 = vsel %vm337, %v958, -inf
    %979 = vmax.xlane.f32.xlu0 %v978
    %v980 = vpop.xlane.xlu0 %979
    %v981 = vsel %vm337, %v959, -inf
    %982 = vmax.xlane.f32.xlu0 %v981
    %v983 = vpop.xlane.xlu0 %982
    %v984 = vsub.f32 %v952, %v962
    %v985 = vsub.f32 %v953, %v965
    %v986 = vsub.f32 %v954, %v968
    %v987 = vsub.f32 %v955, %v971
    %v988 = vsub.f32 %v956, %v974
    %v989 = vsub.f32 %v957, %v977
    %v990 = vsub.f32 %v958, %v980
    %v991 = vsub.f32 %v959, %v983
    %v992 = vmul.f32 %v984, 1.442695
    %v993 = vpow.pop %v992
    %v994 = vmul.f32 %v985, 1.442695
    %v995 = vpow.pop %v994
    %v996 = vmul.f32 %v986, 1.442695
    %v997 = vpow.pop %v996
    %v998 = vmul.f32 %v987, 1.442695
    %v999 = vpow.pop %v998
    %v1000 = vmul.f32 %v988, 1.442695
    %v1001 = vpow.pop %v1000
    %v1002 = vmul.f32 %v989, 1.442695
    %v1003 = vpow.pop %v1002
    %v1004 = vmul.f32 %v990, 1.442695
    %v1005 = vpow.pop %v1004
    %v1006 = vmul.f32 %v991, 1.442695
    %v1007 = vpow.pop %v1006
    %v1008 = vsel %vm337, %v993, 0.0
    %1009 = vadd.xlane.f32.xlu0 %v1008
    %v1010 = vpop.xlane.xlu0 %1009
    %v1011 = vsel %vm337, %v995, 0.0
    %1012 = vadd.xlane.f32.xlu0 %v1011
    %v1013 = vpop.xlane.xlu0 %1012
    %v1014 = vsel %vm337, %v997, 0.0
    %1015 = vadd.xlane.f32.xlu0 %v1014
    %v1016 = vpop.xlane.xlu0 %1015
    %v1017 = vsel %vm337, %v999, 0.0
    %1018 = vadd.xlane.f32.xlu0 %v1017
    %v1019 = vpop.xlane.xlu0 %1018
    %v1020 = vsel %vm337, %v1001, 0.0
    %1021 = vadd.xlane.f32.xlu0 %v1020
    %v1022 = vpop.xlane.xlu0 %1021
    %v1023 = vsel %vm337, %v1003, 0.0
    %1024 = vadd.xlane.f32.xlu0 %v1023
    %v1025 = vpop.xlane.xlu0 %1024
    %v1026 = vsel %vm337, %v1005, 0.0
    %1027 = vadd.xlane.f32.xlu0 %v1026
    %v1028 = vpop.xlane.xlu0 %1027
    %v1029 = vsel %vm337, %v1007, 0.0
    %1030 = vadd.xlane.f32.xlu0 %v1029
    %v1031 = vpop.xlane.xlu0 %1030
    %v1032 = vrcp.pop %v1010
    %v1033 = vrcp.pop %v1013
    %v1034 = vrcp.pop %v1016
    %v1035 = vrcp.pop %v1019
    %v1036 = vrcp.pop %v1022
    %v1037 = vrcp.pop %v1025
    %v1038 = vrcp.pop %v1028
    %v1039 = vrcp.pop %v1031
    %v1040 = vmul.f32 %v993, %v1032
    %v1041 = vmul.f32 %v995, %v1033
    %v1042 = vmul.f32 %v997, %v1034
    %v1043 = vmul.f32 %v999, %v1035
    %v1044 = vmul.f32 %v1001, %v1036
    %v1045 = vmul.f32 %v1003, %v1037
    %v1046 = vmul.f32 %v1005, %v1038
    %v1047 = vmul.f32 %v1007, %v1039
    %1048 = vrot.lane.b32.xlu0 %v308, 64
    %v1049 = vpop.permute.xlu0 %1048
    %v1052 = vsel %vm337, %v1040, 0
    %1054 = vmatprep.subr.mxu0 0.0
    %1055 = vmatpush1.msra.mxu0 0.0
    %1056 = vmatprep.subr.mxu0 0.0
    %1057 = vmatpush1.msra.mxu0 0.0
    %1058 = vmatprep.subr.mxu0 0.0
    %1059 = vmatpush1.msra.mxu0 0.0
    %1060 = vmatprep.subr.mxu0 0.0
    %1061 = vmatpush1.msra.mxu0 0.0
    %1062 = vmatprep.subr.mxu0 0.0
    %1063 = vmatpush1.msra.mxu0 0.0
    %1064 = vmatprep.subr.mxu0 0.0
    %1065 = vmatpush1.msra.mxu0 0.0
    %1066 = vmatprep.subr.mxu0 0.0
    %1067 = vmatpush1.msra.mxu0 0.0
    %1068 = vmatprep.subr.mxu0 0.0
    %1069 = vmatpush1.msra.mxu0 0.0
    %1070 = vmatprep.subr.mxu0 0.0
    %1071 = vmatpush1.msra.mxu0 0.0
    %1072 = vmatprep.subr.mxu0 0.0
    %1073 = vmatpush1.msra.mxu0 0.0
    %1074 = vmatprep.subr.mxu0 0.0
    %1075 = vmatpush1.msra.mxu0 0.0
    %1076 = vmatprep.subr.mxu0 0.0
    %1077 = vmatpush1.msra.mxu0 0.0
    %1078 = vmatprep.subr.mxu0 0.0
    %1079 = vmatpush1.msra.mxu0 0.0
    %1080 = vmatprep.subr.mxu0 0.0
    %1081 = vmatpush1.msra.mxu0 0.0
    %1082 = vmatprep.subr.mxu0 0.0
    %1083 = vmatpush1.msra.mxu0 0.0
    %1084 = vmatprep.subr.mxu0 0.0
    %1085 = vmatpush1.msra.mxu0 %v1049
    %1086 = vmatprep.subr.mxu0 0.0
    %1087 = vmatpush2.msra.mxu0 0.0
    %1088 = vmatprep.subr.mxu0 0.0
    %1089 = vmatpush2.msra.mxu0 0.0
    %1090 = vmatprep.subr.mxu0 0.0
    %1091 = vmatpush2.msra.mxu0 0.0
    %1092 = vmatprep.subr.mxu0 0.0
    %1093 = vmatpush2.msra.mxu0 0.0
    %1094 = vmatprep.subr.mxu0 0.0
    %1095 = vmatpush2.msra.mxu0 0.0
    %1096 = vmatprep.subr.mxu0 0.0
    %1097 = vmatpush2.msra.mxu0 0.0
    %1098 = vmatprep.subr.mxu0 0.0
    %1099 = vmatpush2.msra.mxu0 0.0
    %1100 = vmatprep.subr.mxu0 0.0
    %1101 = vmatpush2.msra.mxu0 0.0
    %1102 = vmatprep.subr.mxu0 0.0
    %1103 = vmatpush2.msra.mxu0 0.0
    %1104 = vmatprep.subr.mxu0 0.0
    %1105 = vmatpush2.msra.mxu0 0.0
    %1106 = vmatprep.subr.mxu0 0.0
    %1107 = vmatpush2.msra.mxu0 0.0
    %1108 = vmatprep.subr.mxu0 0.0
    %1109 = vmatpush2.msra.mxu0 0.0
    %1110 = vmatprep.subr.mxu0 0.0
    %1111 = vmatpush2.msra.mxu0 0.0
    %1112 = vmatprep.subr.mxu0 0.0
    %1113 = vmatpush2.msra.mxu0 0.0
    %1114 = vmatprep.subr.mxu0 0.0
    %1115 = vmatpush2.msra.mxu0 0.0
    %1116 = vmatprep.subr.mxu0 0.0
    %1117 = vmatpush2.msra.mxu0 0.0
    %1118 = vmatprep.mubr.f32.mxu0 0.0
    %1119 = vmatmul.mubr.f32.gmra.mxu0 %v1052
    %v1120 = vpop.f32.mrf.mxu0
    %v1121 = vadd.f32 0.0, %v1120
    %v1122 = vpop.f32.mrf.mxu0
    %1123 = vdwg.mxu0
    %1124 = vrot.lane.b32.xlu0 %v313, 64
    %v1125 = vpop.permute.xlu0 %1124
    %v1128 = vsel %vm337, %v1041, 0
    %1130 = vmatprep.subr.mxu0 0.0
    %1131 = vmatpush1.msra.mxu0 0.0
    %1132 = vmatprep.subr.mxu0 0.0
    %1133 = vmatpush1.msra.mxu0 0.0
    %1134 = vmatprep.subr.mxu0 0.0
    %1135 = vmatpush1.msra.mxu0 0.0
    %1136 = vmatprep.subr.mxu0 0.0
    %1137 = vmatpush1.msra.mxu0 0.0
    %1138 = vmatprep.subr.mxu0 0.0
    %1139 = vmatpush1.msra.mxu0 0.0
    %1140 = vmatprep.subr.mxu0 0.0
    %1141 = vmatpush1.msra.mxu0 0.0
    %1142 = vmatprep.subr.mxu0 0.0
    %1143 = vmatpush1.msra.mxu0 0.0
    %1144 = vmatprep.subr.mxu0 0.0
    %1145 = vmatpush1.msra.mxu0 0.0
    %1146 = vmatprep.subr.mxu0 0.0
    %1147 = vmatpush1.msra.mxu0 0.0
    %1148 = vmatprep.subr.mxu0 0.0
    %1149 = vmatpush1.msra.mxu0 0.0
    %1150 = vmatprep.subr.mxu0 0.0
    %1151 = vmatpush1.msra.mxu0 0.0
    %1152 = vmatprep.subr.mxu0 0.0
    %1153 = vmatpush1.msra.mxu0 0.0
    %1154 = vmatprep.subr.mxu0 0.0
    %1155 = vmatpush1.msra.mxu0 0.0
    %1156 = vmatprep.subr.mxu0 0.0
    %1157 = vmatpush1.msra.mxu0 0.0
    %1158 = vmatprep.subr.mxu0 0.0
    %1159 = vmatpush1.msra.mxu0 0.0
    %1160 = vmatprep.subr.mxu0 0.0
    %1161 = vmatpush1.msra.mxu0 %v1125
    %1162 = vmatprep.subr.mxu0 0.0
    %1163 = vmatpush2.msra.mxu0 0.0
    %1164 = vmatprep.subr.mxu0 0.0
    %1165 = vmatpush2.msra.mxu0 0.0
    %1166 = vmatprep.subr.mxu0 0.0
    %1167 = vmatpush2.msra.mxu0 0.0
    %1168 = vmatprep.subr.mxu0 0.0
    %1169 = vmatpush2.msra.mxu0 0.0
    %1170 = vmatprep.subr.mxu0 0.0
    %1171 = vmatpush2.msra.mxu0 0.0
    %1172 = vmatprep.subr.mxu0 0.0
    %1173 = vmatpush2.msra.mxu0 0.0
    %1174 = vmatprep.subr.mxu0 0.0
    %1175 = vmatpush2.msra.mxu0 0.0
    %1176 = vmatprep.subr.mxu0 0.0
    %1177 = vmatpush2.msra.mxu0 0.0
    %1178 = vmatprep.subr.mxu0 0.0
    %1179 = vmatpush2.msra.mxu0 0.0
    %1180 = vmatprep.subr.mxu0 0.0
    %1181 = vmatpush2.msra.mxu0 0.0
    %1182 = vmatprep.subr.mxu0 0.0
    %1183 = vmatpush2.msra.mxu0 0.0
    %1184 = vmatprep.subr.mxu0 0.0
    %1185 = vmatpush2.msra.mxu0 0.0
    %1186 = vmatprep.subr.mxu0 0.0
    %1187 = vmatpush2.msra.mxu0 0.0
    %1188 = vmatprep.subr.mxu0 0.0
    %1189 = vmatpush2.msra.mxu0 0.0
    %1190 = vmatprep.subr.mxu0 0.0
    %1191 = vmatpush2.msra.mxu0 0.0
    %1192 = vmatprep.subr.mxu0 0.0
    %1193 = vmatpush2.msra.mxu0 0.0
    %1194 = vmatprep.mubr.f32.mxu0 0.0
    %1195 = vmatmul.mubr.f32.gmra.mxu0 %v1128
    %v1196 = vpop.f32.mrf.mxu0
    %v1197 = vadd.f32 0.0, %v1196
    %v1198 = vpop.f32.mrf.mxu0
    %1199 = vdwg.mxu0
    %1200 = vrot.lane.b32.xlu0 %v319, 64
    %v1201 = vpop.permute.xlu0 %1200
    %v1204 = vsel %vm337, %v1042, 0
    %1206 = vmatprep.subr.mxu0 0.0
    %1207 = vmatpush1.msra.mxu0 0.0
    %1208 = vmatprep.subr.mxu0 0.0
    %1209 = vmatpush1.msra.mxu0 0.0
    %1210 = vmatprep.subr.mxu0 0.0
    %1211 = vmatpush1.msra.mxu0 0.0
    %1212 = vmatprep.subr.mxu0 0.0
    %1213 = vmatpush1.msra.mxu0 0.0
    %1214 = vmatprep.subr.mxu0 0.0
    %1215 = vmatpush1.msra.mxu0 0.0
    %1216 = vmatprep.subr.mxu0 0.0
    %1217 = vmatpush1.msra.mxu0 0.0
    %1218 = vmatprep.subr.mxu0 0.0
    %1219 = vmatpush1.msra.mxu0 0.0
    %1220 = vmatprep.subr.mxu0 0.0
    %1221 = vmatpush1.msra.mxu0 0.0
    %1222 = vmatprep.subr.mxu0 0.0
    %1223 = vmatpush1.msra.mxu0 0.0
    %1224 = vmatprep.subr.mxu0 0.0
    %1225 = vmatpush1.msra.mxu0 0.0
    %1226 = vmatprep.subr.mxu0 0.0
    %1227 = vmatpush1.msra.mxu0 0.0
    %1228 = vmatprep.subr.mxu0 0.0
    %1229 = vmatpush1.msra.mxu0 0.0
    %1230 = vmatprep.subr.mxu0 0.0
    %1231 = vmatpush1.msra.mxu0 0.0
    %1232 = vmatprep.subr.mxu0 0.0
    %1233 = vmatpush1.msra.mxu0 0.0
    %1234 = vmatprep.subr.mxu0 0.0
    %1235 = vmatpush1.msra.mxu0 0.0
    %1236 = vmatprep.subr.mxu0 0.0
    %1237 = vmatpush1.msra.mxu0 %v1201
    %1238 = vmatprep.subr.mxu0 0.0
    %1239 = vmatpush2.msra.mxu0 0.0
    %1240 = vmatprep.subr.mxu0 0.0
    %1241 = vmatpush2.msra.mxu0 0.0
    %1242 = vmatprep.subr.mxu0 0.0
    %1243 = vmatpush2.msra.mxu0 0.0
    %1244 = vmatprep.subr.mxu0 0.0
    %1245 = vmatpush2.msra.mxu0 0.0
    %1246 = vmatprep.subr.mxu0 0.0
    %1247 = vmatpush2.msra.mxu0 0.0
    %1248 = vmatprep.subr.mxu0 0.0
    %1249 = vmatpush2.msra.mxu0 0.0
    %1250 = vmatprep.subr.mxu0 0.0
    %1251 = vmatpush2.msra.mxu0 0.0
    %1252 = vmatprep.subr.mxu0 0.0
    %1253 = vmatpush2.msra.mxu0 0.0
    %1254 = vmatprep.subr.mxu0 0.0
    %1255 = vmatpush2.msra.mxu0 0.0
    %1256 = vmatprep.subr.mxu0 0.0
    %1257 = vmatpush2.msra.mxu0 0.0
    %1258 = vmatprep.subr.mxu0 0.0
    %1259 = vmatpush2.msra.mxu0 0.0
    %1260 = vmatprep.subr.mxu0 0.0
    %1261 = vmatpush2.msra.mxu0 0.0
    %1262 = vmatprep.subr.mxu0 0.0
    %1263 = vmatpush2.msra.mxu0 0.0
    %1264 = vmatprep.subr.mxu0 0.0
    %1265 = vmatpush2.msra.mxu0 0.0
    %1266 = vmatprep.subr.mxu0 0.0
    %1267 = vmatpush2.msra.mxu0 0.0
    %1268 = vmatprep.subr.mxu0 0.0
    %1269 = vmatpush2.msra.mxu0 0.0
    %1270 = vmatprep.mubr.f32.mxu0 0.0
    %1271 = vmatmul.mubr.f32.gmra.mxu0 %v1204
    %v1272 = vpop.f32.mrf.mxu0
    %v1273 = vadd.f32 0.0, %v1272
    %v1274 = vpop.f32.mrf.mxu0
    %1275 = vdwg.mxu0
    %1276 = vrot.lane.b32.xlu0 %v321, 64
    %v1277 = vpop.permute.xlu0 %1276
    %v1280 = vsel %vm337, %v1043, 0
    %1282 = vmatprep.subr.mxu0 0.0
    %1283 = vmatpush1.msra.mxu0 0.0
    %1284 = vmatprep.subr.mxu0 0.0
    %1285 = vmatpush1.msra.mxu0 0.0
    %1286 = vmatprep.subr.mxu0 0.0
    %1287 = vmatpush1.msra.mxu0 0.0
    %1288 = vmatprep.subr.mxu0 0.0
    %1289 = vmatpush1.msra.mxu0 0.0
    %1290 = vmatprep.subr.mxu0 0.0
    %1291 = vmatpush1.msra.mxu0 0.0
    %1292 = vmatprep.subr.mxu0 0.0
    %1293 = vmatpush1.msra.mxu0 0.0
    %1294 = vmatprep.subr.mxu0 0.0
    %1295 = vmatpush1.msra.mxu0 0.0
    %1296 = vmatprep.subr.mxu0 0.0
    %1297 = vmatpush1.msra.mxu0 0.0
    %1298 = vmatprep.subr.mxu0 0.0
    %1299 = vmatpush1.msra.mxu0 0.0
    %1300 = vmatprep.subr.mxu0 0.0
    %1301 = vmatpush1.msra.mxu0 0.0
    %1302 = vmatprep.subr.mxu0 0.0
    %1303 = vmatpush1.msra.mxu0 0.0
    %1304 = vmatprep.subr.mxu0 0.0
    %1305 = vmatpush1.msra.mxu0 0.0
    %1306 = vmatprep.subr.mxu0 0.0
    %1307 = vmatpush1.msra.mxu0 0.0
    %1308 = vmatprep.subr.mxu0 0.0
    %1309 = vmatpush1.msra.mxu0 0.0
    %1310 = vmatprep.subr.mxu0 0.0
    %1311 = vmatpush1.msra.mxu0 0.0
    %1312 = vmatprep.subr.mxu0 0.0
    %1313 = vmatpush1.msra.mxu0 %v1277
    %1314 = vmatprep.subr.mxu0 0.0
    %1315 = vmatpush2.msra.mxu0 0.0
    %1316 = vmatprep.subr.mxu0 0.0
    %1317 = vmatpush2.msra.mxu0 0.0
    %1318 = vmatprep.subr.mxu0 0.0
    %1319 = vmatpush2.msra.mxu0 0.0
    %1320 = vmatprep.subr.mxu0 0.0
    %1321 = vmatpush2.msra.mxu0 0.0
    %1322 = vmatprep.subr.mxu0 0.0
    %1323 = vmatpush2.msra.mxu0 0.0
    %1324 = vmatprep.subr.mxu0 0.0
    %1325 = vmatpush2.msra.mxu0 0.0
    %1326 = vmatprep.subr.mxu0 0.0
    %1327 = vmatpush2.msra.mxu0 0.0
    %1328 = vmatprep.subr.mxu0 0.0
    %1329 = vmatpush2.msra.mxu0 0.0
    %1330 = vmatprep.subr.mxu0 0.0
    %1331 = vmatpush2.msra.mxu0 0.0
    %1332 = vmatprep.subr.mxu0 0.0
    %1333 = vmatpush2.msra.mxu0 0.0
    %1334 = vmatprep.subr.mxu0 0.0
    %1335 = vmatpush2.msra.mxu0 0.0
    %1336 = vmatprep.subr.mxu0 0.0
    %1337 = vmatpush2.msra.mxu0 0.0
    %1338 = vmatprep.subr.mxu0 0.0
    %1339 = vmatpush2.msra.mxu0 0.0
    %1340 = vmatprep.subr.mxu0 0.0
    %1341 = vmatpush2.msra.mxu0 0.0
    %1342 = vmatprep.subr.mxu0 0.0
    %1343 = vmatpush2.msra.mxu0 0.0
    %1344 = vmatprep.subr.mxu0 0.0
    %1345 = vmatpush2.msra.mxu0 0.0
    %1346 = vmatprep.mubr.f32.mxu0 0.0
    %1347 = vmatmul.mubr.f32.gmra.mxu0 %v1280
    %v1348 = vpop.f32.mrf.mxu0
    %v1349 = vadd.f32 0.0, %v1348
    %v1350 = vpop.f32.mrf.mxu0
    %1351 = vdwg.mxu0
    %1352 = vrot.lane.b32.xlu0 %v323, 64
    %v1353 = vpop.permute.xlu0 %1352
    %v1356 = vsel %vm337, %v1044, 0
    %1358 = vmatprep.subr.mxu0 0.0
    %1359 = vmatpush1.msra.mxu0 0.0
    %1360 = vmatprep.subr.mxu0 0.0
    %1361 = vmatpush1.msra.mxu0 0.0
    %1362 = vmatprep.subr.mxu0 0.0
    %1363 = vmatpush1.msra.mxu0 0.0
    %1364 = vmatprep.subr.mxu0 0.0
    %1365 = vmatpush1.msra.mxu0 0.0
    %1366 = vmatprep.subr.mxu0 0.0
    %1367 = vmatpush1.msra.mxu0 0.0
    %1368 = vmatprep.subr.mxu0 0.0
    %1369 = vmatpush1.msra.mxu0 0.0
    %1370 = vmatprep.subr.mxu0 0.0
    %1371 = vmatpush1.msra.mxu0 0.0
    %1372 = vmatprep.subr.mxu0 0.0
    %1373 = vmatpush1.msra.mxu0 0.0
    %1374 = vmatprep.subr.mxu0 0.0
    %1375 = vmatpush1.msra.mxu0 0.0
    %1376 = vmatprep.subr.mxu0 0.0
    %1377 = vmatpush1.msra.mxu0 0.0
    %1378 = vmatprep.subr.mxu0 0.0
    %1379 = vmatpush1.msra.mxu0 0.0
    %1380 = vmatprep.subr.mxu0 0.0
    %1381 = vmatpush1.msra.mxu0 0.0
    %1382 = vmatprep.subr.mxu0 0.0
    %1383 = vmatpush1.msra.mxu0 0.0
    %1384 = vmatprep.subr.mxu0 0.0
    %1385 = vmatpush1.msra.mxu0 0.0
    %1386 = vmatprep.subr.mxu0 0.0
    %1387 = vmatpush1.msra.mxu0 0.0
    %1388 = vmatprep.subr.mxu0 0.0
    %1389 = vmatpush1.msra.mxu0 %v1353
    %1390 = vmatprep.subr.mxu0 0.0
    %1391 = vmatpush2.msra.mxu0 0.0
    %1392 = vmatprep.subr.mxu0 0.0
    %1393 = vmatpush2.msra.mxu0 0.0
    %1394 = vmatprep.subr.mxu0 0.0
    %1395 = vmatpush2.msra.mxu0 0.0
    %1396 = vmatprep.subr.mxu0 0.0
    %1397 = vmatpush2.msra.mxu0 0.0
    %1398 = vmatprep.subr.mxu0 0.0
    %1399 = vmatpush2.msra.mxu0 0.0
    %1400 = vmatprep.subr.mxu0 0.0
    %1401 = vmatpush2.msra.mxu0 0.0
    %1402 = vmatprep.subr.mxu0 0.0
    %1403 = vmatpush2.msra.mxu0 0.0
    %1404 = vmatprep.subr.mxu0 0.0
    %1405 = vmatpush2.msra.mxu0 0.0
    %1406 = vmatprep.subr.mxu0 0.0
    %1407 = vmatpush2.msra.mxu0 0.0
    %1408 = vmatprep.subr.mxu0 0.0
    %1409 = vmatpush2.msra.mxu0 0.0
    %1410 = vmatprep.subr.mxu0 0.0
    %1411 = vmatpush2.msra.mxu0 0.0
    %1412 = vmatprep.subr.mxu0 0.0
    %1413 = vmatpush2.msra.mxu0 0.0
    %1414 = vmatprep.subr.mxu0 0.0
    %1415 = vmatpush2.msra.mxu0 0.0
    %1416 = vmatprep.subr.mxu0 0.0
    %1417 = vmatpush2.msra.mxu0 0.0
    %1418 = vmatprep.subr.mxu0 0.0
    %1419 = vmatpush2.msra.mxu0 0.0
    %1420 = vmatprep.subr.mxu0 0.0
    %1421 = vmatpush2.msra.mxu0 0.0
    %1422 = vmatprep.mubr.f32.mxu0 0.0
    %1423 = vmatmul.mubr.f32.gmra.mxu0 %v1356
    %v1424 = vpop.f32.mrf.mxu0
    %v1425 = vadd.f32 0.0, %v1424
    %v1426 = vpop.f32.mrf.mxu0
    %1427 = vdwg.mxu0
    %1428 = vrot.lane.b32.xlu0 %v325, 64
    %v1429 = vpop.permute.xlu0 %1428
    %v1432 = vsel %vm337, %v1045, 0
    %1434 = vmatprep.subr.mxu0 0.0
    %1435 = vmatpush1.msra.mxu0 0.0
    %1436 = vmatprep.subr.mxu0 0.0
    %1437 = vmatpush1.msra.mxu0 0.0
    %1438 = vmatprep.subr.mxu0 0.0
    %1439 = vmatpush1.msra.mxu0 0.0
    %1440 = vmatprep.subr.mxu0 0.0
    %1441 = vmatpush1.msra.mxu0 0.0
    %1442 = vmatprep.subr.mxu0 0.0
    %1443 = vmatpush1.msra.mxu0 0.0
    %1444 = vmatprep.subr.mxu0 0.0
    %1445 = vmatpush1.msra.mxu0 0.0
    %1446 = vmatprep.subr.mxu0 0.0
    %1447 = vmatpush1.msra.mxu0 0.0
    %1448 = vmatprep.subr.mxu0 0.0
    %1449 = vmatpush1.msra.mxu0 0.0
    %1450 = vmatprep.subr.mxu0 0.0
    %1451 = vmatpush1.msra.mxu0 0.0
    %1452 = vmatprep.subr.mxu0 0.0
    %1453 = vmatpush1.msra.mxu0 0.0
    %1454 = vmatprep.subr.mxu0 0.0
    %1455 = vmatpush1.msra.mxu0 0.0
    %1456 = vmatprep.subr.mxu0 0.0
    %1457 = vmatpush1.msra.mxu0 0.0
    %1458 = vmatprep.subr.mxu0 0.0
    %1459 = vmatpush1.msra.mxu0 0.0
    %1460 = vmatprep.subr.mxu0 0.0
    %1461 = vmatpush1.msra.mxu0 0.0
    %1462 = vmatprep.subr.mxu0 0.0
    %1463 = vmatpush1.msra.mxu0 0.0
    %1464 = vmatprep.subr.mxu0 0.0
    %1465 = vmatpush1.msra.mxu0 %v1429
    %1466 = vmatprep.subr.mxu0 0.0
    %1467 = vmatpush2.msra.mxu0 0.0
    %1468 = vmatprep.subr.mxu0 0.0
    %1469 = vmatpush2.msra.mxu0 0.0
    %1470 = vmatprep.subr.mxu0 0.0
    %1471 = vmatpush2.msra.mxu0 0.0
    %1472 = vmatprep.subr.mxu0 0.0
    %1473 = vmatpush2.msra.mxu0 0.0
    %1474 = vmatprep.subr.mxu0 0.0
    %1475 = vmatpush2.msra.mxu0 0.0
    %1476 = vmatprep.subr.mxu0 0.0
    %1477 = vmatpush2.msra.mxu0 0.0
    %1478 = vmatprep.subr.mxu0 0.0
    %1479 = vmatpush2.msra.mxu0 0.0
    %1480 = vmatprep.subr.mxu0 0.0
    %1481 = vmatpush2.msra.mxu0 0.0
    %1482 = vmatprep.subr.mxu0 0.0
    %1483 = vmatpush2.msra.mxu0 0.0
    %1484 = vmatprep.subr.mxu0 0.0
    %1485 = vmatpush2.msra.mxu0 0.0
    %1486 = vmatprep.subr.mxu0 0.0
    %1487 = vmatpush2.msra.mxu0 0.0
    %1488 = vmatprep.subr.mxu0 0.0
    %1489 = vmatpush2.msra.mxu0 0.0
    %1490 = vmatprep.subr.mxu0 0.0
    %1491 = vmatpush2.msra.mxu0 0.0
    %1492 = vmatprep.subr.mxu0 0.0
    %1493 = vmatpush2.msra.mxu0 0.0
    %1494 = vmatprep.subr.mxu0 0.0
    %1495 = vmatpush2.msra.mxu0 0.0
    %1496 = vmatprep.subr.mxu0 0.0
    %1497 = vmatpush2.msra.mxu0 0.0
    %1498 = vmatprep.mubr.f32.mxu0 0.0
    %1499 = vmatmul.mubr.f32.gmra.mxu0 %v1432
    %v1500 = vpop.f32.mrf.mxu0
    %v1501 = vadd.f32 0.0, %v1500
    %v1502 = vpop.f32.mrf.mxu0
    %1503 = vdwg.mxu0
    %1504 = vrot.lane.b32.xlu0 %v327, 64
    %v1505 = vpop.permute.xlu0 %1504
    %v1508 = vsel %vm337, %v1046, 0
    %1510 = vmatprep.subr.mxu0 0.0
    %1511 = vmatpush1.msra.mxu0 0.0
    %1512 = vmatprep.subr.mxu0 0.0
    %1513 = vmatpush1.msra.mxu0 0.0
    %1514 = vmatprep.subr.mxu0 0.0
    %1515 = vmatpush1.msra.mxu0 0.0
    %1516 = vmatprep.subr.mxu0 0.0
    %1517 = vmatpush1.msra.mxu0 0.0
    %1518 = vmatprep.subr.mxu0 0.0
    %1519 = vmatpush1.msra.mxu0 0.0
    %1520 = vmatprep.subr.mxu0 0.0
    %1521 = vmatpush1.msra.mxu0 0.0
    %1522 = vmatprep.subr.mxu0 0.0
    %1523 = vmatpush1.msra.mxu0 0.0
    %1524 = vmatprep.subr.mxu0 0.0
    %1525 = vmatpush1.msra.mxu0 0.0
    %1526 = vmatprep.subr.mxu0 0.0
    %1527 = vmatpush1.msra.mxu0 0.0
    %1528 = vmatprep.subr.mxu0 0.0
    %1529 = vmatpush1.msra.mxu0 0.0
    %1530 = vmatprep.subr.mxu0 0.0
    %1531 = vmatpush1.msra.mxu0 0.0
    %1532 = vmatprep.subr.mxu0 0.0
    %1533 = vmatpush1.msra.mxu0 0.0
    %1534 = vmatprep.subr.mxu0 0.0
    %1535 = vmatpush1.msra.mxu0 0.0
    %1536 = vmatprep.subr.mxu0 0.0
    %1537 = vmatpush1.msra.mxu0 0.0
    %1538 = vmatprep.subr.mxu0 0.0
    %1539 = vmatpush1.msra.mxu0 0.0
    %1540 = vmatprep.subr.mxu0 0.0
    %1541 = vmatpush1.msra.mxu0 %v1505
    %1542 = vmatprep.subr.mxu0 0.0
    %1543 = vmatpush2.msra.mxu0 0.0
    %1544 = vmatprep.subr.mxu0 0.0
    %1545 = vmatpush2.msra.mxu0 0.0
    %1546 = vmatprep.subr.mxu0 0.0
    %1547 = vmatpush2.msra.mxu0 0.0
    %1548 = vmatprep.subr.mxu0 0.0
    %1549 = vmatpush2.msra.mxu0 0.0
    %1550 = vmatprep.subr.mxu0 0.0
    %1551 = vmatpush2.msra.mxu0 0.0
    %1552 = vmatprep.subr.mxu0 0.0
    %1553 = vmatpush2.msra.mxu0 0.0
    %1554 = vmatprep.subr.mxu0 0.0
    %1555 = vmatpush2.msra.mxu0 0.0
    %1556 = vmatprep.subr.mxu0 0.0
    %1557 = vmatpush2.msra.mxu0 0.0
    %1558 = vmatprep.subr.mxu0 0.0
    %1559 = vmatpush2.msra.mxu0 0.0
    %1560 = vmatprep.subr.mxu0 0.0
    %1561 = vmatpush2.msra.mxu0 0.0
    %1562 = vmatprep.subr.mxu0 0.0
    %1563 = vmatpush2.msra.mxu0 0.0
    %1564 = vmatprep.subr.mxu0 0.0
    %1565 = vmatpush2.msra.mxu0 0.0
    %1566 = vmatprep.subr.mxu0 0.0
    %1567 = vmatpush2.msra.mxu0 0.0
    %1568 = vmatprep.subr.mxu0 0.0
    %1569 = vmatpush2.msra.mxu0 0.0
    %1570 = vmatprep.subr.mxu0 0.0
    %1571 = vmatpush2.msra.mxu0 0.0
    %1572 = vmatprep.subr.mxu0 0.0
    %1573 = vmatpush2.msra.mxu0 0.0
    %1574 = vmatprep.mubr.f32.mxu0 0.0
    %1575 = vmatmul.mubr.f32.gmra.mxu0 %v1508
    %v1576 = vpop.f32.mrf.mxu0
    %v1577 = vadd.f32 0.0, %v1576
    %v1578 = vpop.f32.mrf.mxu0
    %1579 = vdwg.mxu0
    %1580 = vrot.lane.b32.xlu0 %v329, 64
    %v1581 = vpop.permute.xlu0 %1580
    %v1584 = vsel %vm337, %v1047, 0
    %1586 = vmatprep.subr.mxu0 0.0
    %1587 = vmatpush1.msra.mxu0 0.0
    %1588 = vmatprep.subr.mxu0 0.0
    %1589 = vmatpush1.msra.mxu0 0.0
    %1590 = vmatprep.subr.mxu0 0.0
    %1591 = vmatpush1.msra.mxu0 0.0
    %1592 = vmatprep.subr.mxu0 0.0
    %1593 = vmatpush1.msra.mxu0 0.0
    %1594 = vmatprep.subr.mxu0 0.0
    %1595 = vmatpush1.msra.mxu0 0.0
    %1596 = vmatprep.subr.mxu0 0.0
    %1597 = vmatpush1.msra.mxu0 0.0
    %1598 = vmatprep.subr.mxu0 0.0
    %1599 = vmatpush1.msra.mxu0 0.0
    %1600 = vmatprep.subr.mxu0 0.0
    %1601 = vmatpush1.msra.mxu0 0.0
    %1602 = vmatprep.subr.mxu0 0.0
    %1603 = vmatpush1.msra.mxu0 0.0
    %1604 = vmatprep.subr.mxu0 0.0
    %1605 = vmatpush1.msra.mxu0 0.0
    %1606 = vmatprep.subr.mxu0 0.0
    %1607 = vmatpush1.msra.mxu0 0.0
    %1608 = vmatprep.subr.mxu0 0.0
    %1609 = vmatpush1.msra.mxu0 0.0
    %1610 = vmatprep.subr.mxu0 0.0
    %1611 = vmatpush1.msra.mxu0 0.0
    %1612 = vmatprep.subr.mxu0 0.0
    %1613 = vmatpush1.msra.mxu0 0.0
    %1614 = vmatprep.subr.mxu0 0.0
    %1615 = vmatpush1.msra.mxu0 0.0
    %1616 = vmatprep.subr.mxu0 0.0
    %1617 = vmatpush1.msra.mxu0 %v1581
    %1618 = vmatprep.subr.mxu0 0.0
    %1619 = vmatpush2.msra.mxu0 0.0
    %1620 = vmatprep.subr.mxu0 0.0
    %1621 = vmatpush2.msra.mxu0 0.0
    %1622 = vmatprep.subr.mxu0 0.0
    %1623 = vmatpush2.msra.mxu0 0.0
    %1624 = vmatprep.subr.mxu0 0.0
    %1625 = vmatpush2.msra.mxu0 0.0
    %1626 = vmatprep.subr.mxu0 0.0
    %1627 = vmatpush2.msra.mxu0 0.0
    %1628 = vmatprep.subr.mxu0 0.0
    %1629 = vmatpush2.msra.mxu0 0.0
    %1630 = vmatprep.subr.mxu0 0.0
    %1631 = vmatpush2.msra.mxu0 0.0
    %1632 = vmatprep.subr.mxu0 0.0
    %1633 = vmatpush2.msra.mxu0 0.0
    %1634 = vmatprep.subr.mxu0 0.0
    %1635 = vmatpush2.msra.mxu0 0.0
    %1636 = vmatprep.subr.mxu0 0.0
    %1637 = vmatpush2.msra.mxu0 0.0
    %1638 = vmatprep.subr.mxu0 0.0
    %1639 = vmatpush2.msra.mxu0 0.0
    %1640 = vmatprep.subr.mxu0 0.0
    %1641 = vmatpush2.msra.mxu0 0.0
    %1642 = vmatprep.subr.mxu0 0.0
    %1643 = vmatpush2.msra.mxu0 0.0
    %1644 = vmatprep.subr.mxu0 0.0
    %1645 = vmatpush2.msra.mxu0 0.0
    %1646 = vmatprep.subr.mxu0 0.0
    %1647 = vmatpush2.msra.mxu0 0.0
    %1648 = vmatprep.subr.mxu0 0.0
    %1649 = vmatpush2.msra.mxu0 0.0
    %1650 = vmatprep.mubr.f32.mxu0 0.0
    %1651 = vmatmul.mubr.f32.gmra.mxu0 %v1584
    %v1652 = vpop.f32.mrf.mxu0
    %v1653 = vadd.f32 0.0, %v1652
    %v1654 = vpop.f32.mrf.mxu0
    %1655 = vdwg.mxu0
    %1658 = vrot.lane.b32.xlu0 %v1273, 8
    %v1659 = vpop.permute.xlu0 %1658
    %1660 = vrot.lane.b32.xlu0 %v1349, 8
    %v1661 = vpop.permute.xlu0 %1660
    %1666 = vrot.lane.b32.xlu0 %v1425, 16
    %v1667 = vpop.permute.xlu0 %1666
    %1668 = vrot.lane.b32.xlu0 %v1501, 16
    %v1669 = vpop.permute.xlu0 %1668
    %1674 = vrot.lane.b32.xlu0 %v1577, 24
    %v1675 = vpop.permute.xlu0 %1674
    %1676 = vrot.lane.b32.xlu0 %v1653, 24
    %v1677 = vpop.permute.xlu0 %1676
    %v1680 = vsel %vm337, %v1121, %v1659
    %v1681 = vsel %vm337, %v1197, %v1661
    %vm1682 = vcmask 130048
    %v1683 = vsel %vm1682, %v1680, %v1667
    %v1684 = vsel %vm1682, %v1681, %v1669
    %vm1685 = vcmask 195584
    %v1686 = vsel %vm1685, %v1683, %v1675
    %v1687 = vsel %vm1685, %v1684, %v1677
    %v1688 = vlaneseq
    %v1689 = vshrl.u32 %v1688, 7
    %v1690 = vsub.s32 0, %v1689
    %v1691 = vrot.slane %v334, %v1690
    %v1693 = vsel %vm115, %v1686, 0
    %v1696 = vsel %vm115, %v1687, 0
    %1698 = vmatprep.subr.mxu0 0.0
    %1699 = vmatpush1.msra.mxu0 0.0
    %1700 = vmatprep.subr.mxu0 0.0
    %1701 = vmatpush1.msra.mxu0 0.0
    %1702 = vmatprep.subr.mxu0 0.0
    %1703 = vmatpush1.msra.mxu0 0.0
    %1704 = vmatprep.subr.mxu0 0.0
    %1705 = vmatpush1.msra.mxu0 0.0
    %1706 = vmatprep.subr.mxu0 0.0
    %1707 = vmatpush1.msra.mxu0 0.0
    %1708 = vmatprep.subr.mxu0 0.0
    %1709 = vmatpush1.msra.mxu0 0.0
    %1710 = vmatprep.subr.mxu0 0.0
    %1711 = vmatpush1.msra.mxu0 0.0
    %1712 = vmatprep.subr.mxu0 0.0
    %1713 = vmatpush1.msra.mxu0 0.0
    %1714 = vmatprep.subr.mxu0 0.0
    %1715 = vmatpush1.msra.mxu0 0.0
    %1716 = vmatprep.subr.mxu0 0.0
    %1717 = vmatpush1.msra.mxu0 0.0
    %1718 = vmatprep.subr.mxu0 0.0
    %1719 = vmatpush1.msra.mxu0 0.0
    %1720 = vmatprep.subr.mxu0 0.0
    %1721 = vmatpush1.msra.mxu0 0.0
    %1722 = vmatprep.subr.mxu0 0.0
    %1723 = vmatpush1.msra.mxu0 %v333
    %1724 = vmatprep.subr.mxu0 0.0
    %1725 = vmatpush1.msra.mxu0 %v332
    %1726 = vmatprep.subr.mxu0 0.0
    %1727 = vmatpush1.msra.mxu0 %v331
    %1728 = vmatprep.subr.mxu0 0.0
    %1729 = vmatpush1.msra.mxu0 %v330
    %1730 = vmatprep.subr.mxu0 0.0
    %1731 = vmatpush2.msra.mxu0 0.0
    %1732 = vmatprep.subr.mxu0 0.0
    %1733 = vmatpush2.msra.mxu0 0.0
    %1734 = vmatprep.subr.mxu0 0.0
    %1735 = vmatpush2.msra.mxu0 0.0
    %1736 = vmatprep.subr.mxu0 0.0
    %1737 = vmatpush2.msra.mxu0 0.0
    %1738 = vmatprep.subr.mxu0 0.0
    %1739 = vmatpush2.msra.mxu0 0.0
    %1740 = vmatprep.subr.mxu0 0.0
    %1741 = vmatpush2.msra.mxu0 0.0
    %1742 = vmatprep.subr.mxu0 0.0
    %1743 = vmatpush2.msra.mxu0 0.0
    %1744 = vmatprep.subr.mxu0 0.0
    %1745 = vmatpush2.msra.mxu0 0.0
    %1746 = vmatprep.subr.mxu0 0.0
    %1747 = vmatpush2.msra.mxu0 0.0
    %1748 = vmatprep.subr.mxu0 0.0
    %1749 = vmatpush2.msra.mxu0 0.0
    %1750 = vmatprep.subr.mxu0 0.0
    %1751 = vmatpush2.msra.mxu0 0.0
    %1752 = vmatprep.subr.mxu0 0.0
    %1753 = vmatpush2.msra.mxu0 0.0
    %1754 = vmatprep.subr.mxu0 0.0
    %1755 = vmatpush2.msra.mxu0 0.0
    %1756 = vmatprep.subr.mxu0 0.0
    %1757 = vmatpush2.msra.mxu0 0.0
    %1758 = vmatprep.subr.mxu0 0.0
    %1759 = vmatpush2.msra.mxu0 0.0
    %1760 = vmatprep.subr.mxu0 0.0
    %1761 = vmatpush2.msra.mxu0 0.0
    %1762 = vmatprep.mubr.f32.mxu0 0.0
    %1763 = vmatmul.mubr.f32.gmra.mxu0 %v1693
    %v1764 = vpop.f32.mrf.mxu0
    %v1765 = vadd.f32 %v1691, %v1764
    %v1766 = vpop.f32.mrf.mxu0
    %1767 = vmatprep.mubr.f32.mxu0 0.0
    %1768 = vmatmul.mubr.f32.gmra.mxu0 %v1696
    %v1769 = vpop.f32.mrf.mxu0
    %v1770 = vadd.f32 %v1691, %v1769
    %v1771 = vpop.f32.mrf.mxu0
    %1772 = vdwg.mxu0
    %v1773 = vadd.f32 %v1765, %v104
    %v1774 = vadd.f32 %v1770, %v105
    %v1775 = vld [vmem:[#allocation10 + $0x1] sm:$0x1]
    %v1776 = vsel %vm115, %v1773, 0.0
    %1777 = vadd.xlane.f32.xlu0 %v1776
    %v1778 = vpop.xlane.xlu0 %1777
    %v1779 = vsel %vm115, %v1774, 0.0
    %1780 = vadd.xlane.f32.xlu0 %v1779
    %v1781 = vpop.xlane.xlu0 %1780
    %v1782 = vmul.f32 %v1778, %v204
    %v1783 = vmul.f32 %v1781, %v204
    %v1784 = vsub.f32 %v1773, %v1782
    %v1785 = vsub.f32 %v1774, %v1783
    %v1786 = vmul.f32 %v1784, %v1784
    %v1787 = vmul.f32 %v1785, %v1785
    %v1788 = vsel %vm115, %v1786, 0.0
    %1789 = vadd.xlane.f32.xlu0 %v1788
    %v1790 = vpop.xlane.xlu0 %1789
    %v1791 = vsel %vm115, %v1787, 0.0
    %1792 = vadd.xlane.f32.xlu0 %v1791
    %v1793 = vpop.xlane.xlu0 %1792
    %v1794 = vmul.f32 %v1790, %v204
    %v1795 = vmul.f32 %v1793, %v204
    %v1796 = vadd.f32 %v1794, 1e-05
    %v1797 = vadd.f32 %v1795, 1e-05
    %v1798 = vrsqrt.pop %v1796
    %v1799 = vrsqrt.pop %v1797
    %v1800 = vmul.f32 %v1784, %v1798
    %v1801 = vmul.f32 %v1785, %v1799
    %v1802 = vlaneseq
    %v1803 = vshrl.u32 %v1802, 7
    %v1804 = vsub.s32 0, %v1803
    %v1805 = vrot.slane %v1775, %v1804
    %v1806 = vmul.f32 %v1800, %v1805
    %v1807 = vmul.f32 %v1801, %v1805
    %v1808 = vld [vmem:[%s4] sm:$0xff]
    %v1809 = vld [vmem:[%s4 + $0x8] sm:$0xff]
    %v1810 = vld [vmem:[%s4 + $0x10] sm:$0xff]
    %v1811 = vld [vmem:[%s4 + $0x18] sm:$0xff]
    %v1813 = vsel %vm115, %v1806, 0
    %v1816 = vsel %vm115, %v1807, 0
    %1818 = vmatprep.subr.mxu0 0.0
    %1819 = vmatpush1.msra.mxu0 0.0
    %1820 = vmatprep.subr.mxu0 0.0
    %1821 = vmatpush1.msra.mxu0 0.0
    %1822 = vmatprep.subr.mxu0 0.0
    %1823 = vmatpush1.msra.mxu0 0.0
    %1824 = vmatprep.subr.mxu0 0.0
    %1825 = vmatpush1.msra.mxu0 0.0
    %1826 = vmatprep.subr.mxu0 0.0
    %1827 = vmatpush1.msra.mxu0 0.0
    %1828 = vmatprep.subr.mxu0 0.0
    %1829 = vmatpush1.msra.mxu0 0.0
    %1830 = vmatprep.subr.mxu0 0.0
    %1831 = vmatpush1.msra.mxu0 0.0
    %1832 = vmatprep.subr.mxu0 0.0
    %1833 = vmatpush1.msra.mxu0 0.0
    %1834 = vmatprep.subr.mxu0 0.0
    %1835 = vmatpush1.msra.mxu0 0.0
    %1836 = vmatprep.subr.mxu0 0.0
    %1837 = vmatpush1.msra.mxu0 0.0
    %1838 = vmatprep.subr.mxu0 0.0
    %1839 = vmatpush1.msra.mxu0 0.0
    %1840 = vmatprep.subr.mxu0 0.0
    %1841 = vmatpush1.msra.mxu0 0.0
    %1842 = vmatprep.subr.mxu0 0.0
    %1843 = vmatpush1.msra.mxu0 %v1811
    %1844 = vmatprep.subr.mxu0 0.0
    %1845 = vmatpush1.msra.mxu0 %v1810
    %1846 = vmatprep.subr.mxu0 0.0
    %1847 = vmatpush1.msra.mxu0 %v1809
    %1848 = vmatprep.subr.mxu0 0.0
    %1849 = vmatpush1.msra.mxu0 %v1808
    %1850 = vmatprep.subr.mxu0 0.0
    %1851 = vmatpush2.msra.mxu0 0.0
    %1852 = vmatprep.subr.mxu0 0.0
    %1853 = vmatpush2.msra.mxu0 0.0
    %1854 = vmatprep.subr.mxu0 0.0
    %1855 = vmatpush2.msra.mxu0 0.0
    %1856 = vmatprep.subr.mxu0 0.0
    %1857 = vmatpush2.msra.mxu0 0.0
    %1858 = vmatprep.subr.mxu0 0.0
    %1859 = vmatpush2.msra.mxu0 0.0
    %1860 = vmatprep.subr.mxu0 0.0
    %1861 = vmatpush2.msra.mxu0 0.0
    %1862 = vmatprep.subr.mxu0 0.0
    %1863 = vmatpush2.msra.mxu0 0.0
    %1864 = vmatprep.subr.mxu0 0.0
    %1865 = vmatpush2.msra.mxu0 0.0
    %1866 = vmatprep.subr.mxu0 0.0
    %1867 = vmatpush2.msra.mxu0 0.0
    %1868 = vmatprep.subr.mxu0 0.0
    %1869 = vmatpush2.msra.mxu0 0.0
    %1870 = vmatprep.subr.mxu0 0.0
    %1871 = vmatpush2.msra.mxu0 0.0
    %1872 = vmatprep.subr.mxu0 0.0
    %1873 = vmatpush2.msra.mxu0 0.0
    %1874 = vmatprep.subr.mxu0 0.0
    %1875 = vmatpush2.msra.mxu0 0.0
    %1876 = vmatprep.subr.mxu0 0.0
    %1877 = vmatpush2.msra.mxu0 0.0
    %1878 = vmatprep.subr.mxu0 0.0
    %1879 = vmatpush2.msra.mxu0 0.0
    %1880 = vmatprep.subr.mxu0 0.0
    %1881 = vmatpush2.msra.mxu0 0.0
    %1882 = vmatprep.mubr.f32.mxu0 0.0
    %1883 = vmatmul.mubr.f32.gmra.mxu0 %v1813
    %v1884 = vpop.f32.mrf.mxu0
    %v1885 = vadd.f32 0.0, %v1884
    %v1886 = vpop.f32.mrf.mxu0
    %1887 = vmatprep.mubr.f32.mxu0 0.0
    %1888 = vmatmul.mubr.f32.gmra.mxu0 %v1816
    %v1889 = vpop.f32.mrf.mxu0
    %v1890 = vadd.f32 0.0, %v1889
    %v1891 = vpop.f32.mrf.mxu0
    %1892 = vdwg.mxu0
    %1895 = vrot.lane.b32.xlu0 %v189, 120
    %v1896 = vpop.permute.xlu0 %1895
    %1897 = vrot.lane.b32.xlu0 %v194, 120
    %v1898 = vpop.permute.xlu0 %1897
    %1899 = vrot.lane.b32.xlu0 %v189, 112
    %v1900 = vpop.permute.xlu0 %1899
    %1901 = vrot.lane.b32.xlu0 %v194, 112
    %v1902 = vpop.permute.xlu0 %1901
    %1903 = vrot.lane.b32.xlu0 %v189, 104
    %v1904 = vpop.permute.xlu0 %1903
    %1905 = vrot.lane.b32.xlu0 %v194, 104
    %v1906 = vpop.permute.xlu0 %1905
    %1909 = vrot.lane.b32.xlu0 %v1885, 120
    %v1910 = vpop.permute.xlu0 %1909
    %1911 = vrot.lane.b32.xlu0 %v1890, 120
    %v1912 = vpop.permute.xlu0 %1911
    %1913 = vrot.lane.b32.xlu0 %v1885, 112
    %v1914 = vpop.permute.xlu0 %1913
    %1915 = vrot.lane.b32.xlu0 %v1890, 112
    %v1916 = vpop.permute.xlu0 %1915
    %1917 = vrot.lane.b32.xlu0 %v1885, 104
    %v1918 = vpop.permute.xlu0 %1917
    %1919 = vrot.lane.b32.xlu0 %v1890, 104
    %v1920 = vpop.permute.xlu0 %1919
    %s1921 = scalar_lea.vmem %s6, 32
    %v1922 = vld [vmem:[%s1921] sm:$0xff]
    %v1923 = vld [vmem:[%s1921 + $0x8] sm:$0xff]
    %v1924 = vld [vmem:[%s1921 + $0x10] sm:$0xff]
    %v1925 = vld [vmem:[%s1921 + $0x18] sm:$0xff]
    %v1926 = vld [vmem:[#allocation10 + $0x8] sm:$0x1]
    %v1927 = vsel %vm337, %v189, 0
    %v1929 = vsel %vm337, %v1885, 0
    %1931 = vmatprep.subr.mxu0 0.0
    %1932 = vmatpush1.xpose.msra.mxu0 0.0
    %1933 = vmatprep.subr.mxu0 0.0
    %1934 = vmatpush1.xpose.msra.mxu0 0.0
    %1935 = vmatprep.subr.mxu0 0.0
    %1936 = vmatpush1.xpose.msra.mxu0 0.0
    %1937 = vmatprep.subr.mxu0 0.0
    %1938 = vmatpush1.xpose.msra.mxu0 0.0
    %1939 = vmatprep.subr.mxu0 0.0
    %1940 = vmatpush1.xpose.msra.mxu0 0.0
    %1941 = vmatprep.subr.mxu0 0.0
    %1942 = vmatpush1.xpose.msra.mxu0 0.0
    %1943 = vmatprep.subr.mxu0 0.0
    %1944 = vmatpush1.xpose.msra.mxu0 0.0
    %1945 = vmatprep.subr.mxu0 0.0
    %1946 = vmatpush1.xpose.msra.mxu0 0.0
    %1947 = vmatprep.subr.mxu0 0.0
    %1948 = vmatpush1.xpose.msra.mxu0 0.0
    %1949 = vmatprep.subr.mxu0 0.0
    %1950 = vmatpush1.xpose.msra.mxu0 0.0
    %1951 = vmatprep.subr.mxu0 0.0
    %1952 = vmatpush1.xpose.msra.mxu0 0.0
    %1953 = vmatprep.subr.mxu0 0.0
    %1954 = vmatpush1.xpose.msra.mxu0 0.0
    %1955 = vmatprep.subr.mxu0 0.0
    %1956 = vmatpush1.xpose.msra.mxu0 0.0
    %1957 = vmatprep.subr.mxu0 0.0
    %1958 = vmatpush1.xpose.msra.mxu0 0.0
    %1959 = vmatprep.subr.mxu0 0.0
    %1960 = vmatpush1.xpose.msra.mxu0 0.0
    %1961 = vmatprep.subr.mxu0 0.0
    %1962 = vmatpush1.xpose.msra.mxu0 %v1929
    %1963 = vmatprep.subr.mxu0 0.0
    %1964 = vmatpush2.xpose.msra.mxu0 0.0
    %1965 = vmatprep.subr.mxu0 0.0
    %1966 = vmatpush2.xpose.msra.mxu0 0.0
    %1967 = vmatprep.subr.mxu0 0.0
    %1968 = vmatpush2.xpose.msra.mxu0 0.0
    %1969 = vmatprep.subr.mxu0 0.0
    %1970 = vmatpush2.xpose.msra.mxu0 0.0
    %1971 = vmatprep.subr.mxu0 0.0
    %1972 = vmatpush2.xpose.msra.mxu0 0.0
    %1973 = vmatprep.subr.mxu0 0.0
    %1974 = vmatpush2.xpose.msra.mxu0 0.0
    %1975 = vmatprep.subr.mxu0 0.0
    %1976 = vmatpush2.xpose.msra.mxu0 0.0
    %1977 = vmatprep.subr.mxu0 0.0
    %1978 = vmatpush2.xpose.msra.mxu0 0.0
    %1979 = vmatprep.subr.mxu0 0.0
    %1980 = vmatpush2.xpose.msra.mxu0 0.0
    %1981 = vmatprep.subr.mxu0 0.0
    %1982 = vmatpush2.xpose.msra.mxu0 0.0
    %1983 = vmatprep.subr.mxu0 0.0
    %1984 = vmatpush2.xpose.msra.mxu0 0.0
    %1985 = vmatprep.subr.mxu0 0.0
    %1986 = vmatpush2.xpose.msra.mxu0 0.0
    %1987 = vmatprep.subr.mxu0 0.0
    %1988 = vmatpush2.xpose.msra.mxu0 0.0
    %1989 = vmatprep.subr.mxu0 0.0
    %1990 = vmatpush2.xpose.msra.mxu0 0.0
    %1991 = vmatprep.subr.mxu0 0.0
    %1992 = vmatpush2.xpose.msra.mxu0 0.0
    %1993 = vmatprep.subr.mxu0 0.0
    %1994 = vmatpush2.xpose.msra.mxu0 0.0
    %1995 = vmatprep.mubr.f32.mxu0 0.0
    %1996 = vmatmul.mubr.f32.gmra.mxu0 %v1927
    %v1997 = vpop.f32.mrf.mxu0
    %v1998 = vadd.f32 0.0, %v1997
    %v1999 = vpop.f32.mrf.mxu0
    %2000 = vdwg.mxu0
    %v2001 = vsel %vm337, %v194, 0
    %v2003 = vsel %vm337, %v1890, 0
    %2005 = vmatprep.subr.mxu0 0.0
    %2006 = vmatpush1.xpose.msra.mxu0 0.0
    %2007 = vmatprep.subr.mxu0 0.0
    %2008 = vmatpush1.xpose.msra.mxu0 0.0
    %2009 = vmatprep.subr.mxu0 0.0
    %2010 = vmatpush1.xpose.msra.mxu0 0.0
    %2011 = vmatprep.subr.mxu0 0.0
    %2012 = vmatpush1.xpose.msra.mxu0 0.0
    %2013 = vmatprep.subr.mxu0 0.0
    %2014 = vmatpush1.xpose.msra.mxu0 0.0
    %2015 = vmatprep.subr.mxu0 0.0
    %2016 = vmatpush1.xpose.msra.mxu0 0.0
    %2017 = vmatprep.subr.mxu0 0.0
    %2018 = vmatpush1.xpose.msra.mxu0 0.0
    %2019 = vmatprep.subr.mxu0 0.0
    %2020 = vmatpush1.xpose.msra.mxu0 0.0
    %2021 = vmatprep.subr.mxu0 0.0
    %2022 = vmatpush1.xpose.msra.mxu0 0.0
    %2023 = vmatprep.subr.mxu0 0.0
    %2024 = vmatpush1.xpose.msra.mxu0 0.0
    %2025 = vmatprep.subr.mxu0 0.0
    %2026 = vmatpush1.xpose.msra.mxu0 0.0
    %2027 = vmatprep.subr.mxu0 0.0
    %2028 = vmatpush1.xpose.msra.mxu0 0.0
    %2029 = vmatprep.subr.mxu0 0.0
    %2030 = vmatpush1.xpose.msra.mxu0 0.0
    %2031 = vmatprep.subr.mxu0 0.0
    %2032 = vmatpush1.xpose.msra.mxu0 0.0
    %2033 = vmatprep.subr.mxu0 0.0
    %2034 = vmatpush1.xpose.msra.mxu0 0.0
    %2035 = vmatprep.subr.mxu0 0.0
    %2036 = vmatpush1.xpose.msra.mxu0 %v2003
    %2037 = vmatprep.subr.mxu0 0.0
    %2038 = vmatpush2.xpose.msra.mxu0 0.0
    %2039 = vmatprep.subr.mxu0 0.0
    %2040 = vmatpush2.xpose.msra.mxu0 0.0
    %2041 = vmatprep.subr.mxu0 0.0
    %2042 = vmatpush2.xpose.msra.mxu0 0.0
    %2043 = vmatprep.subr.mxu0 0.0
    %2044 = vmatpush2.xpose.msra.mxu0 0.0
    %2045 = vmatprep.subr.mxu0 0.0
    %2046 = vmatpush2.xpose.msra.mxu0 0.0
    %2047 = vmatprep.subr.mxu0 0.0
    %2048 = vmatpush2.xpose.msra.mxu0 0.0
    %2049 = vmatprep.subr.mxu0 0.0
    %2050 = vmatpush2.xpose.msra.mxu0 0.0
    %2051 = vmatprep.subr.mxu0 0.0
    %2052 = vmatpush2.xpose.msra.mxu0 0.0
    %2053 = vmatprep.subr.mxu0 0.0
    %2054 = vmatpush2.xpose.msra.mxu0 0.0
    %2055 = vmatprep.subr.mxu0 0.0
    %2056 = vmatpush2.xpose.msra.mxu0 0.0
    %2057 = vmatprep.subr.mxu0 0.0
    %2058 = vmatpush2.xpose.msra.mxu0 0.0
    %2059 = vmatprep.subr.mxu0 0.0
    %2060 = vmatpush2.xpose.msra.mxu0 0.0
    %2061 = vmatprep.subr.mxu0 0.0
    %2062 = vmatpush2.xpose.msra.mxu0 0.0
    %2063 = vmatprep.subr.mxu0 0.0
    %2064 = vmatpush2.xpose.msra.mxu0 0.0
    %2065 = vmatprep.subr.mxu0 0.0
    %2066 = vmatpush2.xpose.msra.mxu0 0.0
    %2067 = vmatprep.subr.mxu0 0.0
    %2068 = vmatpush2.xpose.msra.mxu0 0.0
    %2069 = vmatprep.mubr.f32.mxu0 0.0
    %2070 = vmatmul.mubr.f32.gmra.mxu0 %v2001
    %v2071 = vpop.f32.mrf.mxu0
    %v2072 = vadd.f32 0.0, %v2071
    %v2073 = vpop.f32.mrf.mxu0
    %2074 = vdwg.mxu0
    %v2075 = vsel %vm337, %v1896, 0
    %v2077 = vsel %vm337, %v1910, 0
    %2079 = vmatprep.subr.mxu0 0.0
    %2080 = vmatpush1.xpose.msra.mxu0 0.0
    %2081 = vmatprep.subr.mxu0 0.0
    %2082 = vmatpush1.xpose.msra.mxu0 0.0
    %2083 = vmatprep.subr.mxu0 0.0
    %2084 = vmatpush1.xpose.msra.mxu0 0.0
    %2085 = vmatprep.subr.mxu0 0.0
    %2086 = vmatpush1.xpose.msra.mxu0 0.0
    %2087 = vmatprep.subr.mxu0 0.0
    %2088 = vmatpush1.xpose.msra.mxu0 0.0
    %2089 = vmatprep.subr.mxu0 0.0
    %2090 = vmatpush1.xpose.msra.mxu0 0.0
    %2091 = vmatprep.subr.mxu0 0.0
    %2092 = vmatpush1.xpose.msra.mxu0 0.0
    %2093 = vmatprep.subr.mxu0 0.0
    %2094 = vmatpush1.xpose.msra.mxu0 0.0
    %2095 = vmatprep.subr.mxu0 0.0
    %2096 = vmatpush1.xpose.msra.mxu0 0.0
    %2097 = vmatprep.subr.mxu0 0.0
    %2098 = vmatpush1.xpose.msra.mxu0 0.0
    %2099 = vmatprep.subr.mxu0 0.0
    %2100 = vmatpush1.xpose.msra.mxu0 0.0
    %2101 = vmatprep.subr.mxu0 0.0
    %2102 = vmatpush1.xpose.msra.mxu0 0.0
    %2103 = vmatprep.subr.mxu0 0.0
    %2104 = vmatpush1.xpose.msra.mxu0 0.0
    %2105 = vmatprep.subr.mxu0 0.0
    %2106 = vmatpush1.xpose.msra.mxu0 0.0
    %2107 = vmatprep.subr.mxu0 0.0
    %2108 = vmatpush1.xpose.msra.mxu0 0.0
    %2109 = vmatprep.subr.mxu0 0.0
    %2110 = vmatpush1.xpose.msra.mxu0 %v2077
    %2111 = vmatprep.subr.mxu0 0.0
    %2112 = vmatpush2.xpose.msra.mxu0 0.0
    %2113 = vmatprep.subr.mxu0 0.0
    %2114 = vmatpush2.xpose.msra.mxu0 0.0
    %2115 = vmatprep.subr.mxu0 0.0
    %2116 = vmatpush2.xpose.msra.mxu0 0.0
    %2117 = vmatprep.subr.mxu0 0.0
    %2118 = vmatpush2.xpose.msra.mxu0 0.0
    %2119 = vmatprep.subr.mxu0 0.0
    %2120 = vmatpush2.xpose.msra.mxu0 0.0
    %2121 = vmatprep.subr.mxu0 0.0
    %2122 = vmatpush2.xpose.msra.mxu0 0.0
    %2123 = vmatprep.subr.mxu0 0.0
    %2124 = vmatpush2.xpose.msra.mxu0 0.0
    %2125 = vmatprep.subr.mxu0 0.0
    %2126 = vmatpush2.xpose.msra.mxu0 0.0
    %2127 = vmatprep.subr.mxu0 0.0
    %2128 = vmatpush2.xpose.msra.mxu0 0.0
    %2129 = vmatprep.subr.mxu0 0.0
    %2130 = vmatpush2.xpose.msra.mxu0 0.0
    %2131 = vmatprep.subr.mxu0 0.0
    %2132 = vmatpush2.xpose.msra.mxu0 0.0
    %2133 = vmatprep.subr.mxu0 0.0
    %2134 = vmatpush2.xpose.msra.mxu0 0.0
    %2135 = vmatprep.subr.mxu0 0.0
    %2136 = vmatpush2.xpose.msra.mxu0 0.0
    %2137 = vmatprep.subr.mxu0 0.0
    %2138 = vmatpush2.xpose.msra.mxu0 0.0
    %2139 = vmatprep.subr.mxu0 0.0
    %2140 = vmatpush2.xpose.msra.mxu0 0.0
    %2141 = vmatprep.subr.mxu0 0.0
    %2142 = vmatpush2.xpose.msra.mxu0 0.0
    %2143 = vmatprep.mubr.f32.mxu0 0.0
    %2144 = vmatmul.mubr.f32.gmra.mxu0 %v2075
    %v2145 = vpop.f32.mrf.mxu0
    %v2146 = vadd.f32 0.0, %v2145
    %v2147 = vpop.f32.mrf.mxu0
    %2148 = vdwg.mxu0
    %v2149 = vsel %vm337, %v1898, 0
    %v2151 = vsel %vm337, %v1912, 0
    %2153 = vmatprep.subr.mxu0 0.0
    %2154 = vmatpush1.xpose.msra.mxu0 0.0
    %2155 = vmatprep.subr.mxu0 0.0
    %2156 = vmatpush1.xpose.msra.mxu0 0.0
    %2157 = vmatprep.subr.mxu0 0.0
    %2158 = vmatpush1.xpose.msra.mxu0 0.0
    %2159 = vmatprep.subr.mxu0 0.0
    %2160 = vmatpush1.xpose.msra.mxu0 0.0
    %2161 = vmatprep.subr.mxu0 0.0
    %2162 = vmatpush1.xpose.msra.mxu0 0.0
    %2163 = vmatprep.subr.mxu0 0.0
    %2164 = vmatpush1.xpose.msra.mxu0 0.0
    %2165 = vmatprep.subr.mxu0 0.0
    %2166 = vmatpush1.xpose.msra.mxu0 0.0
    %2167 = vmatprep.subr.mxu0 0.0
    %2168 = vmatpush1.xpose.msra.mxu0 0.0
    %2169 = vmatprep.subr.mxu0 0.0
    %2170 = vmatpush1.xpose.msra.mxu0 0.0
    %2171 = vmatprep.subr.mxu0 0.0
    %2172 = vmatpush1.xpose.msra.mxu0 0.0
    %2173 = vmatprep.subr.mxu0 0.0
    %2174 = vmatpush1.xpose.msra.mxu0 0.0
    %2175 = vmatprep.subr.mxu0 0.0
    %2176 = vmatpush1.xpose.msra.mxu0 0.0
    %2177 = vmatprep.subr.mxu0 0.0
    %2178 = vmatpush1.xpose.msra.mxu0 0.0
    %2179 = vmatprep.subr.mxu0 0.0
    %2180 = vmatpush1.xpose.msra.mxu0 0.0
    %2181 = vmatprep.subr.mxu0 0.0
    %2182 = vmatpush1.xpose.msra.mxu0 0.0
    %2183 = vmatprep.subr.mxu0 0.0
    %2184 = vmatpush1.xpose.msra.mxu0 %v2151
    %2185 = vmatprep.subr.mxu0 0.0
    %2186 = vmatpush2.xpose.msra.mxu0 0.0
    %2187 = vmatprep.subr.mxu0 0.0
    %2188 = vmatpush2.xpose.msra.mxu0 0.0
    %2189 = vmatprep.subr.mxu0 0.0
    %2190 = vmatpush2.xpose.msra.mxu0 0.0
    %2191 = vmatprep.subr.mxu0 0.0
    %2192 = vmatpush2.xpose.msra.mxu0 0.0
    %2193 = vmatprep.subr.mxu0 0.0
    %2194 = vmatpush2.xpose.msra.mxu0 0.0
    %2195 = vmatprep.subr.mxu0 0.0
    %2196 = vmatpush2.xpose.msra.mxu0 0.0
    %2197 = vmatprep.subr.mxu0 0.0
    %2198 = vmatpush2.xpose.msra.mxu0 0.0
    %2199 = vmatprep.subr.mxu0 0.0
    %2200 = vmatpush2.xpose.msra.mxu0 0.0
    %2201 = vmatprep.subr.mxu0 0.0
    %2202 = vmatpush2.xpose.msra.mxu0 0.0
    %2203 = vmatprep.subr.mxu0 0.0
    %2204 = vmatpush2.xpose.msra.mxu0 0.0
    %2205 = vmatprep.subr.mxu0 0.0
    %2206 = vmatpush2.xpose.msra.mxu0 0.0
    %2207 = vmatprep.subr.mxu0 0.0
    %2208 = vmatpush2.xpose.msra.mxu0 0.0
    %2209 = vmatprep.subr.mxu0 0.0
    %2210 = vmatpush2.xpose.msra.mxu0 0.0
    %2211 = vmatprep.subr.mxu0 0.0
    %2212 = vmatpush2.xpose.msra.mxu0 0.0
    %2213 = vmatprep.subr.mxu0 0.0
    %2214 = vmatpush2.xpose.msra.mxu0 0.0
    %2215 = vmatprep.subr.mxu0 0.0
    %2216 = vmatpush2.xpose.msra.mxu0 0.0
    %2217 = vmatprep.mubr.f32.mxu0 0.0
    %2218 = vmatmul.mubr.f32.gmra.mxu0 %v2149
    %v2219 = vpop.f32.mrf.mxu0
    %v2220 = vadd.f32 0.0, %v2219
    %v2221 = vpop.f32.mrf.mxu0
    %2222 = vdwg.mxu0
    %v2223 = vsel %vm337, %v1900, 0
    %v2225 = vsel %vm337, %v1914, 0
    %2227 = vmatprep.subr.mxu0 0.0
    %2228 = vmatpush1.xpose.msra.mxu0 0.0
    %2229 = vmatprep.subr.mxu0 0.0
    %2230 = vmatpush1.xpose.msra.mxu0 0.0
    %2231 = vmatprep.subr.mxu0 0.0
    %2232 = vmatpush1.xpose.msra.mxu0 0.0
    %2233 = vmatprep.subr.mxu0 0.0
    %2234 = vmatpush1.xpose.msra.mxu0 0.0
    %2235 = vmatprep.subr.mxu0 0.0
    %2236 = vmatpush1.xpose.msra.mxu0 0.0
    %2237 = vmatprep.subr.mxu0 0.0
    %2238 = vmatpush1.xpose.msra.mxu0 0.0
    %2239 = vmatprep.subr.mxu0 0.0
    %2240 = vmatpush1.xpose.msra.mxu0 0.0
    %2241 = vmatprep.subr.mxu0 0.0
    %2242 = vmatpush1.xpose.msra.mxu0 0.0
    %2243 = vmatprep.subr.mxu0 0.0
    %2244 = vmatpush1.xpose.msra.mxu0 0.0
    %2245 = vmatprep.subr.mxu0 0.0
    %2246 = vmatpush1.xpose.msra.mxu0 0.0
    %2247 = vmatprep.subr.mxu0 0.0
    %2248 = vmatpush1.xpose.msra.mxu0 0.0
    %2249 = vmatprep.subr.mxu0 0.0
    %2250 = vmatpush1.xpose.msra.mxu0 0.0
    %2251 = vmatprep.subr.mxu0 0.0
    %2252 = vmatpush1.xpose.msra.mxu0 0.0
    %2253 = vmatprep.subr.mxu0 0.0
    %2254 = vmatpush1.xpose.msra.mxu0 0.0
    %2255 = vmatprep.subr.mxu0 0.0
    %2256 = vmatpush1.xpose.msra.mxu0 0.0
    %2257 = vmatprep.subr.mxu0 0.0
    %2258 = vmatpush1.xpose.msra.mxu0 %v2225
    %2259 = vmatprep.subr.mxu0 0.0
    %2260 = vmatpush2.xpose.msra.mxu0 0.0
    %2261 = vmatprep.subr.mxu0 0.0
    %2262 = vmatpush2.xpose.msra.mxu0 0.0
    %2263 = vmatprep.subr.mxu0 0.0
    %2264 = vmatpush2.xpose.msra.mxu0 0.0
    %2265 = vmatprep.subr.mxu0 0.0
    %2266 = vmatpush2.xpose.msra.mxu0 0.0
    %2267 = vmatprep.subr.mxu0 0.0
    %2268 = vmatpush2.xpose.msra.mxu0 0.0
    %2269 = vmatprep.subr.mxu0 0.0
    %2270 = vmatpush2.xpose.msra.mxu0 0.0
    %2271 = vmatprep.subr.mxu0 0.0
    %2272 = vmatpush2.xpose.msra.mxu0 0.0
    %2273 = vmatprep.subr.mxu0 0.0
    %2274 = vmatpush2.xpose.msra.mxu0 0.0
    %2275 = vmatprep.subr.mxu0 0.0
    %2276 = vmatpush2.xpose.msra.mxu0 0.0
    %2277 = vmatprep.subr.mxu0 0.0
    %2278 = vmatpush2.xpose.msra.mxu0 0.0
    %2279 = vmatprep.subr.mxu0 0.0
    %2280 = vmatpush2.xpose.msra.mxu0 0.0
    %2281 = vmatprep.subr.mxu0 0.0
    %2282 = vmatpush2.xpose.msra.mxu0 0.0
    %2283 = vmatprep.subr.mxu0 0.0
    %2284 = vmatpush2.xpose.msra.mxu0 0.0
    %2285 = vmatprep.subr.mxu0 0.0
    %2286 = vmatpush2.xpose.msra.mxu0 0.0
    %2287 = vmatprep.subr.mxu0 0.0
    %2288 = vmatpush2.xpose.msra.mxu0 0.0
    %2289 = vmatprep.subr.mxu0 0.0
    %2290 = vmatpush2.xpose.msra.mxu0 0.0
    %2291 = vmatprep.mubr.f32.mxu0 0.0
    %2292 = vmatmul.mubr.f32.gmra.mxu0 %v2223
    %v2293 = vpop.f32.mrf.mxu0
    %v2294 = vadd.f32 0.0, %v2293
    %v2295 = vpop.f32.mrf.mxu0
    %2296 = vdwg.mxu0
    %v2297 = vsel %vm337, %v1902, 0
    %v2299 = vsel %vm337, %v1916, 0
    %2301 = vmatprep.subr.mxu0 0.0
    %2302 = vmatpush1.xpose.msra.mxu0 0.0
    %2303 = vmatprep.subr.mxu0 0.0
    %2304 = vmatpush1.xpose.msra.mxu0 0.0
    %2305 = vmatprep.subr.mxu0 0.0
    %2306 = vmatpush1.xpose.msra.mxu0 0.0
    %2307 = vmatprep.subr.mxu0 0.0
    %2308 = vmatpush1.xpose.msra.mxu0 0.0
    %2309 = vmatprep.subr.mxu0 0.0
    %2310 = vmatpush1.xpose.msra.mxu0 0.0
    %2311 = vmatprep.subr.mxu0 0.0
    %2312 = vmatpush1.xpose.msra.mxu0 0.0
    %2313 = vmatprep.subr.mxu0 0.0
    %2314 = vmatpush1.xpose.msra.mxu0 0.0
    %2315 = vmatprep.subr.mxu0 0.0
    %2316 = vmatpush1.xpose.msra.mxu0 0.0
    %2317 = vmatprep.subr.mxu0 0.0
    %2318 = vmatpush1.xpose.msra.mxu0 0.0
    %2319 = vmatprep.subr.mxu0 0.0
    %2320 = vmatpush1.xpose.msra.mxu0 0.0
    %2321 = vmatprep.subr.mxu0 0.0
    %2322 = vmatpush1.xpose.msra.mxu0 0.0
    %2323 = vmatprep.subr.mxu0 0.0
    %2324 = vmatpush1.xpose.msra.mxu0 0.0
    %2325 = vmatprep.subr.mxu0 0.0
    %2326 = vmatpush1.xpose.msra.mxu0 0.0
    %2327 = vmatprep.subr.mxu0 0.0
    %2328 = vmatpush1.xpose.msra.mxu0 0.0
    %2329 = vmatprep.subr.mxu0 0.0
    %2330 = vmatpush1.xpose.msra.mxu0 0.0
    %2331 = vmatprep.subr.mxu0 0.0
    %2332 = vmatpush1.xpose.msra.mxu0 %v2299
    %2333 = vmatprep.subr.mxu0 0.0
    %2334 = vmatpush2.xpose.msra.mxu0 0.0
    %2335 = vmatprep.subr.mxu0 0.0
    %2336 = vmatpush2.xpose.msra.mxu0 0.0
    %2337 = vmatprep.subr.mxu0 0.0
    %2338 = vmatpush2.xpose.msra.mxu0 0.0
    %2339 = vmatprep.subr.mxu0 0.0
    %2340 = vmatpush2.xpose.msra.mxu0 0.0
    %2341 = vmatprep.subr.mxu0 0.0
    %2342 = vmatpush2.xpose.msra.mxu0 0.0
    %2343 = vmatprep.subr.mxu0 0.0
    %2344 = vmatpush2.xpose.msra.mxu0 0.0
    %2345 = vmatprep.subr.mxu0 0.0
    %2346 = vmatpush2.xpose.msra.mxu0 0.0
    %2347 = vmatprep.subr.mxu0 0.0
    %2348 = vmatpush2.xpose.msra.mxu0 0.0
    %2349 = vmatprep.subr.mxu0 0.0
    %2350 = vmatpush2.xpose.msra.mxu0 0.0
    %2351 = vmatprep.subr.mxu0 0.0
    %2352 = vmatpush2.xpose.msra.mxu0 0.0
    %2353 = vmatprep.subr.mxu0 0.0
    %2354 = vmatpush2.xpose.msra.mxu0 0.0
    %2355 = vmatprep.subr.mxu0 0.0
    %2356 = vmatpush2.xpose.msra.mxu0 0.0
    %2357 = vmatprep.subr.mxu0 0.0
    %2358 = vmatpush2.xpose.msra.mxu0 0.0
    %2359 = vmatprep.subr.mxu0 0.0
    %2360 = vmatpush2.xpose.msra.mxu0 0.0
    %2361 = vmatprep.subr.mxu0 0.0
    %2362 = vmatpush2.xpose.msra.mxu0 0.0
    %2363 = vmatprep.subr.mxu0 0.0
    %2364 = vmatpush2.xpose.msra.mxu0 0.0
    %2365 = vmatprep.mubr.f32.mxu0 0.0
    %2366 = vmatmul.mubr.f32.gmra.mxu0 %v2297
    %v2367 = vpop.f32.mrf.mxu0
    %v2368 = vadd.f32 0.0, %v2367
    %v2369 = vpop.f32.mrf.mxu0
    %2370 = vdwg.mxu0
    %v2371 = vsel %vm337, %v1904, 0
    %v2373 = vsel %vm337, %v1918, 0
    %2375 = vmatprep.subr.mxu0 0.0
    %2376 = vmatpush1.xpose.msra.mxu0 0.0
    %2377 = vmatprep.subr.mxu0 0.0
    %2378 = vmatpush1.xpose.msra.mxu0 0.0
    %2379 = vmatprep.subr.mxu0 0.0
    %2380 = vmatpush1.xpose.msra.mxu0 0.0
    %2381 = vmatprep.subr.mxu0 0.0
    %2382 = vmatpush1.xpose.msra.mxu0 0.0
    %2383 = vmatprep.subr.mxu0 0.0
    %2384 = vmatpush1.xpose.msra.mxu0 0.0
    %2385 = vmatprep.subr.mxu0 0.0
    %2386 = vmatpush1.xpose.msra.mxu0 0.0
    %2387 = vmatprep.subr.mxu0 0.0
    %2388 = vmatpush1.xpose.msra.mxu0 0.0
    %2389 = vmatprep.subr.mxu0 0.0
    %2390 = vmatpush1.xpose.msra.mxu0 0.0
    %2391 = vmatprep.subr.mxu0 0.0
    %2392 = vmatpush1.xpose.msra.mxu0 0.0
    %2393 = vmatprep.subr.mxu0 0.0
    %2394 = vmatpush1.xpose.msra.mxu0 0.0
    %2395 = vmatprep.subr.mxu0 0.0
    %2396 = vmatpush1.xpose.msra.mxu0 0.0
    %2397 = vmatprep.subr.mxu0 0.0
    %2398 = vmatpush1.xpose.msra.mxu0 0.0
    %2399 = vmatprep.subr.mxu0 0.0
    %2400 = vmatpush1.xpose.msra.mxu0 0.0
    %2401 = vmatprep.subr.mxu0 0.0
    %2402 = vmatpush1.xpose.msra.mxu0 0.0
    %2403 = vmatprep.subr.mxu0 0.0
    %2404 = vmatpush1.xpose.msra.mxu0 0.0
    %2405 = vmatprep.subr.mxu0 0.0
    %2406 = vmatpush1.xpose.msra.mxu0 %v2373
    %2407 = vmatprep.subr.mxu0 0.0
    %2408 = vmatpush2.xpose.msra.mxu0 0.0
    %2409 = vmatprep.subr.mxu0 0.0
    %2410 = vmatpush2.xpose.msra.mxu0 0.0
    %2411 = vmatprep.subr.mxu0 0.0
    %2412 = vmatpush2.xpose.msra.mxu0 0.0
    %2413 = vmatprep.subr.mxu0 0.0
    %2414 = vmatpush2.xpose.msra.mxu0 0.0
    %2415 = vmatprep.subr.mxu0 0.0
    %2416 = vmatpush2.xpose.msra.mxu0 0.0
    %2417 = vmatprep.subr.mxu0 0.0
    %2418 = vmatpush2.xpose.msra.mxu0 0.0
    %2419 = vmatprep.subr.mxu0 0.0
    %2420 = vmatpush2.xpose.msra.mxu0 0.0
    %2421 = vmatprep.subr.mxu0 0.0
    %2422 = vmatpush2.xpose.msra.mxu0 0.0
    %2423 = vmatprep.subr.mxu0 0.0
    %2424 = vmatpush2.xpose.msra.mxu0 0.0
    %2425 = vmatprep.subr.mxu0 0.0
    %2426 = vmatpush2.xpose.msra.mxu0 0.0
    %2427 = vmatprep.subr.mxu0 0.0
    %2428 = vmatpush2.xpose.msra.mxu0 0.0
    %2429 = vmatprep.subr.mxu0 0.0
    %2430 = vmatpush2.xpose.msra.mxu0 0.0
    %2431 = vmatprep.subr.mxu0 0.0
    %2432 = vmatpush2.xpose.msra.mxu0 0.0
    %2433 = vmatprep.subr.mxu0 0.0
    %2434 = vmatpush2.xpose.msra.mxu0 0.0
    %2435 = vmatprep.subr.mxu0 0.0
    %2436 = vmatpush2.xpose.msra.mxu0 0.0
    %2437 = vmatprep.subr.mxu0 0.0
    %2438 = vmatpush2.xpose.msra.mxu0 0.0
    %2439 = vmatprep.mubr.f32.mxu0 0.0
    %2440 = vmatmul.mubr.f32.gmra.mxu0 %v2371
    %v2441 = vpop.f32.mrf.mxu0
    %v2442 = vadd.f32 0.0, %v2441
    %v2443 = vpop.f32.mrf.mxu0
    %2444 = vdwg.mxu0
    %v2445 = vsel %vm337, %v1906, 0
    %v2447 = vsel %vm337, %v1920, 0
    %2449 = vmatprep.subr.mxu0 0.0
    %2450 = vmatpush1.xpose.msra.mxu0 0.0
    %2451 = vmatprep.subr.mxu0 0.0
    %2452 = vmatpush1.xpose.msra.mxu0 0.0
    %2453 = vmatprep.subr.mxu0 0.0
    %2454 = vmatpush1.xpose.msra.mxu0 0.0
    %2455 = vmatprep.subr.mxu0 0.0
    %2456 = vmatpush1.xpose.msra.mxu0 0.0
    %2457 = vmatprep.subr.mxu0 0.0
    %2458 = vmatpush1.xpose.msra.mxu0 0.0
    %2459 = vmatprep.subr.mxu0 0.0
    %2460 = vmatpush1.xpose.msra.mxu0 0.0
    %2461 = vmatprep.subr.mxu0 0.0
    %2462 = vmatpush1.xpose.msra.mxu0 0.0
    %2463 = vmatprep.subr.mxu0 0.0
    %2464 = vmatpush1.xpose.msra.mxu0 0.0
    %2465 = vmatprep.subr.mxu0 0.0
    %2466 = vmatpush1.xpose.msra.mxu0 0.0
    %2467 = vmatprep.subr.mxu0 0.0
    %2468 = vmatpush1.xpose.msra.mxu0 0.0
    %2469 = vmatprep.subr.mxu0 0.0
    %2470 = vmatpush1.xpose.msra.mxu0 0.0
    %2471 = vmatprep.subr.mxu0 0.0
    %2472 = vmatpush1.xpose.msra.mxu0 0.0
    %2473 = vmatprep.subr.mxu0 0.0
    %2474 = vmatpush1.xpose.msra.mxu0 0.0
    %2475 = vmatprep.subr.mxu0 0.0
    %2476 = vmatpush1.xpose.msra.mxu0 0.0
    %2477 = vmatprep.subr.mxu0 0.0
    %2478 = vmatpush1.xpose.msra.mxu0 0.0
    %2479 = vmatprep.subr.mxu0 0.0
    %2480 = vmatpush1.xpose.msra.mxu0 %v2447
    %2481 = vmatprep.subr.mxu0 0.0
    %2482 = vmatpush2.xpose.msra.mxu0 0.0
    %2483 = vmatprep.subr.mxu0 0.0
    %2484 = vmatpush2.xpose.msra.mxu0 0.0
    %2485 = vmatprep.subr.mxu0 0.0
    %2486 = vmatpush2.xpose.msra.mxu0 0.0
    %2487 = vmatprep.subr.mxu0 0.0
    %2488 = vmatpush2.xpose.msra.mxu0 0.0
    %2489 = vmatprep.subr.mxu0 0.0
    %2490 = vmatpush2.xpose.msra.mxu0 0.0
    %2491 = vmatprep.subr.mxu0 0.0
    %2492 = vmatpush2.xpose.msra.mxu0 0.0
    %2493 = vmatprep.subr.mxu0 0.0
    %2494 = vmatpush2.xpose.msra.mxu0 0.0
    %2495 = vmatprep.subr.mxu0 0.0
    %2496 = vmatpush2.xpose.msra.mxu0 0.0
    %2497 = vmatprep.subr.mxu0 0.0
    %2498 = vmatpush2.xpose.msra.mxu0 0.0
    %2499 = vmatprep.subr.mxu0 0.0
    %2500 = vmatpush2.xpose.msra.mxu0 0.0
    %2501 = vmatprep.subr.mxu0 0.0
    %2502 = vmatpush2.xpose.msra.mxu0 0.0
    %2503 = vmatprep.subr.mxu0 0.0
    %2504 = vmatpush2.xpose.msra.mxu0 0.0
    %2505 = vmatprep.subr.mxu0 0.0
    %2506 = vmatpush2.xpose.msra.mxu0 0.0
    %2507 = vmatprep.subr.mxu0 0.0
    %2508 = vmatpush2.xpose.msra.mxu0 0.0
    %2509 = vmatprep.subr.mxu0 0.0
    %2510 = vmatpush2.xpose.msra.mxu0 0.0
    %2511 = vmatprep.subr.mxu0 0.0
    %2512 = vmatpush2.xpose.msra.mxu0 0.0
    %2513 = vmatprep.mubr.f32.mxu0 0.0
    %2514 = vmatmul.mubr.f32.gmra.mxu0 %v2445
    %v2515 = vpop.f32.mrf.mxu0
    %v2516 = vadd.f32 0.0, %v2515
    %v2517 = vpop.f32.mrf.mxu0
    %2518 = vdwg.mxu0
    %v2519 = vmul.f32 %v1998, 2.828427
    %v2520 = vmul.f32 %v2072, 2.828427
    %v2521 = vmul.f32 %v2146, 2.828427
    %v2522 = vmul.f32 %v2220, 2.828427
    %v2523 = vmul.f32 %v2294, 2.828427
    %v2524 = vmul.f32 %v2368, 2.828427
    %v2525 = vmul.f32 %v2442, 2.828427
    %v2526 = vmul.f32 %v2516, 2.828427
    %v2527 = vadd.f32 %v2519, %v110
    %v2528 = vadd.f32 %v2520, %v110
    %v2529 = vadd.f32 %v2521, %v110
    %v2530 = vadd.f32 %v2522, %v110
    %v2531 = vadd.f32 %v2523, %v110
    %v2532 = vadd.f32 %v2524, %v110
    %v2533 = vadd.f32 %v2525, %v110
    %v2534 = vadd.f32 %v2526, %v110
    %v2535 = vsel %vm337, %v2527, -inf
    %2536 = vmax.xlane.f32.xlu0 %v2535
    %v2537 = vpop.xlane.xlu0 %2536
    %v2538 = vsel %vm337, %v2528, -inf
    %2539 = vmax.xlane.f32.xlu0 %v2538
    %v2540 = vpop.xlane.xlu0 %2539
    %v2541 = vsel %vm337, %v2529, -inf
    %2542 = vmax.xlane.f32.xlu0 %v2541
    %v2543 = vpop.xlane.xlu0 %2542
    %v2544 = vsel %vm337, %v2530, -inf
    %2545 = vmax.xlane.f32.xlu0 %v2544
    %v2546 = vpop.xlane.xlu0 %2545
    %v2547 = vsel %vm337, %v2531, -inf
    %2548 = vmax.xlane.f32.xlu0 %v2547
    %v2549 = vpop.xlane.xlu0 %2548
    %v2550 = vsel %vm337, %v2532, -inf
    %2551 = vmax.xlane.f32.xlu0 %v2550
    %v2552 = vpop.xlane.xlu0 %2551
    %v2553 = vsel %vm337, %v2533, -inf
    %2554 = vmax.xlane.f32.xlu0 %v2553
    %v2555 = vpop.xlane.xlu0 %2554
    %v2556 = vsel %vm337, %v2534, -inf
    %2557 = vmax.xlane.f32.xlu0 %v2556
    %v2558 = vpop.xlane.xlu0 %2557
    %v2559 = vsub.f32 %v2527, %v2537
    %v2560 = vsub.f32 %v2528, %v2540
    %v2561 = vsub.f32 %v2529, %v2543
    %v2562 = vsub.f32 %v2530, %v2546
    %v2563 = vsub.f32 %v2531, %v2549
    %v2564 = vsub.f32 %v2532, %v2552
    %v2565 = vsub.f32 %v2533, %v2555
    %v2566 = vsub.f32 %v2534, %v2558
    %v2567 = vmul.f32 %v2559, 1.442695
    %v2568 = vpow.pop %v2567
    %v2569 = vmul.f32 %v2560, 1.442695
    %v2570 = vpow.pop %v2569
    %v2571 = vmul.f32 %v2561, 1.442695
    %v2572 = vpow.pop %v2571
    %v2573 = vmul.f32 %v2562, 1.442695
    %v2574 = vpow.pop %v2573
    %v2575 = vmul.f32 %v2563, 1.442695
    %v2576 = vpow.pop %v2575
    %v2577 = vmul.f32 %v2564, 1.442695
    %v2578 = vpow.pop %v2577
    %v2579 = vmul.f32 %v2565, 1.442695
    %v2580 = vpow.pop %v2579
    %v2581 = vmul.f32 %v2566, 1.442695
    %v2582 = vpow.pop %v2581
    %v2583 = vsel %vm337, %v2568, 0.0
    %2584 = vadd.xlane.f32.xlu0 %v2583
    %v2585 = vpop.xlane.xlu0 %2584
    %v2586 = vsel %vm337, %v2570, 0.0
    %2587 = vadd.xlane.f32.xlu0 %v2586
    %v2588 = vpop.xlane.xlu0 %2587
    %v2589 = vsel %vm337, %v2572, 0.0
    %2590 = vadd.xlane.f32.xlu0 %v2589
    %v2591 = vpop.xlane.xlu0 %2590
    %v2592 = vsel %vm337, %v2574, 0.0
    %2593 = vadd.xlane.f32.xlu0 %v2592
    %v2594 = vpop.xlane.xlu0 %2593
    %v2595 = vsel %vm337, %v2576, 0.0
    %2596 = vadd.xlane.f32.xlu0 %v2595
    %v2597 = vpop.xlane.xlu0 %2596
    %v2598 = vsel %vm337, %v2578, 0.0
    %2599 = vadd.xlane.f32.xlu0 %v2598
    %v2600 = vpop.xlane.xlu0 %2599
    %v2601 = vsel %vm337, %v2580, 0.0
    %2602 = vadd.xlane.f32.xlu0 %v2601
    %v2603 = vpop.xlane.xlu0 %2602
    %v2604 = vsel %vm337, %v2582, 0.0
    %2605 = vadd.xlane.f32.xlu0 %v2604
    %v2606 = vpop.xlane.xlu0 %2605
    %v2607 = vrcp.pop %v2585
    %v2608 = vrcp.pop %v2588
    %v2609 = vrcp.pop %v2591
    %v2610 = vrcp.pop %v2594
    %v2611 = vrcp.pop %v2597
    %v2612 = vrcp.pop %v2600
    %v2613 = vrcp.pop %v2603
    %v2614 = vrcp.pop %v2606
    %v2615 = vmul.f32 %v2568, %v2607
    %v2616 = vmul.f32 %v2570, %v2608
    %v2617 = vmul.f32 %v2572, %v2609
    %v2618 = vmul.f32 %v2574, %v2610
    %v2619 = vmul.f32 %v2576, %v2611
    %v2620 = vmul.f32 %v2578, %v2612
    %v2621 = vmul.f32 %v2580, %v2613
    %v2622 = vmul.f32 %v2582, %v2614
    %2623 = vrot.lane.b32.xlu0 %v189, 96
    %v2624 = vpop.permute.xlu0 %2623
    %v2627 = vsel %vm337, %v2615, 0
    %2629 = vmatprep.subr.mxu0 0.0
    %2630 = vmatpush1.msra.mxu0 0.0
    %2631 = vmatprep.subr.mxu0 0.0
    %2632 = vmatpush1.msra.mxu0 0.0
    %2633 = vmatprep.subr.mxu0 0.0
    %2634 = vmatpush1.msra.mxu0 0.0
    %2635 = vmatprep.subr.mxu0 0.0
    %2636 = vmatpush1.msra.mxu0 0.0
    %2637 = vmatprep.subr.mxu0 0.0
    %2638 = vmatpush1.msra.mxu0 0.0
    %2639 = vmatprep.subr.mxu0 0.0
    %2640 = vmatpush1.msra.mxu0 0.0
    %2641 = vmatprep.subr.mxu0 0.0
    %2642 = vmatpush1.msra.mxu0 0.0
    %2643 = vmatprep.subr.mxu0 0.0
    %2644 = vmatpush1.msra.mxu0 0.0
    %2645 = vmatprep.subr.mxu0 0.0
    %2646 = vmatpush1.msra.mxu0 0.0
    %2647 = vmatprep.subr.mxu0 0.0
    %2648 = vmatpush1.msra.mxu0 0.0
    %2649 = vmatprep.subr.mxu0 0.0
    %2650 = vmatpush1.msra.mxu0 0.0
    %2651 = vmatprep.subr.mxu0 0.0
    %2652 = vmatpush1.msra.mxu0 0.0
    %2653 = vmatprep.subr.mxu0 0.0
    %2654 = vmatpush1.msra.mxu0 0.0
    %2655 = vmatprep.subr.mxu0 0.0
    %2656 = vmatpush1.msra.mxu0 0.0
    %2657 = vmatprep.subr.mxu0 0.0
    %2658 = vmatpush1.msra.mxu0 0.0
    %2659 = vmatprep.subr.mxu0 0.0
    %2660 = vmatpush1.msra.mxu0 %v2624
    %2661 = vmatprep.subr.mxu0 0.0
    %2662 = vmatpush2.msra.mxu0 0.0
    %2663 = vmatprep.subr.mxu0 0.0
    %2664 = vmatpush2.msra.mxu0 0.0
    %2665 = vmatprep.subr.mxu0 0.0
    %2666 = vmatpush2.msra.mxu0 0.0
    %2667 = vmatprep.subr.mxu0 0.0
    %2668 = vmatpush2.msra.mxu0 0.0
    %2669 = vmatprep.subr.mxu0 0.0
    %2670 = vmatpush2.msra.mxu0 0.0
    %2671 = vmatprep.subr.mxu0 0.0
    %2672 = vmatpush2.msra.mxu0 0.0
    %2673 = vmatprep.subr.mxu0 0.0
    %2674 = vmatpush2.msra.mxu0 0.0
    %2675 = vmatprep.subr.mxu0 0.0
    %2676 = vmatpush2.msra.mxu0 0.0
    %2677 = vmatprep.subr.mxu0 0.0
    %2678 = vmatpush2.msra.mxu0 0.0
    %2679 = vmatprep.subr.mxu0 0.0
    %2680 = vmatpush2.msra.mxu0 0.0
    %2681 = vmatprep.subr.mxu0 0.0
    %2682 = vmatpush2.msra.mxu0 0.0
    %2683 = vmatprep.subr.mxu0 0.0
    %2684 = vmatpush2.msra.mxu0 0.0
    %2685 = vmatprep.subr.mxu0 0.0
    %2686 = vmatpush2.msra.mxu0 0.0
    %2687 = vmatprep.subr.mxu0 0.0
    %2688 = vmatpush2.msra.mxu0 0.0
    %2689 = vmatprep.subr.mxu0 0.0
    %2690 = vmatpush2.msra.mxu0 0.0
    %2691 = vmatprep.subr.mxu0 0.0
    %2692 = vmatpush2.msra.mxu0 0.0
    %2693 = vmatprep.mubr.f32.mxu0 0.0
    %2694 = vmatmul.mubr.f32.gmra.mxu0 %v2627
    %v2695 = vpop.f32.mrf.mxu0
    %v2696 = vadd.f32 0.0, %v2695
    %v2697 = vpop.f32.mrf.mxu0
    %2698 = vdwg.mxu0
    %2699 = vrot.lane.b32.xlu0 %v194, 96
    %v2700 = vpop.permute.xlu0 %2699
    %v2703 = vsel %vm337, %v2616, 0
    %2705 = vmatprep.subr.mxu0 0.0
    %2706 = vmatpush1.msra.mxu0 0.0
    %2707 = vmatprep.subr.mxu0 0.0
    %2708 = vmatpush1.msra.mxu0 0.0
    %2709 = vmatprep.subr.mxu0 0.0
    %2710 = vmatpush1.msra.mxu0 0.0
    %2711 = vmatprep.subr.mxu0 0.0
    %2712 = vmatpush1.msra.mxu0 0.0
    %2713 = vmatprep.subr.mxu0 0.0
    %2714 = vmatpush1.msra.mxu0 0.0
    %2715 = vmatprep.subr.mxu0 0.0
    %2716 = vmatpush1.msra.mxu0 0.0
    %2717 = vmatprep.subr.mxu0 0.0
    %2718 = vmatpush1.msra.mxu0 0.0
    %2719 = vmatprep.subr.mxu0 0.0
    %2720 = vmatpush1.msra.mxu0 0.0
    %2721 = vmatprep.subr.mxu0 0.0
    %2722 = vmatpush1.msra.mxu0 0.0
    %2723 = vmatprep.subr.mxu0 0.0
    %2724 = vmatpush1.msra.mxu0 0.0
    %2725 = vmatprep.subr.mxu0 0.0
    %2726 = vmatpush1.msra.mxu0 0.0
    %2727 = vmatprep.subr.mxu0 0.0
    %2728 = vmatpush1.msra.mxu0 0.0
    %2729 = vmatprep.subr.mxu0 0.0
    %2730 = vmatpush1.msra.mxu0 0.0
    %2731 = vmatprep.subr.mxu0 0.0
    %2732 = vmatpush1.msra.mxu0 0.0
    %2733 = vmatprep.subr.mxu0 0.0
    %2734 = vmatpush1.msra.mxu0 0.0
    %2735 = vmatprep.subr.mxu0 0.0
    %2736 = vmatpush1.msra.mxu0 %v2700
    %2737 = vmatprep.subr.mxu0 0.0
    %2738 = vmatpush2.msra.mxu0 0.0
    %2739 = vmatprep.subr.mxu0 0.0
    %2740 = vmatpush2.msra.mxu0 0.0
    %2741 = vmatprep.subr.mxu0 0.0
    %2742 = vmatpush2.msra.mxu0 0.0
    %2743 = vmatprep.subr.mxu0 0.0
    %2744 = vmatpush2.msra.mxu0 0.0
    %2745 = vmatprep.subr.mxu0 0.0
    %2746 = vmatpush2.msra.mxu0 0.0
    %2747 = vmatprep.subr.mxu0 0.0
    %2748 = vmatpush2.msra.mxu0 0.0
    %2749 = vmatprep.subr.mxu0 0.0
    %2750 = vmatpush2.msra.mxu0 0.0
    %2751 = vmatprep.subr.mxu0 0.0
    %2752 = vmatpush2.msra.mxu0 0.0
    %2753 = vmatprep.subr.mxu0 0.0
    %2754 = vmatpush2.msra.mxu0 0.0
    %2755 = vmatprep.subr.mxu0 0.0
    %2756 = vmatpush2.msra.mxu0 0.0
    %2757 = vmatprep.subr.mxu0 0.0
    %2758 = vmatpush2.msra.mxu0 0.0
    %2759 = vmatprep.subr.mxu0 0.0
    %2760 = vmatpush2.msra.mxu0 0.0
    %2761 = vmatprep.subr.mxu0 0.0
    %2762 = vmatpush2.msra.mxu0 0.0
    %2763 = vmatprep.subr.mxu0 0.0
    %2764 = vmatpush2.msra.mxu0 0.0
    %2765 = vmatprep.subr.mxu0 0.0
    %2766 = vmatpush2.msra.mxu0 0.0
    %2767 = vmatprep.subr.mxu0 0.0
    %2768 = vmatpush2.msra.mxu0 0.0
    %2769 = vmatprep.mubr.f32.mxu0 0.0
    %2770 = vmatmul.mubr.f32.gmra.mxu0 %v2703
    %v2771 = vpop.f32.mrf.mxu0
    %v2772 = vadd.f32 0.0, %v2771
    %v2773 = vpop.f32.mrf.mxu0
    %2774 = vdwg.mxu0
    %2775 = vrot.lane.b32.xlu0 %v1896, 96
    %v2776 = vpop.permute.xlu0 %2775
    %v2779 = vsel %vm337, %v2617, 0
    %2781 = vmatprep.subr.mxu0 0.0
    %2782 = vmatpush1.msra.mxu0 0.0
    %2783 = vmatprep.subr.mxu0 0.0
    %2784 = vmatpush1.msra.mxu0 0.0
    %2785 = vmatprep.subr.mxu0 0.0
    %2786 = vmatpush1.msra.mxu0 0.0
    %2787 = vmatprep.subr.mxu0 0.0
    %2788 = vmatpush1.msra.mxu0 0.0
    %2789 = vmatprep.subr.mxu0 0.0
    %2790 = vmatpush1.msra.mxu0 0.0
    %2791 = vmatprep.subr.mxu0 0.0
    %2792 = vmatpush1.msra.mxu0 0.0
    %2793 = vmatprep.subr.mxu0 0.0
    %2794 = vmatpush1.msra.mxu0 0.0
    %2795 = vmatprep.subr.mxu0 0.0
    %2796 = vmatpush1.msra.mxu0 0.0
    %2797 = vmatprep.subr.mxu0 0.0
    %2798 = vmatpush1.msra.mxu0 0.0
    %2799 = vmatprep.subr.mxu0 0.0
    %2800 = vmatpush1.msra.mxu0 0.0
    %2801 = vmatprep.subr.mxu0 0.0
    %2802 = vmatpush1.msra.mxu0 0.0
    %2803 = vmatprep.subr.mxu0 0.0
    %2804 = vmatpush1.msra.mxu0 0.0
    %2805 = vmatprep.subr.mxu0 0.0
    %2806 = vmatpush1.msra.mxu0 0.0
    %2807 = vmatprep.subr.mxu0 0.0
    %2808 = vmatpush1.msra.mxu0 0.0
    %2809 = vmatprep.subr.mxu0 0.0
    %2810 = vmatpush1.msra.mxu0 0.0
    %2811 = vmatprep.subr.mxu0 0.0
    %2812 = vmatpush1.msra.mxu0 %v2776
    %2813 = vmatprep.subr.mxu0 0.0
    %2814 = vmatpush2.msra.mxu0 0.0
    %2815 = vmatprep.subr.mxu0 0.0
    %2816 = vmatpush2.msra.mxu0 0.0
    %2817 = vmatprep.subr.mxu0 0.0
    %2818 = vmatpush2.msra.mxu0 0.0
    %2819 = vmatprep.subr.mxu0 0.0
    %2820 = vmatpush2.msra.mxu0 0.0
    %2821 = vmatprep.subr.mxu0 0.0
    %2822 = vmatpush2.msra.mxu0 0.0
    %2823 = vmatprep.subr.mxu0 0.0
    %2824 = vmatpush2.msra.mxu0 0.0
    %2825 = vmatprep.subr.mxu0 0.0
    %2826 = vmatpush2.msra.mxu0 0.0
    %2827 = vmatprep.subr.mxu0 0.0
    %2828 = vmatpush2.msra.mxu0 0.0
    %2829 = vmatprep.subr.mxu0 0.0
    %2830 = vmatpush2.msra.mxu0 0.0
    %2831 = vmatprep.subr.mxu0 0.0
    %2832 = vmatpush2.msra.mxu0 0.0
    %2833 = vmatprep.subr.mxu0 0.0
    %2834 = vmatpush2.msra.mxu0 0.0
    %2835 = vmatprep.subr.mxu0 0.0
    %2836 = vmatpush2.msra.mxu0 0.0
    %2837 = vmatprep.subr.mxu0 0.0
    %2838 = vmatpush2.msra.mxu0 0.0
    %2839 = vmatprep.subr.mxu0 0.0
    %2840 = vmatpush2.msra.mxu0 0.0
    %2841 = vmatprep.subr.mxu0 0.0
    %2842 = vmatpush2.msra.mxu0 0.0
    %2843 = vmatprep.subr.mxu0 0.0
    %2844 = vmatpush2.msra.mxu0 0.0
    %2845 = vmatprep.mubr.f32.mxu0 0.0
    %2846 = vmatmul.mubr.f32.gmra.mxu0 %v2779
    %v2847 = vpop.f32.mrf.mxu0
    %v2848 = vadd.f32 0.0, %v2847
    %v2849 = vpop.f32.mrf.mxu0
    %2850 = vdwg.mxu0
    %2851 = vrot.lane.b32.xlu0 %v1898, 96
    %v2852 = vpop.permute.xlu0 %2851
    %v2855 = vsel %vm337, %v2618, 0
    %2857 = vmatprep.subr.mxu0 0.0
    %2858 = vmatpush1.msra.mxu0 0.0
    %2859 = vmatprep.subr.mxu0 0.0
    %2860 = vmatpush1.msra.mxu0 0.0
    %2861 = vmatprep.subr.mxu0 0.0
    %2862 = vmatpush1.msra.mxu0 0.0
    %2863 = vmatprep.subr.mxu0 0.0
    %2864 = vmatpush1.msra.mxu0 0.0
    %2865 = vmatprep.subr.mxu0 0.0
    %2866 = vmatpush1.msra.mxu0 0.0
    %2867 = vmatprep.subr.mxu0 0.0
    %2868 = vmatpush1.msra.mxu0 0.0
    %2869 = vmatprep.subr.mxu0 0.0
    %2870 = vmatpush1.msra.mxu0 0.0
    %2871 = vmatprep.subr.mxu0 0.0
    %2872 = vmatpush1.msra.mxu0 0.0
    %2873 = vmatprep.subr.mxu0 0.0
    %2874 = vmatpush1.msra.mxu0 0.0
    %2875 = vmatprep.subr.mxu0 0.0
    %2876 = vmatpush1.msra.mxu0 0.0
    %2877 = vmatprep.subr.mxu0 0.0
    %2878 = vmatpush1.msra.mxu0 0.0
    %2879 = vmatprep.subr.mxu0 0.0
    %2880 = vmatpush1.msra.mxu0 0.0
    %2881 = vmatprep.subr.mxu0 0.0
    %2882 = vmatpush1.msra.mxu0 0.0
    %2883 = vmatprep.subr.mxu0 0.0
    %2884 = vmatpush1.msra.mxu0 0.0
    %2885 = vmatprep.subr.mxu0 0.0
    %2886 = vmatpush1.msra.mxu0 0.0
    %2887 = vmatprep.subr.mxu0 0.0
    %2888 = vmatpush1.msra.mxu0 %v2852
    %2889 = vmatprep.subr.mxu0 0.0
    %2890 = vmatpush2.msra.mxu0 0.0
    %2891 = vmatprep.subr.mxu0 0.0
    %2892 = vmatpush2.msra.mxu0 0.0
    %2893 = vmatprep.subr.mxu0 0.0
    %2894 = vmatpush2.msra.mxu0 0.0
    %2895 = vmatprep.subr.mxu0 0.0
    %2896 = vmatpush2.msra.mxu0 0.0
    %2897 = vmatprep.subr.mxu0 0.0
    %2898 = vmatpush2.msra.mxu0 0.0
    %2899 = vmatprep.subr.mxu0 0.0
    %2900 = vmatpush2.msra.mxu0 0.0
    %2901 = vmatprep.subr.mxu0 0.0
    %2902 = vmatpush2.msra.mxu0 0.0
    %2903 = vmatprep.subr.mxu0 0.0
    %2904 = vmatpush2.msra.mxu0 0.0
    %2905 = vmatprep.subr.mxu0 0.0
    %2906 = vmatpush2.msra.mxu0 0.0
    %2907 = vmatprep.subr.mxu0 0.0
    %2908 = vmatpush2.msra.mxu0 0.0
    %2909 = vmatprep.subr.mxu0 0.0
    %2910 = vmatpush2.msra.mxu0 0.0
    %2911 = vmatprep.subr.mxu0 0.0
    %2912 = vmatpush2.msra.mxu0 0.0
    %2913 = vmatprep.subr.mxu0 0.0
    %2914 = vmatpush2.msra.mxu0 0.0
    %2915 = vmatprep.subr.mxu0 0.0
    %2916 = vmatpush2.msra.mxu0 0.0
    %2917 = vmatprep.subr.mxu0 0.0
    %2918 = vmatpush2.msra.mxu0 0.0
    %2919 = vmatprep.subr.mxu0 0.0
    %2920 = vmatpush2.msra.mxu0 0.0
    %2921 = vmatprep.mubr.f32.mxu0 0.0
    %2922 = vmatmul.mubr.f32.gmra.mxu0 %v2855
    %v2923 = vpop.f32.mrf.mxu0
    %v2924 = vadd.f32 0.0, %v2923
    %v2925 = vpop.f32.mrf.mxu0
    %2926 = vdwg.mxu0
    %2927 = vrot.lane.b32.xlu0 %v1900, 96
    %v2928 = vpop.permute.xlu0 %2927
    %v2931 = vsel %vm337, %v2619, 0
    %2933 = vmatprep.subr.mxu0 0.0
    %2934 = vmatpush1.msra.mxu0 0.0
    %2935 = vmatprep.subr.mxu0 0.0
    %2936 = vmatpush1.msra.mxu0 0.0
    %2937 = vmatprep.subr.mxu0 0.0
    %2938 = vmatpush1.msra.mxu0 0.0
    %2939 = vmatprep.subr.mxu0 0.0
    %2940 = vmatpush1.msra.mxu0 0.0
    %2941 = vmatprep.subr.mxu0 0.0
    %2942 = vmatpush1.msra.mxu0 0.0
    %2943 = vmatprep.subr.mxu0 0.0
    %2944 = vmatpush1.msra.mxu0 0.0
    %2945 = vmatprep.subr.mxu0 0.0
    %2946 = vmatpush1.msra.mxu0 0.0
    %2947 = vmatprep.subr.mxu0 0.0
    %2948 = vmatpush1.msra.mxu0 0.0
    %2949 = vmatprep.subr.mxu0 0.0
    %2950 = vmatpush1.msra.mxu0 0.0
    %2951 = vmatprep.subr.mxu0 0.0
    %2952 = vmatpush1.msra.mxu0 0.0
    %2953 = vmatprep.subr.mxu0 0.0
    %2954 = vmatpush1.msra.mxu0 0.0
    %2955 = vmatprep.subr.mxu0 0.0
    %2956 = vmatpush1.msra.mxu0 0.0
    %2957 = vmatprep.subr.mxu0 0.0
    %2958 = vmatpush1.msra.mxu0 0.0
    %2959 = vmatprep.subr.mxu0 0.0
    %2960 = vmatpush1.msra.mxu0 0.0
    %2961 = vmatprep.subr.mxu0 0.0
    %2962 = vmatpush1.msra.mxu0 0.0
    %2963 = vmatprep.subr.mxu0 0.0
    %2964 = vmatpush1.msra.mxu0 %v2928
    %2965 = vmatprep.subr.mxu0 0.0
    %2966 = vmatpush2.msra.mxu0 0.0
    %2967 = vmatprep.subr.mxu0 0.0
    %2968 = vmatpush2.msra.mxu0 0.0
    %2969 = vmatprep.subr.mxu0 0.0
    %2970 = vmatpush2.msra.mxu0 0.0
    %2971 = vmatprep.subr.mxu0 0.0
    %2972 = vmatpush2.msra.mxu0 0.0
    %2973 = vmatprep.subr.mxu0 0.0
    %2974 = vmatpush2.msra.mxu0 0.0
    %2975 = vmatprep.subr.mxu0 0.0
    %2976 = vmatpush2.msra.mxu0 0.0
    %2977 = vmatprep.subr.mxu0 0.0
    %2978 = vmatpush2.msra.mxu0 0.0
    %2979 = vmatprep.subr.mxu0 0.0
    %2980 = vmatpush2.msra.mxu0 0.0
    %2981 = vmatprep.subr.mxu0 0.0
    %2982 = vmatpush2.msra.mxu0 0.0
    %2983 = vmatprep.subr.mxu0 0.0
    %2984 = vmatpush2.msra.mxu0 0.0
    %2985 = vmatprep.subr.mxu0 0.0
    %2986 = vmatpush2.msra.mxu0 0.0
    %2987 = vmatprep.subr.mxu0 0.0
    %2988 = vmatpush2.msra.mxu0 0.0
    %2989 = vmatprep.subr.mxu0 0.0
    %2990 = vmatpush2.msra.mxu0 0.0
    %2991 = vmatprep.subr.mxu0 0.0
    %2992 = vmatpush2.msra.mxu0 0.0
    %2993 = vmatprep.subr.mxu0 0.0
    %2994 = vmatpush2.msra.mxu0 0.0
    %2995 = vmatprep.subr.mxu0 0.0
    %2996 = vmatpush2.msra.mxu0 0.0
    %2997 = vmatprep.mubr.f32.mxu0 0.0
    %2998 = vmatmul.mubr.f32.gmra.mxu0 %v2931
    %v2999 = vpop.f32.mrf.mxu0
    %v3000 = vadd.f32 0.0, %v2999
    %v3001 = vpop.f32.mrf.mxu0
    %3002 = vdwg.mxu0
    %3003 = vrot.lane.b32.xlu0 %v1902, 96
    %v3004 = vpop.permute.xlu0 %3003
    %v3007 = vsel %vm337, %v2620, 0
    %3009 = vmatprep.subr.mxu0 0.0
    %3010 = vmatpush1.msra.mxu0 0.0
    %3011 = vmatprep.subr.mxu0 0.0
    %3012 = vmatpush1.msra.mxu0 0.0
    %3013 = vmatprep.subr.mxu0 0.0
    %3014 = vmatpush1.msra.mxu0 0.0
    %3015 = vmatprep.subr.mxu0 0.0
    %3016 = vmatpush1.msra.mxu0 0.0
    %3017 = vmatprep.subr.mxu0 0.0
    %3018 = vmatpush1.msra.mxu0 0.0
    %3019 = vmatprep.subr.mxu0 0.0
    %3020 = vmatpush1.msra.mxu0 0.0
    %3021 = vmatprep.subr.mxu0 0.0
    %3022 = vmatpush1.msra.mxu0 0.0
    %3023 = vmatprep.subr.mxu0 0.0
    %3024 = vmatpush1.msra.mxu0 0.0
    %3025 = vmatprep.subr.mxu0 0.0
    %3026 = vmatpush1.msra.mxu0 0.0
    %3027 = vmatprep.subr.mxu0 0.0
    %3028 = vmatpush1.msra.mxu0 0.0
    %3029 = vmatprep.subr.mxu0 0.0
    %3030 = vmatpush1.msra.mxu0 0.0
    %3031 = vmatprep.subr.mxu0 0.0
    %3032 = vmatpush1.msra.mxu0 0.0
    %3033 = vmatprep.subr.mxu0 0.0
    %3034 = vmatpush1.msra.mxu0 0.0
    %3035 = vmatprep.subr.mxu0 0.0
    %3036 = vmatpush1.msra.mxu0 0.0
    %3037 = vmatprep.subr.mxu0 0.0
    %3038 = vmatpush1.msra.mxu0 0.0
    %3039 = vmatprep.subr.mxu0 0.0
    %3040 = vmatpush1.msra.mxu0 %v3004
    %3041 = vmatprep.subr.mxu0 0.0
    %3042 = vmatpush2.msra.mxu0 0.0
    %3043 = vmatprep.subr.mxu0 0.0
    %3044 = vmatpush2.msra.mxu0 0.0
    %3045 = vmatprep.subr.mxu0 0.0
    %3046 = vmatpush2.msra.mxu0 0.0
    %3047 = vmatprep.subr.mxu0 0.0
    %3048 = vmatpush2.msra.mxu0 0.0
    %3049 = vmatprep.subr.mxu0 0.0
    %3050 = vmatpush2.msra.mxu0 0.0
    %3051 = vmatprep.subr.mxu0 0.0
    %3052 = vmatpush2.msra.mxu0 0.0
    %3053 = vmatprep.subr.mxu0 0.0
    %3054 = vmatpush2.msra.mxu0 0.0
    %3055 = vmatprep.subr.mxu0 0.0
    %3056 = vmatpush2.msra.mxu0 0.0
    %3057 = vmatprep.subr.mxu0 0.0
    %3058 = vmatpush2.msra.mxu0 0.0
    %3059 = vmatprep.subr.mxu0 0.0
    %3060 = vmatpush2.msra.mxu0 0.0
    %3061 = vmatprep.subr.mxu0 0.0
    %3062 = vmatpush2.msra.mxu0 0.0
    %3063 = vmatprep.subr.mxu0 0.0
    %3064 = vmatpush2.msra.mxu0 0.0
    %3065 = vmatprep.subr.mxu0 0.0
    %3066 = vmatpush2.msra.mxu0 0.0
    %3067 = vmatprep.subr.mxu0 0.0
    %3068 = vmatpush2.msra.mxu0 0.0
    %3069 = vmatprep.subr.mxu0 0.0
    %3070 = vmatpush2.msra.mxu0 0.0
    %3071 = vmatprep.subr.mxu0 0.0
    %3072 = vmatpush2.msra.mxu0 0.0
    %3073 = vmatprep.mubr.f32.mxu0 0.0
    %3074 = vmatmul.mubr.f32.gmra.mxu0 %v3007
    %v3075 = vpop.f32.mrf.mxu0
    %v3076 = vadd.f32 0.0, %v3075
    %v3077 = vpop.f32.mrf.mxu0
    %3078 = vdwg.mxu0
    %3079 = vrot.lane.b32.xlu0 %v1904, 96
    %v3080 = vpop.permute.xlu0 %3079
    %v3083 = vsel %vm337, %v2621, 0
    %3085 = vmatprep.subr.mxu0 0.0
    %3086 = vmatpush1.msra.mxu0 0.0
    %3087 = vmatprep.subr.mxu0 0.0
    %3088 = vmatpush1.msra.mxu0 0.0
    %3089 = vmatprep.subr.mxu0 0.0
    %3090 = vmatpush1.msra.mxu0 0.0
    %3091 = vmatprep.subr.mxu0 0.0
    %3092 = vmatpush1.msra.mxu0 0.0
    %3093 = vmatprep.subr.mxu0 0.0
    %3094 = vmatpush1.msra.mxu0 0.0
    %3095 = vmatprep.subr.mxu0 0.0
    %3096 = vmatpush1.msra.mxu0 0.0
    %3097 = vmatprep.subr.mxu0 0.0
    %3098 = vmatpush1.msra.mxu0 0.0
    %3099 = vmatprep.subr.mxu0 0.0
    %3100 = vmatpush1.msra.mxu0 0.0
    %3101 = vmatprep.subr.mxu0 0.0
    %3102 = vmatpush1.msra.mxu0 0.0
    %3103 = vmatprep.subr.mxu0 0.0
    %3104 = vmatpush1.msra.mxu0 0.0
    %3105 = vmatprep.subr.mxu0 0.0
    %3106 = vmatpush1.msra.mxu0 0.0
    %3107 = vmatprep.subr.mxu0 0.0
    %3108 = vmatpush1.msra.mxu0 0.0
    %3109 = vmatprep.subr.mxu0 0.0
    %3110 = vmatpush1.msra.mxu0 0.0
    %3111 = vmatprep.subr.mxu0 0.0
    %3112 = vmatpush1.msra.mxu0 0.0
    %3113 = vmatprep.subr.mxu0 0.0
    %3114 = vmatpush1.msra.mxu0 0.0
    %3115 = vmatprep.subr.mxu0 0.0
    %3116 = vmatpush1.msra.mxu0 %v3080
    %3117 = vmatprep.subr.mxu0 0.0
    %3118 = vmatpush2.msra.mxu0 0.0
    %3119 = vmatprep.subr.mxu0 0.0
    %3120 = vmatpush2.msra.mxu0 0.0
    %3121 = vmatprep.subr.mxu0 0.0
    %3122 = vmatpush2.msra.mxu0 0.0
    %3123 = vmatprep.subr.mxu0 0.0
    %3124 = vmatpush2.msra.mxu0 0.0
    %3125 = vmatprep.subr.mxu0 0.0
    %3126 = vmatpush2.msra.mxu0 0.0
    %3127 = vmatprep.subr.mxu0 0.0
    %3128 = vmatpush2.msra.mxu0 0.0
    %3129 = vmatprep.subr.mxu0 0.0
    %3130 = vmatpush2.msra.mxu0 0.0
    %3131 = vmatprep.subr.mxu0 0.0
    %3132 = vmatpush2.msra.mxu0 0.0
    %3133 = vmatprep.subr.mxu0 0.0
    %3134 = vmatpush2.msra.mxu0 0.0
    %3135 = vmatprep.subr.mxu0 0.0
    %3136 = vmatpush2.msra.mxu0 0.0
    %3137 = vmatprep.subr.mxu0 0.0
    %3138 = vmatpush2.msra.mxu0 0.0
    %3139 = vmatprep.subr.mxu0 0.0
    %3140 = vmatpush2.msra.mxu0 0.0
    %3141 = vmatprep.subr.mxu0 0.0
    %3142 = vmatpush2.msra.mxu0 0.0
    %3143 = vmatprep.subr.mxu0 0.0
    %3144 = vmatpush2.msra.mxu0 0.0
    %3145 = vmatprep.subr.mxu0 0.0
    %3146 = vmatpush2.msra.mxu0 0.0
    %3147 = vmatprep.subr.mxu0 0.0
    %3148 = vmatpush2.msra.mxu0 0.0
    %3149 = vmatprep.mubr.f32.mxu0 0.0
    %3150 = vmatmul.mubr.f32.gmra.mxu0 %v3083
    %v3151 = vpop.f32.mrf.mxu0
    %v3152 = vadd.f32 0.0, %v3151
    %v3153 = vpop.f32.mrf.mxu0
    %3154 = vdwg.mxu0
    %3155 = vrot.lane.b32.xlu0 %v1906, 96
    %v3156 = vpop.permute.xlu0 %3155
    %v3159 = vsel %vm337, %v2622, 0
    %3161 = vmatprep.subr.mxu0 0.0
    %3162 = vmatpush1.msra.mxu0 0.0
    %3163 = vmatprep.subr.mxu0 0.0
    %3164 = vmatpush1.msra.mxu0 0.0
    %3165 = vmatprep.subr.mxu0 0.0
    %3166 = vmatpush1.msra.mxu0 0.0
    %3167 = vmatprep.subr.mxu0 0.0
    %3168 = vmatpush1.msra.mxu0 0.0
    %3169 = vmatprep.subr.mxu0 0.0
    %3170 = vmatpush1.msra.mxu0 0.0
    %3171 = vmatprep.subr.mxu0 0.0
    %3172 = vmatpush1.msra.mxu0 0.0
    %3173 = vmatprep.subr.mxu0 0.0
    %3174 = vmatpush1.msra.mxu0 0.0
    %3175 = vmatprep.subr.mxu0 0.0
    %3176 = vmatpush1.msra.mxu0 0.0
    %3177 = vmatprep.subr.mxu0 0.0
    %3178 = vmatpush1.msra.mxu0 0.0
    %3179 = vmatprep.subr.mxu0 0.0
    %3180 = vmatpush1.msra.mxu0 0.0
    %3181 = vmatprep.subr.mxu0 0.0
    %3182 = vmatpush1.msra.mxu0 0.0
    %3183 = vmatprep.subr.mxu0 0.0
    %3184 = vmatpush1.msra.mxu0 0.0
    %3185 = vmatprep.subr.mxu0 0.0
    %3186 = vmatpush1.msra.mxu0 0.0
    %3187 = vmatprep.subr.mxu0 0.0
    %3188 = vmatpush1.msra.mxu0 0.0
    %3189 = vmatprep.subr.mxu0 0.0
    %3190 = vmatpush1.msra.mxu0 0.0
    %3191 = vmatprep.subr.mxu0 0.0
    %3192 = vmatpush1.msra.mxu0 %v3156
    %3193 = vmatprep.subr.mxu0 0.0
    %3194 = vmatpush2.msra.mxu0 0.0
    %3195 = vmatprep.subr.mxu0 0.0
    %3196 = vmatpush2.msra.mxu0 0.0
    %3197 = vmatprep.subr.mxu0 0.0
    %3198 = vmatpush2.msra.mxu0 0.0
    %3199 = vmatprep.subr.mxu0 0.0
    %3200 = vmatpush2.msra.mxu0 0.0
    %3201 = vmatprep.subr.mxu0 0.0
    %3202 = vmatpush2.msra.mxu0 0.0
    %3203 = vmatprep.subr.mxu0 0.0
    %3204 = vmatpush2.msra.mxu0 0.0
    %3205 = vmatprep.subr.mxu0 0.0
    %3206 = vmatpush2.msra.mxu0 0.0
    %3207 = vmatprep.subr.mxu0 0.0
    %3208 = vmatpush2.msra.mxu0 0.0
    %3209 = vmatprep.subr.mxu0 0.0
    %3210 = vmatpush2.msra.mxu0 0.0
    %3211 = vmatprep.subr.mxu0 0.0
    %3212 = vmatpush2.msra.mxu0 0.0
    %3213 = vmatprep.subr.mxu0 0.0
    %3214 = vmatpush2.msra.mxu0 0.0
    %3215 = vmatprep.subr.mxu0 0.0
    %3216 = vmatpush2.msra.mxu0 0.0
    %3217 = vmatprep.subr.mxu0 0.0
    %3218 = vmatpush2.msra.mxu0 0.0
    %3219 = vmatprep.subr.mxu0 0.0
    %3220 = vmatpush2.msra.mxu0 0.0
    %3221 = vmatprep.subr.mxu0 0.0
    %3222 = vmatpush2.msra.mxu0 0.0
    %3223 = vmatprep.subr.mxu0 0.0
    %3224 = vmatpush2.msra.mxu0 0.0
    %3225 = vmatprep.mubr.f32.mxu0 0.0
    %3226 = vmatmul.mubr.f32.gmra.mxu0 %v3159
    %v3227 = vpop.f32.mrf.mxu0
    %v3228 = vadd.f32 0.0, %v3227
    %v3229 = vpop.f32.mrf.mxu0
    %3230 = vdwg.mxu0
    %3233 = vrot.lane.b32.xlu0 %v2848, 8
    %v3234 = vpop.permute.xlu0 %3233
    %3235 = vrot.lane.b32.xlu0 %v2924, 8
    %v3236 = vpop.permute.xlu0 %3235
    %3241 = vrot.lane.b32.xlu0 %v3000, 16
    %v3242 = vpop.permute.xlu0 %3241
    %3243 = vrot.lane.b32.xlu0 %v3076, 16
    %v3244 = vpop.permute.xlu0 %3243
    %3249 = vrot.lane.b32.xlu0 %v3152, 24
    %v3250 = vpop.permute.xlu0 %3249
    %3251 = vrot.lane.b32.xlu0 %v3228, 24
    %v3252 = vpop.permute.xlu0 %3251
    %v3255 = vsel %vm337, %v2696, %v3234
    %v3256 = vsel %vm337, %v2772, %v3236
    %v3257 = vsel %vm1682, %v3255, %v3242
    %v3258 = vsel %vm1682, %v3256, %v3244
    %v3259 = vsel %vm1685, %v3257, %v3250
    %v3260 = vsel %vm1685, %v3258, %v3252
    %v3261 = vlaneseq
    %v3262 = vshrl.u32 %v3261, 7
    %v3263 = vsub.s32 0, %v3262
    %v3264 = vrot.slane %v1926, %v3263
    %v3266 = vsel %vm115, %v3259, 0
    %v3269 = vsel %vm115, %v3260, 0
    %3271 = vmatprep.subr.mxu0 0.0
    %3272 = vmatpush1.msra.mxu0 0.0
    %3273 = vmatprep.subr.mxu0 0.0
    %3274 = vmatpush1.msra.mxu0 0.0
    %3275 = vmatprep.subr.mxu0 0.0
    %3276 = vmatpush1.msra.mxu0 0.0
    %3277 = vmatprep.subr.mxu0 0.0
    %3278 = vmatpush1.msra.mxu0 0.0
    %3279 = vmatprep.subr.mxu0 0.0
    %3280 = vmatpush1.msra.mxu0 0.0
    %3281 = vmatprep.subr.mxu0 0.0
    %3282 = vmatpush1.msra.mxu0 0.0
    %3283 = vmatprep.subr.mxu0 0.0
    %3284 = vmatpush1.msra.mxu0 0.0
    %3285 = vmatprep.subr.mxu0 0.0
    %3286 = vmatpush1.msra.mxu0 0.0
    %3287 = vmatprep.subr.mxu0 0.0
    %3288 = vmatpush1.msra.mxu0 0.0
    %3289 = vmatprep.subr.mxu0 0.0
    %3290 = vmatpush1.msra.mxu0 0.0
    %3291 = vmatprep.subr.mxu0 0.0
    %3292 = vmatpush1.msra.mxu0 0.0
    %3293 = vmatprep.subr.mxu0 0.0
    %3294 = vmatpush1.msra.mxu0 0.0
    %3295 = vmatprep.subr.mxu0 0.0
    %3296 = vmatpush1.msra.mxu0 %v1925
    %3297 = vmatprep.subr.mxu0 0.0
    %3298 = vmatpush1.msra.mxu0 %v1924
    %3299 = vmatprep.subr.mxu0 0.0
    %3300 = vmatpush1.msra.mxu0 %v1923
    %3301 = vmatprep.subr.mxu0 0.0
    %3302 = vmatpush1.msra.mxu0 %v1922
    %3303 = vmatprep.subr.mxu0 0.0
    %3304 = vmatpush2.msra.mxu0 0.0
    %3305 = vmatprep.subr.mxu0 0.0
    %3306 = vmatpush2.msra.mxu0 0.0
    %3307 = vmatprep.subr.mxu0 0.0
    %3308 = vmatpush2.msra.mxu0 0.0
    %3309 = vmatprep.subr.mxu0 0.0
    %3310 = vmatpush2.msra.mxu0 0.0
    %3311 = vmatprep.subr.mxu0 0.0
    %3312 = vmatpush2.msra.mxu0 0.0
    %3313 = vmatprep.subr.mxu0 0.0
    %3314 = vmatpush2.msra.mxu0 0.0
    %3315 = vmatprep.subr.mxu0 0.0
    %3316 = vmatpush2.msra.mxu0 0.0
    %3317 = vmatprep.subr.mxu0 0.0
    %3318 = vmatpush2.msra.mxu0 0.0
    %3319 = vmatprep.subr.mxu0 0.0
    %3320 = vmatpush2.msra.mxu0 0.0
    %3321 = vmatprep.subr.mxu0 0.0
    %3322 = vmatpush2.msra.mxu0 0.0
    %3323 = vmatprep.subr.mxu0 0.0
    %3324 = vmatpush2.msra.mxu0 0.0
    %3325 = vmatprep.subr.mxu0 0.0
    %3326 = vmatpush2.msra.mxu0 0.0
    %3327 = vmatprep.subr.mxu0 0.0
    %3328 = vmatpush2.msra.mxu0 0.0
    %3329 = vmatprep.subr.mxu0 0.0
    %3330 = vmatpush2.msra.mxu0 0.0
    %3331 = vmatprep.subr.mxu0 0.0
    %3332 = vmatpush2.msra.mxu0 0.0
    %3333 = vmatprep.subr.mxu0 0.0
    %3334 = vmatpush2.msra.mxu0 0.0
    %3335 = vmatprep.mubr.f32.mxu0 0.0
    %3336 = vmatmul.mubr.f32.gmra.mxu0 %v3266
    %v3337 = vpop.f32.mrf.mxu0
    %v3338 = vadd.f32 %v3264, %v3337
    %v3339 = vpop.f32.mrf.mxu0
    %3340 = vmatprep.mubr.f32.mxu0 0.0
    %3341 = vmatmul.mubr.f32.gmra.mxu0 %v3269
    %v3342 = vpop.f32.mrf.mxu0
    %v3343 = vadd.f32 %v3264, %v3342
    %v3344 = vpop.f32.mrf.mxu0
    %3345 = vdwg.mxu0
    %v3346 = vadd.f32 %v3338, %v1773
    %v3347 = vadd.f32 %v3343, %v1774
    %v3348 = vld [vmem:[#allocation10 + $0x2] sm:$0x1]
    %v3349 = vsel %vm115, %v3346, 0.0
    %3350 = vadd.xlane.f32.xlu0 %v3349
    %v3351 = vpop.xlane.xlu0 %3350
    %v3352 = vsel %vm115, %v3347, 0.0
    %3353 = vadd.xlane.f32.xlu0 %v3352
    %v3354 = vpop.xlane.xlu0 %3353
    %v3355 = vmul.f32 %v3351, %v204
    %v3356 = vmul.f32 %v3354, %v204
    %v3357 = vsub.f32 %v3346, %v3355
    %v3358 = vsub.f32 %v3347, %v3356
    %v3359 = vmul.f32 %v3357, %v3357
    %v3360 = vmul.f32 %v3358, %v3358
    %v3361 = vsel %vm115, %v3359, 0.0
    %3362 = vadd.xlane.f32.xlu0 %v3361
    %v3363 = vpop.xlane.xlu0 %3362
    %v3364 = vsel %vm115, %v3360, 0.0
    %3365 = vadd.xlane.f32.xlu0 %v3364
    %v3366 = vpop.xlane.xlu0 %3365
    %v3367 = vmul.f32 %v3363, %v204
    %v3368 = vmul.f32 %v3366, %v204
    %v3369 = vadd.f32 %v3367, 1e-05
    %v3370 = vadd.f32 %v3368, 1e-05
    %v3371 = vrsqrt.pop %v3369
    %v3372 = vrsqrt.pop %v3370
    %v3373 = vmul.f32 %v3357, %v3371
    %v3374 = vmul.f32 %v3358, %v3372
    %v3375 = vlaneseq
    %v3376 = vshrl.u32 %v3375, 7
    %v3377 = vsub.s32 0, %v3376
    %v3378 = vrot.slane %v3348, %v3377
    %v3379 = vmul.f32 %v3373, %v3378
    %v3380 = vmul.f32 %v3374, %v3378
    %v3381 = vld [vmem:[#allocation8] sm:$0xff]
    %v3382 = vld [vmem:[#allocation8 + $0x8] sm:$0xff]
    %v3383 = vld [vmem:[#allocation8 + $0x10] sm:$0xff]
    %v3384 = vld [vmem:[#allocation8 + $0x18] sm:$0xff]
    %v3385 = vld [vmem:[#allocation10 + $0xe] sm:$0x1]
    %v3386 = vlaneseq
    %v3387 = vshrl.u32 %v3386, 7
    %v3388 = vsub.s32 0, %v3387
    %v3389 = vrot.slane %v3385, %v3388
    %v3391 = vsel %vm115, %v3379, 0
    %v3394 = vsel %vm115, %v3380, 0
    %3396 = vmatprep.subr.mxu0 0.0
    %3397 = vmatpush1.msra.mxu0 0.0
    %3398 = vmatprep.subr.mxu0 0.0
    %3399 = vmatpush1.msra.mxu0 0.0
    %3400 = vmatprep.subr.mxu0 0.0
    %3401 = vmatpush1.msra.mxu0 0.0
    %3402 = vmatprep.subr.mxu0 0.0
    %3403 = vmatpush1.msra.mxu0 0.0
    %3404 = vmatprep.subr.mxu0 0.0
    %3405 = vmatpush1.msra.mxu0 0.0
    %3406 = vmatprep.subr.mxu0 0.0
    %3407 = vmatpush1.msra.mxu0 0.0
    %3408 = vmatprep.subr.mxu0 0.0
    %3409 = vmatpush1.msra.mxu0 0.0
    %3410 = vmatprep.subr.mxu0 0.0
    %3411 = vmatpush1.msra.mxu0 0.0
    %3412 = vmatprep.subr.mxu0 0.0
    %3413 = vmatpush1.msra.mxu0 0.0
    %3414 = vmatprep.subr.mxu0 0.0
    %3415 = vmatpush1.msra.mxu0 0.0
    %3416 = vmatprep.subr.mxu0 0.0
    %3417 = vmatpush1.msra.mxu0 0.0
    %3418 = vmatprep.subr.mxu0 0.0
    %3419 = vmatpush1.msra.mxu0 0.0
    %3420 = vmatprep.subr.mxu0 0.0
    %3421 = vmatpush1.msra.mxu0 %v3384
    %3422 = vmatprep.subr.mxu0 0.0
    %3423 = vmatpush1.msra.mxu0 %v3383
    %3424 = vmatprep.subr.mxu0 0.0
    %3425 = vmatpush1.msra.mxu0 %v3382
    %3426 = vmatprep.subr.mxu0 0.0
    %3427 = vmatpush1.msra.mxu0 %v3381
    %3428 = vmatprep.subr.mxu0 0.0
    %3429 = vmatpush2.msra.mxu0 0.0
    %3430 = vmatprep.subr.mxu0 0.0
    %3431 = vmatpush2.msra.mxu0 0.0
    %3432 = vmatprep.subr.mxu0 0.0
    %3433 = vmatpush2.msra.mxu0 0.0
    %3434 = vmatprep.subr.mxu0 0.0
    %3435 = vmatpush2.msra.mxu0 0.0
    %3436 = vmatprep.subr.mxu0 0.0
    %3437 = vmatpush2.msra.mxu0 0.0
    %3438 = vmatprep.subr.mxu0 0.0
    %3439 = vmatpush2.msra.mxu0 0.0
    %3440 = vmatprep.subr.mxu0 0.0
    %3441 = vmatpush2.msra.mxu0 0.0
    %3442 = vmatprep.subr.mxu0 0.0
    %3443 = vmatpush2.msra.mxu0 0.0
    %3444 = vmatprep.subr.mxu0 0.0
    %3445 = vmatpush2.msra.mxu0 0.0
    %3446 = vmatprep.subr.mxu0 0.0
    %3447 = vmatpush2.msra.mxu0 0.0
    %3448 = vmatprep.subr.mxu0 0.0
    %3449 = vmatpush2.msra.mxu0 0.0
    %3450 = vmatprep.subr.mxu0 0.0
    %3451 = vmatpush2.msra.mxu0 0.0
    %3452 = vmatprep.subr.mxu0 0.0
    %3453 = vmatpush2.msra.mxu0 0.0
    %3454 = vmatprep.subr.mxu0 0.0
    %3455 = vmatpush2.msra.mxu0 0.0
    %3456 = vmatprep.subr.mxu0 0.0
    %3457 = vmatpush2.msra.mxu0 0.0
    %3458 = vmatprep.subr.mxu0 0.0
    %3459 = vmatpush2.msra.mxu0 0.0
    %3460 = vmatprep.mubr.f32.mxu0 0.0
    %3461 = vmatmul.mubr.f32.gmra.mxu0 %v3391
    %v3462 = vpop.f32.mrf.mxu0
    %v3463 = vadd.f32 %v3389, %v3462
    %v3464 = vpop.f32.mrf.mxu0
    %3465 = vmatprep.mubr.f32.mxu0 0.0
    %3466 = vmatmul.mubr.f32.gmra.mxu0 %v3394
    %v3467 = vpop.f32.mrf.mxu0
    %v3468 = vadd.f32 %v3389, %v3467
    %v3469 = vpop.f32.mrf.mxu0
    %3470 = vdwg.mxu0
    %v3471 = vmax.f32 %v3463, 0.0
    %v3472 = vmax.f32 %v3468, 0.0
    %v3473 = vld [vmem:[%s8] sm:$0xff]
    %v3474 = vld [vmem:[%s8 + $0x8] sm:$0xff]
    %v3475 = vld [vmem:[%s8 + $0x10] sm:$0xff]
    %v3476 = vld [vmem:[%s8 + $0x18] sm:$0xff]
    %v3477 = vld [vmem:[%s8 + $0x20] sm:$0xff]
    %v3478 = vld [vmem:[%s8 + $0x28] sm:$0xff]
    %v3479 = vld [vmem:[%s8 + $0x30] sm:$0xff]
    %v3480 = vld [vmem:[%s8 + $0x38] sm:$0xff]
    %v3481 = vld [vmem:[%s8 + $0x40] sm:$0xff]
    %v3482 = vld [vmem:[%s8 + $0x48] sm:$0xff]
    %v3483 = vld [vmem:[%s8 + $0x50] sm:$0xff]
    %v3484 = vld [vmem:[%s8 + $0x58] sm:$0xff]
    %v3485 = vld [vmem:[%s8 + $0x60] sm:$0xff]
    %v3486 = vld [vmem:[%s8 + $0x68] sm:$0xff]
    %v3487 = vld [vmem:[%s8 + $0x70] sm:$0xff]
    %v3488 = vld [vmem:[%s8 + $0x78] sm:$0xff]
    %v3489 = vld [vmem:[#allocation10 + $0xb] sm:$0x1]
    %v3490 = vlaneseq
    %v3491 = vshrl.u32 %v3490, 7
    %v3492 = vsub.s32 0, %v3491
    %v3493 = vrot.slane %v3489, %v3492
    %3494 = vmatprep.subr.mxu0 0.0
    %3495 = vmatpush1.msra.mxu0 %v3488
    %3496 = vmatprep.subr.mxu0 0.0
    %3497 = vmatpush1.msra.mxu0 %v3487
    %3498 = vmatprep.subr.mxu0 0.0
    %3499 = vmatpush1.msra.mxu0 %v3486
    %3500 = vmatprep.subr.mxu0 0.0
    %3501 = vmatpush1.msra.mxu0 %v3485
    %3502 = vmatprep.subr.mxu0 0.0
    %3503 = vmatpush1.msra.mxu0 %v3484
    %3504 = vmatprep.subr.mxu0 0.0
    %3505 = vmatpush1.msra.mxu0 %v3483
    %3506 = vmatprep.subr.mxu0 0.0
    %3507 = vmatpush1.msra.mxu0 %v3482
    %3508 = vmatprep.subr.mxu0 0.0
    %3509 = vmatpush1.msra.mxu0 %v3481
    %3510 = vmatprep.subr.mxu0 0.0
    %3511 = vmatpush1.msra.mxu0 %v3480
    %3512 = vmatprep.subr.mxu0 0.0
    %3513 = vmatpush1.msra.mxu0 %v3479
    %3514 = vmatprep.subr.mxu0 0.0
    %3515 = vmatpush1.msra.mxu0 %v3478
    %3516 = vmatprep.subr.mxu0 0.0
    %3517 = vmatpush1.msra.mxu0 %v3477
    %3518 = vmatprep.subr.mxu0 0.0
    %3519 = vmatpush1.msra.mxu0 %v3476
    %3520 = vmatprep.subr.mxu0 0.0
    %3521 = vmatpush1.msra.mxu0 %v3475
    %3522 = vmatprep.subr.mxu0 0.0
    %3523 = vmatpush1.msra.mxu0 %v3474
    %3524 = vmatprep.subr.mxu0 0.0
    %3525 = vmatpush1.msra.mxu0 %v3473
    %3526 = vmatprep.subr.mxu0 0.0
    %3527 = vmatpush2.msra.mxu0 0.0
    %3528 = vmatprep.subr.mxu0 0.0
    %3529 = vmatpush2.msra.mxu0 0.0
    %3530 = vmatprep.subr.mxu0 0.0
    %3531 = vmatpush2.msra.mxu0 0.0
    %3532 = vmatprep.subr.mxu0 0.0
    %3533 = vmatpush2.msra.mxu0 0.0
    %3534 = vmatprep.subr.mxu0 0.0
    %3535 = vmatpush2.msra.mxu0 0.0
    %3536 = vmatprep.subr.mxu0 0.0
    %3537 = vmatpush2.msra.mxu0 0.0
    %3538 = vmatprep.subr.mxu0 0.0
    %3539 = vmatpush2.msra.mxu0 0.0
    %3540 = vmatprep.subr.mxu0 0.0
    %3541 = vmatpush2.msra.mxu0 0.0
    %3542 = vmatprep.subr.mxu0 0.0
    %3543 = vmatpush2.msra.mxu0 0.0
    %3544 = vmatprep.subr.mxu0 0.0
    %3545 = vmatpush2.msra.mxu0 0.0
    %3546 = vmatprep.subr.mxu0 0.0
    %3547 = vmatpush2.msra.mxu0 0.0
    %3548 = vmatprep.subr.mxu0 0.0
    %3549 = vmatpush2.msra.mxu0 0.0
    %3550 = vmatprep.subr.mxu0 0.0
    %3551 = vmatpush2.msra.mxu0 0.0
    %3552 = vmatprep.subr.mxu0 0.0
    %3553 = vmatpush2.msra.mxu0 0.0
    %3554 = vmatprep.subr.mxu0 0.0
    %3555 = vmatpush2.msra.mxu0 0.0
    %3556 = vmatprep.subr.mxu0 0.0
    %3557 = vmatpush2.msra.mxu0 0.0
    %3558 = vmatprep.mubr.f32.mxu0 0.0
    %3559 = vmatmul.mubr.f32.gmra.mxu0 %v3471
    %v3560 = vpop.f32.mrf.mxu0
    %v3561 = vadd.f32 %v3493, %v3560
    %v3562 = vpop.f32.mrf.mxu0
    %3563 = vmatprep.mubr.f32.mxu0 0.0
    %3564 = vmatmul.mubr.f32.gmra.mxu0 %v3472
    %v3565 = vpop.f32.mrf.mxu0
    %v3566 = vadd.f32 %v3493, %v3565
    %v3567 = vpop.f32.mrf.mxu0
    %3568 = vdwg.mxu0
    %v3569 = vadd.f32 %v3561, %v3346
    %v3570 = vadd.f32 %v3566, %v3347
    %v3571 = vld [vmem:[#allocation10 + $0x3] sm:$0x1]
    %v3572 = vsel %vm115, %v3569, 0.0
    %3573 = vadd.xlane.f32.xlu0 %v3572
    %v3574 = vpop.xlane.xlu0 %3573
    %v3575 = vsel %vm115, %v3570, 0.0
    %3576 = vadd.xlane.f32.xlu0 %v3575
    %v3577 = vpop.xlane.xlu0 %3576
    %v3578 = vmul.f32 %v3574, %v204
    %v3579 = vmul.f32 %v3577, %v204
    %v3580 = vsub.f32 %v3569, %v3578
    %v3581 = vsub.f32 %v3570, %v3579
    %v3582 = vmul.f32 %v3580, %v3580
    %v3583 = vmul.f32 %v3581, %v3581
    %v3584 = vsel %vm115, %v3582, 0.0
    %3585 = vadd.xlane.f32.xlu0 %v3584
    %v3586 = vpop.xlane.xlu0 %3585
    %v3587 = vsel %vm115, %v3583, 0.0
    %3588 = vadd.xlane.f32.xlu0 %v3587
    %v3589 = vpop.xlane.xlu0 %3588
    %v3590 = vmul.f32 %v3586, %v204
    %v3591 = vmul.f32 %v3589, %v204
    %v3592 = vadd.f32 %v3590, 1e-05
    %v3593 = vadd.f32 %v3591, 1e-05
    %v3594 = vrsqrt.pop %v3592
    %v3595 = vrsqrt.pop %v3593
    %v3596 = vmul.f32 %v3580, %v3594
    %v3597 = vmul.f32 %v3581, %v3595
    %v3598 = vlaneseq
    %v3599 = vshrl.u32 %v3598, 7
    %v3600 = vsub.s32 0, %v3599
    %v3601 = vrot.slane %v3571, %v3600
    %v3602 = vmul.f32 %v3596, %v3601
    %v3603 = vmul.f32 %v3597, %v3601
    %s3604 = scalar_lea.vmem %s3, 32
    %v3605 = vld [vmem:[%s3604] sm:$0xff]
    %v3606 = vld [vmem:[%s3604 + $0x8] sm:$0xff]
    %v3607 = vld [vmem:[%s3604 + $0x10] sm:$0xff]
    %v3608 = vld [vmem:[%s3604 + $0x18] sm:$0xff]
    %v3610 = vsel %vm115, %v3602, 0
    %v3613 = vsel %vm115, %v3603, 0
    %3615 = vmatprep.subr.mxu0 0.0
    %3616 = vmatpush1.msra.mxu0 0.0
    %3617 = vmatprep.subr.mxu0 0.0
    %3618 = vmatpush1.msra.mxu0 0.0
    %3619 = vmatprep.subr.mxu0 0.0
    %3620 = vmatpush1.msra.mxu0 0.0
    %3621 = vmatprep.subr.mxu0 0.0
    %3622 = vmatpush1.msra.mxu0 0.0
    %3623 = vmatprep.subr.mxu0 0.0
    %3624 = vmatpush1.msra.mxu0 0.0
    %3625 = vmatprep.subr.mxu0 0.0
    %3626 = vmatpush1.msra.mxu0 0.0
    %3627 = vmatprep.subr.mxu0 0.0
    %3628 = vmatpush1.msra.mxu0 0.0
    %3629 = vmatprep.subr.mxu0 0.0
    %3630 = vmatpush1.msra.mxu0 0.0
    %3631 = vmatprep.subr.mxu0 0.0
    %3632 = vmatpush1.msra.mxu0 0.0
    %3633 = vmatprep.subr.mxu0 0.0
    %3634 = vmatpush1.msra.mxu0 0.0
    %3635 = vmatprep.subr.mxu0 0.0
    %3636 = vmatpush1.msra.mxu0 0.0
    %3637 = vmatprep.subr.mxu0 0.0
    %3638 = vmatpush1.msra.mxu0 0.0
    %3639 = vmatprep.subr.mxu0 0.0
    %3640 = vmatpush1.msra.mxu0 %v3608
    %3641 = vmatprep.subr.mxu0 0.0
    %3642 = vmatpush1.msra.mxu0 %v3607
    %3643 = vmatprep.subr.mxu0 0.0
    %3644 = vmatpush1.msra.mxu0 %v3606
    %3645 = vmatprep.subr.mxu0 0.0
    %3646 = vmatpush1.msra.mxu0 %v3605
    %3647 = vmatprep.subr.mxu0 0.0
    %3648 = vmatpush2.msra.mxu0 0.0
    %3649 = vmatprep.subr.mxu0 0.0
    %3650 = vmatpush2.msra.mxu0 0.0
    %3651 = vmatprep.subr.mxu0 0.0
    %3652 = vmatpush2.msra.mxu0 0.0
    %3653 = vmatprep.subr.mxu0 0.0
    %3654 = vmatpush2.msra.mxu0 0.0
    %3655 = vmatprep.subr.mxu0 0.0
    %3656 = vmatpush2.msra.mxu0 0.0
    %3657 = vmatprep.subr.mxu0 0.0
    %3658 = vmatpush2.msra.mxu0 0.0
    %3659 = vmatprep.subr.mxu0 0.0
    %3660 = vmatpush2.msra.mxu0 0.0
    %3661 = vmatprep.subr.mxu0 0.0
    %3662 = vmatpush2.msra.mxu0 0.0
    %3663 = vmatprep.subr.mxu0 0.0
    %3664 = vmatpush2.msra.mxu0 0.0
    %3665 = vmatprep.subr.mxu0 0.0
    %3666 = vmatpush2.msra.mxu0 0.0
    %3667 = vmatprep.subr.mxu0 0.0
    %3668 = vmatpush2.msra.mxu0 0.0
    %3669 = vmatprep.subr.mxu0 0.0
    %3670 = vmatpush2.msra.mxu0 0.0
    %3671 = vmatprep.subr.mxu0 0.0
    %3672 = vmatpush2.msra.mxu0 0.0
    %3673 = vmatprep.subr.mxu0 0.0
    %3674 = vmatpush2.msra.mxu0 0.0
    %3675 = vmatprep.subr.mxu0 0.0
    %3676 = vmatpush2.msra.mxu0 0.0
    %3677 = vmatprep.subr.mxu0 0.0
    %3678 = vmatpush2.msra.mxu0 0.0
    %3679 = vmatprep.mubr.f32.mxu0 0.0
    %3680 = vmatmul.mubr.f32.gmra.mxu0 %v3610
    %v3681 = vpop.f32.mrf.mxu0
    %v3682 = vadd.f32 0.0, %v3681
    %v3683 = vpop.f32.mrf.mxu0
    %3684 = vmatprep.mubr.f32.mxu0 0.0
    %3685 = vmatmul.mubr.f32.gmra.mxu0 %v3613
    %v3686 = vpop.f32.mrf.mxu0
    %v3687 = vadd.f32 0.0, %v3686
    %v3688 = vpop.f32.mrf.mxu0
    %3689 = vdwg.mxu0
    %3692 = vrot.lane.b32.xlu0 %v3682, 120
    %v3693 = vpop.permute.xlu0 %3692
    %3694 = vrot.lane.b32.xlu0 %v3687, 120
    %v3695 = vpop.permute.xlu0 %3694
    %3696 = vrot.lane.b32.xlu0 %v3682, 112
    %v3697 = vpop.permute.xlu0 %3696
    %3698 = vrot.lane.b32.xlu0 %v3687, 112
    %v3699 = vpop.permute.xlu0 %3698
    %3700 = vrot.lane.b32.xlu0 %v3682, 104
    %v3701 = vpop.permute.xlu0 %3700
    %3702 = vrot.lane.b32.xlu0 %v3687, 104
    %v3703 = vpop.permute.xlu0 %3702
    %s3704 = scalar_lea.vmem %s6, 64
    %v3705 = vld [vmem:[%s3704] sm:$0xff]
    %v3706 = vld [vmem:[%s3704 + $0x8] sm:$0xff]
    %v3707 = vld [vmem:[%s3704 + $0x10] sm:$0xff]
    %v3708 = vld [vmem:[%s3704 + $0x18] sm:$0xff]
    %v3709 = vld [vmem:[#allocation10 + $0x9] sm:$0x1]
    %3710 = vrot.lane.b32.xlu0 %v3682, 96
    %v3711 = vpop.permute.xlu0 %3710
    %v3712 = vsel %vm337, %v3682, 0
    %v3714 = vsel %vm337, %v3711, 0
    %3716 = vmatprep.subr.mxu0 0.0
    %3717 = vmatpush1.xpose.msra.mxu0 0.0
    %3718 = vmatprep.subr.mxu0 0.0
    %3719 = vmatpush1.xpose.msra.mxu0 0.0
    %3720 = vmatprep.subr.mxu0 0.0
    %3721 = vmatpush1.xpose.msra.mxu0 0.0
    %3722 = vmatprep.subr.mxu0 0.0
    %3723 = vmatpush1.xpose.msra.mxu0 0.0
    %3724 = vmatprep.subr.mxu0 0.0
    %3725 = vmatpush1.xpose.msra.mxu0 0.0
    %3726 = vmatprep.subr.mxu0 0.0
    %3727 = vmatpush1.xpose.msra.mxu0 0.0
    %3728 = vmatprep.subr.mxu0 0.0
    %3729 = vmatpush1.xpose.msra.mxu0 0.0
    %3730 = vmatprep.subr.mxu0 0.0
    %3731 = vmatpush1.xpose.msra.mxu0 0.0
    %3732 = vmatprep.subr.mxu0 0.0
    %3733 = vmatpush1.xpose.msra.mxu0 0.0
    %3734 = vmatprep.subr.mxu0 0.0
    %3735 = vmatpush1.xpose.msra.mxu0 0.0
    %3736 = vmatprep.subr.mxu0 0.0
    %3737 = vmatpush1.xpose.msra.mxu0 0.0
    %3738 = vmatprep.subr.mxu0 0.0
    %3739 = vmatpush1.xpose.msra.mxu0 0.0
    %3740 = vmatprep.subr.mxu0 0.0
    %3741 = vmatpush1.xpose.msra.mxu0 0.0
    %3742 = vmatprep.subr.mxu0 0.0
    %3743 = vmatpush1.xpose.msra.mxu0 0.0
    %3744 = vmatprep.subr.mxu0 0.0
    %3745 = vmatpush1.xpose.msra.mxu0 0.0
    %3746 = vmatprep.subr.mxu0 0.0
    %3747 = vmatpush1.xpose.msra.mxu0 %v3714
    %3748 = vmatprep.subr.mxu0 0.0
    %3749 = vmatpush2.xpose.msra.mxu0 0.0
    %3750 = vmatprep.subr.mxu0 0.0
    %3751 = vmatpush2.xpose.msra.mxu0 0.0
    %3752 = vmatprep.subr.mxu0 0.0
    %3753 = vmatpush2.xpose.msra.mxu0 0.0
    %3754 = vmatprep.subr.mxu0 0.0
    %3755 = vmatpush2.xpose.msra.mxu0 0.0
    %3756 = vmatprep.subr.mxu0 0.0
    %3757 = vmatpush2.xpose.msra.mxu0 0.0
    %3758 = vmatprep.subr.mxu0 0.0
    %3759 = vmatpush2.xpose.msra.mxu0 0.0
    %3760 = vmatprep.subr.mxu0 0.0
    %3761 = vmatpush2.xpose.msra.mxu0 0.0
    %3762 = vmatprep.subr.mxu0 0.0
    %3763 = vmatpush2.xpose.msra.mxu0 0.0
    %3764 = vmatprep.subr.mxu0 0.0
    %3765 = vmatpush2.xpose.msra.mxu0 0.0
    %3766 = vmatprep.subr.mxu0 0.0
    %3767 = vmatpush2.xpose.msra.mxu0 0.0
    %3768 = vmatprep.subr.mxu0 0.0
    %3769 = vmatpush2.xpose.msra.mxu0 0.0
    %3770 = vmatprep.subr.mxu0 0.0
    %3771 = vmatpush2.xpose.msra.mxu0 0.0
    %3772 = vmatprep.subr.mxu0 0.0
    %3773 = vmatpush2.xpose.msra.mxu0 0.0
    %3774 = vmatprep.subr.mxu0 0.0
    %3775 = vmatpush2.xpose.msra.mxu0 0.0
    %3776 = vmatprep.subr.mxu0 0.0
    %3777 = vmatpush2.xpose.msra.mxu0 0.0
    %3778 = vmatprep.subr.mxu0 0.0
    %3779 = vmatpush2.xpose.msra.mxu0 0.0
    %3780 = vmatprep.mubr.f32.mxu0 0.0
    %3781 = vmatmul.mubr.f32.gmra.mxu0 %v3712
    %v3782 = vpop.f32.mrf.mxu0
    %v3783 = vadd.f32 0.0, %v3782
    %v3784 = vpop.f32.mrf.mxu0
    %3785 = vdwg.mxu0
    %3786 = vrot.lane.b32.xlu0 %v3687, 96
    %v3787 = vpop.permute.xlu0 %3786
    %v3788 = vsel %vm337, %v3687, 0
    %v3790 = vsel %vm337, %v3787, 0
    %3792 = vmatprep.subr.mxu0 0.0
    %3793 = vmatpush1.xpose.msra.mxu0 0.0
    %3794 = vmatprep.subr.mxu0 0.0
    %3795 = vmatpush1.xpose.msra.mxu0 0.0
    %3796 = vmatprep.subr.mxu0 0.0
    %3797 = vmatpush1.xpose.msra.mxu0 0.0
    %3798 = vmatprep.subr.mxu0 0.0
    %3799 = vmatpush1.xpose.msra.mxu0 0.0
    %3800 = vmatprep.subr.mxu0 0.0
    %3801 = vmatpush1.xpose.msra.mxu0 0.0
    %3802 = vmatprep.subr.mxu0 0.0
    %3803 = vmatpush1.xpose.msra.mxu0 0.0
    %3804 = vmatprep.subr.mxu0 0.0
    %3805 = vmatpush1.xpose.msra.mxu0 0.0
    %3806 = vmatprep.subr.mxu0 0.0
    %3807 = vmatpush1.xpose.msra.mxu0 0.0
    %3808 = vmatprep.subr.mxu0 0.0
    %3809 = vmatpush1.xpose.msra.mxu0 0.0
    %3810 = vmatprep.subr.mxu0 0.0
    %3811 = vmatpush1.xpose.msra.mxu0 0.0
    %3812 = vmatprep.subr.mxu0 0.0
    %3813 = vmatpush1.xpose.msra.mxu0 0.0
    %3814 = vmatprep.subr.mxu0 0.0
    %3815 = vmatpush1.xpose.msra.mxu0 0.0
    %3816 = vmatprep.subr.mxu0 0.0
    %3817 = vmatpush1.xpose.msra.mxu0 0.0
    %3818 = vmatprep.subr.mxu0 0.0
    %3819 = vmatpush1.xpose.msra.mxu0 0.0
    %3820 = vmatprep.subr.mxu0 0.0
    %3821 = vmatpush1.xpose.msra.mxu0 0.0
    %3822 = vmatprep.subr.mxu0 0.0
    %3823 = vmatpush1.xpose.msra.mxu0 %v3790
    %3824 = vmatprep.subr.mxu0 0.0
    %3825 = vmatpush2.xpose.msra.mxu0 0.0
    %3826 = vmatprep.subr.mxu0 0.0
    %3827 = vmatpush2.xpose.msra.mxu0 0.0
    %3828 = vmatprep.subr.mxu0 0.0
    %3829 = vmatpush2.xpose.msra.mxu0 0.0
    %3830 = vmatprep.subr.mxu0 0.0
    %3831 = vmatpush2.xpose.msra.mxu0 0.0
    %3832 = vmatprep.subr.mxu0 0.0
    %3833 = vmatpush2.xpose.msra.mxu0 0.0
    %3834 = vmatprep.subr.mxu0 0.0
    %3835 = vmatpush2.xpose.msra.mxu0 0.0
    %3836 = vmatprep.subr.mxu0 0.0
    %3837 = vmatpush2.xpose.msra.mxu0 0.0
    %3838 = vmatprep.subr.mxu0 0.0
    %3839 = vmatpush2.xpose.msra.mxu0 0.0
    %3840 = vmatprep.subr.mxu0 0.0
    %3841 = vmatpush2.xpose.msra.mxu0 0.0
    %3842 = vmatprep.subr.mxu0 0.0
    %3843 = vmatpush2.xpose.msra.mxu0 0.0
    %3844 = vmatprep.subr.mxu0 0.0
    %3845 = vmatpush2.xpose.msra.mxu0 0.0
    %3846 = vmatprep.subr.mxu0 0.0
    %3847 = vmatpush2.xpose.msra.mxu0 0.0
    %3848 = vmatprep.subr.mxu0 0.0
    %3849 = vmatpush2.xpose.msra.mxu0 0.0
    %3850 = vmatprep.subr.mxu0 0.0
    %3851 = vmatpush2.xpose.msra.mxu0 0.0
    %3852 = vmatprep.subr.mxu0 0.0
    %3853 = vmatpush2.xpose.msra.mxu0 0.0
    %3854 = vmatprep.subr.mxu0 0.0
    %3855 = vmatpush2.xpose.msra.mxu0 0.0
    %3856 = vmatprep.mubr.f32.mxu0 0.0
    %3857 = vmatmul.mubr.f32.gmra.mxu0 %v3788
    %v3858 = vpop.f32.mrf.mxu0
    %v3859 = vadd.f32 0.0, %v3858
    %v3860 = vpop.f32.mrf.mxu0
    %3861 = vdwg.mxu0
    %3862 = vrot.lane.b32.xlu0 %v3693, 96
    %v3863 = vpop.permute.xlu0 %3862
    %v3864 = vsel %vm337, %v3693, 0
    %v3866 = vsel %vm337, %v3863, 0
    %3868 = vmatprep.subr.mxu0 0.0
    %3869 = vmatpush1.xpose.msra.mxu0 0.0
    %3870 = vmatprep.subr.mxu0 0.0
    %3871 = vmatpush1.xpose.msra.mxu0 0.0
    %3872 = vmatprep.subr.mxu0 0.0
    %3873 = vmatpush1.xpose.msra.mxu0 0.0
    %3874 = vmatprep.subr.mxu0 0.0
    %3875 = vmatpush1.xpose.msra.mxu0 0.0
    %3876 = vmatprep.subr.mxu0 0.0
    %3877 = vmatpush1.xpose.msra.mxu0 0.0
    %3878 = vmatprep.subr.mxu0 0.0
    %3879 = vmatpush1.xpose.msra.mxu0 0.0
    %3880 = vmatprep.subr.mxu0 0.0
    %3881 = vmatpush1.xpose.msra.mxu0 0.0
    %3882 = vmatprep.subr.mxu0 0.0
    %3883 = vmatpush1.xpose.msra.mxu0 0.0
    %3884 = vmatprep.subr.mxu0 0.0
    %3885 = vmatpush1.xpose.msra.mxu0 0.0
    %3886 = vmatprep.subr.mxu0 0.0
    %3887 = vmatpush1.xpose.msra.mxu0 0.0
    %3888 = vmatprep.subr.mxu0 0.0
    %3889 = vmatpush1.xpose.msra.mxu0 0.0
    %3890 = vmatprep.subr.mxu0 0.0
    %3891 = vmatpush1.xpose.msra.mxu0 0.0
    %3892 = vmatprep.subr.mxu0 0.0
    %3893 = vmatpush1.xpose.msra.mxu0 0.0
    %3894 = vmatprep.subr.mxu0 0.0
    %3895 = vmatpush1.xpose.msra.mxu0 0.0
    %3896 = vmatprep.subr.mxu0 0.0
    %3897 = vmatpush1.xpose.msra.mxu0 0.0
    %3898 = vmatprep.subr.mxu0 0.0
    %3899 = vmatpush1.xpose.msra.mxu0 %v3866
    %3900 = vmatprep.subr.mxu0 0.0
    %3901 = vmatpush2.xpose.msra.mxu0 0.0
    %3902 = vmatprep.subr.mxu0 0.0
    %3903 = vmatpush2.xpose.msra.mxu0 0.0
    %3904 = vmatprep.subr.mxu0 0.0
    %3905 = vmatpush2.xpose.msra.mxu0 0.0
    %3906 = vmatprep.subr.mxu0 0.0
    %3907 = vmatpush2.xpose.msra.mxu0 0.0
    %3908 = vmatprep.subr.mxu0 0.0
    %3909 = vmatpush2.xpose.msra.mxu0 0.0
    %3910 = vmatprep.subr.mxu0 0.0
    %3911 = vmatpush2.xpose.msra.mxu0 0.0
    %3912 = vmatprep.subr.mxu0 0.0
    %3913 = vmatpush2.xpose.msra.mxu0 0.0
    %3914 = vmatprep.subr.mxu0 0.0
    %3915 = vmatpush2.xpose.msra.mxu0 0.0
    %3916 = vmatprep.subr.mxu0 0.0
    %3917 = vmatpush2.xpose.msra.mxu0 0.0
    %3918 = vmatprep.subr.mxu0 0.0
    %3919 = vmatpush2.xpose.msra.mxu0 0.0
    %3920 = vmatprep.subr.mxu0 0.0
    %3921 = vmatpush2.xpose.msra.mxu0 0.0
    %3922 = vmatprep.subr.mxu0 0.0
    %3923 = vmatpush2.xpose.msra.mxu0 0.0
    %3924 = vmatprep.subr.mxu0 0.0
    %3925 = vmatpush2.xpose.msra.mxu0 0.0
    %3926 = vmatprep.subr.mxu0 0.0
    %3927 = vmatpush2.xpose.msra.mxu0 0.0
    %3928 = vmatprep.subr.mxu0 0.0
    %3929 = vmatpush2.xpose.msra.mxu0 0.0
    %3930 = vmatprep.subr.mxu0 0.0
    %3931 = vmatpush2.xpose.msra.mxu0 0.0
    %3932 = vmatprep.mubr.f32.mxu0 0.0
    %3933 = vmatmul.mubr.f32.gmra.mxu0 %v3864
    %v3934 = vpop.f32.mrf.mxu0
    %v3935 = vadd.f32 0.0, %v3934
    %v3936 = vpop.f32.mrf.mxu0
    %3937 = vdwg.mxu0
    %3938 = vrot.lane.b32.xlu0 %v3695, 96
    %v3939 = vpop.permute.xlu0 %3938
    %v3940 = vsel %vm337, %v3695, 0
    %v3942 = vsel %vm337, %v3939, 0
    %3944 = vmatprep.subr.mxu0 0.0
    %3945 = vmatpush1.xpose.msra.mxu0 0.0
    %3946 = vmatprep.subr.mxu0 0.0
    %3947 = vmatpush1.xpose.msra.mxu0 0.0
    %3948 = vmatprep.subr.mxu0 0.0
    %3949 = vmatpush1.xpose.msra.mxu0 0.0
    %3950 = vmatprep.subr.mxu0 0.0
    %3951 = vmatpush1.xpose.msra.mxu0 0.0
    %3952 = vmatprep.subr.mxu0 0.0
    %3953 = vmatpush1.xpose.msra.mxu0 0.0
    %3954 = vmatprep.subr.mxu0 0.0
    %3955 = vmatpush1.xpose.msra.mxu0 0.0
    %3956 = vmatprep.subr.mxu0 0.0
    %3957 = vmatpush1.xpose.msra.mxu0 0.0
    %3958 = vmatprep.subr.mxu0 0.0
    %3959 = vmatpush1.xpose.msra.mxu0 0.0
    %3960 = vmatprep.subr.mxu0 0.0
    %3961 = vmatpush1.xpose.msra.mxu0 0.0
    %3962 = vmatprep.subr.mxu0 0.0
    %3963 = vmatpush1.xpose.msra.mxu0 0.0
    %3964 = vmatprep.subr.mxu0 0.0
    %3965 = vmatpush1.xpose.msra.mxu0 0.0
    %3966 = vmatprep.subr.mxu0 0.0
    %3967 = vmatpush1.xpose.msra.mxu0 0.0
    %3968 = vmatprep.subr.mxu0 0.0
    %3969 = vmatpush1.xpose.msra.mxu0 0.0
    %3970 = vmatprep.subr.mxu0 0.0
    %3971 = vmatpush1.xpose.msra.mxu0 0.0
    %3972 = vmatprep.subr.mxu0 0.0
    %3973 = vmatpush1.xpose.msra.mxu0 0.0
    %3974 = vmatprep.subr.mxu0 0.0
    %3975 = vmatpush1.xpose.msra.mxu0 %v3942
    %3976 = vmatprep.subr.mxu0 0.0
    %3977 = vmatpush2.xpose.msra.mxu0 0.0
    %3978 = vmatprep.subr.mxu0 0.0
    %3979 = vmatpush2.xpose.msra.mxu0 0.0
    %3980 = vmatprep.subr.mxu0 0.0
    %3981 = vmatpush2.xpose.msra.mxu0 0.0
    %3982 = vmatprep.subr.mxu0 0.0
    %3983 = vmatpush2.xpose.msra.mxu0 0.0
    %3984 = vmatprep.subr.mxu0 0.0
    %3985 = vmatpush2.xpose.msra.mxu0 0.0
    %3986 = vmatprep.subr.mxu0 0.0
    %3987 = vmatpush2.xpose.msra.mxu0 0.0
    %3988 = vmatprep.subr.mxu0 0.0
    %3989 = vmatpush2.xpose.msra.mxu0 0.0
    %3990 = vmatprep.subr.mxu0 0.0
    %3991 = vmatpush2.xpose.msra.mxu0 0.0
    %3992 = vmatprep.subr.mxu0 0.0
    %3993 = vmatpush2.xpose.msra.mxu0 0.0
    %3994 = vmatprep.subr.mxu0 0.0
    %3995 = vmatpush2.xpose.msra.mxu0 0.0
    %3996 = vmatprep.subr.mxu0 0.0
    %3997 = vmatpush2.xpose.msra.mxu0 0.0
    %3998 = vmatprep.subr.mxu0 0.0
    %3999 = vmatpush2.xpose.msra.mxu0 0.0
    %4000 = vmatprep.subr.mxu0 0.0
    %4001 = vmatpush2.xpose.msra.mxu0 0.0
    %4002 = vmatprep.subr.mxu0 0.0
    %4003 = vmatpush2.xpose.msra.mxu0 0.0
    %4004 = vmatprep.subr.mxu0 0.0
    %4005 = vmatpush2.xpose.msra.mxu0 0.0
    %4006 = vmatprep.subr.mxu0 0.0
    %4007 = vmatpush2.xpose.msra.mxu0 0.0
    %4008 = vmatprep.mubr.f32.mxu0 0.0
    %4009 = vmatmul.mubr.f32.gmra.mxu0 %v3940
    %v4010 = vpop.f32.mrf.mxu0
    %v4011 = vadd.f32 0.0, %v4010
    %v4012 = vpop.f32.mrf.mxu0
    %4013 = vdwg.mxu0
    %4014 = vrot.lane.b32.xlu0 %v3697, 96
    %v4015 = vpop.permute.xlu0 %4014
    %v4016 = vsel %vm337, %v3697, 0
    %v4018 = vsel %vm337, %v4015, 0
    %4020 = vmatprep.subr.mxu0 0.0
    %4021 = vmatpush1.xpose.msra.mxu0 0.0
    %4022 = vmatprep.subr.mxu0 0.0
    %4023 = vmatpush1.xpose.msra.mxu0 0.0
    %4024 = vmatprep.subr.mxu0 0.0
    %4025 = vmatpush1.xpose.msra.mxu0 0.0
    %4026 = vmatprep.subr.mxu0 0.0
    %4027 = vmatpush1.xpose.msra.mxu0 0.0
    %4028 = vmatprep.subr.mxu0 0.0
    %4029 = vmatpush1.xpose.msra.mxu0 0.0
    %4030 = vmatprep.subr.mxu0 0.0
    %4031 = vmatpush1.xpose.msra.mxu0 0.0
    %4032 = vmatprep.subr.mxu0 0.0
    %4033 = vmatpush1.xpose.msra.mxu0 0.0
    %4034 = vmatprep.subr.mxu0 0.0
    %4035 = vmatpush1.xpose.msra.mxu0 0.0
    %4036 = vmatprep.subr.mxu0 0.0
    %4037 = vmatpush1.xpose.msra.mxu0 0.0
    %4038 = vmatprep.subr.mxu0 0.0
    %4039 = vmatpush1.xpose.msra.mxu0 0.0
    %4040 = vmatprep.subr.mxu0 0.0
    %4041 = vmatpush1.xpose.msra.mxu0 0.0
    %4042 = vmatprep.subr.mxu0 0.0
    %4043 = vmatpush1.xpose.msra.mxu0 0.0
    %4044 = vmatprep.subr.mxu0 0.0
    %4045 = vmatpush1.xpose.msra.mxu0 0.0
    %4046 = vmatprep.subr.mxu0 0.0
    %4047 = vmatpush1.xpose.msra.mxu0 0.0
    %4048 = vmatprep.subr.mxu0 0.0
    %4049 = vmatpush1.xpose.msra.mxu0 0.0
    %4050 = vmatprep.subr.mxu0 0.0
    %4051 = vmatpush1.xpose.msra.mxu0 %v4018
    %4052 = vmatprep.subr.mxu0 0.0
    %4053 = vmatpush2.xpose.msra.mxu0 0.0
    %4054 = vmatprep.subr.mxu0 0.0
    %4055 = vmatpush2.xpose.msra.mxu0 0.0
    %4056 = vmatprep.subr.mxu0 0.0
    %4057 = vmatpush2.xpose.msra.mxu0 0.0
    %4058 = vmatprep.subr.mxu0 0.0
    %4059 = vmatpush2.xpose.msra.mxu0 0.0
    %4060 = vmatprep.subr.mxu0 0.0
    %4061 = vmatpush2.xpose.msra.mxu0 0.0
    %4062 = vmatprep.subr.mxu0 0.0
    %4063 = vmatpush2.xpose.msra.mxu0 0.0
    %4064 = vmatprep.subr.mxu0 0.0
    %4065 = vmatpush2.xpose.msra.mxu0 0.0
    %4066 = vmatprep.subr.mxu0 0.0
    %4067 = vmatpush2.xpose.msra.mxu0 0.0
    %4068 = vmatprep.subr.mxu0 0.0
    %4069 = vmatpush2.xpose.msra.mxu0 0.0
    %4070 = vmatprep.subr.mxu0 0.0
    %4071 = vmatpush2.xpose.msra.mxu0 0.0
    %4072 = vmatprep.subr.mxu0 0.0
    %4073 = vmatpush2.xpose.msra.mxu0 0.0
    %4074 = vmatprep.subr.mxu0 0.0
    %4075 = vmatpush2.xpose.msra.mxu0 0.0
    %4076 = vmatprep.subr.mxu0 0.0
    %4077 = vmatpush2.xpose.msra.mxu0 0.0
    %4078 = vmatprep.subr.mxu0 0.0
    %4079 = vmatpush2.xpose.msra.mxu0 0.0
    %4080 = vmatprep.subr.mxu0 0.0
    %4081 = vmatpush2.xpose.msra.mxu0 0.0
    %4082 = vmatprep.subr.mxu0 0.0
    %4083 = vmatpush2.xpose.msra.mxu0 0.0
    %4084 = vmatprep.mubr.f32.mxu0 0.0
    %4085 = vmatmul.mubr.f32.gmra.mxu0 %v4016
    %v4086 = vpop.f32.mrf.mxu0
    %v4087 = vadd.f32 0.0, %v4086
    %v4088 = vpop.f32.mrf.mxu0
    %4089 = vdwg.mxu0
    %4090 = vrot.lane.b32.xlu0 %v3699, 96
    %v4091 = vpop.permute.xlu0 %4090
    %v4092 = vsel %vm337, %v3699, 0
    %v4094 = vsel %vm337, %v4091, 0
    %4096 = vmatprep.subr.mxu0 0.0
    %4097 = vmatpush1.xpose.msra.mxu0 0.0
    %4098 = vmatprep.subr.mxu0 0.0
    %4099 = vmatpush1.xpose.msra.mxu0 0.0
    %4100 = vmatprep.subr.mxu0 0.0
    %4101 = vmatpush1.xpose.msra.mxu0 0.0
    %4102 = vmatprep.subr.mxu0 0.0
    %4103 = vmatpush1.xpose.msra.mxu0 0.0
    %4104 = vmatprep.subr.mxu0 0.0
    %4105 = vmatpush1.xpose.msra.mxu0 0.0
    %4106 = vmatprep.subr.mxu0 0.0
    %4107 = vmatpush1.xpose.msra.mxu0 0.0
    %4108 = vmatprep.subr.mxu0 0.0
    %4109 = vmatpush1.xpose.msra.mxu0 0.0
    %4110 = vmatprep.subr.mxu0 0.0
    %4111 = vmatpush1.xpose.msra.mxu0 0.0
    %4112 = vmatprep.subr.mxu0 0.0
    %4113 = vmatpush1.xpose.msra.mxu0 0.0
    %4114 = vmatprep.subr.mxu0 0.0
    %4115 = vmatpush1.xpose.msra.mxu0 0.0
    %4116 = vmatprep.subr.mxu0 0.0
    %4117 = vmatpush1.xpose.msra.mxu0 0.0
    %4118 = vmatprep.subr.mxu0 0.0
    %4119 = vmatpush1.xpose.msra.mxu0 0.0
    %4120 = vmatprep.subr.mxu0 0.0
    %4121 = vmatpush1.xpose.msra.mxu0 0.0
    %4122 = vmatprep.subr.mxu0 0.0
    %4123 = vmatpush1.xpose.msra.mxu0 0.0
    %4124 = vmatprep.subr.mxu0 0.0
    %4125 = vmatpush1.xpose.msra.mxu0 0.0
    %4126 = vmatprep.subr.mxu0 0.0
    %4127 = vmatpush1.xpose.msra.mxu0 %v4094
    %4128 = vmatprep.subr.mxu0 0.0
    %4129 = vmatpush2.xpose.msra.mxu0 0.0
    %4130 = vmatprep.subr.mxu0 0.0
    %4131 = vmatpush2.xpose.msra.mxu0 0.0
    %4132 = vmatprep.subr.mxu0 0.0
    %4133 = vmatpush2.xpose.msra.mxu0 0.0
    %4134 = vmatprep.subr.mxu0 0.0
    %4135 = vmatpush2.xpose.msra.mxu0 0.0
    %4136 = vmatprep.subr.mxu0 0.0
    %4137 = vmatpush2.xpose.msra.mxu0 0.0
    %4138 = vmatprep.subr.mxu0 0.0
    %4139 = vmatpush2.xpose.msra.mxu0 0.0
    %4140 = vmatprep.subr.mxu0 0.0
    %4141 = vmatpush2.xpose.msra.mxu0 0.0
    %4142 = vmatprep.subr.mxu0 0.0
    %4143 = vmatpush2.xpose.msra.mxu0 0.0
    %4144 = vmatprep.subr.mxu0 0.0
    %4145 = vmatpush2.xpose.msra.mxu0 0.0
    %4146 = vmatprep.subr.mxu0 0.0
    %4147 = vmatpush2.xpose.msra.mxu0 0.0
    %4148 = vmatprep.subr.mxu0 0.0
    %4149 = vmatpush2.xpose.msra.mxu0 0.0
    %4150 = vmatprep.subr.mxu0 0.0
    %4151 = vmatpush2.xpose.msra.mxu0 0.0
    %4152 = vmatprep.subr.mxu0 0.0
    %4153 = vmatpush2.xpose.msra.mxu0 0.0
    %4154 = vmatprep.subr.mxu0 0.0
    %4155 = vmatpush2.xpose.msra.mxu0 0.0
    %4156 = vmatprep.subr.mxu0 0.0
    %4157 = vmatpush2.xpose.msra.mxu0 0.0
    %4158 = vmatprep.subr.mxu0 0.0
    %4159 = vmatpush2.xpose.msra.mxu0 0.0
    %4160 = vmatprep.mubr.f32.mxu0 0.0
    %4161 = vmatmul.mubr.f32.gmra.mxu0 %v4092
    %v4162 = vpop.f32.mrf.mxu0
    %v4163 = vadd.f32 0.0, %v4162
    %v4164 = vpop.f32.mrf.mxu0
    %4165 = vdwg.mxu0
    %4166 = vrot.lane.b32.xlu0 %v3701, 96
    %v4167 = vpop.permute.xlu0 %4166
    %v4168 = vsel %vm337, %v3701, 0
    %v4170 = vsel %vm337, %v4167, 0
    %4172 = vmatprep.subr.mxu0 0.0
    %4173 = vmatpush1.xpose.msra.mxu0 0.0
    %4174 = vmatprep.subr.mxu0 0.0
    %4175 = vmatpush1.xpose.msra.mxu0 0.0
    %4176 = vmatprep.subr.mxu0 0.0
    %4177 = vmatpush1.xpose.msra.mxu0 0.0
    %4178 = vmatprep.subr.mxu0 0.0
    %4179 = vmatpush1.xpose.msra.mxu0 0.0
    %4180 = vmatprep.subr.mxu0 0.0
    %4181 = vmatpush1.xpose.msra.mxu0 0.0
    %4182 = vmatprep.subr.mxu0 0.0
    %4183 = vmatpush1.xpose.msra.mxu0 0.0
    %4184 = vmatprep.subr.mxu0 0.0
    %4185 = vmatpush1.xpose.msra.mxu0 0.0
    %4186 = vmatprep.subr.mxu0 0.0
    %4187 = vmatpush1.xpose.msra.mxu0 0.0
    %4188 = vmatprep.subr.mxu0 0.0
    %4189 = vmatpush1.xpose.msra.mxu0 0.0
    %4190 = vmatprep.subr.mxu0 0.0
    %4191 = vmatpush1.xpose.msra.mxu0 0.0
    %4192 = vmatprep.subr.mxu0 0.0
    %4193 = vmatpush1.xpose.msra.mxu0 0.0
    %4194 = vmatprep.subr.mxu0 0.0
    %4195 = vmatpush1.xpose.msra.mxu0 0.0
    %4196 = vmatprep.subr.mxu0 0.0
    %4197 = vmatpush1.xpose.msra.mxu0 0.0
    %4198 = vmatprep.subr.mxu0 0.0
    %4199 = vmatpush1.xpose.msra.mxu0 0.0
    %4200 = vmatprep.subr.mxu0 0.0
    %4201 = vmatpush1.xpose.msra.mxu0 0.0
    %4202 = vmatprep.subr.mxu0 0.0
    %4203 = vmatpush1.xpose.msra.mxu0 %v4170
    %4204 = vmatprep.subr.mxu0 0.0
    %4205 = vmatpush2.xpose.msra.mxu0 0.0
    %4206 = vmatprep.subr.mxu0 0.0
    %4207 = vmatpush2.xpose.msra.mxu0 0.0
    %4208 = vmatprep.subr.mxu0 0.0
    %4209 = vmatpush2.xpose.msra.mxu0 0.0
    %4210 = vmatprep.subr.mxu0 0.0
    %4211 = vmatpush2.xpose.msra.mxu0 0.0
    %4212 = vmatprep.subr.mxu0 0.0
    %4213 = vmatpush2.xpose.msra.mxu0 0.0
    %4214 = vmatprep.subr.mxu0 0.0
    %4215 = vmatpush2.xpose.msra.mxu0 0.0
    %4216 = vmatprep.subr.mxu0 0.0
    %4217 = vmatpush2.xpose.msra.mxu0 0.0
    %4218 = vmatprep.subr.mxu0 0.0
    %4219 = vmatpush2.xpose.msra.mxu0 0.0
    %4220 = vmatprep.subr.mxu0 0.0
    %4221 = vmatpush2.xpose.msra.mxu0 0.0
    %4222 = vmatprep.subr.mxu0 0.0
    %4223 = vmatpush2.xpose.msra.mxu0 0.0
    %4224 = vmatprep.subr.mxu0 0.0
    %4225 = vmatpush2.xpose.msra.mxu0 0.0
    %4226 = vmatprep.subr.mxu0 0.0
    %4227 = vmatpush2.xpose.msra.mxu0 0.0
    %4228 = vmatprep.subr.mxu0 0.0
    %4229 = vmatpush2.xpose.msra.mxu0 0.0
    %4230 = vmatprep.subr.mxu0 0.0
    %4231 = vmatpush2.xpose.msra.mxu0 0.0
    %4232 = vmatprep.subr.mxu0 0.0
    %4233 = vmatpush2.xpose.msra.mxu0 0.0
    %4234 = vmatprep.subr.mxu0 0.0
    %4235 = vmatpush2.xpose.msra.mxu0 0.0
    %4236 = vmatprep.mubr.f32.mxu0 0.0
    %4237 = vmatmul.mubr.f32.gmra.mxu0 %v4168
    %v4238 = vpop.f32.mrf.mxu0
    %v4239 = vadd.f32 0.0, %v4238
    %v4240 = vpop.f32.mrf.mxu0
    %4241 = vdwg.mxu0
    %4242 = vrot.lane.b32.xlu0 %v3703, 96
    %v4243 = vpop.permute.xlu0 %4242
    %v4244 = vsel %vm337, %v3703, 0
    %v4246 = vsel %vm337, %v4243, 0
    %4248 = vmatprep.subr.mxu0 0.0
    %4249 = vmatpush1.xpose.msra.mxu0 0.0
    %4250 = vmatprep.subr.mxu0 0.0
    %4251 = vmatpush1.xpose.msra.mxu0 0.0
    %4252 = vmatprep.subr.mxu0 0.0
    %4253 = vmatpush1.xpose.msra.mxu0 0.0
    %4254 = vmatprep.subr.mxu0 0.0
    %4255 = vmatpush1.xpose.msra.mxu0 0.0
    %4256 = vmatprep.subr.mxu0 0.0
    %4257 = vmatpush1.xpose.msra.mxu0 0.0
    %4258 = vmatprep.subr.mxu0 0.0
    %4259 = vmatpush1.xpose.msra.mxu0 0.0
    %4260 = vmatprep.subr.mxu0 0.0
    %4261 = vmatpush1.xpose.msra.mxu0 0.0
    %4262 = vmatprep.subr.mxu0 0.0
    %4263 = vmatpush1.xpose.msra.mxu0 0.0
    %4264 = vmatprep.subr.mxu0 0.0
    %4265 = vmatpush1.xpose.msra.mxu0 0.0
    %4266 = vmatprep.subr.mxu0 0.0
    %4267 = vmatpush1.xpose.msra.mxu0 0.0
    %4268 = vmatprep.subr.mxu0 0.0
    %4269 = vmatpush1.xpose.msra.mxu0 0.0
    %4270 = vmatprep.subr.mxu0 0.0
    %4271 = vmatpush1.xpose.msra.mxu0 0.0
    %4272 = vmatprep.subr.mxu0 0.0
    %4273 = vmatpush1.xpose.msra.mxu0 0.0
    %4274 = vmatprep.subr.mxu0 0.0
    %4275 = vmatpush1.xpose.msra.mxu0 0.0
    %4276 = vmatprep.subr.mxu0 0.0
    %4277 = vmatpush1.xpose.msra.mxu0 0.0
    %4278 = vmatprep.subr.mxu0 0.0
    %4279 = vmatpush1.xpose.msra.mxu0 %v4246
    %4280 = vmatprep.subr.mxu0 0.0
    %4281 = vmatpush2.xpose.msra.mxu0 0.0
    %4282 = vmatprep.subr.mxu0 0.0
    %4283 = vmatpush2.xpose.msra.mxu0 0.0
    %4284 = vmatprep.subr.mxu0 0.0
    %4285 = vmatpush2.xpose.msra.mxu0 0.0
    %4286 = vmatprep.subr.mxu0 0.0
    %4287 = vmatpush2.xpose.msra.mxu0 0.0
    %4288 = vmatprep.subr.mxu0 0.0
    %4289 = vmatpush2.xpose.msra.mxu0 0.0
    %4290 = vmatprep.subr.mxu0 0.0
    %4291 = vmatpush2.xpose.msra.mxu0 0.0
    %4292 = vmatprep.subr.mxu0 0.0
    %4293 = vmatpush2.xpose.msra.mxu0 0.0
    %4294 = vmatprep.subr.mxu0 0.0
    %4295 = vmatpush2.xpose.msra.mxu0 0.0
    %4296 = vmatprep.subr.mxu0 0.0
    %4297 = vmatpush2.xpose.msra.mxu0 0.0
    %4298 = vmatprep.subr.mxu0 0.0
    %4299 = vmatpush2.xpose.msra.mxu0 0.0
    %4300 = vmatprep.subr.mxu0 0.0
    %4301 = vmatpush2.xpose.msra.mxu0 0.0
    %4302 = vmatprep.subr.mxu0 0.0
    %4303 = vmatpush2.xpose.msra.mxu0 0.0
    %4304 = vmatprep.subr.mxu0 0.0
    %4305 = vmatpush2.xpose.msra.mxu0 0.0
    %4306 = vmatprep.subr.mxu0 0.0
    %4307 = vmatpush2.xpose.msra.mxu0 0.0
    %4308 = vmatprep.subr.mxu0 0.0
    %4309 = vmatpush2.xpose.msra.mxu0 0.0
    %4310 = vmatprep.subr.mxu0 0.0
    %4311 = vmatpush2.xpose.msra.mxu0 0.0
    %4312 = vmatprep.mubr.f32.mxu0 0.0
    %4313 = vmatmul.mubr.f32.gmra.mxu0 %v4244
    %v4314 = vpop.f32.mrf.mxu0
    %v4315 = vadd.f32 0.0, %v4314
    %v4316 = vpop.f32.mrf.mxu0
    %4317 = vdwg.mxu0
    %v4318 = vmul.f32 %v3783, 2.828427
    %v4319 = vmul.f32 %v3859, 2.828427
    %v4320 = vmul.f32 %v3935, 2.828427
    %v4321 = vmul.f32 %v4011, 2.828427
    %v4322 = vmul.f32 %v4087, 2.828427
    %v4323 = vmul.f32 %v4163, 2.828427
    %v4324 = vmul.f32 %v4239, 2.828427
    %v4325 = vmul.f32 %v4315, 2.828427
    %v4326 = vadd.f32 %v4318, %v108
    %v4327 = vadd.f32 %v4319, %v108
    %v4328 = vadd.f32 %v4320, %v108
    %v4329 = vadd.f32 %v4321, %v108
    %v4330 = vadd.f32 %v4322, %v108
    %v4331 = vadd.f32 %v4323, %v108
    %v4332 = vadd.f32 %v4324, %v108
    %v4333 = vadd.f32 %v4325, %v108
    %v4334 = vsel %vm337, %v4326, -inf
    %4335 = vmax.xlane.f32.xlu0 %v4334
    %v4336 = vpop.xlane.xlu0 %4335
    %v4337 = vsel %vm337, %v4327, -inf
    %4338 = vmax.xlane.f32.xlu0 %v4337
    %v4339 = vpop.xlane.xlu0 %4338
    %v4340 = vsel %vm337, %v4328, -inf
    %4341 = vmax.xlane.f32.xlu0 %v4340
    %v4342 = vpop.xlane.xlu0 %4341
    %v4343 = vsel %vm337, %v4329, -inf
    %4344 = vmax.xlane.f32.xlu0 %v4343
    %v4345 = vpop.xlane.xlu0 %4344
    %v4346 = vsel %vm337, %v4330, -inf
    %4347 = vmax.xlane.f32.xlu0 %v4346
    %v4348 = vpop.xlane.xlu0 %4347
    %v4349 = vsel %vm337, %v4331, -inf
    %4350 = vmax.xlane.f32.xlu0 %v4349
    %v4351 = vpop.xlane.xlu0 %4350
    %v4352 = vsel %vm337, %v4332, -inf
    %4353 = vmax.xlane.f32.xlu0 %v4352
    %v4354 = vpop.xlane.xlu0 %4353
    %v4355 = vsel %vm337, %v4333, -inf
    %4356 = vmax.xlane.f32.xlu0 %v4355
    %v4357 = vpop.xlane.xlu0 %4356
    %v4358 = vsub.f32 %v4326, %v4336
    %v4359 = vsub.f32 %v4327, %v4339
    %v4360 = vsub.f32 %v4328, %v4342
    %v4361 = vsub.f32 %v4329, %v4345
    %v4362 = vsub.f32 %v4330, %v4348
    %v4363 = vsub.f32 %v4331, %v4351
    %v4364 = vsub.f32 %v4332, %v4354
    %v4365 = vsub.f32 %v4333, %v4357
    %v4366 = vmul.f32 %v4358, 1.442695
    %v4367 = vpow.pop %v4366
    %v4368 = vmul.f32 %v4359, 1.442695
    %v4369 = vpow.pop %v4368
    %v4370 = vmul.f32 %v4360, 1.442695
    %v4371 = vpow.pop %v4370
    %v4372 = vmul.f32 %v4361, 1.442695
    %v4373 = vpow.pop %v4372
    %v4374 = vmul.f32 %v4362, 1.442695
    %v4375 = vpow.pop %v4374
    %v4376 = vmul.f32 %v4363, 1.442695
    %v4377 = vpow.pop %v4376
    %v4378 = vmul.f32 %v4364, 1.442695
    %v4379 = vpow.pop %v4378
    %v4380 = vmul.f32 %v4365, 1.442695
    %v4381 = vpow.pop %v4380
    %v4382 = vsel %vm337, %v4367, 0.0
    %4383 = vadd.xlane.f32.xlu0 %v4382
    %v4384 = vpop.xlane.xlu0 %4383
    %v4385 = vsel %vm337, %v4369, 0.0
    %4386 = vadd.xlane.f32.xlu0 %v4385
    %v4387 = vpop.xlane.xlu0 %4386
    %v4388 = vsel %vm337, %v4371, 0.0
    %4389 = vadd.xlane.f32.xlu0 %v4388
    %v4390 = vpop.xlane.xlu0 %4389
    %v4391 = vsel %vm337, %v4373, 0.0
    %4392 = vadd.xlane.f32.xlu0 %v4391
    %v4393 = vpop.xlane.xlu0 %4392
    %v4394 = vsel %vm337, %v4375, 0.0
    %4395 = vadd.xlane.f32.xlu0 %v4394
    %v4396 = vpop.xlane.xlu0 %4395
    %v4397 = vsel %vm337, %v4377, 0.0
    %4398 = vadd.xlane.f32.xlu0 %v4397
    %v4399 = vpop.xlane.xlu0 %4398
    %v4400 = vsel %vm337, %v4379, 0.0
    %4401 = vadd.xlane.f32.xlu0 %v4400
    %v4402 = vpop.xlane.xlu0 %4401
    %v4403 = vsel %vm337, %v4381, 0.0
    %4404 = vadd.xlane.f32.xlu0 %v4403
    %v4405 = vpop.xlane.xlu0 %4404
    %v4406 = vrcp.pop %v4384
    %v4407 = vrcp.pop %v4387
    %v4408 = vrcp.pop %v4390
    %v4409 = vrcp.pop %v4393
    %v4410 = vrcp.pop %v4396
    %v4411 = vrcp.pop %v4399
    %v4412 = vrcp.pop %v4402
    %v4413 = vrcp.pop %v4405
    %v4414 = vmul.f32 %v4367, %v4406
    %v4415 = vmul.f32 %v4369, %v4407
    %v4416 = vmul.f32 %v4371, %v4408
    %v4417 = vmul.f32 %v4373, %v4409
    %v4418 = vmul.f32 %v4375, %v4410
    %v4419 = vmul.f32 %v4377, %v4411
    %v4420 = vmul.f32 %v4379, %v4412
    %v4421 = vmul.f32 %v4381, %v4413
    %4422 = vrot.lane.b32.xlu0 %v3682, 64
    %v4423 = vpop.permute.xlu0 %4422
    %v4426 = vsel %vm337, %v4414, 0
    %4428 = vmatprep.subr.mxu0 0.0
    %4429 = vmatpush1.msra.mxu0 0.0
    %4430 = vmatprep.subr.mxu0 0.0
    %4431 = vmatpush1.msra.mxu0 0.0
    %4432 = vmatprep.subr.mxu0 0.0
    %4433 = vmatpush1.msra.mxu0 0.0
    %4434 = vmatprep.subr.mxu0 0.0
    %4435 = vmatpush1.msra.mxu0 0.0
    %4436 = vmatprep.subr.mxu0 0.0
    %4437 = vmatpush1.msra.mxu0 0.0
    %4438 = vmatprep.subr.mxu0 0.0
    %4439 = vmatpush1.msra.mxu0 0.0
    %4440 = vmatprep.subr.mxu0 0.0
    %4441 = vmatpush1.msra.mxu0 0.0
    %4442 = vmatprep.subr.mxu0 0.0
    %4443 = vmatpush1.msra.mxu0 0.0
    %4444 = vmatprep.subr.mxu0 0.0
    %4445 = vmatpush1.msra.mxu0 0.0
    %4446 = vmatprep.subr.mxu0 0.0
    %4447 = vmatpush1.msra.mxu0 0.0
    %4448 = vmatprep.subr.mxu0 0.0
    %4449 = vmatpush1.msra.mxu0 0.0
    %4450 = vmatprep.subr.mxu0 0.0
    %4451 = vmatpush1.msra.mxu0 0.0
    %4452 = vmatprep.subr.mxu0 0.0
    %4453 = vmatpush1.msra.mxu0 0.0
    %4454 = vmatprep.subr.mxu0 0.0
    %4455 = vmatpush1.msra.mxu0 0.0
    %4456 = vmatprep.subr.mxu0 0.0
    %4457 = vmatpush1.msra.mxu0 0.0
    %4458 = vmatprep.subr.mxu0 0.0
    %4459 = vmatpush1.msra.mxu0 %v4423
    %4460 = vmatprep.subr.mxu0 0.0
    %4461 = vmatpush2.msra.mxu0 0.0
    %4462 = vmatprep.subr.mxu0 0.0
    %4463 = vmatpush2.msra.mxu0 0.0
    %4464 = vmatprep.subr.mxu0 0.0
    %4465 = vmatpush2.msra.mxu0 0.0
    %4466 = vmatprep.subr.mxu0 0.0
    %4467 = vmatpush2.msra.mxu0 0.0
    %4468 = vmatprep.subr.mxu0 0.0
    %4469 = vmatpush2.msra.mxu0 0.0
    %4470 = vmatprep.subr.mxu0 0.0
    %4471 = vmatpush2.msra.mxu0 0.0
    %4472 = vmatprep.subr.mxu0 0.0
    %4473 = vmatpush2.msra.mxu0 0.0
    %4474 = vmatprep.subr.mxu0 0.0
    %4475 = vmatpush2.msra.mxu0 0.0
    %4476 = vmatprep.subr.mxu0 0.0
    %4477 = vmatpush2.msra.mxu0 0.0
    %4478 = vmatprep.subr.mxu0 0.0
    %4479 = vmatpush2.msra.mxu0 0.0
    %4480 = vmatprep.subr.mxu0 0.0
    %4481 = vmatpush2.msra.mxu0 0.0
    %4482 = vmatprep.subr.mxu0 0.0
    %4483 = vmatpush2.msra.mxu0 0.0
    %4484 = vmatprep.subr.mxu0 0.0
    %4485 = vmatpush2.msra.mxu0 0.0
    %4486 = vmatprep.subr.mxu0 0.0
    %4487 = vmatpush2.msra.mxu0 0.0
    %4488 = vmatprep.subr.mxu0 0.0
    %4489 = vmatpush2.msra.mxu0 0.0
    %4490 = vmatprep.subr.mxu0 0.0
    %4491 = vmatpush2.msra.mxu0 0.0
    %4492 = vmatprep.mubr.f32.mxu0 0.0
    %4493 = vmatmul.mubr.f32.gmra.mxu0 %v4426
    %v4494 = vpop.f32.mrf.mxu0
    %v4495 = vadd.f32 0.0, %v4494
    %v4496 = vpop.f32.mrf.mxu0
    %4497 = vdwg.mxu0
    %4498 = vrot.lane.b32.xlu0 %v3687, 64
    %v4499 = vpop.permute.xlu0 %4498
    %v4502 = vsel %vm337, %v4415, 0
    %4504 = vmatprep.subr.mxu0 0.0
    %4505 = vmatpush1.msra.mxu0 0.0
    %4506 = vmatprep.subr.mxu0 0.0
    %4507 = vmatpush1.msra.mxu0 0.0
    %4508 = vmatprep.subr.mxu0 0.0
    %4509 = vmatpush1.msra.mxu0 0.0
    %4510 = vmatprep.subr.mxu0 0.0
    %4511 = vmatpush1.msra.mxu0 0.0
    %4512 = vmatprep.subr.mxu0 0.0
    %4513 = vmatpush1.msra.mxu0 0.0
    %4514 = vmatprep.subr.mxu0 0.0
    %4515 = vmatpush1.msra.mxu0 0.0
    %4516 = vmatprep.subr.mxu0 0.0
    %4517 = vmatpush1.msra.mxu0 0.0
    %4518 = vmatprep.subr.mxu0 0.0
    %4519 = vmatpush1.msra.mxu0 0.0
    %4520 = vmatprep.subr.mxu0 0.0
    %4521 = vmatpush1.msra.mxu0 0.0
    %4522 = vmatprep.subr.mxu0 0.0
    %4523 = vmatpush1.msra.mxu0 0.0
    %4524 = vmatprep.subr.mxu0 0.0
    %4525 = vmatpush1.msra.mxu0 0.0
    %4526 = vmatprep.subr.mxu0 0.0
    %4527 = vmatpush1.msra.mxu0 0.0
    %4528 = vmatprep.subr.mxu0 0.0
    %4529 = vmatpush1.msra.mxu0 0.0
    %4530 = vmatprep.subr.mxu0 0.0
    %4531 = vmatpush1.msra.mxu0 0.0
    %4532 = vmatprep.subr.mxu0 0.0
    %4533 = vmatpush1.msra.mxu0 0.0
    %4534 = vmatprep.subr.mxu0 0.0
    %4535 = vmatpush1.msra.mxu0 %v4499
    %4536 = vmatprep.subr.mxu0 0.0
    %4537 = vmatpush2.msra.mxu0 0.0
    %4538 = vmatprep.subr.mxu0 0.0
    %4539 = vmatpush2.msra.mxu0 0.0
    %4540 = vmatprep.subr.mxu0 0.0
    %4541 = vmatpush2.msra.mxu0 0.0
    %4542 = vmatprep.subr.mxu0 0.0
    %4543 = vmatpush2.msra.mxu0 0.0
    %4544 = vmatprep.subr.mxu0 0.0
    %4545 = vmatpush2.msra.mxu0 0.0
    %4546 = vmatprep.subr.mxu0 0.0
    %4547 = vmatpush2.msra.mxu0 0.0
    %4548 = vmatprep.subr.mxu0 0.0
    %4549 = vmatpush2.msra.mxu0 0.0
    %4550 = vmatprep.subr.mxu0 0.0
    %4551 = vmatpush2.msra.mxu0 0.0
    %4552 = vmatprep.subr.mxu0 0.0
    %4553 = vmatpush2.msra.mxu0 0.0
    %4554 = vmatprep.subr.mxu0 0.0
    %4555 = vmatpush2.msra.mxu0 0.0
    %4556 = vmatprep.subr.mxu0 0.0
    %4557 = vmatpush2.msra.mxu0 0.0
    %4558 = vmatprep.subr.mxu0 0.0
    %4559 = vmatpush2.msra.mxu0 0.0
    %4560 = vmatprep.subr.mxu0 0.0
    %4561 = vmatpush2.msra.mxu0 0.0
    %4562 = vmatprep.subr.mxu0 0.0
    %4563 = vmatpush2.msra.mxu0 0.0
    %4564 = vmatprep.subr.mxu0 0.0
    %4565 = vmatpush2.msra.mxu0 0.0
    %4566 = vmatprep.subr.mxu0 0.0
    %4567 = vmatpush2.msra.mxu0 0.0
    %4568 = vmatprep.mubr.f32.mxu0 0.0
    %4569 = vmatmul.mubr.f32.gmra.mxu0 %v4502
    %v4570 = vpop.f32.mrf.mxu0
    %v4571 = vadd.f32 0.0, %v4570
    %v4572 = vpop.f32.mrf.mxu0
    %4573 = vdwg.mxu0
    %4574 = vrot.lane.b32.xlu0 %v3693, 64
    %v4575 = vpop.permute.xlu0 %4574
    %v4578 = vsel %vm337, %v4416, 0
    %4580 = vmatprep.subr.mxu0 0.0
    %4581 = vmatpush1.msra.mxu0 0.0
    %4582 = vmatprep.subr.mxu0 0.0
    %4583 = vmatpush1.msra.mxu0 0.0
    %4584 = vmatprep.subr.mxu0 0.0
    %4585 = vmatpush1.msra.mxu0 0.0
    %4586 = vmatprep.subr.mxu0 0.0
    %4587 = vmatpush1.msra.mxu0 0.0
    %4588 = vmatprep.subr.mxu0 0.0
    %4589 = vmatpush1.msra.mxu0 0.0
    %4590 = vmatprep.subr.mxu0 0.0
    %4591 = vmatpush1.msra.mxu0 0.0
    %4592 = vmatprep.subr.mxu0 0.0
    %4593 = vmatpush1.msra.mxu0 0.0
    %4594 = vmatprep.subr.mxu0 0.0
    %4595 = vmatpush1.msra.mxu0 0.0
    %4596 = vmatprep.subr.mxu0 0.0
    %4597 = vmatpush1.msra.mxu0 0.0
    %4598 = vmatprep.subr.mxu0 0.0
    %4599 = vmatpush1.msra.mxu0 0.0
    %4600 = vmatprep.subr.mxu0 0.0
    %4601 = vmatpush1.msra.mxu0 0.0
    %4602 = vmatprep.subr.mxu0 0.0
    %4603 = vmatpush1.msra.mxu0 0.0
    %4604 = vmatprep.subr.mxu0 0.0
    %4605 = vmatpush1.msra.mxu0 0.0
    %4606 = vmatprep.subr.mxu0 0.0
    %4607 = vmatpush1.msra.mxu0 0.0
    %4608 = vmatprep.subr.mxu0 0.0
    %4609 = vmatpush1.msra.mxu0 0.0
    %4610 = vmatprep.subr.mxu0 0.0
    %4611 = vmatpush1.msra.mxu0 %v4575
    %4612 = vmatprep.subr.mxu0 0.0
    %4613 = vmatpush2.msra.mxu0 0.0
    %4614 = vmatprep.subr.mxu0 0.0
    %4615 = vmatpush2.msra.mxu0 0.0
    %4616 = vmatprep.subr.mxu0 0.0
    %4617 = vmatpush2.msra.mxu0 0.0
    %4618 = vmatprep.subr.mxu0 0.0
    %4619 = vmatpush2.msra.mxu0 0.0
    %4620 = vmatprep.subr.mxu0 0.0
    %4621 = vmatpush2.msra.mxu0 0.0
    %4622 = vmatprep.subr.mxu0 0.0
    %4623 = vmatpush2.msra.mxu0 0.0
    %4624 = vmatprep.subr.mxu0 0.0
    %4625 = vmatpush2.msra.mxu0 0.0
    %4626 = vmatprep.subr.mxu0 0.0
    %4627 = vmatpush2.msra.mxu0 0.0
    %4628 = vmatprep.subr.mxu0 0.0
    %4629 = vmatpush2.msra.mxu0 0.0
    %4630 = vmatprep.subr.mxu0 0.0
    %4631 = vmatpush2.msra.mxu0 0.0
    %4632 = vmatprep.subr.mxu0 0.0
    %4633 = vmatpush2.msra.mxu0 0.0
    %4634 = vmatprep.subr.mxu0 0.0
    %4635 = vmatpush2.msra.mxu0 0.0
    %4636 = vmatprep.subr.mxu0 0.0
    %4637 = vmatpush2.msra.mxu0 0.0
    %4638 = vmatprep.subr.mxu0 0.0
    %4639 = vmatpush2.msra.mxu0 0.0
    %4640 = vmatprep.subr.mxu0 0.0
    %4641 = vmatpush2.msra.mxu0 0.0
    %4642 = vmatprep.subr.mxu0 0.0
    %4643 = vmatpush2.msra.mxu0 0.0
    %4644 = vmatprep.mubr.f32.mxu0 0.0
    %4645 = vmatmul.mubr.f32.gmra.mxu0 %v4578
    %v4646 = vpop.f32.mrf.mxu0
    %v4647 = vadd.f32 0.0, %v4646
    %v4648 = vpop.f32.mrf.mxu0
    %4649 = vdwg.mxu0
    %4650 = vrot.lane.b32.xlu0 %v3695, 64
    %v4651 = vpop.permute.xlu0 %4650
    %v4654 = vsel %vm337, %v4417, 0
    %4656 = vmatprep.subr.mxu0 0.0
    %4657 = vmatpush1.msra.mxu0 0.0
    %4658 = vmatprep.subr.mxu0 0.0
    %4659 = vmatpush1.msra.mxu0 0.0
    %4660 = vmatprep.subr.mxu0 0.0
    %4661 = vmatpush1.msra.mxu0 0.0
    %4662 = vmatprep.subr.mxu0 0.0
    %4663 = vmatpush1.msra.mxu0 0.0
    %4664 = vmatprep.subr.mxu0 0.0
    %4665 = vmatpush1.msra.mxu0 0.0
    %4666 = vmatprep.subr.mxu0 0.0
    %4667 = vmatpush1.msra.mxu0 0.0
    %4668 = vmatprep.subr.mxu0 0.0
    %4669 = vmatpush1.msra.mxu0 0.0
    %4670 = vmatprep.subr.mxu0 0.0
    %4671 = vmatpush1.msra.mxu0 0.0
    %4672 = vmatprep.subr.mxu0 0.0
    %4673 = vmatpush1.msra.mxu0 0.0
    %4674 = vmatprep.subr.mxu0 0.0
    %4675 = vmatpush1.msra.mxu0 0.0
    %4676 = vmatprep.subr.mxu0 0.0
    %4677 = vmatpush1.msra.mxu0 0.0
    %4678 = vmatprep.subr.mxu0 0.0
    %4679 = vmatpush1.msra.mxu0 0.0
    %4680 = vmatprep.subr.mxu0 0.0
    %4681 = vmatpush1.msra.mxu0 0.0
    %4682 = vmatprep.subr.mxu0 0.0
    %4683 = vmatpush1.msra.mxu0 0.0
    %4684 = vmatprep.subr.mxu0 0.0
    %4685 = vmatpush1.msra.mxu0 0.0
    %4686 = vmatprep.subr.mxu0 0.0
    %4687 = vmatpush1.msra.mxu0 %v4651
    %4688 = vmatprep.subr.mxu0 0.0
    %4689 = vmatpush2.msra.mxu0 0.0
    %4690 = vmatprep.subr.mxu0 0.0
    %4691 = vmatpush2.msra.mxu0 0.0
    %4692 = vmatprep.subr.mxu0 0.0
    %4693 = vmatpush2.msra.mxu0 0.0
    %4694 = vmatprep.subr.mxu0 0.0
    %4695 = vmatpush2.msra.mxu0 0.0
    %4696 = vmatprep.subr.mxu0 0.0
    %4697 = vmatpush2.msra.mxu0 0.0
    %4698 = vmatprep.subr.mxu0 0.0
    %4699 = vmatpush2.msra.mxu0 0.0
    %4700 = vmatprep.subr.mxu0 0.0
    %4701 = vmatpush2.msra.mxu0 0.0
    %4702 = vmatprep.subr.mxu0 0.0
    %4703 = vmatpush2.msra.mxu0 0.0
    %4704 = vmatprep.subr.mxu0 0.0
    %4705 = vmatpush2.msra.mxu0 0.0
    %4706 = vmatprep.subr.mxu0 0.0
    %4707 = vmatpush2.msra.mxu0 0.0
    %4708 = vmatprep.subr.mxu0 0.0
    %4709 = vmatpush2.msra.mxu0 0.0
    %4710 = vmatprep.subr.mxu0 0.0
    %4711 = vmatpush2.msra.mxu0 0.0
    %4712 = vmatprep.subr.mxu0 0.0
    %4713 = vmatpush2.msra.mxu0 0.0
    %4714 = vmatprep.subr.mxu0 0.0
    %4715 = vmatpush2.msra.mxu0 0.0
    %4716 = vmatprep.subr.mxu0 0.0
    %4717 = vmatpush2.msra.mxu0 0.0
    %4718 = vmatprep.subr.mxu0 0.0
    %4719 = vmatpush2.msra.mxu0 0.0
    %4720 = vmatprep.mubr.f32.mxu0 0.0
    %4721 = vmatmul.mubr.f32.gmra.mxu0 %v4654
    %v4722 = vpop.f32.mrf.mxu0
    %v4723 = vadd.f32 0.0, %v4722
    %v4724 = vpop.f32.mrf.mxu0
    %4725 = vdwg.mxu0
    %4726 = vrot.lane.b32.xlu0 %v3697, 64
    %v4727 = vpop.permute.xlu0 %4726
    %v4730 = vsel %vm337, %v4418, 0
    %4732 = vmatprep.subr.mxu0 0.0
    %4733 = vmatpush1.msra.mxu0 0.0
    %4734 = vmatprep.subr.mxu0 0.0
    %4735 = vmatpush1.msra.mxu0 0.0
    %4736 = vmatprep.subr.mxu0 0.0
    %4737 = vmatpush1.msra.mxu0 0.0
    %4738 = vmatprep.subr.mxu0 0.0
    %4739 = vmatpush1.msra.mxu0 0.0
    %4740 = vmatprep.subr.mxu0 0.0
    %4741 = vmatpush1.msra.mxu0 0.0
    %4742 = vmatprep.subr.mxu0 0.0
    %4743 = vmatpush1.msra.mxu0 0.0
    %4744 = vmatprep.subr.mxu0 0.0
    %4745 = vmatpush1.msra.mxu0 0.0
    %4746 = vmatprep.subr.mxu0 0.0
    %4747 = vmatpush1.msra.mxu0 0.0
    %4748 = vmatprep.subr.mxu0 0.0
    %4749 = vmatpush1.msra.mxu0 0.0
    %4750 = vmatprep.subr.mxu0 0.0
    %4751 = vmatpush1.msra.mxu0 0.0
    %4752 = vmatprep.subr.mxu0 0.0
    %4753 = vmatpush1.msra.mxu0 0.0
    %4754 = vmatprep.subr.mxu0 0.0
    %4755 = vmatpush1.msra.mxu0 0.0
    %4756 = vmatprep.subr.mxu0 0.0
    %4757 = vmatpush1.msra.mxu0 0.0
    %4758 = vmatprep.subr.mxu0 0.0
    %4759 = vmatpush1.msra.mxu0 0.0
    %4760 = vmatprep.subr.mxu0 0.0
    %4761 = vmatpush1.msra.mxu0 0.0
    %4762 = vmatprep.subr.mxu0 0.0
    %4763 = vmatpush1.msra.mxu0 %v4727
    %4764 = vmatprep.subr.mxu0 0.0
    %4765 = vmatpush2.msra.mxu0 0.0
    %4766 = vmatprep.subr.mxu0 0.0
    %4767 = vmatpush2.msra.mxu0 0.0
    %4768 = vmatprep.subr.mxu0 0.0
    %4769 = vmatpush2.msra.mxu0 0.0
    %4770 = vmatprep.subr.mxu0 0.0
    %4771 = vmatpush2.msra.mxu0 0.0
    %4772 = vmatprep.subr.mxu0 0.0
    %4773 = vmatpush2.msra.mxu0 0.0
    %4774 = vmatprep.subr.mxu0 0.0
    %4775 = vmatpush2.msra.mxu0 0.0
    %4776 = vmatprep.subr.mxu0 0.0
    %4777 = vmatpush2.msra.mxu0 0.0
    %4778 = vmatprep.subr.mxu0 0.0
    %4779 = vmatpush2.msra.mxu0 0.0
    %4780 = vmatprep.subr.mxu0 0.0
    %4781 = vmatpush2.msra.mxu0 0.0
    %4782 = vmatprep.subr.mxu0 0.0
    %4783 = vmatpush2.msra.mxu0 0.0
    %4784 = vmatprep.subr.mxu0 0.0
    %4785 = vmatpush2.msra.mxu0 0.0
    %4786 = vmatprep.subr.mxu0 0.0
    %4787 = vmatpush2.msra.mxu0 0.0
    %4788 = vmatprep.subr.mxu0 0.0
    %4789 = vmatpush2.msra.mxu0 0.0
    %4790 = vmatprep.subr.mxu0 0.0
    %4791 = vmatpush2.msra.mxu0 0.0
    %4792 = vmatprep.subr.mxu0 0.0
    %4793 = vmatpush2.msra.mxu0 0.0
    %4794 = vmatprep.subr.mxu0 0.0
    %4795 = vmatpush2.msra.mxu0 0.0
    %4796 = vmatprep.mubr.f32.mxu0 0.0
    %4797 = vmatmul.mubr.f32.gmra.mxu0 %v4730
    %v4798 = vpop.f32.mrf.mxu0
    %v4799 = vadd.f32 0.0, %v4798
    %v4800 = vpop.f32.mrf.mxu0
    %4801 = vdwg.mxu0
    %4802 = vrot.lane.b32.xlu0 %v3699, 64
    %v4803 = vpop.permute.xlu0 %4802
    %v4806 = vsel %vm337, %v4419, 0
    %4808 = vmatprep.subr.mxu0 0.0
    %4809 = vmatpush1.msra.mxu0 0.0
    %4810 = vmatprep.subr.mxu0 0.0
    %4811 = vmatpush1.msra.mxu0 0.0
    %4812 = vmatprep.subr.mxu0 0.0
    %4813 = vmatpush1.msra.mxu0 0.0
    %4814 = vmatprep.subr.mxu0 0.0
    %4815 = vmatpush1.msra.mxu0 0.0
    %4816 = vmatprep.subr.mxu0 0.0
    %4817 = vmatpush1.msra.mxu0 0.0
    %4818 = vmatprep.subr.mxu0 0.0
    %4819 = vmatpush1.msra.mxu0 0.0
    %4820 = vmatprep.subr.mxu0 0.0
    %4821 = vmatpush1.msra.mxu0 0.0
    %4822 = vmatprep.subr.mxu0 0.0
    %4823 = vmatpush1.msra.mxu0 0.0
    %4824 = vmatprep.subr.mxu0 0.0
    %4825 = vmatpush1.msra.mxu0 0.0
    %4826 = vmatprep.subr.mxu0 0.0
    %4827 = vmatpush1.msra.mxu0 0.0
    %4828 = vmatprep.subr.mxu0 0.0
    %4829 = vmatpush1.msra.mxu0 0.0
    %4830 = vmatprep.subr.mxu0 0.0
    %4831 = vmatpush1.msra.mxu0 0.0
    %4832 = vmatprep.subr.mxu0 0.0
    %4833 = vmatpush1.msra.mxu0 0.0
    %4834 = vmatprep.subr.mxu0 0.0
    %4835 = vmatpush1.msra.mxu0 0.0
    %4836 = vmatprep.subr.mxu0 0.0
    %4837 = vmatpush1.msra.mxu0 0.0
    %4838 = vmatprep.subr.mxu0 0.0
    %4839 = vmatpush1.msra.mxu0 %v4803
    %4840 = vmatprep.subr.mxu0 0.0
    %4841 = vmatpush2.msra.mxu0 0.0
    %4842 = vmatprep.subr.mxu0 0.0
    %4843 = vmatpush2.msra.mxu0 0.0
    %4844 = vmatprep.subr.mxu0 0.0
    %4845 = vmatpush2.msra.mxu0 0.0
    %4846 = vmatprep.subr.mxu0 0.0
    %4847 = vmatpush2.msra.mxu0 0.0
    %4848 = vmatprep.subr.mxu0 0.0
    %4849 = vmatpush2.msra.mxu0 0.0
    %4850 = vmatprep.subr.mxu0 0.0
    %4851 = vmatpush2.msra.mxu0 0.0
    %4852 = vmatprep.subr.mxu0 0.0
    %4853 = vmatpush2.msra.mxu0 0.0
    %4854 = vmatprep.subr.mxu0 0.0
    %4855 = vmatpush2.msra.mxu0 0.0
    %4856 = vmatprep.subr.mxu0 0.0
    %4857 = vmatpush2.msra.mxu0 0.0
    %4858 = vmatprep.subr.mxu0 0.0
    %4859 = vmatpush2.msra.mxu0 0.0
    %4860 = vmatprep.subr.mxu0 0.0
    %4861 = vmatpush2.msra.mxu0 0.0
    %4862 = vmatprep.subr.mxu0 0.0
    %4863 = vmatpush2.msra.mxu0 0.0
    %4864 = vmatprep.subr.mxu0 0.0
    %4865 = vmatpush2.msra.mxu0 0.0
    %4866 = vmatprep.subr.mxu0 0.0
    %4867 = vmatpush2.msra.mxu0 0.0
    %4868 = vmatprep.subr.mxu0 0.0
    %4869 = vmatpush2.msra.mxu0 0.0
    %4870 = vmatprep.subr.mxu0 0.0
    %4871 = vmatpush2.msra.mxu0 0.0
    %4872 = vmatprep.mubr.f32.mxu0 0.0
    %4873 = vmatmul.mubr.f32.gmra.mxu0 %v4806
    %v4874 = vpop.f32.mrf.mxu0
    %v4875 = vadd.f32 0.0, %v4874
    %v4876 = vpop.f32.mrf.mxu0
    %4877 = vdwg.mxu0
    %4878 = vrot.lane.b32.xlu0 %v3701, 64
    %v4879 = vpop.permute.xlu0 %4878
    %v4882 = vsel %vm337, %v4420, 0
    %4884 = vmatprep.subr.mxu0 0.0
    %4885 = vmatpush1.msra.mxu0 0.0
    %4886 = vmatprep.subr.mxu0 0.0
    %4887 = vmatpush1.msra.mxu0 0.0
    %4888 = vmatprep.subr.mxu0 0.0
    %4889 = vmatpush1.msra.mxu0 0.0
    %4890 = vmatprep.subr.mxu0 0.0
    %4891 = vmatpush1.msra.mxu0 0.0
    %4892 = vmatprep.subr.mxu0 0.0
    %4893 = vmatpush1.msra.mxu0 0.0
    %4894 = vmatprep.subr.mxu0 0.0
    %4895 = vmatpush1.msra.mxu0 0.0
    %4896 = vmatprep.subr.mxu0 0.0
    %4897 = vmatpush1.msra.mxu0 0.0
    %4898 = vmatprep.subr.mxu0 0.0
    %4899 = vmatpush1.msra.mxu0 0.0
    %4900 = vmatprep.subr.mxu0 0.0
    %4901 = vmatpush1.msra.mxu0 0.0
    %4902 = vmatprep.subr.mxu0 0.0
    %4903 = vmatpush1.msra.mxu0 0.0
    %4904 = vmatprep.subr.mxu0 0.0
    %4905 = vmatpush1.msra.mxu0 0.0
    %4906 = vmatprep.subr.mxu0 0.0
    %4907 = vmatpush1.msra.mxu0 0.0
    %4908 = vmatprep.subr.mxu0 0.0
    %4909 = vmatpush1.msra.mxu0 0.0
    %4910 = vmatprep.subr.mxu0 0.0
    %4911 = vmatpush1.msra.mxu0 0.0
    %4912 = vmatprep.subr.mxu0 0.0
    %4913 = vmatpush1.msra.mxu0 0.0
    %4914 = vmatprep.subr.mxu0 0.0
    %4915 = vmatpush1.msra.mxu0 %v4879
    %4916 = vmatprep.subr.mxu0 0.0
    %4917 = vmatpush2.msra.mxu0 0.0
    %4918 = vmatprep.subr.mxu0 0.0
    %4919 = vmatpush2.msra.mxu0 0.0
    %4920 = vmatprep.subr.mxu0 0.0
    %4921 = vmatpush2.msra.mxu0 0.0
    %4922 = vmatprep.subr.mxu0 0.0
    %4923 = vmatpush2.msra.mxu0 0.0
    %4924 = vmatprep.subr.mxu0 0.0
    %4925 = vmatpush2.msra.mxu0 0.0
    %4926 = vmatprep.subr.mxu0 0.0
    %4927 = vmatpush2.msra.mxu0 0.0
    %4928 = vmatprep.subr.mxu0 0.0
    %4929 = vmatpush2.msra.mxu0 0.0
    %4930 = vmatprep.subr.mxu0 0.0
    %4931 = vmatpush2.msra.mxu0 0.0
    %4932 = vmatprep.subr.mxu0 0.0
    %4933 = vmatpush2.msra.mxu0 0.0
    %4934 = vmatprep.subr.mxu0 0.0
    %4935 = vmatpush2.msra.mxu0 0.0
    %4936 = vmatprep.subr.mxu0 0.0
    %4937 = vmatpush2.msra.mxu0 0.0
    %4938 = vmatprep.subr.mxu0 0.0
    %4939 = vmatpush2.msra.mxu0 0.0
    %4940 = vmatprep.subr.mxu0 0.0
    %4941 = vmatpush2.msra.mxu0 0.0
    %4942 = vmatprep.subr.mxu0 0.0
    %4943 = vmatpush2.msra.mxu0 0.0
    %4944 = vmatprep.subr.mxu0 0.0
    %4945 = vmatpush2.msra.mxu0 0.0
    %4946 = vmatprep.subr.mxu0 0.0
    %4947 = vmatpush2.msra.mxu0 0.0
    %4948 = vmatprep.mubr.f32.mxu0 0.0
    %4949 = vmatmul.mubr.f32.gmra.mxu0 %v4882
    %v4950 = vpop.f32.mrf.mxu0
    %v4951 = vadd.f32 0.0, %v4950
    %v4952 = vpop.f32.mrf.mxu0
    %4953 = vdwg.mxu0
    %4954 = vrot.lane.b32.xlu0 %v3703, 64
    %v4955 = vpop.permute.xlu0 %4954
    %v4958 = vsel %vm337, %v4421, 0
    %4960 = vmatprep.subr.mxu0 0.0
    %4961 = vmatpush1.msra.mxu0 0.0
    %4962 = vmatprep.subr.mxu0 0.0
    %4963 = vmatpush1.msra.mxu0 0.0
    %4964 = vmatprep.subr.mxu0 0.0
    %4965 = vmatpush1.msra.mxu0 0.0
    %4966 = vmatprep.subr.mxu0 0.0
    %4967 = vmatpush1.msra.mxu0 0.0
    %4968 = vmatprep.subr.mxu0 0.0
    %4969 = vmatpush1.msra.mxu0 0.0
    %4970 = vmatprep.subr.mxu0 0.0
    %4971 = vmatpush1.msra.mxu0 0.0
    %4972 = vmatprep.subr.mxu0 0.0
    %4973 = vmatpush1.msra.mxu0 0.0
    %4974 = vmatprep.subr.mxu0 0.0
    %4975 = vmatpush1.msra.mxu0 0.0
    %4976 = vmatprep.subr.mxu0 0.0
    %4977 = vmatpush1.msra.mxu0 0.0
    %4978 = vmatprep.subr.mxu0 0.0
    %4979 = vmatpush1.msra.mxu0 0.0
    %4980 = vmatprep.subr.mxu0 0.0
    %4981 = vmatpush1.msra.mxu0 0.0
    %4982 = vmatprep.subr.mxu0 0.0
    %4983 = vmatpush1.msra.mxu0 0.0
    %4984 = vmatprep.subr.mxu0 0.0
    %4985 = vmatpush1.msra.mxu0 0.0
    %4986 = vmatprep.subr.mxu0 0.0
    %4987 = vmatpush1.msra.mxu0 0.0
    %4988 = vmatprep.subr.mxu0 0.0
    %4989 = vmatpush1.msra.mxu0 0.0
    %4990 = vmatprep.subr.mxu0 0.0
    %4991 = vmatpush1.msra.mxu0 %v4955
    %4992 = vmatprep.subr.mxu0 0.0
    %4993 = vmatpush2.msra.mxu0 0.0
    %4994 = vmatprep.subr.mxu0 0.0
    %4995 = vmatpush2.msra.mxu0 0.0
    %4996 = vmatprep.subr.mxu0 0.0
    %4997 = vmatpush2.msra.mxu0 0.0
    %4998 = vmatprep.subr.mxu0 0.0
    %4999 = vmatpush2.msra.mxu0 0.0
    %5000 = vmatprep.subr.mxu0 0.0
    %5001 = vmatpush2.msra.mxu0 0.0
    %5002 = vmatprep.subr.mxu0 0.0
    %5003 = vmatpush2.msra.mxu0 0.0
    %5004 = vmatprep.subr.mxu0 0.0
    %5005 = vmatpush2.msra.mxu0 0.0
    %5006 = vmatprep.subr.mxu0 0.0
    %5007 = vmatpush2.msra.mxu0 0.0
    %5008 = vmatprep.subr.mxu0 0.0
    %5009 = vmatpush2.msra.mxu0 0.0
    %5010 = vmatprep.subr.mxu0 0.0
    %5011 = vmatpush2.msra.mxu0 0.0
    %5012 = vmatprep.subr.mxu0 0.0
    %5013 = vmatpush2.msra.mxu0 0.0
    %5014 = vmatprep.subr.mxu0 0.0
    %5015 = vmatpush2.msra.mxu0 0.0
    %5016 = vmatprep.subr.mxu0 0.0
    %5017 = vmatpush2.msra.mxu0 0.0
    %5018 = vmatprep.subr.mxu0 0.0
    %5019 = vmatpush2.msra.mxu0 0.0
    %5020 = vmatprep.subr.mxu0 0.0
    %5021 = vmatpush2.msra.mxu0 0.0
    %5022 = vmatprep.subr.mxu0 0.0
    %5023 = vmatpush2.msra.mxu0 0.0
    %5024 = vmatprep.mubr.f32.mxu0 0.0
    %5025 = vmatmul.mubr.f32.gmra.mxu0 %v4958
    %v5026 = vpop.f32.mrf.mxu0
    %v5027 = vadd.f32 0.0, %v5026
    %v5028 = vpop.f32.mrf.mxu0
    %5029 = vdwg.mxu0
    %5032 = vrot.lane.b32.xlu0 %v4647, 8
    %v5033 = vpop.permute.xlu0 %5032
    %5034 = vrot.lane.b32.xlu0 %v4723, 8
    %v5035 = vpop.permute.xlu0 %5034
    %5040 = vrot.lane.b32.xlu0 %v4799, 16
    %v5041 = vpop.permute.xlu0 %5040
    %5042 = vrot.lane.b32.xlu0 %v4875, 16
    %v5043 = vpop.permute.xlu0 %5042
    %5048 = vrot.lane.b32.xlu0 %v4951, 24
    %v5049 = vpop.permute.xlu0 %5048
    %5050 = vrot.lane.b32.xlu0 %v5027, 24
    %v5051 = vpop.permute.xlu0 %5050
    %v5054 = vsel %vm337, %v4495, %v5033
    %v5055 = vsel %vm337, %v4571, %v5035
    %v5056 = vsel %vm1682, %v5054, %v5041
    %v5057 = vsel %vm1682, %v5055, %v5043
    %v5058 = vsel %vm1685, %v5056, %v5049
    %v5059 = vsel %vm1685, %v5057, %v5051
    %v5060 = vlaneseq
    %v5061 = vshrl.u32 %v5060, 7
    %v5062 = vsub.s32 0, %v5061
    %v5063 = vrot.slane %v3709, %v5062
    %v5065 = vsel %vm115, %v5058, 0
    %v5068 = vsel %vm115, %v5059, 0
    %5070 = vmatprep.subr.mxu0 0.0
    %5071 = vmatpush1.msra.mxu0 0.0
    %5072 = vmatprep.subr.mxu0 0.0
    %5073 = vmatpush1.msra.mxu0 0.0
    %5074 = vmatprep.subr.mxu0 0.0
    %5075 = vmatpush1.msra.mxu0 0.0
    %5076 = vmatprep.subr.mxu0 0.0
    %5077 = vmatpush1.msra.mxu0 0.0
    %5078 = vmatprep.subr.mxu0 0.0
    %5079 = vmatpush1.msra.mxu0 0.0
    %5080 = vmatprep.subr.mxu0 0.0
    %5081 = vmatpush1.msra.mxu0 0.0
    %5082 = vmatprep.subr.mxu0 0.0
    %5083 = vmatpush1.msra.mxu0 0.0
    %5084 = vmatprep.subr.mxu0 0.0
    %5085 = vmatpush1.msra.mxu0 0.0
    %5086 = vmatprep.subr.mxu0 0.0
    %5087 = vmatpush1.msra.mxu0 0.0
    %5088 = vmatprep.subr.mxu0 0.0
    %5089 = vmatpush1.msra.mxu0 0.0
    %5090 = vmatprep.subr.mxu0 0.0
    %5091 = vmatpush1.msra.mxu0 0.0
    %5092 = vmatprep.subr.mxu0 0.0
    %5093 = vmatpush1.msra.mxu0 0.0
    %5094 = vmatprep.subr.mxu0 0.0
    %5095 = vmatpush1.msra.mxu0 %v3708
    %5096 = vmatprep.subr.mxu0 0.0
    %5097 = vmatpush1.msra.mxu0 %v3707
    %5098 = vmatprep.subr.mxu0 0.0
    %5099 = vmatpush1.msra.mxu0 %v3706
    %5100 = vmatprep.subr.mxu0 0.0
    %5101 = vmatpush1.msra.mxu0 %v3705
    %5102 = vmatprep.subr.mxu0 0.0
    %5103 = vmatpush2.msra.mxu0 0.0
    %5104 = vmatprep.subr.mxu0 0.0
    %5105 = vmatpush2.msra.mxu0 0.0
    %5106 = vmatprep.subr.mxu0 0.0
    %5107 = vmatpush2.msra.mxu0 0.0
    %5108 = vmatprep.subr.mxu0 0.0
    %5109 = vmatpush2.msra.mxu0 0.0
    %5110 = vmatprep.subr.mxu0 0.0
    %5111 = vmatpush2.msra.mxu0 0.0
    %5112 = vmatprep.subr.mxu0 0.0
    %5113 = vmatpush2.msra.mxu0 0.0
    %5114 = vmatprep.subr.mxu0 0.0
    %5115 = vmatpush2.msra.mxu0 0.0
    %5116 = vmatprep.subr.mxu0 0.0
    %5117 = vmatpush2.msra.mxu0 0.0
    %5118 = vmatprep.subr.mxu0 0.0
    %5119 = vmatpush2.msra.mxu0 0.0
    %5120 = vmatprep.subr.mxu0 0.0
    %5121 = vmatpush2.msra.mxu0 0.0
    %5122 = vmatprep.subr.mxu0 0.0
    %5123 = vmatpush2.msra.mxu0 0.0
    %5124 = vmatprep.subr.mxu0 0.0
    %5125 = vmatpush2.msra.mxu0 0.0
    %5126 = vmatprep.subr.mxu0 0.0
    %5127 = vmatpush2.msra.mxu0 0.0
    %5128 = vmatprep.subr.mxu0 0.0
    %5129 = vmatpush2.msra.mxu0 0.0
    %5130 = vmatprep.subr.mxu0 0.0
    %5131 = vmatpush2.msra.mxu0 0.0
    %5132 = vmatprep.subr.mxu0 0.0
    %5133 = vmatpush2.msra.mxu0 0.0
    %5134 = vmatprep.mubr.f32.mxu0 0.0
    %5135 = vmatmul.mubr.f32.gmra.mxu0 %v5065
    %v5136 = vpop.f32.mrf.mxu0
    %v5137 = vadd.f32 %v5063, %v5136
    %v5138 = vpop.f32.mrf.mxu0
    %5139 = vmatprep.mubr.f32.mxu0 0.0
    %5140 = vmatmul.mubr.f32.gmra.mxu0 %v5068
    %v5141 = vpop.f32.mrf.mxu0
    %v5142 = vadd.f32 %v5063, %v5141
    %v5143 = vpop.f32.mrf.mxu0
    %5144 = vdwg.mxu0
    %v5145 = vadd.f32 %v5137, %v3569
    %v5146 = vadd.f32 %v5142, %v3570
    %v5147 = vld [vmem:[#allocation10 + $0x4] sm:$0x1]
    %v5148 = vsel %vm115, %v5145, 0.0
    %5149 = vadd.xlane.f32.xlu0 %v5148
    %v5150 = vpop.xlane.xlu0 %5149
    %v5151 = vsel %vm115, %v5146, 0.0
    %5152 = vadd.xlane.f32.xlu0 %v5151
    %v5153 = vpop.xlane.xlu0 %5152
    %v5154 = vmul.f32 %v5150, %v204
    %v5155 = vmul.f32 %v5153, %v204
    %v5156 = vsub.f32 %v5145, %v5154
    %v5157 = vsub.f32 %v5146, %v5155
    %v5158 = vmul.f32 %v5156, %v5156
    %v5159 = vmul.f32 %v5157, %v5157
    %v5160 = vsel %vm115, %v5158, 0.0
    %5161 = vadd.xlane.f32.xlu0 %v5160
    %v5162 = vpop.xlane.xlu0 %5161
    %v5163 = vsel %vm115, %v5159, 0.0
    %5164 = vadd.xlane.f32.xlu0 %v5163
    %v5165 = vpop.xlane.xlu0 %5164
    %v5166 = vmul.f32 %v5162, %v204
    %v5167 = vmul.f32 %v5165, %v204
    %v5168 = vadd.f32 %v5166, 1e-05
    %v5169 = vadd.f32 %v5167, 1e-05
    %v5170 = vrsqrt.pop %v5168
    %v5171 = vrsqrt.pop %v5169
    %v5172 = vmul.f32 %v5156, %v5170
    %v5173 = vmul.f32 %v5157, %v5171
    %v5174 = vlaneseq
    %v5175 = vshrl.u32 %v5174, 7
    %v5176 = vsub.s32 0, %v5175
    %v5177 = vrot.slane %v5147, %v5176
    %v5178 = vmul.f32 %v5172, %v5177
    %v5179 = vmul.f32 %v5173, %v5177
    %s5180 = scalar_lea.vmem %s4, 32
    %v5181 = vld [vmem:[%s5180] sm:$0xff]
    %v5182 = vld [vmem:[%s5180 + $0x8] sm:$0xff]
    %v5183 = vld [vmem:[%s5180 + $0x10] sm:$0xff]
    %v5184 = vld [vmem:[%s5180 + $0x18] sm:$0xff]
    %v5186 = vsel %vm115, %v5178, 0
    %v5189 = vsel %vm115, %v5179, 0
    %5191 = vmatprep.subr.mxu0 0.0
    %5192 = vmatpush1.msra.mxu0 0.0
    %5193 = vmatprep.subr.mxu0 0.0
    %5194 = vmatpush1.msra.mxu0 0.0
    %5195 = vmatprep.subr.mxu0 0.0
    %5196 = vmatpush1.msra.mxu0 0.0
    %5197 = vmatprep.subr.mxu0 0.0
    %5198 = vmatpush1.msra.mxu0 0.0
    %5199 = vmatprep.subr.mxu0 0.0
    %5200 = vmatpush1.msra.mxu0 0.0
    %5201 = vmatprep.subr.mxu0 0.0
    %5202 = vmatpush1.msra.mxu0 0.0
    %5203 = vmatprep.subr.mxu0 0.0
    %5204 = vmatpush1.msra.mxu0 0.0
    %5205 = vmatprep.subr.mxu0 0.0
    %5206 = vmatpush1.msra.mxu0 0.0
    %5207 = vmatprep.subr.mxu0 0.0
    %5208 = vmatpush1.msra.mxu0 0.0
    %5209 = vmatprep.subr.mxu0 0.0
    %5210 = vmatpush1.msra.mxu0 0.0
    %5211 = vmatprep.subr.mxu0 0.0
    %5212 = vmatpush1.msra.mxu0 0.0
    %5213 = vmatprep.subr.mxu0 0.0
    %5214 = vmatpush1.msra.mxu0 0.0
    %5215 = vmatprep.subr.mxu0 0.0
    %5216 = vmatpush1.msra.mxu0 %v5184
    %5217 = vmatprep.subr.mxu0 0.0
    %5218 = vmatpush1.msra.mxu0 %v5183
    %5219 = vmatprep.subr.mxu0 0.0
    %5220 = vmatpush1.msra.mxu0 %v5182
    %5221 = vmatprep.subr.mxu0 0.0
    %5222 = vmatpush1.msra.mxu0 %v5181
    %5223 = vmatprep.subr.mxu0 0.0
    %5224 = vmatpush2.msra.mxu0 0.0
    %5225 = vmatprep.subr.mxu0 0.0
    %5226 = vmatpush2.msra.mxu0 0.0
    %5227 = vmatprep.subr.mxu0 0.0
    %5228 = vmatpush2.msra.mxu0 0.0
    %5229 = vmatprep.subr.mxu0 0.0
    %5230 = vmatpush2.msra.mxu0 0.0
    %5231 = vmatprep.subr.mxu0 0.0
    %5232 = vmatpush2.msra.mxu0 0.0
    %5233 = vmatprep.subr.mxu0 0.0
    %5234 = vmatpush2.msra.mxu0 0.0
    %5235 = vmatprep.subr.mxu0 0.0
    %5236 = vmatpush2.msra.mxu0 0.0
    %5237 = vmatprep.subr.mxu0 0.0
    %5238 = vmatpush2.msra.mxu0 0.0
    %5239 = vmatprep.subr.mxu0 0.0
    %5240 = vmatpush2.msra.mxu0 0.0
    %5241 = vmatprep.subr.mxu0 0.0
    %5242 = vmatpush2.msra.mxu0 0.0
    %5243 = vmatprep.subr.mxu0 0.0
    %5244 = vmatpush2.msra.mxu0 0.0
    %5245 = vmatprep.subr.mxu0 0.0
    %5246 = vmatpush2.msra.mxu0 0.0
    %5247 = vmatprep.subr.mxu0 0.0
    %5248 = vmatpush2.msra.mxu0 0.0
    %5249 = vmatprep.subr.mxu0 0.0
    %5250 = vmatpush2.msra.mxu0 0.0
    %5251 = vmatprep.subr.mxu0 0.0
    %5252 = vmatpush2.msra.mxu0 0.0
    %5253 = vmatprep.subr.mxu0 0.0
    %5254 = vmatpush2.msra.mxu0 0.0
    %5255 = vmatprep.mubr.f32.mxu0 0.0
    %5256 = vmatmul.mubr.f32.gmra.mxu0 %v5186
    %v5257 = vpop.f32.mrf.mxu0
    %v5258 = vadd.f32 0.0, %v5257
    %v5259 = vpop.f32.mrf.mxu0
    %5260 = vmatprep.mubr.f32.mxu0 0.0
    %5261 = vmatmul.mubr.f32.gmra.mxu0 %v5189
    %v5262 = vpop.f32.mrf.mxu0
    %v5263 = vadd.f32 0.0, %v5262
    %v5264 = vpop.f32.mrf.mxu0
    %5265 = vdwg.mxu0
    %5268 = vrot.lane.b32.xlu0 %v5258, 120
    %v5269 = vpop.permute.xlu0 %5268
    %5270 = vrot.lane.b32.xlu0 %v5263, 120
    %v5271 = vpop.permute.xlu0 %5270
    %5272 = vrot.lane.b32.xlu0 %v5258, 112
    %v5273 = vpop.permute.xlu0 %5272
    %5274 = vrot.lane.b32.xlu0 %v5263, 112
    %v5275 = vpop.permute.xlu0 %5274
    %5276 = vrot.lane.b32.xlu0 %v5258, 104
    %v5277 = vpop.permute.xlu0 %5276
    %5278 = vrot.lane.b32.xlu0 %v5263, 104
    %v5279 = vpop.permute.xlu0 %5278
    %s5280 = scalar_lea.vmem %s6, 96
    %v5281 = vld [vmem:[%s5280] sm:$0xff]
    %v5282 = vld [vmem:[%s5280 + $0x8] sm:$0xff]
    %v5283 = vld [vmem:[%s5280 + $0x10] sm:$0xff]
    %v5284 = vld [vmem:[%s5280 + $0x18] sm:$0xff]
    %v5285 = vld [vmem:[#allocation10 + $0xa] sm:$0x1]
    %5286 = vrot.lane.b32.xlu0 %v189, 64
    %v5287 = vpop.permute.xlu0 %5286
    %v5288 = vsel %vm337, %v5287, 0
    %v5290 = vsel %vm337, %v5258, 0
    %5292 = vmatprep.subr.mxu0 0.0
    %5293 = vmatpush1.xpose.msra.mxu0 0.0
    %5294 = vmatprep.subr.mxu0 0.0
    %5295 = vmatpush1.xpose.msra.mxu0 0.0
    %5296 = vmatprep.subr.mxu0 0.0
    %5297 = vmatpush1.xpose.msra.mxu0 0.0
    %5298 = vmatprep.subr.mxu0 0.0
    %5299 = vmatpush1.xpose.msra.mxu0 0.0
    %5300 = vmatprep.subr.mxu0 0.0
    %5301 = vmatpush1.xpose.msra.mxu0 0.0
    %5302 = vmatprep.subr.mxu0 0.0
    %5303 = vmatpush1.xpose.msra.mxu0 0.0
    %5304 = vmatprep.subr.mxu0 0.0
    %5305 = vmatpush1.xpose.msra.mxu0 0.0
    %5306 = vmatprep.subr.mxu0 0.0
    %5307 = vmatpush1.xpose.msra.mxu0 0.0
    %5308 = vmatprep.subr.mxu0 0.0
    %5309 = vmatpush1.xpose.msra.mxu0 0.0
    %5310 = vmatprep.subr.mxu0 0.0
    %5311 = vmatpush1.xpose.msra.mxu0 0.0
    %5312 = vmatprep.subr.mxu0 0.0
    %5313 = vmatpush1.xpose.msra.mxu0 0.0
    %5314 = vmatprep.subr.mxu0 0.0
    %5315 = vmatpush1.xpose.msra.mxu0 0.0
    %5316 = vmatprep.subr.mxu0 0.0
    %5317 = vmatpush1.xpose.msra.mxu0 0.0
    %5318 = vmatprep.subr.mxu0 0.0
    %5319 = vmatpush1.xpose.msra.mxu0 0.0
    %5320 = vmatprep.subr.mxu0 0.0
    %5321 = vmatpush1.xpose.msra.mxu0 0.0
    %5322 = vmatprep.subr.mxu0 0.0
    %5323 = vmatpush1.xpose.msra.mxu0 %v5290
    %5324 = vmatprep.subr.mxu0 0.0
    %5325 = vmatpush2.xpose.msra.mxu0 0.0
    %5326 = vmatprep.subr.mxu0 0.0
    %5327 = vmatpush2.xpose.msra.mxu0 0.0
    %5328 = vmatprep.subr.mxu0 0.0
    %5329 = vmatpush2.xpose.msra.mxu0 0.0
    %5330 = vmatprep.subr.mxu0 0.0
    %5331 = vmatpush2.xpose.msra.mxu0 0.0
    %5332 = vmatprep.subr.mxu0 0.0
    %5333 = vmatpush2.xpose.msra.mxu0 0.0
    %5334 = vmatprep.subr.mxu0 0.0
    %5335 = vmatpush2.xpose.msra.mxu0 0.0
    %5336 = vmatprep.subr.mxu0 0.0
    %5337 = vmatpush2.xpose.msra.mxu0 0.0
    %5338 = vmatprep.subr.mxu0 0.0
    %5339 = vmatpush2.xpose.msra.mxu0 0.0
    %5340 = vmatprep.subr.mxu0 0.0
    %5341 = vmatpush2.xpose.msra.mxu0 0.0
    %5342 = vmatprep.subr.mxu0 0.0
    %5343 = vmatpush2.xpose.msra.mxu0 0.0
    %5344 = vmatprep.subr.mxu0 0.0
    %5345 = vmatpush2.xpose.msra.mxu0 0.0
    %5346 = vmatprep.subr.mxu0 0.0
    %5347 = vmatpush2.xpose.msra.mxu0 0.0
    %5348 = vmatprep.subr.mxu0 0.0
    %5349 = vmatpush2.xpose.msra.mxu0 0.0
    %5350 = vmatprep.subr.mxu0 0.0
    %5351 = vmatpush2.xpose.msra.mxu0 0.0
    %5352 = vmatprep.subr.mxu0 0.0
    %5353 = vmatpush2.xpose.msra.mxu0 0.0
    %5354 = vmatprep.subr.mxu0 0.0
    %5355 = vmatpush2.xpose.msra.mxu0 0.0
    %5356 = vmatprep.mubr.f32.mxu0 0.0
    %5357 = vmatmul.mubr.f32.gmra.mxu0 %v5288
    %v5358 = vpop.f32.mrf.mxu0
    %v5359 = vadd.f32 0.0, %v5358
    %v5360 = vpop.f32.mrf.mxu0
    %5361 = vdwg.mxu0
    %5362 = vrot.lane.b32.xlu0 %v194, 64
    %v5363 = vpop.permute.xlu0 %5362
    %v5364 = vsel %vm337, %v5363, 0
    %v5366 = vsel %vm337, %v5263, 0
    %5368 = vmatprep.subr.mxu0 0.0
    %5369 = vmatpush1.xpose.msra.mxu0 0.0
    %5370 = vmatprep.subr.mxu0 0.0
    %5371 = vmatpush1.xpose.msra.mxu0 0.0
    %5372 = vmatprep.subr.mxu0 0.0
    %5373 = vmatpush1.xpose.msra.mxu0 0.0
    %5374 = vmatprep.subr.mxu0 0.0
    %5375 = vmatpush1.xpose.msra.mxu0 0.0
    %5376 = vmatprep.subr.mxu0 0.0
    %5377 = vmatpush1.xpose.msra.mxu0 0.0
    %5378 = vmatprep.subr.mxu0 0.0
    %5379 = vmatpush1.xpose.msra.mxu0 0.0
    %5380 = vmatprep.subr.mxu0 0.0
    %5381 = vmatpush1.xpose.msra.mxu0 0.0
    %5382 = vmatprep.subr.mxu0 0.0
    %5383 = vmatpush1.xpose.msra.mxu0 0.0
    %5384 = vmatprep.subr.mxu0 0.0
    %5385 = vmatpush1.xpose.msra.mxu0 0.0
    %5386 = vmatprep.subr.mxu0 0.0
    %5387 = vmatpush1.xpose.msra.mxu0 0.0
    %5388 = vmatprep.subr.mxu0 0.0
    %5389 = vmatpush1.xpose.msra.mxu0 0.0
    %5390 = vmatprep.subr.mxu0 0.0
    %5391 = vmatpush1.xpose.msra.mxu0 0.0
    %5392 = vmatprep.subr.mxu0 0.0
    %5393 = vmatpush1.xpose.msra.mxu0 0.0
    %5394 = vmatprep.subr.mxu0 0.0
    %5395 = vmatpush1.xpose.msra.mxu0 0.0
    %5396 = vmatprep.subr.mxu0 0.0
    %5397 = vmatpush1.xpose.msra.mxu0 0.0
    %5398 = vmatprep.subr.mxu0 0.0
    %5399 = vmatpush1.xpose.msra.mxu0 %v5366
    %5400 = vmatprep.subr.mxu0 0.0
    %5401 = vmatpush2.xpose.msra.mxu0 0.0
    %5402 = vmatprep.subr.mxu0 0.0
    %5403 = vmatpush2.xpose.msra.mxu0 0.0
    %5404 = vmatprep.subr.mxu0 0.0
    %5405 = vmatpush2.xpose.msra.mxu0 0.0
    %5406 = vmatprep.subr.mxu0 0.0
    %5407 = vmatpush2.xpose.msra.mxu0 0.0
    %5408 = vmatprep.subr.mxu0 0.0
    %5409 = vmatpush2.xpose.msra.mxu0 0.0
    %5410 = vmatprep.subr.mxu0 0.0
    %5411 = vmatpush2.xpose.msra.mxu0 0.0
    %5412 = vmatprep.subr.mxu0 0.0
    %5413 = vmatpush2.xpose.msra.mxu0 0.0
    %5414 = vmatprep.subr.mxu0 0.0
    %5415 = vmatpush2.xpose.msra.mxu0 0.0
    %5416 = vmatprep.subr.mxu0 0.0
    %5417 = vmatpush2.xpose.msra.mxu0 0.0
    %5418 = vmatprep.subr.mxu0 0.0
    %5419 = vmatpush2.xpose.msra.mxu0 0.0
    %5420 = vmatprep.subr.mxu0 0.0
    %5421 = vmatpush2.xpose.msra.mxu0 0.0
    %5422 = vmatprep.subr.mxu0 0.0
    %5423 = vmatpush2.xpose.msra.mxu0 0.0
    %5424 = vmatprep.subr.mxu0 0.0
    %5425 = vmatpush2.xpose.msra.mxu0 0.0
    %5426 = vmatprep.subr.mxu0 0.0
    %5427 = vmatpush2.xpose.msra.mxu0 0.0
    %5428 = vmatprep.subr.mxu0 0.0
    %5429 = vmatpush2.xpose.msra.mxu0 0.0
    %5430 = vmatprep.subr.mxu0 0.0
    %5431 = vmatpush2.xpose.msra.mxu0 0.0
    %5432 = vmatprep.mubr.f32.mxu0 0.0
    %5433 = vmatmul.mubr.f32.gmra.mxu0 %v5364
    %v5434 = vpop.f32.mrf.mxu0
    %v5435 = vadd.f32 0.0, %v5434
    %v5436 = vpop.f32.mrf.mxu0
    %5437 = vdwg.mxu0
    %5438 = vrot.lane.b32.xlu0 %v1896, 64
    %v5439 = vpop.permute.xlu0 %5438
    %v5440 = vsel %vm337, %v5439, 0
    %v5442 = vsel %vm337, %v5269, 0
    %5444 = vmatprep.subr.mxu0 0.0
    %5445 = vmatpush1.xpose.msra.mxu0 0.0
    %5446 = vmatprep.subr.mxu0 0.0
    %5447 = vmatpush1.xpose.msra.mxu0 0.0
    %5448 = vmatprep.subr.mxu0 0.0
    %5449 = vmatpush1.xpose.msra.mxu0 0.0
    %5450 = vmatprep.subr.mxu0 0.0
    %5451 = vmatpush1.xpose.msra.mxu0 0.0
    %5452 = vmatprep.subr.mxu0 0.0
    %5453 = vmatpush1.xpose.msra.mxu0 0.0
    %5454 = vmatprep.subr.mxu0 0.0
    %5455 = vmatpush1.xpose.msra.mxu0 0.0
    %5456 = vmatprep.subr.mxu0 0.0
    %5457 = vmatpush1.xpose.msra.mxu0 0.0
    %5458 = vmatprep.subr.mxu0 0.0
    %5459 = vmatpush1.xpose.msra.mxu0 0.0
    %5460 = vmatprep.subr.mxu0 0.0
    %5461 = vmatpush1.xpose.msra.mxu0 0.0
    %5462 = vmatprep.subr.mxu0 0.0
    %5463 = vmatpush1.xpose.msra.mxu0 0.0
    %5464 = vmatprep.subr.mxu0 0.0
    %5465 = vmatpush1.xpose.msra.mxu0 0.0
    %5466 = vmatprep.subr.mxu0 0.0
    %5467 = vmatpush1.xpose.msra.mxu0 0.0
    %5468 = vmatprep.subr.mxu0 0.0
    %5469 = vmatpush1.xpose.msra.mxu0 0.0
    %5470 = vmatprep.subr.mxu0 0.0
    %5471 = vmatpush1.xpose.msra.mxu0 0.0
    %5472 = vmatprep.subr.mxu0 0.0
    %5473 = vmatpush1.xpose.msra.mxu0 0.0
    %5474 = vmatprep.subr.mxu0 0.0
    %5475 = vmatpush1.xpose.msra.mxu0 %v5442
    %5476 = vmatprep.subr.mxu0 0.0
    %5477 = vmatpush2.xpose.msra.mxu0 0.0
    %5478 = vmatprep.subr.mxu0 0.0
    %5479 = vmatpush2.xpose.msra.mxu0 0.0
    %5480 = vmatprep.subr.mxu0 0.0
    %5481 = vmatpush2.xpose.msra.mxu0 0.0
    %5482 = vmatprep.subr.mxu0 0.0
    %5483 = vmatpush2.xpose.msra.mxu0 0.0
    %5484 = vmatprep.subr.mxu0 0.0
    %5485 = vmatpush2.xpose.msra.mxu0 0.0
    %5486 = vmatprep.subr.mxu0 0.0
    %5487 = vmatpush2.xpose.msra.mxu0 0.0
    %5488 = vmatprep.subr.mxu0 0.0
    %5489 = vmatpush2.xpose.msra.mxu0 0.0
    %5490 = vmatprep.subr.mxu0 0.0
    %5491 = vmatpush2.xpose.msra.mxu0 0.0
    %5492 = vmatprep.subr.mxu0 0.0
    %5493 = vmatpush2.xpose.msra.mxu0 0.0
    %5494 = vmatprep.subr.mxu0 0.0
    %5495 = vmatpush2.xpose.msra.mxu0 0.0
    %5496 = vmatprep.subr.mxu0 0.0
    %5497 = vmatpush2.xpose.msra.mxu0 0.0
    %5498 = vmatprep.subr.mxu0 0.0
    %5499 = vmatpush2.xpose.msra.mxu0 0.0
    %5500 = vmatprep.subr.mxu0 0.0
    %5501 = vmatpush2.xpose.msra.mxu0 0.0
    %5502 = vmatprep.subr.mxu0 0.0
    %5503 = vmatpush2.xpose.msra.mxu0 0.0
    %5504 = vmatprep.subr.mxu0 0.0
    %5505 = vmatpush2.xpose.msra.mxu0 0.0
    %5506 = vmatprep.subr.mxu0 0.0
    %5507 = vmatpush2.xpose.msra.mxu0 0.0
    %5508 = vmatprep.mubr.f32.mxu0 0.0
    %5509 = vmatmul.mubr.f32.gmra.mxu0 %v5440
    %v5510 = vpop.f32.mrf.mxu0
    %v5511 = vadd.f32 0.0, %v5510
    %v5512 = vpop.f32.mrf.mxu0
    %5513 = vdwg.mxu0
    %5514 = vrot.lane.b32.xlu0 %v1898, 64
    %v5515 = vpop.permute.xlu0 %5514
    %v5516 = vsel %vm337, %v5515, 0
    %v5518 = vsel %vm337, %v5271, 0
    %5520 = vmatprep.subr.mxu0 0.0
    %5521 = vmatpush1.xpose.msra.mxu0 0.0
    %5522 = vmatprep.subr.mxu0 0.0
    %5523 = vmatpush1.xpose.msra.mxu0 0.0
    %5524 = vmatprep.subr.mxu0 0.0
    %5525 = vmatpush1.xpose.msra.mxu0 0.0
    %5526 = vmatprep.subr.mxu0 0.0
    %5527 = vmatpush1.xpose.msra.mxu0 0.0
    %5528 = vmatprep.subr.mxu0 0.0
    %5529 = vmatpush1.xpose.msra.mxu0 0.0
    %5530 = vmatprep.subr.mxu0 0.0
    %5531 = vmatpush1.xpose.msra.mxu0 0.0
    %5532 = vmatprep.subr.mxu0 0.0
    %5533 = vmatpush1.xpose.msra.mxu0 0.0
    %5534 = vmatprep.subr.mxu0 0.0
    %5535 = vmatpush1.xpose.msra.mxu0 0.0
    %5536 = vmatprep.subr.mxu0 0.0
    %5537 = vmatpush1.xpose.msra.mxu0 0.0
    %5538 = vmatprep.subr.mxu0 0.0
    %5539 = vmatpush1.xpose.msra.mxu0 0.0
    %5540 = vmatprep.subr.mxu0 0.0
    %5541 = vmatpush1.xpose.msra.mxu0 0.0
    %5542 = vmatprep.subr.mxu0 0.0
    %5543 = vmatpush1.xpose.msra.mxu0 0.0
    %5544 = vmatprep.subr.mxu0 0.0
    %5545 = vmatpush1.xpose.msra.mxu0 0.0
    %5546 = vmatprep.subr.mxu0 0.0
    %5547 = vmatpush1.xpose.msra.mxu0 0.0
    %5548 = vmatprep.subr.mxu0 0.0
    %5549 = vmatpush1.xpose.msra.mxu0 0.0
    %5550 = vmatprep.subr.mxu0 0.0
    %5551 = vmatpush1.xpose.msra.mxu0 %v5518
    %5552 = vmatprep.subr.mxu0 0.0
    %5553 = vmatpush2.xpose.msra.mxu0 0.0
    %5554 = vmatprep.subr.mxu0 0.0
    %5555 = vmatpush2.xpose.msra.mxu0 0.0
    %5556 = vmatprep.subr.mxu0 0.0
    %5557 = vmatpush2.xpose.msra.mxu0 0.0
    %5558 = vmatprep.subr.mxu0 0.0
    %5559 = vmatpush2.xpose.msra.mxu0 0.0
    %5560 = vmatprep.subr.mxu0 0.0
    %5561 = vmatpush2.xpose.msra.mxu0 0.0
    %5562 = vmatprep.subr.mxu0 0.0
    %5563 = vmatpush2.xpose.msra.mxu0 0.0
    %5564 = vmatprep.subr.mxu0 0.0
    %5565 = vmatpush2.xpose.msra.mxu0 0.0
    %5566 = vmatprep.subr.mxu0 0.0
    %5567 = vmatpush2.xpose.msra.mxu0 0.0
    %5568 = vmatprep.subr.mxu0 0.0
    %5569 = vmatpush2.xpose.msra.mxu0 0.0
    %5570 = vmatprep.subr.mxu0 0.0
    %5571 = vmatpush2.xpose.msra.mxu0 0.0
    %5572 = vmatprep.subr.mxu0 0.0
    %5573 = vmatpush2.xpose.msra.mxu0 0.0
    %5574 = vmatprep.subr.mxu0 0.0
    %5575 = vmatpush2.xpose.msra.mxu0 0.0
    %5576 = vmatprep.subr.mxu0 0.0
    %5577 = vmatpush2.xpose.msra.mxu0 0.0
    %5578 = vmatprep.subr.mxu0 0.0
    %5579 = vmatpush2.xpose.msra.mxu0 0.0
    %5580 = vmatprep.subr.mxu0 0.0
    %5581 = vmatpush2.xpose.msra.mxu0 0.0
    %5582 = vmatprep.subr.mxu0 0.0
    %5583 = vmatpush2.xpose.msra.mxu0 0.0
    %5584 = vmatprep.mubr.f32.mxu0 0.0
    %5585 = vmatmul.mubr.f32.gmra.mxu0 %v5516
    %v5586 = vpop.f32.mrf.mxu0
    %v5587 = vadd.f32 0.0, %v5586
    %v5588 = vpop.f32.mrf.mxu0
    %5589 = vdwg.mxu0
    %5590 = vrot.lane.b32.xlu0 %v1900, 64
    %v5591 = vpop.permute.xlu0 %5590
    %v5592 = vsel %vm337, %v5591, 0
    %v5594 = vsel %vm337, %v5273, 0
    %5596 = vmatprep.subr.mxu0 0.0
    %5597 = vmatpush1.xpose.msra.mxu0 0.0
    %5598 = vmatprep.subr.mxu0 0.0
    %5599 = vmatpush1.xpose.msra.mxu0 0.0
    %5600 = vmatprep.subr.mxu0 0.0
    %5601 = vmatpush1.xpose.msra.mxu0 0.0
    %5602 = vmatprep.subr.mxu0 0.0
    %5603 = vmatpush1.xpose.msra.mxu0 0.0
    %5604 = vmatprep.subr.mxu0 0.0
    %5605 = vmatpush1.xpose.msra.mxu0 0.0
    %5606 = vmatprep.subr.mxu0 0.0
    %5607 = vmatpush1.xpose.msra.mxu0 0.0
    %5608 = vmatprep.subr.mxu0 0.0
    %5609 = vmatpush1.xpose.msra.mxu0 0.0
    %5610 = vmatprep.subr.mxu0 0.0
    %5611 = vmatpush1.xpose.msra.mxu0 0.0
    %5612 = vmatprep.subr.mxu0 0.0
    %5613 = vmatpush1.xpose.msra.mxu0 0.0
    %5614 = vmatprep.subr.mxu0 0.0
    %5615 = vmatpush1.xpose.msra.mxu0 0.0
    %5616 = vmatprep.subr.mxu0 0.0
    %5617 = vmatpush1.xpose.msra.mxu0 0.0
    %5618 = vmatprep.subr.mxu0 0.0
    %5619 = vmatpush1.xpose.msra.mxu0 0.0
    %5620 = vmatprep.subr.mxu0 0.0
    %5621 = vmatpush1.xpose.msra.mxu0 0.0
    %5622 = vmatprep.subr.mxu0 0.0
    %5623 = vmatpush1.xpose.msra.mxu0 0.0
    %5624 = vmatprep.subr.mxu0 0.0
    %5625 = vmatpush1.xpose.msra.mxu0 0.0
    %5626 = vmatprep.subr.mxu0 0.0
    %5627 = vmatpush1.xpose.msra.mxu0 %v5594
    %5628 = vmatprep.subr.mxu0 0.0
    %5629 = vmatpush2.xpose.msra.mxu0 0.0
    %5630 = vmatprep.subr.mxu0 0.0
    %5631 = vmatpush2.xpose.msra.mxu0 0.0
    %5632 = vmatprep.subr.mxu0 0.0
    %5633 = vmatpush2.xpose.msra.mxu0 0.0
    %5634 = vmatprep.subr.mxu0 0.0
    %5635 = vmatpush2.xpose.msra.mxu0 0.0
    %5636 = vmatprep.subr.mxu0 0.0
    %5637 = vmatpush2.xpose.msra.mxu0 0.0
    %5638 = vmatprep.subr.mxu0 0.0
    %5639 = vmatpush2.xpose.msra.mxu0 0.0
    %5640 = vmatprep.subr.mxu0 0.0
    %5641 = vmatpush2.xpose.msra.mxu0 0.0
    %5642 = vmatprep.subr.mxu0 0.0
    %5643 = vmatpush2.xpose.msra.mxu0 0.0
    %5644 = vmatprep.subr.mxu0 0.0
    %5645 = vmatpush2.xpose.msra.mxu0 0.0
    %5646 = vmatprep.subr.mxu0 0.0
    %5647 = vmatpush2.xpose.msra.mxu0 0.0
    %5648 = vmatprep.subr.mxu0 0.0
    %5649 = vmatpush2.xpose.msra.mxu0 0.0
    %5650 = vmatprep.subr.mxu0 0.0
    %5651 = vmatpush2.xpose.msra.mxu0 0.0
    %5652 = vmatprep.subr.mxu0 0.0
    %5653 = vmatpush2.xpose.msra.mxu0 0.0
    %5654 = vmatprep.subr.mxu0 0.0
    %5655 = vmatpush2.xpose.msra.mxu0 0.0
    %5656 = vmatprep.subr.mxu0 0.0
    %5657 = vmatpush2.xpose.msra.mxu0 0.0
    %5658 = vmatprep.subr.mxu0 0.0
    %5659 = vmatpush2.xpose.msra.mxu0 0.0
    %5660 = vmatprep.mubr.f32.mxu0 0.0
    %5661 = vmatmul.mubr.f32.gmra.mxu0 %v5592
    %v5662 = vpop.f32.mrf.mxu0
    %v5663 = vadd.f32 0.0, %v5662
    %v5664 = vpop.f32.mrf.mxu0
    %5665 = vdwg.mxu0
    %5666 = vrot.lane.b32.xlu0 %v1902, 64
    %v5667 = vpop.permute.xlu0 %5666
    %v5668 = vsel %vm337, %v5667, 0
    %v5670 = vsel %vm337, %v5275, 0
    %5672 = vmatprep.subr.mxu0 0.0
    %5673 = vmatpush1.xpose.msra.mxu0 0.0
    %5674 = vmatprep.subr.mxu0 0.0
    %5675 = vmatpush1.xpose.msra.mxu0 0.0
    %5676 = vmatprep.subr.mxu0 0.0
    %5677 = vmatpush1.xpose.msra.mxu0 0.0
    %5678 = vmatprep.subr.mxu0 0.0
    %5679 = vmatpush1.xpose.msra.mxu0 0.0
    %5680 = vmatprep.subr.mxu0 0.0
    %5681 = vmatpush1.xpose.msra.mxu0 0.0
    %5682 = vmatprep.subr.mxu0 0.0
    %5683 = vmatpush1.xpose.msra.mxu0 0.0
    %5684 = vmatprep.subr.mxu0 0.0
    %5685 = vmatpush1.xpose.msra.mxu0 0.0
    %5686 = vmatprep.subr.mxu0 0.0
    %5687 = vmatpush1.xpose.msra.mxu0 0.0
    %5688 = vmatprep.subr.mxu0 0.0
    %5689 = vmatpush1.xpose.msra.mxu0 0.0
    %5690 = vmatprep.subr.mxu0 0.0
    %5691 = vmatpush1.xpose.msra.mxu0 0.0
    %5692 = vmatprep.subr.mxu0 0.0
    %5693 = vmatpush1.xpose.msra.mxu0 0.0
    %5694 = vmatprep.subr.mxu0 0.0
    %5695 = vmatpush1.xpose.msra.mxu0 0.0
    %5696 = vmatprep.subr.mxu0 0.0
    %5697 = vmatpush1.xpose.msra.mxu0 0.0
    %5698 = vmatprep.subr.mxu0 0.0
    %5699 = vmatpush1.xpose.msra.mxu0 0.0
    %5700 = vmatprep.subr.mxu0 0.0
    %5701 = vmatpush1.xpose.msra.mxu0 0.0
    %5702 = vmatprep.subr.mxu0 0.0
    %5703 = vmatpush1.xpose.msra.mxu0 %v5670
    %5704 = vmatprep.subr.mxu0 0.0
    %5705 = vmatpush2.xpose.msra.mxu0 0.0
    %5706 = vmatprep.subr.mxu0 0.0
    %5707 = vmatpush2.xpose.msra.mxu0 0.0
    %5708 = vmatprep.subr.mxu0 0.0
    %5709 = vmatpush2.xpose.msra.mxu0 0.0
    %5710 = vmatprep.subr.mxu0 0.0
    %5711 = vmatpush2.xpose.msra.mxu0 0.0
    %5712 = vmatprep.subr.mxu0 0.0
    %5713 = vmatpush2.xpose.msra.mxu0 0.0
    %5714 = vmatprep.subr.mxu0 0.0
    %5715 = vmatpush2.xpose.msra.mxu0 0.0
    %5716 = vmatprep.subr.mxu0 0.0
    %5717 = vmatpush2.xpose.msra.mxu0 0.0
    %5718 = vmatprep.subr.mxu0 0.0
    %5719 = vmatpush2.xpose.msra.mxu0 0.0
    %5720 = vmatprep.subr.mxu0 0.0
    %5721 = vmatpush2.xpose.msra.mxu0 0.0
    %5722 = vmatprep.subr.mxu0 0.0
    %5723 = vmatpush2.xpose.msra.mxu0 0.0
    %5724 = vmatprep.subr.mxu0 0.0
    %5725 = vmatpush2.xpose.msra.mxu0 0.0
    %5726 = vmatprep.subr.mxu0 0.0
    %5727 = vmatpush2.xpose.msra.mxu0 0.0
    %5728 = vmatprep.subr.mxu0 0.0
    %5729 = vmatpush2.xpose.msra.mxu0 0.0
    %5730 = vmatprep.subr.mxu0 0.0
    %5731 = vmatpush2.xpose.msra.mxu0 0.0
    %5732 = vmatprep.subr.mxu0 0.0
    %5733 = vmatpush2.xpose.msra.mxu0 0.0
    %5734 = vmatprep.subr.mxu0 0.0
    %5735 = vmatpush2.xpose.msra.mxu0 0.0
    %5736 = vmatprep.mubr.f32.mxu0 0.0
    %5737 = vmatmul.mubr.f32.gmra.mxu0 %v5668
    %v5738 = vpop.f32.mrf.mxu0
    %v5739 = vadd.f32 0.0, %v5738
    %v5740 = vpop.f32.mrf.mxu0
    %5741 = vdwg.mxu0
    %5742 = vrot.lane.b32.xlu0 %v1904, 64
    %v5743 = vpop.permute.xlu0 %5742
    %v5744 = vsel %vm337, %v5743, 0
    %v5746 = vsel %vm337, %v5277, 0
    %5748 = vmatprep.subr.mxu0 0.0
    %5749 = vmatpush1.xpose.msra.mxu0 0.0
    %5750 = vmatprep.subr.mxu0 0.0
    %5751 = vmatpush1.xpose.msra.mxu0 0.0
    %5752 = vmatprep.subr.mxu0 0.0
    %5753 = vmatpush1.xpose.msra.mxu0 0.0
    %5754 = vmatprep.subr.mxu0 0.0
    %5755 = vmatpush1.xpose.msra.mxu0 0.0
    %5756 = vmatprep.subr.mxu0 0.0
    %5757 = vmatpush1.xpose.msra.mxu0 0.0
    %5758 = vmatprep.subr.mxu0 0.0
    %5759 = vmatpush1.xpose.msra.mxu0 0.0
    %5760 = vmatprep.subr.mxu0 0.0
    %5761 = vmatpush1.xpose.msra.mxu0 0.0
    %5762 = vmatprep.subr.mxu0 0.0
    %5763 = vmatpush1.xpose.msra.mxu0 0.0
    %5764 = vmatprep.subr.mxu0 0.0
    %5765 = vmatpush1.xpose.msra.mxu0 0.0
    %5766 = vmatprep.subr.mxu0 0.0
    %5767 = vmatpush1.xpose.msra.mxu0 0.0
    %5768 = vmatprep.subr.mxu0 0.0
    %5769 = vmatpush1.xpose.msra.mxu0 0.0
    %5770 = vmatprep.subr.mxu0 0.0
    %5771 = vmatpush1.xpose.msra.mxu0 0.0
    %5772 = vmatprep.subr.mxu0 0.0
    %5773 = vmatpush1.xpose.msra.mxu0 0.0
    %5774 = vmatprep.subr.mxu0 0.0
    %5775 = vmatpush1.xpose.msra.mxu0 0.0
    %5776 = vmatprep.subr.mxu0 0.0
    %5777 = vmatpush1.xpose.msra.mxu0 0.0
    %5778 = vmatprep.subr.mxu0 0.0
    %5779 = vmatpush1.xpose.msra.mxu0 %v5746
    %5780 = vmatprep.subr.mxu0 0.0
    %5781 = vmatpush2.xpose.msra.mxu0 0.0
    %5782 = vmatprep.subr.mxu0 0.0
    %5783 = vmatpush2.xpose.msra.mxu0 0.0
    %5784 = vmatprep.subr.mxu0 0.0
    %5785 = vmatpush2.xpose.msra.mxu0 0.0
    %5786 = vmatprep.subr.mxu0 0.0
    %5787 = vmatpush2.xpose.msra.mxu0 0.0
    %5788 = vmatprep.subr.mxu0 0.0
    %5789 = vmatpush2.xpose.msra.mxu0 0.0
    %5790 = vmatprep.subr.mxu0 0.0
    %5791 = vmatpush2.xpose.msra.mxu0 0.0
    %5792 = vmatprep.subr.mxu0 0.0
    %5793 = vmatpush2.xpose.msra.mxu0 0.0
    %5794 = vmatprep.subr.mxu0 0.0
    %5795 = vmatpush2.xpose.msra.mxu0 0.0
    %5796 = vmatprep.subr.mxu0 0.0
    %5797 = vmatpush2.xpose.msra.mxu0 0.0
    %5798 = vmatprep.subr.mxu0 0.0
    %5799 = vmatpush2.xpose.msra.mxu0 0.0
    %5800 = vmatprep.subr.mxu0 0.0
    %5801 = vmatpush2.xpose.msra.mxu0 0.0
    %5802 = vmatprep.subr.mxu0 0.0
    %5803 = vmatpush2.xpose.msra.mxu0 0.0
    %5804 = vmatprep.subr.mxu0 0.0
    %5805 = vmatpush2.xpose.msra.mxu0 0.0
    %5806 = vmatprep.subr.mxu0 0.0
    %5807 = vmatpush2.xpose.msra.mxu0 0.0
    %5808 = vmatprep.subr.mxu0 0.0
    %5809 = vmatpush2.xpose.msra.mxu0 0.0
    %5810 = vmatprep.subr.mxu0 0.0
    %5811 = vmatpush2.xpose.msra.mxu0 0.0
    %5812 = vmatprep.mubr.f32.mxu0 0.0
    %5813 = vmatmul.mubr.f32.gmra.mxu0 %v5744
    %v5814 = vpop.f32.mrf.mxu0
    %v5815 = vadd.f32 0.0, %v5814
    %v5816 = vpop.f32.mrf.mxu0
    %5817 = vdwg.mxu0
    %5818 = vrot.lane.b32.xlu0 %v1906, 64
    %v5819 = vpop.permute.xlu0 %5818
    %v5820 = vsel %vm337, %v5819, 0
    %v5822 = vsel %vm337, %v5279, 0
    %5824 = vmatprep.subr.mxu0 0.0
    %5825 = vmatpush1.xpose.msra.mxu0 0.0
    %5826 = vmatprep.subr.mxu0 0.0
    %5827 = vmatpush1.xpose.msra.mxu0 0.0
    %5828 = vmatprep.subr.mxu0 0.0
    %5829 = vmatpush1.xpose.msra.mxu0 0.0
    %5830 = vmatprep.subr.mxu0 0.0
    %5831 = vmatpush1.xpose.msra.mxu0 0.0
    %5832 = vmatprep.subr.mxu0 0.0
    %5833 = vmatpush1.xpose.msra.mxu0 0.0
    %5834 = vmatprep.subr.mxu0 0.0
    %5835 = vmatpush1.xpose.msra.mxu0 0.0
    %5836 = vmatprep.subr.mxu0 0.0
    %5837 = vmatpush1.xpose.msra.mxu0 0.0
    %5838 = vmatprep.subr.mxu0 0.0
    %5839 = vmatpush1.xpose.msra.mxu0 0.0
    %5840 = vmatprep.subr.mxu0 0.0
    %5841 = vmatpush1.xpose.msra.mxu0 0.0
    %5842 = vmatprep.subr.mxu0 0.0
    %5843 = vmatpush1.xpose.msra.mxu0 0.0
    %5844 = vmatprep.subr.mxu0 0.0
    %5845 = vmatpush1.xpose.msra.mxu0 0.0
    %5846 = vmatprep.subr.mxu0 0.0
    %5847 = vmatpush1.xpose.msra.mxu0 0.0
    %5848 = vmatprep.subr.mxu0 0.0
    %5849 = vmatpush1.xpose.msra.mxu0 0.0
    %5850 = vmatprep.subr.mxu0 0.0
    %5851 = vmatpush1.xpose.msra.mxu0 0.0
    %5852 = vmatprep.subr.mxu0 0.0
    %5853 = vmatpush1.xpose.msra.mxu0 0.0
    %5854 = vmatprep.subr.mxu0 0.0
    %5855 = vmatpush1.xpose.msra.mxu0 %v5822
    %5856 = vmatprep.subr.mxu0 0.0
    %5857 = vmatpush2.xpose.msra.mxu0 0.0
    %5858 = vmatprep.subr.mxu0 0.0
    %5859 = vmatpush2.xpose.msra.mxu0 0.0
    %5860 = vmatprep.subr.mxu0 0.0
    %5861 = vmatpush2.xpose.msra.mxu0 0.0
    %5862 = vmatprep.subr.mxu0 0.0
    %5863 = vmatpush2.xpose.msra.mxu0 0.0
    %5864 = vmatprep.subr.mxu0 0.0
    %5865 = vmatpush2.xpose.msra.mxu0 0.0
    %5866 = vmatprep.subr.mxu0 0.0
    %5867 = vmatpush2.xpose.msra.mxu0 0.0
    %5868 = vmatprep.subr.mxu0 0.0
    %5869 = vmatpush2.xpose.msra.mxu0 0.0
    %5870 = vmatprep.subr.mxu0 0.0
    %5871 = vmatpush2.xpose.msra.mxu0 0.0
    %5872 = vmatprep.subr.mxu0 0.0
    %5873 = vmatpush2.xpose.msra.mxu0 0.0
    %5874 = vmatprep.subr.mxu0 0.0
    %5875 = vmatpush2.xpose.msra.mxu0 0.0
    %5876 = vmatprep.subr.mxu0 0.0
    %5877 = vmatpush2.xpose.msra.mxu0 0.0
    %5878 = vmatprep.subr.mxu0 0.0
    %5879 = vmatpush2.xpose.msra.mxu0 0.0
    %5880 = vmatprep.subr.mxu0 0.0
    %5881 = vmatpush2.xpose.msra.mxu0 0.0
    %5882 = vmatprep.subr.mxu0 0.0
    %5883 = vmatpush2.xpose.msra.mxu0 0.0
    %5884 = vmatprep.subr.mxu0 0.0
    %5885 = vmatpush2.xpose.msra.mxu0 0.0
    %5886 = vmatprep.subr.mxu0 0.0
    %5887 = vmatpush2.xpose.msra.mxu0 0.0
    %5888 = vmatprep.mubr.f32.mxu0 0.0
    %5889 = vmatmul.mubr.f32.gmra.mxu0 %v5820
    %v5890 = vpop.f32.mrf.mxu0
    %v5891 = vadd.f32 0.0, %v5890
    %v5892 = vpop.f32.mrf.mxu0
    %5893 = vdwg.mxu0
    %v5894 = vmul.f32 %v5359, 2.828427
    %v5895 = vmul.f32 %v5435, 2.828427
    %v5896 = vmul.f32 %v5511, 2.828427
    %v5897 = vmul.f32 %v5587, 2.828427
    %v5898 = vmul.f32 %v5663, 2.828427
    %v5899 = vmul.f32 %v5739, 2.828427
    %v5900 = vmul.f32 %v5815, 2.828427
    %v5901 = vmul.f32 %v5891, 2.828427
    %v5902 = vadd.f32 %v5894, %v110
    %v5903 = vadd.f32 %v5895, %v110
    %v5904 = vadd.f32 %v5896, %v110
    %v5905 = vadd.f32 %v5897, %v110
    %v5906 = vadd.f32 %v5898, %v110
    %v5907 = vadd.f32 %v5899, %v110
    %v5908 = vadd.f32 %v5900, %v110
    %v5909 = vadd.f32 %v5901, %v110
    %v5910 = vsel %vm337, %v5902, -inf
    %5911 = vmax.xlane.f32.xlu0 %v5910
    %v5912 = vpop.xlane.xlu0 %5911
    %v5913 = vsel %vm337, %v5903, -inf
    %5914 = vmax.xlane.f32.xlu0 %v5913
    %v5915 = vpop.xlane.xlu0 %5914
    %v5916 = vsel %vm337, %v5904, -inf
    %5917 = vmax.xlane.f32.xlu0 %v5916
    %v5918 = vpop.xlane.xlu0 %5917
    %v5919 = vsel %vm337, %v5905, -inf
    %5920 = vmax.xlane.f32.xlu0 %v5919
    %v5921 = vpop.xlane.xlu0 %5920
    %v5922 = vsel %vm337, %v5906, -inf
    %5923 = vmax.xlane.f32.xlu0 %v5922
    %v5924 = vpop.xlane.xlu0 %5923
    %v5925 = vsel %vm337, %v5907, -inf
    %5926 = vmax.xlane.f32.xlu0 %v5925
    %v5927 = vpop.xlane.xlu0 %5926
    %v5928 = vsel %vm337, %v5908, -inf
    %5929 = vmax.xlane.f32.xlu0 %v5928
    %v5930 = vpop.xlane.xlu0 %5929
    %v5931 = vsel %vm337, %v5909, -inf
    %5932 = vmax.xlane.f32.xlu0 %v5931
    %v5933 = vpop.xlane.xlu0 %5932
    %v5934 = vsub.f32 %v5902, %v5912
    %v5935 = vsub.f32 %v5903, %v5915
    %v5936 = vsub.f32 %v5904, %v5918
    %v5937 = vsub.f32 %v5905, %v5921
    %v5938 = vsub.f32 %v5906, %v5924
    %v5939 = vsub.f32 %v5907, %v5927
    %v5940 = vsub.f32 %v5908, %v5930
    %v5941 = vsub.f32 %v5909, %v5933
    %v5942 = vmul.f32 %v5934, 1.442695
    %v5943 = vpow.pop %v5942
    %v5944 = vmul.f32 %v5935, 1.442695
    %v5945 = vpow.pop %v5944
    %v5946 = vmul.f32 %v5936, 1.442695
    %v5947 = vpow.pop %v5946
    %v5948 = vmul.f32 %v5937, 1.442695
    %v5949 = vpow.pop %v5948
    %v5950 = vmul.f32 %v5938, 1.442695
    %v5951 = vpow.pop %v5950
    %v5952 = vmul.f32 %v5939, 1.442695
    %v5953 = vpow.pop %v5952
    %v5954 = vmul.f32 %v5940, 1.442695
    %v5955 = vpow.pop %v5954
    %v5956 = vmul.f32 %v5941, 1.442695
    %v5957 = vpow.pop %v5956
    %v5958 = vsel %vm337, %v5943, 0.0
    %5959 = vadd.xlane.f32.xlu0 %v5958
    %v5960 = vpop.xlane.xlu0 %5959
    %v5961 = vsel %vm337, %v5945, 0.0
    %5962 = vadd.xlane.f32.xlu0 %v5961
    %v5963 = vpop.xlane.xlu0 %5962
    %v5964 = vsel %vm337, %v5947, 0.0
    %5965 = vadd.xlane.f32.xlu0 %v5964
    %v5966 = vpop.xlane.xlu0 %5965
    %v5967 = vsel %vm337, %v5949, 0.0
    %5968 = vadd.xlane.f32.xlu0 %v5967
    %v5969 = vpop.xlane.xlu0 %5968
    %v5970 = vsel %vm337, %v5951, 0.0
    %5971 = vadd.xlane.f32.xlu0 %v5970
    %v5972 = vpop.xlane.xlu0 %5971
    %v5973 = vsel %vm337, %v5953, 0.0
    %5974 = vadd.xlane.f32.xlu0 %v5973
    %v5975 = vpop.xlane.xlu0 %5974
    %v5976 = vsel %vm337, %v5955, 0.0
    %5977 = vadd.xlane.f32.xlu0 %v5976
    %v5978 = vpop.xlane.xlu0 %5977
    %v5979 = vsel %vm337, %v5957, 0.0
    %5980 = vadd.xlane.f32.xlu0 %v5979
    %v5981 = vpop.xlane.xlu0 %5980
    %v5982 = vrcp.pop %v5960
    %v5983 = vrcp.pop %v5963
    %v5984 = vrcp.pop %v5966
    %v5985 = vrcp.pop %v5969
    %v5986 = vrcp.pop %v5972
    %v5987 = vrcp.pop %v5975
    %v5988 = vrcp.pop %v5978
    %v5989 = vrcp.pop %v5981
    %v5990 = vmul.f32 %v5943, %v5982
    %v5991 = vmul.f32 %v5945, %v5983
    %v5992 = vmul.f32 %v5947, %v5984
    %v5993 = vmul.f32 %v5949, %v5985
    %v5994 = vmul.f32 %v5951, %v5986
    %v5995 = vmul.f32 %v5953, %v5987
    %v5996 = vmul.f32 %v5955, %v5988
    %v5997 = vmul.f32 %v5957, %v5989
    %5998 = vrot.lane.b32.xlu0 %v189, 32
    %v5999 = vpop.permute.xlu0 %5998
    %v6002 = vsel %vm337, %v5990, 0
    %6004 = vmatprep.subr.mxu0 0.0
    %6005 = vmatpush1.msra.mxu0 0.0
    %6006 = vmatprep.subr.mxu0 0.0
    %6007 = vmatpush1.msra.mxu0 0.0
    %6008 = vmatprep.subr.mxu0 0.0
    %6009 = vmatpush1.msra.mxu0 0.0
    %6010 = vmatprep.subr.mxu0 0.0
    %6011 = vmatpush1.msra.mxu0 0.0
    %6012 = vmatprep.subr.mxu0 0.0
    %6013 = vmatpush1.msra.mxu0 0.0
    %6014 = vmatprep.subr.mxu0 0.0
    %6015 = vmatpush1.msra.mxu0 0.0
    %6016 = vmatprep.subr.mxu0 0.0
    %6017 = vmatpush1.msra.mxu0 0.0
    %6018 = vmatprep.subr.mxu0 0.0
    %6019 = vmatpush1.msra.mxu0 0.0
    %6020 = vmatprep.subr.mxu0 0.0
    %6021 = vmatpush1.msra.mxu0 0.0
    %6022 = vmatprep.subr.mxu0 0.0
    %6023 = vmatpush1.msra.mxu0 0.0
    %6024 = vmatprep.subr.mxu0 0.0
    %6025 = vmatpush1.msra.mxu0 0.0
    %6026 = vmatprep.subr.mxu0 0.0
    %6027 = vmatpush1.msra.mxu0 0.0
    %6028 = vmatprep.subr.mxu0 0.0
    %6029 = vmatpush1.msra.mxu0 0.0
    %6030 = vmatprep.subr.mxu0 0.0
    %6031 = vmatpush1.msra.mxu0 0.0
    %6032 = vmatprep.subr.mxu0 0.0
    %6033 = vmatpush1.msra.mxu0 0.0
    %6034 = vmatprep.subr.mxu0 0.0
    %6035 = vmatpush1.msra.mxu0 %v5999
    %6036 = vmatprep.subr.mxu0 0.0
    %6037 = vmatpush2.msra.mxu0 0.0
    %6038 = vmatprep.subr.mxu0 0.0
    %6039 = vmatpush2.msra.mxu0 0.0
    %6040 = vmatprep.subr.mxu0 0.0
    %6041 = vmatpush2.msra.mxu0 0.0
    %6042 = vmatprep.subr.mxu0 0.0
    %6043 = vmatpush2.msra.mxu0 0.0
    %6044 = vmatprep.subr.mxu0 0.0
    %6045 = vmatpush2.msra.mxu0 0.0
    %6046 = vmatprep.subr.mxu0 0.0
    %6047 = vmatpush2.msra.mxu0 0.0
    %6048 = vmatprep.subr.mxu0 0.0
    %6049 = vmatpush2.msra.mxu0 0.0
    %6050 = vmatprep.subr.mxu0 0.0
    %6051 = vmatpush2.msra.mxu0 0.0
    %6052 = vmatprep.subr.mxu0 0.0
    %6053 = vmatpush2.msra.mxu0 0.0
    %6054 = vmatprep.subr.mxu0 0.0
    %6055 = vmatpush2.msra.mxu0 0.0
    %6056 = vmatprep.subr.mxu0 0.0
    %6057 = vmatpush2.msra.mxu0 0.0
    %6058 = vmatprep.subr.mxu0 0.0
    %6059 = vmatpush2.msra.mxu0 0.0
    %6060 = vmatprep.subr.mxu0 0.0
    %6061 = vmatpush2.msra.mxu0 0.0
    %6062 = vmatprep.subr.mxu0 0.0
    %6063 = vmatpush2.msra.mxu0 0.0
    %6064 = vmatprep.subr.mxu0 0.0
    %6065 = vmatpush2.msra.mxu0 0.0
    %6066 = vmatprep.subr.mxu0 0.0
    %6067 = vmatpush2.msra.mxu0 0.0
    %6068 = vmatprep.mubr.f32.mxu0 0.0
    %6069 = vmatmul.mubr.f32.gmra.mxu0 %v6002
    %v6070 = vpop.f32.mrf.mxu0
    %v6071 = vadd.f32 0.0, %v6070
    %v6072 = vpop.f32.mrf.mxu0
    %6073 = vdwg.mxu0
    %6074 = vrot.lane.b32.xlu0 %v194, 32
    %v6075 = vpop.permute.xlu0 %6074
    %v6078 = vsel %vm337, %v5991, 0
    %6080 = vmatprep.subr.mxu0 0.0
    %6081 = vmatpush1.msra.mxu0 0.0
    %6082 = vmatprep.subr.mxu0 0.0
    %6083 = vmatpush1.msra.mxu0 0.0
    %6084 = vmatprep.subr.mxu0 0.0
    %6085 = vmatpush1.msra.mxu0 0.0
    %6086 = vmatprep.subr.mxu0 0.0
    %6087 = vmatpush1.msra.mxu0 0.0
    %6088 = vmatprep.subr.mxu0 0.0
    %6089 = vmatpush1.msra.mxu0 0.0
    %6090 = vmatprep.subr.mxu0 0.0
    %6091 = vmatpush1.msra.mxu0 0.0
    %6092 = vmatprep.subr.mxu0 0.0
    %6093 = vmatpush1.msra.mxu0 0.0
    %6094 = vmatprep.subr.mxu0 0.0
    %6095 = vmatpush1.msra.mxu0 0.0
    %6096 = vmatprep.subr.mxu0 0.0
    %6097 = vmatpush1.msra.mxu0 0.0
    %6098 = vmatprep.subr.mxu0 0.0
    %6099 = vmatpush1.msra.mxu0 0.0
    %6100 = vmatprep.subr.mxu0 0.0
    %6101 = vmatpush1.msra.mxu0 0.0
    %6102 = vmatprep.subr.mxu0 0.0
    %6103 = vmatpush1.msra.mxu0 0.0
    %6104 = vmatprep.subr.mxu0 0.0
    %6105 = vmatpush1.msra.mxu0 0.0
    %6106 = vmatprep.subr.mxu0 0.0
    %6107 = vmatpush1.msra.mxu0 0.0
    %6108 = vmatprep.subr.mxu0 0.0
    %6109 = vmatpush1.msra.mxu0 0.0
    %6110 = vmatprep.subr.mxu0 0.0
    %6111 = vmatpush1.msra.mxu0 %v6075
    %6112 = vmatprep.subr.mxu0 0.0
    %6113 = vmatpush2.msra.mxu0 0.0
    %6114 = vmatprep.subr.mxu0 0.0
    %6115 = vmatpush2.msra.mxu0 0.0
    %6116 = vmatprep.subr.mxu0 0.0
    %6117 = vmatpush2.msra.mxu0 0.0
    %6118 = vmatprep.subr.mxu0 0.0
    %6119 = vmatpush2.msra.mxu0 0.0
    %6120 = vmatprep.subr.mxu0 0.0
    %6121 = vmatpush2.msra.mxu0 0.0
    %6122 = vmatprep.subr.mxu0 0.0
    %6123 = vmatpush2.msra.mxu0 0.0
    %6124 = vmatprep.subr.mxu0 0.0
    %6125 = vmatpush2.msra.mxu0 0.0
    %6126 = vmatprep.subr.mxu0 0.0
    %6127 = vmatpush2.msra.mxu0 0.0
    %6128 = vmatprep.subr.mxu0 0.0
    %6129 = vmatpush2.msra.mxu0 0.0
    %6130 = vmatprep.subr.mxu0 0.0
    %6131 = vmatpush2.msra.mxu0 0.0
    %6132 = vmatprep.subr.mxu0 0.0
    %6133 = vmatpush2.msra.mxu0 0.0
    %6134 = vmatprep.subr.mxu0 0.0
    %6135 = vmatpush2.msra.mxu0 0.0
    %6136 = vmatprep.subr.mxu0 0.0
    %6137 = vmatpush2.msra.mxu0 0.0
    %6138 = vmatprep.subr.mxu0 0.0
    %6139 = vmatpush2.msra.mxu0 0.0
    %6140 = vmatprep.subr.mxu0 0.0
    %6141 = vmatpush2.msra.mxu0 0.0
    %6142 = vmatprep.subr.mxu0 0.0
    %6143 = vmatpush2.msra.mxu0 0.0
    %6144 = vmatprep.mubr.f32.mxu0 0.0
    %6145 = vmatmul.mubr.f32.gmra.mxu0 %v6078
    %v6146 = vpop.f32.mrf.mxu0
    %v6147 = vadd.f32 0.0, %v6146
    %v6148 = vpop.f32.mrf.mxu0
    %6149 = vdwg.mxu0
    %6150 = vrot.lane.b32.xlu0 %v1896, 32
    %v6151 = vpop.permute.xlu0 %6150
    %v6154 = vsel %vm337, %v5992, 0
    %6156 = vmatprep.subr.mxu0 0.0
    %6157 = vmatpush1.msra.mxu0 0.0
    %6158 = vmatprep.subr.mxu0 0.0
    %6159 = vmatpush1.msra.mxu0 0.0
    %6160 = vmatprep.subr.mxu0 0.0
    %6161 = vmatpush1.msra.mxu0 0.0
    %6162 = vmatprep.subr.mxu0 0.0
    %6163 = vmatpush1.msra.mxu0 0.0
    %6164 = vmatprep.subr.mxu0 0.0
    %6165 = vmatpush1.msra.mxu0 0.0
    %6166 = vmatprep.subr.mxu0 0.0
    %6167 = vmatpush1.msra.mxu0 0.0
    %6168 = vmatprep.subr.mxu0 0.0
    %6169 = vmatpush1.msra.mxu0 0.0
    %6170 = vmatprep.subr.mxu0 0.0
    %6171 = vmatpush1.msra.mxu0 0.0
    %6172 = vmatprep.subr.mxu0 0.0
    %6173 = vmatpush1.msra.mxu0 0.0
    %6174 = vmatprep.subr.mxu0 0.0
    %6175 = vmatpush1.msra.mxu0 0.0
    %6176 = vmatprep.subr.mxu0 0.0
    %6177 = vmatpush1.msra.mxu0 0.0
    %6178 = vmatprep.subr.mxu0 0.0
    %6179 = vmatpush1.msra.mxu0 0.0
    %6180 = vmatprep.subr.mxu0 0.0
    %6181 = vmatpush1.msra.mxu0 0.0
    %6182 = vmatprep.subr.mxu0 0.0
    %6183 = vmatpush1.msra.mxu0 0.0
    %6184 = vmatprep.subr.mxu0 0.0
    %6185 = vmatpush1.msra.mxu0 0.0
    %6186 = vmatprep.subr.mxu0 0.0
    %6187 = vmatpush1.msra.mxu0 %v6151
    %6188 = vmatprep.subr.mxu0 0.0
    %6189 = vmatpush2.msra.mxu0 0.0
    %6190 = vmatprep.subr.mxu0 0.0
    %6191 = vmatpush2.msra.mxu0 0.0
    %6192 = vmatprep.subr.mxu0 0.0
    %6193 = vmatpush2.msra.mxu0 0.0
    %6194 = vmatprep.subr.mxu0 0.0
    %6195 = vmatpush2.msra.mxu0 0.0
    %6196 = vmatprep.subr.mxu0 0.0
    %6197 = vmatpush2.msra.mxu0 0.0
    %6198 = vmatprep.subr.mxu0 0.0
    %6199 = vmatpush2.msra.mxu0 0.0
    %6200 = vmatprep.subr.mxu0 0.0
    %6201 = vmatpush2.msra.mxu0 0.0
    %6202 = vmatprep.subr.mxu0 0.0
    %6203 = vmatpush2.msra.mxu0 0.0
    %6204 = vmatprep.subr.mxu0 0.0
    %6205 = vmatpush2.msra.mxu0 0.0
    %6206 = vmatprep.subr.mxu0 0.0
    %6207 = vmatpush2.msra.mxu0 0.0
    %6208 = vmatprep.subr.mxu0 0.0
    %6209 = vmatpush2.msra.mxu0 0.0
    %6210 = vmatprep.subr.mxu0 0.0
    %6211 = vmatpush2.msra.mxu0 0.0
    %6212 = vmatprep.subr.mxu0 0.0
    %6213 = vmatpush2.msra.mxu0 0.0
    %6214 = vmatprep.subr.mxu0 0.0
    %6215 = vmatpush2.msra.mxu0 0.0
    %6216 = vmatprep.subr.mxu0 0.0
    %6217 = vmatpush2.msra.mxu0 0.0
    %6218 = vmatprep.subr.mxu0 0.0
    %6219 = vmatpush2.msra.mxu0 0.0
    %6220 = vmatprep.mubr.f32.mxu0 0.0
    %6221 = vmatmul.mubr.f32.gmra.mxu0 %v6154
    %v6222 = vpop.f32.mrf.mxu0
    %v6223 = vadd.f32 0.0, %v6222
    %v6224 = vpop.f32.mrf.mxu0
    %6225 = vdwg.mxu0
    %6226 = vrot.lane.b32.xlu0 %v1898, 32
    %v6227 = vpop.permute.xlu0 %6226
    %v6230 = vsel %vm337, %v5993, 0
    %6232 = vmatprep.subr.mxu0 0.0
    %6233 = vmatpush1.msra.mxu0 0.0
    %6234 = vmatprep.subr.mxu0 0.0
    %6235 = vmatpush1.msra.mxu0 0.0
    %6236 = vmatprep.subr.mxu0 0.0
    %6237 = vmatpush1.msra.mxu0 0.0
    %6238 = vmatprep.subr.mxu0 0.0
    %6239 = vmatpush1.msra.mxu0 0.0
    %6240 = vmatprep.subr.mxu0 0.0
    %6241 = vmatpush1.msra.mxu0 0.0
    %6242 = vmatprep.subr.mxu0 0.0
    %6243 = vmatpush1.msra.mxu0 0.0
    %6244 = vmatprep.subr.mxu0 0.0
    %6245 = vmatpush1.msra.mxu0 0.0
    %6246 = vmatprep.subr.mxu0 0.0
    %6247 = vmatpush1.msra.mxu0 0.0
    %6248 = vmatprep.subr.mxu0 0.0
    %6249 = vmatpush1.msra.mxu0 0.0
    %6250 = vmatprep.subr.mxu0 0.0
    %6251 = vmatpush1.msra.mxu0 0.0
    %6252 = vmatprep.subr.mxu0 0.0
    %6253 = vmatpush1.msra.mxu0 0.0
    %6254 = vmatprep.subr.mxu0 0.0
    %6255 = vmatpush1.msra.mxu0 0.0
    %6256 = vmatprep.subr.mxu0 0.0
    %6257 = vmatpush1.msra.mxu0 0.0
    %6258 = vmatprep.subr.mxu0 0.0
    %6259 = vmatpush1.msra.mxu0 0.0
    %6260 = vmatprep.subr.mxu0 0.0
    %6261 = vmatpush1.msra.mxu0 0.0
    %6262 = vmatprep.subr.mxu0 0.0
    %6263 = vmatpush1.msra.mxu0 %v6227
    %6264 = vmatprep.subr.mxu0 0.0
    %6265 = vmatpush2.msra.mxu0 0.0
    %6266 = vmatprep.subr.mxu0 0.0
    %6267 = vmatpush2.msra.mxu0 0.0
    %6268 = vmatprep.subr.mxu0 0.0
    %6269 = vmatpush2.msra.mxu0 0.0
    %6270 = vmatprep.subr.mxu0 0.0
    %6271 = vmatpush2.msra.mxu0 0.0
    %6272 = vmatprep.subr.mxu0 0.0
    %6273 = vmatpush2.msra.mxu0 0.0
    %6274 = vmatprep.subr.mxu0 0.0
    %6275 = vmatpush2.msra.mxu0 0.0
    %6276 = vmatprep.subr.mxu0 0.0
    %6277 = vmatpush2.msra.mxu0 0.0
    %6278 = vmatprep.subr.mxu0 0.0
    %6279 = vmatpush2.msra.mxu0 0.0
    %6280 = vmatprep.subr.mxu0 0.0
    %6281 = vmatpush2.msra.mxu0 0.0
    %6282 = vmatprep.subr.mxu0 0.0
    %6283 = vmatpush2.msra.mxu0 0.0
    %6284 = vmatprep.subr.mxu0 0.0
    %6285 = vmatpush2.msra.mxu0 0.0
    %6286 = vmatprep.subr.mxu0 0.0
    %6287 = vmatpush2.msra.mxu0 0.0
    %6288 = vmatprep.subr.mxu0 0.0
    %6289 = vmatpush2.msra.mxu0 0.0
    %6290 = vmatprep.subr.mxu0 0.0
    %6291 = vmatpush2.msra.mxu0 0.0
    %6292 = vmatprep.subr.mxu0 0.0
    %6293 = vmatpush2.msra.mxu0 0.0
    %6294 = vmatprep.subr.mxu0 0.0
    %6295 = vmatpush2.msra.mxu0 0.0
    %6296 = vmatprep.mubr.f32.mxu0 0.0
    %6297 = vmatmul.mubr.f32.gmra.mxu0 %v6230
    %v6298 = vpop.f32.mrf.mxu0
    %v6299 = vadd.f32 0.0, %v6298
    %v6300 = vpop.f32.mrf.mxu0
    %6301 = vdwg.mxu0
    %6302 = vrot.lane.b32.xlu0 %v1900, 32
    %v6303 = vpop.permute.xlu0 %6302
    %v6306 = vsel %vm337, %v5994, 0
    %6308 = vmatprep.subr.mxu0 0.0
    %6309 = vmatpush1.msra.mxu0 0.0
    %6310 = vmatprep.subr.mxu0 0.0
    %6311 = vmatpush1.msra.mxu0 0.0
    %6312 = vmatprep.subr.mxu0 0.0
    %6313 = vmatpush1.msra.mxu0 0.0
    %6314 = vmatprep.subr.mxu0 0.0
    %6315 = vmatpush1.msra.mxu0 0.0
    %6316 = vmatprep.subr.mxu0 0.0
    %6317 = vmatpush1.msra.mxu0 0.0
    %6318 = vmatprep.subr.mxu0 0.0
    %6319 = vmatpush1.msra.mxu0 0.0
    %6320 = vmatprep.subr.mxu0 0.0
    %6321 = vmatpush1.msra.mxu0 0.0
    %6322 = vmatprep.subr.mxu0 0.0
    %6323 = vmatpush1.msra.mxu0 0.0
    %6324 = vmatprep.subr.mxu0 0.0
    %6325 = vmatpush1.msra.mxu0 0.0
    %6326 = vmatprep.subr.mxu0 0.0
    %6327 = vmatpush1.msra.mxu0 0.0
    %6328 = vmatprep.subr.mxu0 0.0
    %6329 = vmatpush1.msra.mxu0 0.0
    %6330 = vmatprep.subr.mxu0 0.0
    %6331 = vmatpush1.msra.mxu0 0.0
    %6332 = vmatprep.subr.mxu0 0.0
    %6333 = vmatpush1.msra.mxu0 0.0
    %6334 = vmatprep.subr.mxu0 0.0
    %6335 = vmatpush1.msra.mxu0 0.0
    %6336 = vmatprep.subr.mxu0 0.0
    %6337 = vmatpush1.msra.mxu0 0.0
    %6338 = vmatprep.subr.mxu0 0.0
    %6339 = vmatpush1.msra.mxu0 %v6303
    %6340 = vmatprep.subr.mxu0 0.0
    %6341 = vmatpush2.msra.mxu0 0.0
    %6342 = vmatprep.subr.mxu0 0.0
    %6343 = vmatpush2.msra.mxu0 0.0
    %6344 = vmatprep.subr.mxu0 0.0
    %6345 = vmatpush2.msra.mxu0 0.0
    %6346 = vmatprep.subr.mxu0 0.0
    %6347 = vmatpush2.msra.mxu0 0.0
    %6348 = vmatprep.subr.mxu0 0.0
    %6349 = vmatpush2.msra.mxu0 0.0
    %6350 = vmatprep.subr.mxu0 0.0
    %6351 = vmatpush2.msra.mxu0 0.0
    %6352 = vmatprep.subr.mxu0 0.0
    %6353 = vmatpush2.msra.mxu0 0.0
    %6354 = vmatprep.subr.mxu0 0.0
    %6355 = vmatpush2.msra.mxu0 0.0
    %6356 = vmatprep.subr.mxu0 0.0
    %6357 = vmatpush2.msra.mxu0 0.0
    %6358 = vmatprep.subr.mxu0 0.0
    %6359 = vmatpush2.msra.mxu0 0.0
    %6360 = vmatprep.subr.mxu0 0.0
    %6361 = vmatpush2.msra.mxu0 0.0
    %6362 = vmatprep.subr.mxu0 0.0
    %6363 = vmatpush2.msra.mxu0 0.0
    %6364 = vmatprep.subr.mxu0 0.0
    %6365 = vmatpush2.msra.mxu0 0.0
    %6366 = vmatprep.subr.mxu0 0.0
    %6367 = vmatpush2.msra.mxu0 0.0
    %6368 = vmatprep.subr.mxu0 0.0
    %6369 = vmatpush2.msra.mxu0 0.0
    %6370 = vmatprep.subr.mxu0 0.0
    %6371 = vmatpush2.msra.mxu0 0.0
    %6372 = vmatprep.mubr.f32.mxu0 0.0
    %6373 = vmatmul.mubr.f32.gmra.mxu0 %v6306
    %v6374 = vpop.f32.mrf.mxu0
    %v6375 = vadd.f32 0.0, %v6374
    %v6376 = vpop.f32.mrf.mxu0
    %6377 = vdwg.mxu0
    %6378 = vrot.lane.b32.xlu0 %v1902, 32
    %v6379 = vpop.permute.xlu0 %6378
    %v6382 = vsel %vm337, %v5995, 0
    %6384 = vmatprep.subr.mxu0 0.0
    %6385 = vmatpush1.msra.mxu0 0.0
    %6386 = vmatprep.subr.mxu0 0.0
    %6387 = vmatpush1.msra.mxu0 0.0
    %6388 = vmatprep.subr.mxu0 0.0
    %6389 = vmatpush1.msra.mxu0 0.0
    %6390 = vmatprep.subr.mxu0 0.0
    %6391 = vmatpush1.msra.mxu0 0.0
    %6392 = vmatprep.subr.mxu0 0.0
    %6393 = vmatpush1.msra.mxu0 0.0
    %6394 = vmatprep.subr.mxu0 0.0
    %6395 = vmatpush1.msra.mxu0 0.0
    %6396 = vmatprep.subr.mxu0 0.0
    %6397 = vmatpush1.msra.mxu0 0.0
    %6398 = vmatprep.subr.mxu0 0.0
    %6399 = vmatpush1.msra.mxu0 0.0
    %6400 = vmatprep.subr.mxu0 0.0
    %6401 = vmatpush1.msra.mxu0 0.0
    %6402 = vmatprep.subr.mxu0 0.0
    %6403 = vmatpush1.msra.mxu0 0.0
    %6404 = vmatprep.subr.mxu0 0.0
    %6405 = vmatpush1.msra.mxu0 0.0
    %6406 = vmatprep.subr.mxu0 0.0
    %6407 = vmatpush1.msra.mxu0 0.0
    %6408 = vmatprep.subr.mxu0 0.0
    %6409 = vmatpush1.msra.mxu0 0.0
    %6410 = vmatprep.subr.mxu0 0.0
    %6411 = vmatpush1.msra.mxu0 0.0
    %6412 = vmatprep.subr.mxu0 0.0
    %6413 = vmatpush1.msra.mxu0 0.0
    %6414 = vmatprep.subr.mxu0 0.0
    %6415 = vmatpush1.msra.mxu0 %v6379
    %6416 = vmatprep.subr.mxu0 0.0
    %6417 = vmatpush2.msra.mxu0 0.0
    %6418 = vmatprep.subr.mxu0 0.0
    %6419 = vmatpush2.msra.mxu0 0.0
    %6420 = vmatprep.subr.mxu0 0.0
    %6421 = vmatpush2.msra.mxu0 0.0
    %6422 = vmatprep.subr.mxu0 0.0
    %6423 = vmatpush2.msra.mxu0 0.0
    %6424 = vmatprep.subr.mxu0 0.0
    %6425 = vmatpush2.msra.mxu0 0.0
    %6426 = vmatprep.subr.mxu0 0.0
    %6427 = vmatpush2.msra.mxu0 0.0
    %6428 = vmatprep.subr.mxu0 0.0
    %6429 = vmatpush2.msra.mxu0 0.0
    %6430 = vmatprep.subr.mxu0 0.0
    %6431 = vmatpush2.msra.mxu0 0.0
    %6432 = vmatprep.subr.mxu0 0.0
    %6433 = vmatpush2.msra.mxu0 0.0
    %6434 = vmatprep.subr.mxu0 0.0
    %6435 = vmatpush2.msra.mxu0 0.0
    %6436 = vmatprep.subr.mxu0 0.0
    %6437 = vmatpush2.msra.mxu0 0.0
    %6438 = vmatprep.subr.mxu0 0.0
    %6439 = vmatpush2.msra.mxu0 0.0
    %6440 = vmatprep.subr.mxu0 0.0
    %6441 = vmatpush2.msra.mxu0 0.0
    %6442 = vmatprep.subr.mxu0 0.0
    %6443 = vmatpush2.msra.mxu0 0.0
    %6444 = vmatprep.subr.mxu0 0.0
    %6445 = vmatpush2.msra.mxu0 0.0
    %6446 = vmatprep.subr.mxu0 0.0
    %6447 = vmatpush2.msra.mxu0 0.0
    %6448 = vmatprep.mubr.f32.mxu0 0.0
    %6449 = vmatmul.mubr.f32.gmra.mxu0 %v6382
    %v6450 = vpop.f32.mrf.mxu0
    %v6451 = vadd.f32 0.0, %v6450
    %v6452 = vpop.f32.mrf.mxu0
    %6453 = vdwg.mxu0
    %6454 = vrot.lane.b32.xlu0 %v1904, 32
    %v6455 = vpop.permute.xlu0 %6454
    %v6458 = vsel %vm337, %v5996, 0
    %6460 = vmatprep.subr.mxu0 0.0
    %6461 = vmatpush1.msra.mxu0 0.0
    %6462 = vmatprep.subr.mxu0 0.0
    %6463 = vmatpush1.msra.mxu0 0.0
    %6464 = vmatprep.subr.mxu0 0.0
    %6465 = vmatpush1.msra.mxu0 0.0
    %6466 = vmatprep.subr.mxu0 0.0
    %6467 = vmatpush1.msra.mxu0 0.0
    %6468 = vmatprep.subr.mxu0 0.0
    %6469 = vmatpush1.msra.mxu0 0.0
    %6470 = vmatprep.subr.mxu0 0.0
    %6471 = vmatpush1.msra.mxu0 0.0
    %6472 = vmatprep.subr.mxu0 0.0
    %6473 = vmatpush1.msra.mxu0 0.0
    %6474 = vmatprep.subr.mxu0 0.0
    %6475 = vmatpush1.msra.mxu0 0.0
    %6476 = vmatprep.subr.mxu0 0.0
    %6477 = vmatpush1.msra.mxu0 0.0
    %6478 = vmatprep.subr.mxu0 0.0
    %6479 = vmatpush1.msra.mxu0 0.0
    %6480 = vmatprep.subr.mxu0 0.0
    %6481 = vmatpush1.msra.mxu0 0.0
    %6482 = vmatprep.subr.mxu0 0.0
    %6483 = vmatpush1.msra.mxu0 0.0
    %6484 = vmatprep.subr.mxu0 0.0
    %6485 = vmatpush1.msra.mxu0 0.0
    %6486 = vmatprep.subr.mxu0 0.0
    %6487 = vmatpush1.msra.mxu0 0.0
    %6488 = vmatprep.subr.mxu0 0.0
    %6489 = vmatpush1.msra.mxu0 0.0
    %6490 = vmatprep.subr.mxu0 0.0
    %6491 = vmatpush1.msra.mxu0 %v6455
    %6492 = vmatprep.subr.mxu0 0.0
    %6493 = vmatpush2.msra.mxu0 0.0
    %6494 = vmatprep.subr.mxu0 0.0
    %6495 = vmatpush2.msra.mxu0 0.0
    %6496 = vmatprep.subr.mxu0 0.0
    %6497 = vmatpush2.msra.mxu0 0.0
    %6498 = vmatprep.subr.mxu0 0.0
    %6499 = vmatpush2.msra.mxu0 0.0
    %6500 = vmatprep.subr.mxu0 0.0
    %6501 = vmatpush2.msra.mxu0 0.0
    %6502 = vmatprep.subr.mxu0 0.0
    %6503 = vmatpush2.msra.mxu0 0.0
    %6504 = vmatprep.subr.mxu0 0.0
    %6505 = vmatpush2.msra.mxu0 0.0
    %6506 = vmatprep.subr.mxu0 0.0
    %6507 = vmatpush2.msra.mxu0 0.0
    %6508 = vmatprep.subr.mxu0 0.0
    %6509 = vmatpush2.msra.mxu0 0.0
    %6510 = vmatprep.subr.mxu0 0.0
    %6511 = vmatpush2.msra.mxu0 0.0
    %6512 = vmatprep.subr.mxu0 0.0
    %6513 = vmatpush2.msra.mxu0 0.0
    %6514 = vmatprep.subr.mxu0 0.0
    %6515 = vmatpush2.msra.mxu0 0.0
    %6516 = vmatprep.subr.mxu0 0.0
    %6517 = vmatpush2.msra.mxu0 0.0
    %6518 = vmatprep.subr.mxu0 0.0
    %6519 = vmatpush2.msra.mxu0 0.0
    %6520 = vmatprep.subr.mxu0 0.0
    %6521 = vmatpush2.msra.mxu0 0.0
    %6522 = vmatprep.subr.mxu0 0.0
    %6523 = vmatpush2.msra.mxu0 0.0
    %6524 = vmatprep.mubr.f32.mxu0 0.0
    %6525 = vmatmul.mubr.f32.gmra.mxu0 %v6458
    %v6526 = vpop.f32.mrf.mxu0
    %v6527 = vadd.f32 0.0, %v6526
    %v6528 = vpop.f32.mrf.mxu0
    %6529 = vdwg.mxu0
    %6530 = vrot.lane.b32.xlu0 %v1906, 32
    %v6531 = vpop.permute.xlu0 %6530
    %v6534 = vsel %vm337, %v5997, 0
    %6536 = vmatprep.subr.mxu0 0.0
    %6537 = vmatpush1.msra.mxu0 0.0
    %6538 = vmatprep.subr.mxu0 0.0
    %6539 = vmatpush1.msra.mxu0 0.0
    %6540 = vmatprep.subr.mxu0 0.0
    %6541 = vmatpush1.msra.mxu0 0.0
    %6542 = vmatprep.subr.mxu0 0.0
    %6543 = vmatpush1.msra.mxu0 0.0
    %6544 = vmatprep.subr.mxu0 0.0
    %6545 = vmatpush1.msra.mxu0 0.0
    %6546 = vmatprep.subr.mxu0 0.0
    %6547 = vmatpush1.msra.mxu0 0.0
    %6548 = vmatprep.subr.mxu0 0.0
    %6549 = vmatpush1.msra.mxu0 0.0
    %6550 = vmatprep.subr.mxu0 0.0
    %6551 = vmatpush1.msra.mxu0 0.0
    %6552 = vmatprep.subr.mxu0 0.0
    %6553 = vmatpush1.msra.mxu0 0.0
    %6554 = vmatprep.subr.mxu0 0.0
    %6555 = vmatpush1.msra.mxu0 0.0
    %6556 = vmatprep.subr.mxu0 0.0
    %6557 = vmatpush1.msra.mxu0 0.0
    %6558 = vmatprep.subr.mxu0 0.0
    %6559 = vmatpush1.msra.mxu0 0.0
    %6560 = vmatprep.subr.mxu0 0.0
    %6561 = vmatpush1.msra.mxu0 0.0
    %6562 = vmatprep.subr.mxu0 0.0
    %6563 = vmatpush1.msra.mxu0 0.0
    %6564 = vmatprep.subr.mxu0 0.0
    %6565 = vmatpush1.msra.mxu0 0.0
    %6566 = vmatprep.subr.mxu0 0.0
    %6567 = vmatpush1.msra.mxu0 %v6531
    %6568 = vmatprep.subr.mxu0 0.0
    %6569 = vmatpush2.msra.mxu0 0.0
    %6570 = vmatprep.subr.mxu0 0.0
    %6571 = vmatpush2.msra.mxu0 0.0
    %6572 = vmatprep.subr.mxu0 0.0
    %6573 = vmatpush2.msra.mxu0 0.0
    %6574 = vmatprep.subr.mxu0 0.0
    %6575 = vmatpush2.msra.mxu0 0.0
    %6576 = vmatprep.subr.mxu0 0.0
    %6577 = vmatpush2.msra.mxu0 0.0
    %6578 = vmatprep.subr.mxu0 0.0
    %6579 = vmatpush2.msra.mxu0 0.0
    %6580 = vmatprep.subr.mxu0 0.0
    %6581 = vmatpush2.msra.mxu0 0.0
    %6582 = vmatprep.subr.mxu0 0.0
    %6583 = vmatpush2.msra.mxu0 0.0
    %6584 = vmatprep.subr.mxu0 0.0
    %6585 = vmatpush2.msra.mxu0 0.0
    %6586 = vmatprep.subr.mxu0 0.0
    %6587 = vmatpush2.msra.mxu0 0.0
    %6588 = vmatprep.subr.mxu0 0.0
    %6589 = vmatpush2.msra.mxu0 0.0
    %6590 = vmatprep.subr.mxu0 0.0
    %6591 = vmatpush2.msra.mxu0 0.0
    %6592 = vmatprep.subr.mxu0 0.0
    %6593 = vmatpush2.msra.mxu0 0.0
    %6594 = vmatprep.subr.mxu0 0.0
    %6595 = vmatpush2.msra.mxu0 0.0
    %6596 = vmatprep.subr.mxu0 0.0
    %6597 = vmatpush2.msra.mxu0 0.0
    %6598 = vmatprep.subr.mxu0 0.0
    %6599 = vmatpush2.msra.mxu0 0.0
    %6600 = vmatprep.mubr.f32.mxu0 0.0
    %6601 = vmatmul.mubr.f32.gmra.mxu0 %v6534
    %v6602 = vpop.f32.mrf.mxu0
    %v6603 = vadd.f32 0.0, %v6602
    %v6604 = vpop.f32.mrf.mxu0
    %6605 = vdwg.mxu0
    %6608 = vrot.lane.b32.xlu0 %v6223, 8
    %v6609 = vpop.permute.xlu0 %6608
    %6610 = vrot.lane.b32.xlu0 %v6299, 8
    %v6611 = vpop.permute.xlu0 %6610
    %6616 = vrot.lane.b32.xlu0 %v6375, 16
    %v6617 = vpop.permute.xlu0 %6616
    %6618 = vrot.lane.b32.xlu0 %v6451, 16
    %v6619 = vpop.permute.xlu0 %6618
    %6624 = vrot.lane.b32.xlu0 %v6527, 24
    %v6625 = vpop.permute.xlu0 %6624
    %6626 = vrot.lane.b32.xlu0 %v6603, 24
    %v6627 = vpop.permute.xlu0 %6626
    %v6630 = vsel %vm337, %v6071, %v6609
    %v6631 = vsel %vm337, %v6147, %v6611
    %v6632 = vsel %vm1682, %v6630, %v6617
    %v6633 = vsel %vm1682, %v6631, %v6619
    %v6634 = vsel %vm1685, %v6632, %v6625
    %v6635 = vsel %vm1685, %v6633, %v6627
    %v6636 = vlaneseq
    %v6637 = vshrl.u32 %v6636, 7
    %v6638 = vsub.s32 0, %v6637
    %v6639 = vrot.slane %v5285, %v6638
    %v6641 = vsel %vm115, %v6634, 0
    %v6644 = vsel %vm115, %v6635, 0
    %6646 = vmatprep.subr.mxu0 0.0
    %6647 = vmatpush1.msra.mxu0 0.0
    %6648 = vmatprep.subr.mxu0 0.0
    %6649 = vmatpush1.msra.mxu0 0.0
    %6650 = vmatprep.subr.mxu0 0.0
    %6651 = vmatpush1.msra.mxu0 0.0
    %6652 = vmatprep.subr.mxu0 0.0
    %6653 = vmatpush1.msra.mxu0 0.0
    %6654 = vmatprep.subr.mxu0 0.0
    %6655 = vmatpush1.msra.mxu0 0.0
    %6656 = vmatprep.subr.mxu0 0.0
    %6657 = vmatpush1.msra.mxu0 0.0
    %6658 = vmatprep.subr.mxu0 0.0
    %6659 = vmatpush1.msra.mxu0 0.0
    %6660 = vmatprep.subr.mxu0 0.0
    %6661 = vmatpush1.msra.mxu0 0.0
    %6662 = vmatprep.subr.mxu0 0.0
    %6663 = vmatpush1.msra.mxu0 0.0
    %6664 = vmatprep.subr.mxu0 0.0
    %6665 = vmatpush1.msra.mxu0 0.0
    %6666 = vmatprep.subr.mxu0 0.0
    %6667 = vmatpush1.msra.mxu0 0.0
    %6668 = vmatprep.subr.mxu0 0.0
    %6669 = vmatpush1.msra.mxu0 0.0
    %6670 = vmatprep.subr.mxu0 0.0
    %6671 = vmatpush1.msra.mxu0 %v5284
    %6672 = vmatprep.subr.mxu0 0.0
    %6673 = vmatpush1.msra.mxu0 %v5283
    %6674 = vmatprep.subr.mxu0 0.0
    %6675 = vmatpush1.msra.mxu0 %v5282
    %6676 = vmatprep.subr.mxu0 0.0
    %6677 = vmatpush1.msra.mxu0 %v5281
    %6678 = vmatprep.subr.mxu0 0.0
    %6679 = vmatpush2.msra.mxu0 0.0
    %6680 = vmatprep.subr.mxu0 0.0
    %6681 = vmatpush2.msra.mxu0 0.0
    %6682 = vmatprep.subr.mxu0 0.0
    %6683 = vmatpush2.msra.mxu0 0.0
    %6684 = vmatprep.subr.mxu0 0.0
    %6685 = vmatpush2.msra.mxu0 0.0
    %6686 = vmatprep.subr.mxu0 0.0
    %6687 = vmatpush2.msra.mxu0 0.0
    %6688 = vmatprep.subr.mxu0 0.0
    %6689 = vmatpush2.msra.mxu0 0.0
    %6690 = vmatprep.subr.mxu0 0.0
    %6691 = vmatpush2.msra.mxu0 0.0
    %6692 = vmatprep.subr.mxu0 0.0
    %6693 = vmatpush2.msra.mxu0 0.0
    %6694 = vmatprep.subr.mxu0 0.0
    %6695 = vmatpush2.msra.mxu0 0.0
    %6696 = vmatprep.subr.mxu0 0.0
    %6697 = vmatpush2.msra.mxu0 0.0
    %6698 = vmatprep.subr.mxu0 0.0
    %6699 = vmatpush2.msra.mxu0 0.0
    %6700 = vmatprep.subr.mxu0 0.0
    %6701 = vmatpush2.msra.mxu0 0.0
    %6702 = vmatprep.subr.mxu0 0.0
    %6703 = vmatpush2.msra.mxu0 0.0
    %6704 = vmatprep.subr.mxu0 0.0
    %6705 = vmatpush2.msra.mxu0 0.0
    %6706 = vmatprep.subr.mxu0 0.0
    %6707 = vmatpush2.msra.mxu0 0.0
    %6708 = vmatprep.subr.mxu0 0.0
    %6709 = vmatpush2.msra.mxu0 0.0
    %6710 = vmatprep.mubr.f32.mxu0 0.0
    %6711 = vmatmul.mubr.f32.gmra.mxu0 %v6641
    %v6712 = vpop.f32.mrf.mxu0
    %v6713 = vadd.f32 %v6639, %v6712
    %v6714 = vpop.f32.mrf.mxu0
    %6715 = vmatprep.mubr.f32.mxu0 0.0
    %6716 = vmatmul.mubr.f32.gmra.mxu0 %v6644
    %v6717 = vpop.f32.mrf.mxu0
    %v6718 = vadd.f32 %v6639, %v6717
    %v6719 = vpop.f32.mrf.mxu0
    %6720 = vdwg.mxu0
    %v6721 = vadd.f32 %v6713, %v5145
    %v6722 = vadd.f32 %v6718, %v5146
    %v6723 = vld [vmem:[#allocation10 + $0x5] sm:$0x1]
    %v6724 = vsel %vm115, %v6721, 0.0
    %6725 = vadd.xlane.f32.xlu0 %v6724
    %v6726 = vpop.xlane.xlu0 %6725
    %v6727 = vsel %vm115, %v6722, 0.0
    %6728 = vadd.xlane.f32.xlu0 %v6727
    %v6729 = vpop.xlane.xlu0 %6728
    %v6730 = vmul.f32 %v6726, %v204
    %v6731 = vmul.f32 %v6729, %v204
    %v6732 = vsub.f32 %v6721, %v6730
    %v6733 = vsub.f32 %v6722, %v6731
    %v6734 = vmul.f32 %v6732, %v6732
    %v6735 = vmul.f32 %v6733, %v6733
    %v6736 = vsel %vm115, %v6734, 0.0
    %6737 = vadd.xlane.f32.xlu0 %v6736
    %v6738 = vpop.xlane.xlu0 %6737
    %v6739 = vsel %vm115, %v6735, 0.0
    %6740 = vadd.xlane.f32.xlu0 %v6739
    %v6741 = vpop.xlane.xlu0 %6740
    %v6742 = vmul.f32 %v6738, %v204
    %v6743 = vmul.f32 %v6741, %v204
    %v6744 = vadd.f32 %v6742, 1e-05
    %v6745 = vadd.f32 %v6743, 1e-05
    %v6746 = vrsqrt.pop %v6744
    %v6747 = vrsqrt.pop %v6745
    %v6748 = vmul.f32 %v6732, %v6746
    %v6749 = vmul.f32 %v6733, %v6747
    %v6750 = vlaneseq
    %v6751 = vshrl.u32 %v6750, 7
    %v6752 = vsub.s32 0, %v6751
    %v6753 = vrot.slane %v6723, %v6752
    %v6754 = vmul.f32 %v6748, %v6753
    %v6755 = vmul.f32 %v6749, %v6753
    %s6756 = scalar_lea.vmem [#allocation8], 32
    %v6757 = vld [vmem:[%s6756] sm:$0xff]
    %v6758 = vld [vmem:[%s6756 + $0x8] sm:$0xff]
    %v6759 = vld [vmem:[%s6756 + $0x10] sm:$0xff]
    %v6760 = vld [vmem:[%s6756 + $0x18] sm:$0xff]
    %v6761 = vld [vmem:[#allocation10 + $0xf] sm:$0x1]
    %v6762 = vlaneseq
    %v6763 = vshrl.u32 %v6762, 7
    %v6764 = vsub.s32 0, %v6763
    %v6765 = vrot.slane %v6761, %v6764
    %v6767 = vsel %vm115, %v6754, 0
    %v6770 = vsel %vm115, %v6755, 0
    %6772 = vmatprep.subr.mxu0 0.0
    %6773 = vmatpush1.msra.mxu0 0.0
    %6774 = vmatprep.subr.mxu0 0.0
    %6775 = vmatpush1.msra.mxu0 0.0
    %6776 = vmatprep.subr.mxu0 0.0
    %6777 = vmatpush1.msra.mxu0 0.0
    %6778 = vmatprep.subr.mxu0 0.0
    %6779 = vmatpush1.msra.mxu0 0.0
    %6780 = vmatprep.subr.mxu0 0.0
    %6781 = vmatpush1.msra.mxu0 0.0
    %6782 = vmatprep.subr.mxu0 0.0
    %6783 = vmatpush1.msra.mxu0 0.0
    %6784 = vmatprep.subr.mxu0 0.0
    %6785 = vmatpush1.msra.mxu0 0.0
    %6786 = vmatprep.subr.mxu0 0.0
    %6787 = vmatpush1.msra.mxu0 0.0
    %6788 = vmatprep.subr.mxu0 0.0
    %6789 = vmatpush1.msra.mxu0 0.0
    %6790 = vmatprep.subr.mxu0 0.0
    %6791 = vmatpush1.msra.mxu0 0.0
    %6792 = vmatprep.subr.mxu0 0.0
    %6793 = vmatpush1.msra.mxu0 0.0
    %6794 = vmatprep.subr.mxu0 0.0
    %6795 = vmatpush1.msra.mxu0 0.0
    %6796 = vmatprep.subr.mxu0 0.0
    %6797 = vmatpush1.msra.mxu0 %v6760
    %6798 = vmatprep.subr.mxu0 0.0
    %6799 = vmatpush1.msra.mxu0 %v6759
    %6800 = vmatprep.subr.mxu0 0.0
    %6801 = vmatpush1.msra.mxu0 %v6758
    %6802 = vmatprep.subr.mxu0 0.0
    %6803 = vmatpush1.msra.mxu0 %v6757
    %6804 = vmatprep.subr.mxu0 0.0
    %6805 = vmatpush2.msra.mxu0 0.0
    %6806 = vmatprep.subr.mxu0 0.0
    %6807 = vmatpush2.msra.mxu0 0.0
    %6808 = vmatprep.subr.mxu0 0.0
    %6809 = vmatpush2.msra.mxu0 0.0
    %6810 = vmatprep.subr.mxu0 0.0
    %6811 = vmatpush2.msra.mxu0 0.0
    %6812 = vmatprep.subr.mxu0 0.0
    %6813 = vmatpush2.msra.mxu0 0.0
    %6814 = vmatprep.subr.mxu0 0.0
    %6815 = vmatpush2.msra.mxu0 0.0
    %6816 = vmatprep.subr.mxu0 0.0
    %6817 = vmatpush2.msra.mxu0 0.0
    %6818 = vmatprep.subr.mxu0 0.0
    %6819 = vmatpush2.msra.mxu0 0.0
    %6820 = vmatprep.subr.mxu0 0.0
    %6821 = vmatpush2.msra.mxu0 0.0
    %6822 = vmatprep.subr.mxu0 0.0
    %6823 = vmatpush2.msra.mxu0 0.0
    %6824 = vmatprep.subr.mxu0 0.0
    %6825 = vmatpush2.msra.mxu0 0.0
    %6826 = vmatprep.subr.mxu0 0.0
    %6827 = vmatpush2.msra.mxu0 0.0
    %6828 = vmatprep.subr.mxu0 0.0
    %6829 = vmatpush2.msra.mxu0 0.0
    %6830 = vmatprep.subr.mxu0 0.0
    %6831 = vmatpush2.msra.mxu0 0.0
    %6832 = vmatprep.subr.mxu0 0.0
    %6833 = vmatpush2.msra.mxu0 0.0
    %6834 = vmatprep.subr.mxu0 0.0
    %6835 = vmatpush2.msra.mxu0 0.0
    %6836 = vmatprep.mubr.f32.mxu0 0.0
    %6837 = vmatmul.mubr.f32.gmra.mxu0 %v6767
    %v6838 = vpop.f32.mrf.mxu0
    %v6839 = vadd.f32 %v6765, %v6838
    %v6840 = vpop.f32.mrf.mxu0
    %6841 = vmatprep.mubr.f32.mxu0 0.0
    %6842 = vmatmul.mubr.f32.gmra.mxu0 %v6770
    %v6843 = vpop.f32.mrf.mxu0
    %v6844 = vadd.f32 %v6765, %v6843
    %v6845 = vpop.f32.mrf.mxu0
    %6846 = vdwg.mxu0
    %v6847 = vmax.f32 %v6839, 0.0
    %v6848 = vmax.f32 %v6844, 0.0
    %s6849 = scalar_lea.vmem %s8, 128
    %v6850 = vld [vmem:[%s6849] sm:$0xff]
    %v6851 = vld [vmem:[%s6849 + $0x8] sm:$0xff]
    %v6852 = vld [vmem:[%s6849 + $0x10] sm:$0xff]
    %v6853 = vld [vmem:[%s6849 + $0x18] sm:$0xff]
    %v6854 = vld [vmem:[%s6849 + $0x20] sm:$0xff]
    %v6855 = vld [vmem:[%s6849 + $0x28] sm:$0xff]
    %v6856 = vld [vmem:[%s6849 + $0x30] sm:$0xff]
    %v6857 = vld [vmem:[%s6849 + $0x38] sm:$0xff]
    %v6858 = vld [vmem:[%s6849 + $0x40] sm:$0xff]
    %v6859 = vld [vmem:[%s6849 + $0x48] sm:$0xff]
    %v6860 = vld [vmem:[%s6849 + $0x50] sm:$0xff]
    %v6861 = vld [vmem:[%s6849 + $0x58] sm:$0xff]
    %v6862 = vld [vmem:[%s6849 + $0x60] sm:$0xff]
    %v6863 = vld [vmem:[%s6849 + $0x68] sm:$0xff]
    %v6864 = vld [vmem:[%s6849 + $0x70] sm:$0xff]
    %v6865 = vld [vmem:[%s6849 + $0x78] sm:$0xff]
    %v6866 = vld [vmem:[#allocation10 + $0xc] sm:$0x1]
    %v6867 = vlaneseq
    %v6868 = vshrl.u32 %v6867, 7
    %v6869 = vsub.s32 0, %v6868
    %v6870 = vrot.slane %v6866, %v6869
    %6871 = vmatprep.subr.mxu0 0.0
    %6872 = vmatpush1.msra.mxu0 %v6865
    %6873 = vmatprep.subr.mxu0 0.0
    %6874 = vmatpush1.msra.mxu0 %v6864
    %6875 = vmatprep.subr.mxu0 0.0
    %6876 = vmatpush1.msra.mxu0 %v6863
    %6877 = vmatprep.subr.mxu0 0.0
    %6878 = vmatpush1.msra.mxu0 %v6862
    %6879 = vmatprep.subr.mxu0 0.0
    %6880 = vmatpush1.msra.mxu0 %v6861
    %6881 = vmatprep.subr.mxu0 0.0
    %6882 = vmatpush1.msra.mxu0 %v6860
    %6883 = vmatprep.subr.mxu0 0.0
    %6884 = vmatpush1.msra.mxu0 %v6859
    %6885 = vmatprep.subr.mxu0 0.0
    %6886 = vmatpush1.msra.mxu0 %v6858
    %6887 = vmatprep.subr.mxu0 0.0
    %6888 = vmatpush1.msra.mxu0 %v6857
    %6889 = vmatprep.subr.mxu0 0.0
    %6890 = vmatpush1.msra.mxu0 %v6856
    %6891 = vmatprep.subr.mxu0 0.0
    %6892 = vmatpush1.msra.mxu0 %v6855
    %6893 = vmatprep.subr.mxu0 0.0
    %6894 = vmatpush1.msra.mxu0 %v6854
    %6895 = vmatprep.subr.mxu0 0.0
    %6896 = vmatpush1.msra.mxu0 %v6853
    %6897 = vmatprep.subr.mxu0 0.0
    %6898 = vmatpush1.msra.mxu0 %v6852
    %6899 = vmatprep.subr.mxu0 0.0
    %6900 = vmatpush1.msra.mxu0 %v6851
    %6901 = vmatprep.subr.mxu0 0.0
    %6902 = vmatpush1.msra.mxu0 %v6850
    %6903 = vmatprep.subr.mxu0 0.0
    %6904 = vmatpush2.msra.mxu0 0.0
    %6905 = vmatprep.subr.mxu0 0.0
    %6906 = vmatpush2.msra.mxu0 0.0
    %6907 = vmatprep.subr.mxu0 0.0
    %6908 = vmatpush2.msra.mxu0 0.0
    %6909 = vmatprep.subr.mxu0 0.0
    %6910 = vmatpush2.msra.mxu0 0.0
    %6911 = vmatprep.subr.mxu0 0.0
    %6912 = vmatpush2.msra.mxu0 0.0
    %6913 = vmatprep.subr.mxu0 0.0
    %6914 = vmatpush2.msra.mxu0 0.0
    %6915 = vmatprep.subr.mxu0 0.0
    %6916 = vmatpush2.msra.mxu0 0.0
    %6917 = vmatprep.subr.mxu0 0.0
    %6918 = vmatpush2.msra.mxu0 0.0
    %6919 = vmatprep.subr.mxu0 0.0
    %6920 = vmatpush2.msra.mxu0 0.0
    %6921 = vmatprep.subr.mxu0 0.0
    %6922 = vmatpush2.msra.mxu0 0.0
    %6923 = vmatprep.subr.mxu0 0.0
    %6924 = vmatpush2.msra.mxu0 0.0
    %6925 = vmatprep.subr.mxu0 0.0
    %6926 = vmatpush2.msra.mxu0 0.0
    %6927 = vmatprep.subr.mxu0 0.0
    %6928 = vmatpush2.msra.mxu0 0.0
    %6929 = vmatprep.subr.mxu0 0.0
    %6930 = vmatpush2.msra.mxu0 0.0
    %6931 = vmatprep.subr.mxu0 0.0
    %6932 = vmatpush2.msra.mxu0 0.0
    %6933 = vmatprep.subr.mxu0 0.0
    %6934 = vmatpush2.msra.mxu0 0.0
    %6935 = vmatprep.mubr.f32.mxu0 0.0
    %6936 = vmatmul.mubr.f32.gmra.mxu0 %v6847
    %v6937 = vpop.f32.mrf.mxu0
    %v6938 = vadd.f32 %v6870, %v6937
    %v6939 = vpop.f32.mrf.mxu0
    %6940 = vmatprep.mubr.f32.mxu0 0.0
    %6941 = vmatmul.mubr.f32.gmra.mxu0 %v6848
    %v6942 = vpop.f32.mrf.mxu0
    %v6943 = vadd.f32 %v6870, %v6942
    %v6944 = vpop.f32.mrf.mxu0
    %6945 = vdwg.mxu0
    %v6946 = vadd.f32 %v6938, %v6721
    %v6947 = vadd.f32 %v6943, %v6722
    %v6948 = vld [vmem:[#allocation10 + $0x6] sm:$0x1]
    %v6949 = vsel %vm115, %v6946, 0.0
    %6950 = vadd.xlane.f32.xlu0 %v6949
    %v6951 = vpop.xlane.xlu0 %6950
    %v6952 = vsel %vm115, %v6947, 0.0
    %6953 = vadd.xlane.f32.xlu0 %v6952
    %v6954 = vpop.xlane.xlu0 %6953
    %v6955 = vmul.f32 %v6951, %v204
    %v6956 = vmul.f32 %v6954, %v204
    %v6957 = vsub.f32 %v6946, %v6955
    %v6958 = vsub.f32 %v6947, %v6956
    %v6959 = vmul.f32 %v6957, %v6957
    %v6960 = vmul.f32 %v6958, %v6958
    %v6961 = vsel %vm115, %v6959, 0.0
    %6962 = vadd.xlane.f32.xlu0 %v6961
    %v6963 = vpop.xlane.xlu0 %6962
    %v6964 = vsel %vm115, %v6960, 0.0
    %6965 = vadd.xlane.f32.xlu0 %v6964
    %v6966 = vpop.xlane.xlu0 %6965
    %v6967 = vmul.f32 %v6963, %v204
    %v6968 = vmul.f32 %v6966, %v204
    %v6969 = vadd.f32 %v6967, 1e-05
    %v6970 = vadd.f32 %v6968, 1e-05
    %v6971 = vrsqrt.pop %v6969
    %v6972 = vrsqrt.pop %v6970
    %v6973 = vmul.f32 %v6957, %v6971
    %v6974 = vmul.f32 %v6958, %v6972
    %v6975 = vlaneseq
    %v6976 = vshrl.u32 %v6975, 7
    %v6977 = vsub.s32 0, %v6976
    %v6978 = vrot.slane %v6948, %v6977
    %v6979 = vmul.f32 %v6973, %v6978
    %v6980 = vmul.f32 %v6974, %v6978
    %s6981 = scalar_lea.vmem %s6, 128
    %v6982 = vld [vmem:[%s6981] sm:$0xff]
    %v6983 = vld [vmem:[%s6981 + $0x8] sm:$0xff]
    %v6984 = vld [vmem:[%s6981 + $0x10] sm:$0xff]
    %v6985 = vld [vmem:[%s6981 + $0x18] sm:$0xff]
    %v6986 = vld [vmem:[#allocation10 + $0xd] sm:$0x1]
    %v6987 = vlaneseq
    %v6988 = vshrl.u32 %v6987, 7
    %v6989 = vsub.s32 0, %v6988
    %v6990 = vrot.slane %v6986, %v6989
    %v6992 = vsel %vm115, %v6979, 0
    %v6995 = vsel %vm115, %v6980, 0
    %6997 = vmatprep.subr.mxu0 0.0
    %6998 = vmatpush1.msra.mxu0 0.0
    %6999 = vmatprep.subr.mxu0 0.0
    %7000 = vmatpush1.msra.mxu0 0.0
    %7001 = vmatprep.subr.mxu0 0.0
    %7002 = vmatpush1.msra.mxu0 0.0
    %7003 = vmatprep.subr.mxu0 0.0
    %7004 = vmatpush1.msra.mxu0 0.0
    %7005 = vmatprep.subr.mxu0 0.0
    %7006 = vmatpush1.msra.mxu0 0.0
    %7007 = vmatprep.subr.mxu0 0.0
    %7008 = vmatpush1.msra.mxu0 0.0
    %7009 = vmatprep.subr.mxu0 0.0
    %7010 = vmatpush1.msra.mxu0 0.0
    %7011 = vmatprep.subr.mxu0 0.0
    %7012 = vmatpush1.msra.mxu0 0.0
    %7013 = vmatprep.subr.mxu0 0.0
    %7014 = vmatpush1.msra.mxu0 0.0
    %7015 = vmatprep.subr.mxu0 0.0
    %7016 = vmatpush1.msra.mxu0 0.0
    %7017 = vmatprep.subr.mxu0 0.0
    %7018 = vmatpush1.msra.mxu0 0.0
    %7019 = vmatprep.subr.mxu0 0.0
    %7020 = vmatpush1.msra.mxu0 0.0
    %7021 = vmatprep.subr.mxu0 0.0
    %7022 = vmatpush1.msra.mxu0 %v6985
    %7023 = vmatprep.subr.mxu0 0.0
    %7024 = vmatpush1.msra.mxu0 %v6984
    %7025 = vmatprep.subr.mxu0 0.0
    %7026 = vmatpush1.msra.mxu0 %v6983
    %7027 = vmatprep.subr.mxu0 0.0
    %7028 = vmatpush1.msra.mxu0 %v6982
    %7029 = vmatprep.subr.mxu0 0.0
    %7030 = vmatpush2.msra.mxu0 0.0
    %7031 = vmatprep.subr.mxu0 0.0
    %7032 = vmatpush2.msra.mxu0 0.0
    %7033 = vmatprep.subr.mxu0 0.0
    %7034 = vmatpush2.msra.mxu0 0.0
    %7035 = vmatprep.subr.mxu0 0.0
    %7036 = vmatpush2.msra.mxu0 0.0
    %7037 = vmatprep.subr.mxu0 0.0
    %7038 = vmatpush2.msra.mxu0 0.0
    %7039 = vmatprep.subr.mxu0 0.0
    %7040 = vmatpush2.msra.mxu0 0.0
    %7041 = vmatprep.subr.mxu0 0.0
    %7042 = vmatpush2.msra.mxu0 0.0
    %7043 = vmatprep.subr.mxu0 0.0
    %7044 = vmatpush2.msra.mxu0 0.0
    %7045 = vmatprep.subr.mxu0 0.0
    %7046 = vmatpush2.msra.mxu0 0.0
    %7047 = vmatprep.subr.mxu0 0.0
    %7048 = vmatpush2.msra.mxu0 0.0
    %7049 = vmatprep.subr.mxu0 0.0
    %7050 = vmatpush2.msra.mxu0 0.0
    %7051 = vmatprep.subr.mxu0 0.0
    %7052 = vmatpush2.msra.mxu0 0.0
    %7053 = vmatprep.subr.mxu0 0.0
    %7054 = vmatpush2.msra.mxu0 0.0
    %7055 = vmatprep.subr.mxu0 0.0
    %7056 = vmatpush2.msra.mxu0 0.0
    %7057 = vmatprep.subr.mxu0 0.0
    %7058 = vmatpush2.msra.mxu0 0.0
    %7059 = vmatprep.subr.mxu0 0.0
    %7060 = vmatpush2.msra.mxu0 0.0
    %7061 = vmatprep.mubr.f32.mxu0 0.0
    %7062 = vmatmul.mubr.f32.gmra.mxu0 %v6992
    %v7063 = vpop.f32.mrf.mxu0
    %v7064 = vadd.f32 %v6990, %v7063
    %v7065 = vpop.f32.mrf.mxu0
    %7066 = vmatprep.mubr.f32.mxu0 0.0
    %7067 = vmatmul.mubr.f32.gmra.mxu0 %v6995
    %v7068 = vpop.f32.mrf.mxu0
    %v7069 = vadd.f32 %v6990, %v7068
    %v7070 = vpop.f32.mrf.mxu0
    %7071 = vdwg.mxu0
    %7072 = vst.msk [vmem:[#allocation11] sm:$0xff] %vm115, %v7064
    %7073 = vst.msk [vmem:[#allocation11 + $0x8] sm:$0xff] %vm115, %v7069
    // Predicated region
    $region62: #{tpu_custom_call.1} parent=1 // pred_check
      _
    $region63: #{tpu_custom_call.1} parent=1 // pred_check_branch
      %7075 = sbr.rel (0) target = $region65
    $region64: #{tpu_custom_call.1} parent=1 // pred_region
      %s7077 = ssub.s32 256, 256
      %7078 = vsyncadd [#allocation4], %s7077
      %s7079 = sshll.u32 [#allocation11], 4
      %s7080 = int_to_ptr.vmem [resolvable:$true] %s7079
      %7085 = dma.vmem_to_hbm [thread:$0]  %s7080, 256, %s10, [#allocation4], 128, 128, 8
    $region65: #{tpu_custom_call.1} parent=1 // pred_fallthru
      _
    // Predicated region
    $region66: #{tpu_custom_call.1} parent=1 // pred_check
      _
    $region67: #{tpu_custom_call.1} parent=1 // pred_check_branch
      %7087 = sbr.rel (0) target = $region69
    $region68: #{tpu_custom_call.1} parent=1 // pred_region
      %7088 = dma.done [#allocation4], 256
    $region69: #{tpu_custom_call.1} parent=1 // pred_fallthru
      _
    %7089 = vsyncpa [#allocation3], 1
    %7090 = vsyncpa [#allocation6], 1
    %7091 = vsyncpa [#allocation9], 1
    %7092 = vsyncpa [#allocation4], 1

</llo_original>
